<compile_context>
chip_gen: v7x
topology: tpu7x:2x2x1
jax: 0.10.0
libtpu: 0.0.40
codegen_flags: <defaults>
</compile_context>

<pallas_src>
import jax
import jax.numpy as jnp
from jax.experimental import pallas as pl
from jax.experimental.pallas import tpu as pltpu

ENDO_IN = 32     # stub endo_model input feature dim
MRE_IN = 32      # stub mre_model input feature dim
FEAT = 768       # endo / mre feature dim
TAB = 49         # tabular feature dim
OUT = 2          # logits
OUT_PAD = 128    # lane-dense padded output width


def _fused_kernel(
    endo_x_ref, mre_x_ref, tab_x_ref,
    endo_w_ref, endo_b_ref, mre_w_ref, mre_b_ref,
    ea_w_ref, ea_b_ref, ma_w_ref, ma_b_ref, ta_w_ref, ta_b_ref,
    w1em_ref, w1t_ref, b1_ref,
    w2_ref, b2_ref, w3_ref, b3_ref, w4_ref, b4_ref, w5_ref, b5_ref,
    out_ref,
):
    f32 = jnp.float32
    bf16 = jnp.bfloat16

    # --- stub backbones: Linear(in, 768); bf16 MXU operands, f32 accumulation ---
    endo_feat = (jnp.dot(endo_x_ref[...].astype(bf16), endo_w_ref[...],
                         preferred_element_type=f32) + endo_b_ref[...])
    mre_feat = (jnp.dot(mre_x_ref[...].astype(bf16), mre_w_ref[...],
                        preferred_element_type=f32) + mre_b_ref[...])
    tab_feat = tab_x_ref[...]

    # --- endo/mre attention: sigmoid(Linear(768 -> 1)) * features ---
    # Linear(768,1) done as a VPU multiply + lane reduce (avoids an N=1 MXU matmul
    # and the (768,1) lane-padded weight allocation). All elementwise math in f32.
    ea_s = jax.nn.sigmoid(
        jnp.sum(endo_feat * ea_w_ref[...], axis=-1, keepdims=True) + ea_b_ref[...])
    endo_att = ea_s * endo_feat                       # [B,1] * [B,768]
    ma_s = jax.nn.sigmoid(
        jnp.sum(mre_feat * ma_w_ref[...], axis=-1, keepdims=True) + ma_b_ref[...])
    mre_att = ma_s * mre_feat

    # --- tabular attention: softmax(Linear(49 -> 49), dim=1) * features (f32) ---
    ta_s = jnp.dot(tab_feat, ta_w_ref[...], preferred_element_type=f32) + ta_b_ref[...]
    ta_s = ta_s - jnp.max(ta_s, axis=-1, keepdims=True)
    ta_e = jnp.exp(ta_s)
    ta_p = ta_e / jnp.sum(ta_e, axis=-1, keepdims=True)
    tab_att = ta_p * tab_feat                         # [B,49]

    # --- late fusion + classifier ---
    # concat([endo_att, mre_att, tab_att]) @ W1.T is computed as ONE K=1536 matmul
    # for the endo|mre halves plus a small K=49 matmul for the tabular part.
    em = jnp.concatenate([endo_att, mre_att], axis=-1).astype(bf16)   # [B,1536]
    h = (jnp.dot(em, w1em_ref[...], preferred_element_type=f32)
         + jnp.dot(tab_att.astype(bf16), w1t_ref[...], preferred_element_type=f32)
         + b1_ref[...])
    h = jnp.maximum(h, 0.0)                           # ReLU (Dropout = identity, eval)

    h = jnp.maximum(jnp.dot(h.astype(bf16), w2_ref[...],
                            preferred_element_type=f32) + b2_ref[...], 0.0)
    h = jnp.maximum(jnp.dot(h.astype(bf16), w3_ref[...],
                            preferred_element_type=f32) + b3_ref[...], 0.0)
    h = jnp.maximum(jnp.dot(h.astype(bf16), w4_ref[...],
                            preferred_element_type=f32) + b4_ref[...], 0.0)
    # Final layer padded to a lane-dense 128-wide output (zero columns beyond 2).
    out_ref[...] = (jnp.dot(h.astype(bf16), w5_ref[...],
                            preferred_element_type=f32) + b5_ref[...])


def _round_up(x, m):
    return (x + m - 1) // m * m


def _pad_rows(x, rows):
    b = x.shape[0]
    if b == rows:
        return x
    return jnp.pad(x, ((0, rows - b), (0, 0)))


def multimodal_forward(endo_data, mre_data, tabular_data, params):
    """Runs the fused Pallas kernel. Returns logits of shape [B, 2]."""
    B = endo_data.shape[0]
    # Batch tile: multiple of 8 sublanes, capped at 256 rows per grid step.
    TB = min(256, _round_up(B, 8))
    Bp = _round_up(B, TB)

    endo_p = _pad_rows(endo_data, Bp)
    mre_p = _pad_rows(mre_data, Bp)
    tab_p = _pad_rows(tabular_data, Bp)

    args = (
        endo_p, mre_p, tab_p,
        params["endo_w"], params["endo_b"], params["mre_w"], params["mre_b"],
        params["ea_w"], params["ea_b"], params["ma_w"], params["ma_b"],
        params["ta_w"], params["ta_b"],
        params["w1em"], params["w1t"], params["b1"],
        params["w2"], params["b2"], params["w3"], params["b3"],
        params["w4"], params["b4"], params["w5p"], params["b5p"],
    )

    grid = (Bp // TB,)

    def act_spec(d):
        # activations: tiled along (parallel) batch axis
        return pl.BlockSpec((TB, d), lambda i: (i, 0))

    def w_spec(a):
        # weights/biases: full array, constant index_map -> stays VMEM-resident
        return pl.BlockSpec(a.shape, lambda i: (0, 0))

    in_specs = ([act_spec(ENDO_IN), act_spec(MRE_IN), act_spec(TAB)]
                + [w_spec(a) for a in args[3:]])
    out_specs = pl.BlockSpec((TB, OUT_PAD), lambda i: (i, 0))

    flops = 2 * Bp * (ENDO_IN * FEAT + MRE_IN * FEAT + TAB * TAB
                      + 2 * FEAT * FEAT + TAB * FEAT
                      + FEAT * 512 + 512 * 256 + 256 * 128 + 128 * OUT_PAD)
    transcendentals = Bp * (2 + TAB)   # 2 sigmoids + 49 exps per row
    bytes_accessed = (sum(int(a.size) * a.dtype.itemsize for a in args)
                      + Bp * OUT_PAD * 4)

    out = pl.pallas_call(
        _fused_kernel,
        out_shape=jax.ShapeDtypeStruct((Bp, OUT_PAD), jnp.float32),
        grid=grid,
        in_specs=in_specs,
        out_specs=out_specs,
        compiler_params=pltpu.CompilerParams(
            dimension_semantics=("parallel",)),
        cost_estimate=pl.CostEstimate(flops=flops,
                                      transcendentals=transcendentals,
                                      bytes_accessed=bytes_accessed),
    )(*args)
    return out[:B, :OUT]


def make_params(key):
    """Deterministic parameter init. Linear weights stored transposed: [in, out].

    MXU weights are stored in bfloat16 (f32 accumulation in the kernel); the tiny
    gate weights / all biases stay f32 (VPU/EUP elementwise path)."""
    bf16 = jnp.bfloat16

    def lin(k, fan_in, fan_out):
        kw, kb = jax.random.split(k)
        scale = 1.0 / jnp.sqrt(jnp.float32(fan_in))
        w = jax.random.uniform(kw, (fan_in, fan_out), jnp.float32, -scale, scale)
        b = jax.random.uniform(kb, (1, fan_out), jnp.float32, -scale, scale)
        return w, b

    ks = jax.random.split(key, 10)
    p = {}
    w, b = lin(ks[0], ENDO_IN, FEAT); p["endo_w"] = w.astype(bf16); p["endo_b"] = b
    w, b = lin(ks[1], MRE_IN, FEAT); p["mre_w"] = w.astype(bf16); p["mre_b"] = b
    w, b = lin(ks[2], FEAT, 1); p["ea_w"] = w.T; p["ea_b"] = b        # (1,768),(1,1)
    w, b = lin(ks[3], FEAT, 1); p["ma_w"] = w.T; p["ma_b"] = b        # (1,768),(1,1)
    w, b = lin(ks[4], TAB, TAB); p["ta_w"] = w; p["ta_b"] = b         # f32 49x49
    # classifier Linear(768*2+49, 768): split input dim into (endo|mre) and tab.
    w1, p["b1"] = lin(ks[5], 2 * FEAT + TAB, FEAT)
    p["w1em"] = w1[:2 * FEAT, :].astype(bf16)
    p["w1t"] = w1[2 * FEAT:, :].astype(bf16)
    w, b = lin(ks[6], 768, 512); p["w2"] = w.astype(bf16); p["b2"] = b
    w, b = lin(ks[7], 512, 256); p["w3"] = w.astype(bf16); p["b3"] = b
    w, b = lin(ks[8], 256, 128); p["w4"] = w.astype(bf16); p["b4"] = b
    w, b = lin(ks[9], 128, OUT)
    p["w5p"] = (jnp.zeros((128, OUT_PAD), jnp.float32)
                .at[:, :OUT].set(w).astype(bf16))                     # lane-dense pad
    p["b5p"] = jnp.zeros((1, OUT_PAD), jnp.float32).at[:, :OUT].set(b)
    return p


def reference_forward(endo_data, mre_data, tabular_data, p):
    """Pure-JAX reference matching the PyTorch module semantics (eval mode),
    mirroring the kernel's bf16-operand / f32-accumulation matmuls."""
    f32 = jnp.float32
    hi = jax.lax.Precision.HIGHEST

    def bdot(x, w_bf16):
        return jnp.dot(x.astype(jnp.bfloat16).astype(f32),
                       w_bf16.astype(f32), precision=hi)

    endo_feat = bdot(endo_data, p["endo_w"]) + p["endo_b"]
    mre_feat = bdot(mre_data, p["mre_w"]) + p["mre_b"]
    endo_att = jax.nn.sigmoid(
        jnp.sum(endo_feat * p["ea_w"], axis=-1, keepdims=True) + p["ea_b"]) * endo_feat
    mre_att = jax.nn.sigmoid(
        jnp.sum(mre_feat * p["ma_w"], axis=-1, keepdims=True) + p["ma_b"]) * mre_feat
    ta = jnp.dot(tabular_data, p["ta_w"], precision=hi) + p["ta_b"]
    tab_att = jax.nn.softmax(ta, axis=1) * tabular_data

    combined = jnp.concatenate([endo_att, mre_att], axis=1)
    h = jax.nn.relu(bdot(combined, p["w1em"]) + bdot(tab_att, p["w1t"]) + p["b1"])
    h = jax.nn.relu(bdot(h, p["w2"]) + p["b2"])
    h = jax.nn.relu(bdot(h, p["w3"]) + p["b3"])
    h = jax.nn.relu(bdot(h, p["w4"]) + p["b4"])
    out = bdot(h, p["w5p"]) + p["b5p"]
    return out[:, :OUT]


if __name__ == "__main__":
    key = jax.random.PRNGKey(0)
    k_endo, k_mre, k_tab, k_params = jax.random.split(key, 4)

    B = 2
    endo_data = jax.random.normal(k_endo, (B, ENDO_IN), jnp.float32)
    mre_data = jax.random.normal(k_mre, (B, MRE_IN), jnp.float32)
    tabular_data = jax.random.normal(k_tab, (B, TAB), jnp.float32)
    params = make_params(k_params)

    out = multimodal_forward(endo_data, mre_data, tabular_data, params)
    out = jax.block_until_ready(out)

    ref = reference_forward(endo_data, mre_data, tabular_data, params)
    assert out.shape == (B, OUT), out.shape
    assert jnp.allclose(out, ref, atol=5e-3, rtol=5e-3), (out, ref)

    print("KERNEL_OK")
</pallas_src>

<mosaic_0001>
module attributes {stable_mosaic.version = 11 : i64} {
  func.func @_fused_kernel(%arg0: i32, %arg1: memref<8x32xf32, #tpu.memory_space<vmem>>, %arg2: memref<8x32xf32, #tpu.memory_space<vmem>>, %arg3: memref<8x49xf32, #tpu.memory_space<vmem>>, %arg4: memref<32x768xbf16, #tpu.memory_space<vmem>>, %arg5: memref<1x768xf32, #tpu.memory_space<vmem>>, %arg6: memref<32x768xbf16, #tpu.memory_space<vmem>>, %arg7: memref<1x768xf32, #tpu.memory_space<vmem>>, %arg8: memref<1x768xf32, #tpu.memory_space<vmem>>, %arg9: memref<1x1xf32, #tpu.memory_space<vmem>>, %arg10: memref<1x768xf32, #tpu.memory_space<vmem>>, %arg11: memref<1x1xf32, #tpu.memory_space<vmem>>, %arg12: memref<49x49xf32, #tpu.memory_space<vmem>>, %arg13: memref<1x49xf32, #tpu.memory_space<vmem>>, %arg14: memref<1536x768xbf16, #tpu.memory_space<vmem>>, %arg15: memref<49x768xbf16, #tpu.memory_space<vmem>>, %arg16: memref<1x768xf32, #tpu.memory_space<vmem>>, %arg17: memref<768x512xbf16, #tpu.memory_space<vmem>>, %arg18: memref<1x512xf32, #tpu.memory_space<vmem>>, %arg19: memref<512x256xbf16, #tpu.memory_space<vmem>>, %arg20: memref<1x256xf32, #tpu.memory_space<vmem>>, %arg21: memref<256x128xbf16, #tpu.memory_space<vmem>>, %arg22: memref<1x128xf32, #tpu.memory_space<vmem>>, %arg23: memref<128x128xbf16, #tpu.memory_space<vmem>>, %arg24: memref<1x128xf32, #tpu.memory_space<vmem>>, %arg25: memref<8x128xf32, #tpu.memory_space<vmem>>) attributes {dimension_semantics = [#tpu.dimension_semantics<parallel>], iteration_bounds = array<i64: 1>, scalar_prefetch = 0 : i64, scratch_operands = 0 : i64, tpu.core_type = #tpu.core_type<tc>, window_params = [{transform_indices = @transform_0, window_bounds = array<i64: 8, 32>}, {transform_indices = @transform_1, window_bounds = array<i64: 8, 32>}, {transform_indices = @transform_2, window_bounds = array<i64: 8, 49>}, {pipeline_mode = #tpu.pipeline_mode<synchronous>, transform_indices = @transform_3, window_bounds = array<i64: 32, 768>}, {pipeline_mode = #tpu.pipeline_mode<synchronous>, transform_indices = @transform_4, window_bounds = array<i64: 1, 768>}, {pipeline_mode = #tpu.pipeline_mode<synchronous>, transform_indices = @transform_5, window_bounds = array<i64: 32, 768>}, {pipeline_mode = #tpu.pipeline_mode<synchronous>, transform_indices = @transform_6, window_bounds = array<i64: 1, 768>}, {pipeline_mode = #tpu.pipeline_mode<synchronous>, transform_indices = @transform_7, window_bounds = array<i64: 1, 768>}, {pipeline_mode = #tpu.pipeline_mode<synchronous>, transform_indices = @transform_8, window_bounds = array<i64: 1, 1>}, {pipeline_mode = #tpu.pipeline_mode<synchronous>, transform_indices = @transform_9, window_bounds = array<i64: 1, 768>}, {pipeline_mode = #tpu.pipeline_mode<synchronous>, transform_indices = @transform_10, window_bounds = array<i64: 1, 1>}, {pipeline_mode = #tpu.pipeline_mode<synchronous>, transform_indices = @transform_11, window_bounds = array<i64: 49, 49>}, {pipeline_mode = #tpu.pipeline_mode<synchronous>, transform_indices = @transform_12, window_bounds = array<i64: 1, 49>}, {pipeline_mode = #tpu.pipeline_mode<synchronous>, transform_indices = @transform_13, window_bounds = array<i64: 1536, 768>}, {pipeline_mode = #tpu.pipeline_mode<synchronous>, transform_indices = @transform_14, window_bounds = array<i64: 49, 768>}, {pipeline_mode = #tpu.pipeline_mode<synchronous>, transform_indices = @transform_15, window_bounds = array<i64: 1, 768>}, {pipeline_mode = #tpu.pipeline_mode<synchronous>, transform_indices = @transform_16, window_bounds = array<i64: 768, 512>}, {pipeline_mode = #tpu.pipeline_mode<synchronous>, transform_indices = @transform_17, window_bounds = array<i64: 1, 512>}, {pipeline_mode = #tpu.pipeline_mode<synchronous>, transform_indices = @transform_18, window_bounds = array<i64: 512, 256>}, {pipeline_mode = #tpu.pipeline_mode<synchronous>, transform_indices = @transform_19, window_bounds = array<i64: 1, 256>}, {pipeline_mode = #tpu.pipeline_mode<synchronous>, transform_indices = @transform_20, window_bounds = array<i64: 256, 128>}, {pipeline_mode = #tpu.pipeline_mode<synchronous>, transform_indices = @transform_21, window_bounds = array<i64: 1, 128>}, {pipeline_mode = #tpu.pipeline_mode<synchronous>, transform_indices = @transform_22, window_bounds = array<i64: 128, 128>}, {pipeline_mode = #tpu.pipeline_mode<synchronous>, transform_indices = @transform_23, window_bounds = array<i64: 1, 128>}, {transform_indices = @transform_24, window_bounds = array<i64: 8, 128>}]} {
    %c0 = arith.constant 0 : index
    %c0_0 = arith.constant 0 : index
    %0 = vector.load %arg1[%c0, %c0_0] : memref<8x32xf32, #tpu.memory_space<vmem>>, vector<8x32xf32>
    %1 = arith.truncf %0 : vector<8x32xf32> to vector<8x32xbf16>
    %c0_1 = arith.constant 0 : index
    %c0_2 = arith.constant 0 : index
    %2 = vector.load %arg4[%c0_1, %c0_2] : memref<32x768xbf16, #tpu.memory_space<vmem>>, vector<32x768xbf16>
    %cst = arith.constant dense<0.000000e+00> : vector<8x768xf32>
    %3 = tpu.matmul %1, %2, %cst {dimension_numbers = #tpu.dot_dimension_numbers<[1], [0], [0], [1], [0, 0, 1, 1], [], []>} : vector<8x32xbf16>, vector<32x768xbf16>, vector<8x768xf32> -> vector<8x768xf32>
    %c0_3 = arith.constant 0 : index
    %c0_4 = arith.constant 0 : index
    %4 = vector.load %arg5[%c0_3, %c0_4] : memref<1x768xf32, #tpu.memory_space<vmem>>, vector<1x768xf32>
    %5 = vector.broadcast %4 : vector<1x768xf32> to vector<8x768xf32>
    %6 = arith.addf %3, %5 : vector<8x768xf32>
    %c0_5 = arith.constant 0 : index
    %c0_6 = arith.constant 0 : index
    %7 = vector.load %arg2[%c0_5, %c0_6] : memref<8x32xf32, #tpu.memory_space<vmem>>, vector<8x32xf32>
    %8 = arith.truncf %7 : vector<8x32xf32> to vector<8x32xbf16>
    %c0_7 = arith.constant 0 : index
    %c0_8 = arith.constant 0 : index
    %9 = vector.load %arg6[%c0_7, %c0_8] : memref<32x768xbf16, #tpu.memory_space<vmem>>, vector<32x768xbf16>
    %cst_9 = arith.constant dense<0.000000e+00> : vector<8x768xf32>
    %10 = tpu.matmul %8, %9, %cst_9 {dimension_numbers = #tpu.dot_dimension_numbers<[1], [0], [0], [1], [0, 0, 1, 1], [], []>} : vector<8x32xbf16>, vector<32x768xbf16>, vector<8x768xf32> -> vector<8x768xf32>
    %c0_10 = arith.constant 0 : index
    %c0_11 = arith.constant 0 : index
    %11 = vector.load %arg7[%c0_10, %c0_11] : memref<1x768xf32, #tpu.memory_space<vmem>>, vector<1x768xf32>
    %12 = vector.broadcast %11 : vector<1x768xf32> to vector<8x768xf32>
    %13 = arith.addf %10, %12 : vector<8x768xf32>
    %c0_12 = arith.constant 0 : index
    %c0_13 = arith.constant 0 : index
    %14 = vector.load %arg3[%c0_12, %c0_13] : memref<8x49xf32, #tpu.memory_space<vmem>>, vector<8x49xf32>
    %c0_14 = arith.constant 0 : index
    %c0_15 = arith.constant 0 : index
    %15 = vector.load %arg8[%c0_14, %c0_15] : memref<1x768xf32, #tpu.memory_space<vmem>>, vector<1x768xf32>
    %16 = vector.broadcast %15 : vector<1x768xf32> to vector<8x768xf32>
    %17 = arith.mulf %6, %16 : vector<8x768xf32>
    %cst_16 = arith.constant dense<0.000000e+00> : vector<8xf32>
    %18 = vector.multi_reduction <add>, %17, %cst_16 [1] : vector<8x768xf32> to vector<8xf32>
    %19 = vector.shape_cast %18 : vector<8xf32> to vector<8x1xf32>
    %c0_17 = arith.constant 0 : index
    %c0_18 = arith.constant 0 : index
    %20 = vector.load %arg9[%c0_17, %c0_18] : memref<1x1xf32, #tpu.memory_space<vmem>>, vector<1x1xf32>
    %21 = vector.broadcast %20 : vector<1x1xf32> to vector<8x1xf32>
    %22 = arith.addf %19, %21 : vector<8x1xf32>
    %23 = arith.negf %22 : vector<8x1xf32>
    %24 = math.exp %23 : vector<8x1xf32>
    %cst_19 = arith.constant 1.000000e+00 : f32
    %25 = vector.broadcast %cst_19 : f32 to vector<8x1xf32>
    %26 = arith.addf %25, %24 : vector<8x1xf32>
    %27 = arith.divf %25, %26 : vector<8x1xf32>
    %28 = vector.broadcast %27 : vector<8x1xf32> to vector<8x768xf32>
    %29 = arith.mulf %28, %6 : vector<8x768xf32>
    %c0_20 = arith.constant 0 : index
    %c0_21 = arith.constant 0 : index
    %30 = vector.load %arg10[%c0_20, %c0_21] : memref<1x768xf32, #tpu.memory_space<vmem>>, vector<1x768xf32>
    %31 = vector.broadcast %30 : vector<1x768xf32> to vector<8x768xf32>
    %32 = arith.mulf %13, %31 : vector<8x768xf32>
    %cst_22 = arith.constant dense<0.000000e+00> : vector<8xf32>
    %33 = vector.multi_reduction <add>, %32, %cst_22 [1] : vector<8x768xf32> to vector<8xf32>
    %34 = vector.shape_cast %33 : vector<8xf32> to vector<8x1xf32>
    %c0_23 = arith.constant 0 : index
    %c0_24 = arith.constant 0 : index
    %35 = vector.load %arg11[%c0_23, %c0_24] : memref<1x1xf32, #tpu.memory_space<vmem>>, vector<1x1xf32>
    %36 = vector.broadcast %35 : vector<1x1xf32> to vector<8x1xf32>
    %37 = arith.addf %34, %36 : vector<8x1xf32>
    %38 = arith.negf %37 : vector<8x1xf32>
    %39 = math.exp %38 : vector<8x1xf32>
    %cst_25 = arith.constant 1.000000e+00 : f32
    %40 = vector.broadcast %cst_25 : f32 to vector<8x1xf32>
    %41 = arith.addf %40, %39 : vector<8x1xf32>
    %42 = arith.divf %40, %41 : vector<8x1xf32>
    %43 = vector.broadcast %42 : vector<8x1xf32> to vector<8x768xf32>
    %44 = arith.mulf %43, %13 : vector<8x768xf32>
    %c0_26 = arith.constant 0 : index
    %c0_27 = arith.constant 0 : index
    %45 = vector.load %arg12[%c0_26, %c0_27] : memref<49x49xf32, #tpu.memory_space<vmem>>, vector<49x49xf32>
    %cst_28 = arith.constant dense<0.000000e+00> : vector<8x49xf32>
    %46 = tpu.matmul %14, %45, %cst_28 {dimension_numbers = #tpu.dot_dimension_numbers<[1], [0], [0], [1], [0, 0, 1, 1], [], []>} : vector<8x49xf32>, vector<49x49xf32>, vector<8x49xf32> -> vector<8x49xf32>
    %c0_29 = arith.constant 0 : index
    %c0_30 = arith.constant 0 : index
    %47 = vector.load %arg13[%c0_29, %c0_30] : memref<1x49xf32, #tpu.memory_space<vmem>>, vector<1x49xf32>
    %48 = vector.broadcast %47 : vector<1x49xf32> to vector<8x49xf32>
    %49 = arith.addf %46, %48 : vector<8x49xf32>
    %cst_31 = arith.constant dense<0xFF800000> : vector<8xf32>
    %50 = vector.multi_reduction <maximumf>, %49, %cst_31 [1] : vector<8x49xf32> to vector<8xf32>
    %51 = vector.shape_cast %50 : vector<8xf32> to vector<8x1xf32>
    %52 = vector.broadcast %51 : vector<8x1xf32> to vector<8x49xf32>
    %53 = arith.subf %49, %52 : vector<8x49xf32>
    %54 = math.exp %53 : vector<8x49xf32>
    %cst_32 = arith.constant dense<0.000000e+00> : vector<8xf32>
    %55 = vector.multi_reduction <add>, %54, %cst_32 [1] : vector<8x49xf32> to vector<8xf32>
    %56 = vector.shape_cast %55 : vector<8xf32> to vector<8x1xf32>
    %57 = vector.broadcast %56 : vector<8x1xf32> to vector<8x49xf32>
    %58 = arith.divf %54, %57 : vector<8x49xf32>
    %59 = arith.mulf %58, %14 : vector<8x49xf32>
    %60 = tpu.concatenate %29, %44 in 1 : vector<8x768xf32>, vector<8x768xf32> -> vector<8x1536xf32>
    %61 = arith.truncf %60 : vector<8x1536xf32> to vector<8x1536xbf16>
    %c0_33 = arith.constant 0 : index
    %c0_34 = arith.constant 0 : index
    %62 = vector.load %arg14[%c0_33, %c0_34] : memref<1536x768xbf16, #tpu.memory_space<vmem>>, vector<1536x768xbf16>
    %cst_35 = arith.constant dense<0.000000e+00> : vector<8x768xf32>
    %63 = tpu.matmul %61, %62, %cst_35 {dimension_numbers = #tpu.dot_dimension_numbers<[1], [0], [0], [1], [0, 0, 1, 1], [], []>} : vector<8x1536xbf16>, vector<1536x768xbf16>, vector<8x768xf32> -> vector<8x768xf32>
    %64 = arith.truncf %59 : vector<8x49xf32> to vector<8x49xbf16>
    %c0_36 = arith.constant 0 : index
    %c0_37 = arith.constant 0 : index
    %65 = vector.load %arg15[%c0_36, %c0_37] : memref<49x768xbf16, #tpu.memory_space<vmem>>, vector<49x768xbf16>
    %cst_38 = arith.constant dense<0.000000e+00> : vector<8x768xf32>
    %66 = tpu.matmul %64, %65, %cst_38 {dimension_numbers = #tpu.dot_dimension_numbers<[1], [0], [0], [1], [0, 0, 1, 1], [], []>} : vector<8x49xbf16>, vector<49x768xbf16>, vector<8x768xf32> -> vector<8x768xf32>
    %67 = arith.addf %63, %66 : vector<8x768xf32>
    %c0_39 = arith.constant 0 : index
    %c0_40 = arith.constant 0 : index
    %68 = vector.load %arg16[%c0_39, %c0_40] : memref<1x768xf32, #tpu.memory_space<vmem>>, vector<1x768xf32>
    %69 = vector.broadcast %68 : vector<1x768xf32> to vector<8x768xf32>
    %70 = arith.addf %67, %69 : vector<8x768xf32>
    %cst_41 = arith.constant 0.000000e+00 : f32
    %71 = vector.broadcast %cst_41 : f32 to vector<8x768xf32>
    %72 = arith.maximumf %70, %71 : vector<8x768xf32>
    %73 = arith.truncf %72 : vector<8x768xf32> to vector<8x768xbf16>
    %c0_42 = arith.constant 0 : index
    %c0_43 = arith.constant 0 : index
    %74 = vector.load %arg17[%c0_42, %c0_43] : memref<768x512xbf16, #tpu.memory_space<vmem>>, vector<768x512xbf16>
    %cst_44 = arith.constant dense<0.000000e+00> : vector<8x512xf32>
    %75 = tpu.matmul %73, %74, %cst_44 {dimension_numbers = #tpu.dot_dimension_numbers<[1], [0], [0], [1], [0, 0, 1, 1], [], []>} : vector<8x768xbf16>, vector<768x512xbf16>, vector<8x512xf32> -> vector<8x512xf32>
    %c0_45 = arith.constant 0 : index
    %c0_46 = arith.constant 0 : index
    %76 = vector.load %arg18[%c0_45, %c0_46] : memref<1x512xf32, #tpu.memory_space<vmem>>, vector<1x512xf32>
    %77 = vector.broadcast %76 : vector<1x512xf32> to vector<8x512xf32>
    %78 = arith.addf %75, %77 : vector<8x512xf32>
    %cst_47 = arith.constant 0.000000e+00 : f32
    %79 = vector.broadcast %cst_47 : f32 to vector<8x512xf32>
    %80 = arith.maximumf %78, %79 : vector<8x512xf32>
    %81 = arith.truncf %80 : vector<8x512xf32> to vector<8x512xbf16>
    %c0_48 = arith.constant 0 : index
    %c0_49 = arith.constant 0 : index
    %82 = vector.load %arg19[%c0_48, %c0_49] : memref<512x256xbf16, #tpu.memory_space<vmem>>, vector<512x256xbf16>
    %cst_50 = arith.constant dense<0.000000e+00> : vector<8x256xf32>
    %83 = tpu.matmul %81, %82, %cst_50 {dimension_numbers = #tpu.dot_dimension_numbers<[1], [0], [0], [1], [0, 0, 1, 1], [], []>} : vector<8x512xbf16>, vector<512x256xbf16>, vector<8x256xf32> -> vector<8x256xf32>
    %c0_51 = arith.constant 0 : index
    %c0_52 = arith.constant 0 : index
    %84 = vector.load %arg20[%c0_51, %c0_52] : memref<1x256xf32, #tpu.memory_space<vmem>>, vector<1x256xf32>
    %85 = vector.broadcast %84 : vector<1x256xf32> to vector<8x256xf32>
    %86 = arith.addf %83, %85 : vector<8x256xf32>
    %cst_53 = arith.constant 0.000000e+00 : f32
    %87 = vector.broadcast %cst_53 : f32 to vector<8x256xf32>
    %88 = arith.maximumf %86, %87 : vector<8x256xf32>
    %89 = arith.truncf %88 : vector<8x256xf32> to vector<8x256xbf16>
    %c0_54 = arith.constant 0 : index
    %c0_55 = arith.constant 0 : index
    %90 = vector.load %arg21[%c0_54, %c0_55] : memref<256x128xbf16, #tpu.memory_space<vmem>>, vector<256x128xbf16>
    %cst_56 = arith.constant dense<0.000000e+00> : vector<8x128xf32>
    %91 = tpu.matmul %89, %90, %cst_56 {dimension_numbers = #tpu.dot_dimension_numbers<[1], [0], [0], [1], [0, 0, 1, 1], [], []>} : vector<8x256xbf16>, vector<256x128xbf16>, vector<8x128xf32> -> vector<8x128xf32>
    %c0_57 = arith.constant 0 : index
    %c0_58 = arith.constant 0 : index
    %92 = vector.load %arg22[%c0_57, %c0_58] : memref<1x128xf32, #tpu.memory_space<vmem>>, vector<1x128xf32>
    %93 = vector.broadcast %92 : vector<1x128xf32> to vector<8x128xf32>
    %94 = arith.addf %91, %93 : vector<8x128xf32>
    %cst_59 = arith.constant 0.000000e+00 : f32
    %95 = vector.broadcast %cst_59 : f32 to vector<8x128xf32>
    %96 = arith.maximumf %94, %95 : vector<8x128xf32>
    %97 = arith.truncf %96 : vector<8x128xf32> to vector<8x128xbf16>
    %c0_60 = arith.constant 0 : index
    %c0_61 = arith.constant 0 : index
    %98 = vector.load %arg23[%c0_60, %c0_61] : memref<128x128xbf16, #tpu.memory_space<vmem>>, vector<128x128xbf16>
    %cst_62 = arith.constant dense<0.000000e+00> : vector<8x128xf32>
    %99 = tpu.matmul %97, %98, %cst_62 {dimension_numbers = #tpu.dot_dimension_numbers<[1], [0], [0], [1], [0, 0, 1, 1], [], []>} : vector<8x128xbf16>, vector<128x128xbf16>, vector<8x128xf32> -> vector<8x128xf32>
    %c0_63 = arith.constant 0 : index
    %c0_64 = arith.constant 0 : index
    %100 = vector.load %arg24[%c0_63, %c0_64] : memref<1x128xf32, #tpu.memory_space<vmem>>, vector<1x128xf32>
    %101 = vector.broadcast %100 : vector<1x128xf32> to vector<8x128xf32>
    %102 = arith.addf %99, %101 : vector<8x128xf32>
    %c0_65 = arith.constant 0 : index
    %c0_66 = arith.constant 0 : index
    %103 = vector.load %arg25[%c0_65, %c0_66] : memref<8x128xf32, #tpu.memory_space<vmem>>, vector<8x128xf32>
    tpu.vector_store %arg25[%c0_65, %c0_66], %102 {strides = array<i32>} : memref<8x128xf32, #tpu.memory_space<vmem>>, vector<8x128xf32>,
    return
  }
  func.func @transform_0(%arg0: i32) -> (i32, i32) {
    %c0_i32 = arith.constant 0 : i32
    %c0_i32_0 = arith.constant 0 : i32
    return %arg0, %c0_i32 : i32, i32
  }
  func.func @transform_1(%arg0: i32) -> (i32, i32) {
    %c0_i32 = arith.constant 0 : i32
    %c0_i32_0 = arith.constant 0 : i32
    return %arg0, %c0_i32 : i32, i32
  }
  func.func @transform_2(%arg0: i32) -> (i32, i32) {
    %c0_i32 = arith.constant 0 : i32
    %c0_i32_0 = arith.constant 0 : i32
    return %arg0, %c0_i32 : i32, i32
  }
  func.func @transform_3(%arg0: i32) -> (i32, i32) {
    %c0_i32 = arith.constant 0 : i32
    %c0_i32_0 = arith.constant 0 : i32
    %c0_i32_1 = arith.constant 0 : i32
    return %c0_i32, %c0_i32_0 : i32, i32
  }
  func.func @transform_4(%arg0: i32) -> (i32, i32) {
    %c0_i32 = arith.constant 0 : i32
    %c0_i32_0 = arith.constant 0 : i32
    %c0_i32_1 = arith.constant 0 : i32
    return %c0_i32, %c0_i32_0 : i32, i32
  }
  func.func @transform_5(%arg0: i32) -> (i32, i32) {
    %c0_i32 = arith.constant 0 : i32
    %c0_i32_0 = arith.constant 0 : i32
    %c0_i32_1 = arith.constant 0 : i32
    return %c0_i32, %c0_i32_0 : i32, i32
  }
  func.func @transform_6(%arg0: i32) -> (i32, i32) {
    %c0_i32 = arith.constant 0 : i32
    %c0_i32_0 = arith.constant 0 : i32
    %c0_i32_1 = arith.constant 0 : i32
    return %c0_i32, %c0_i32_0 : i32, i32
  }
  func.func @transform_7(%arg0: i32) -> (i32, i32) {
    %c0_i32 = arith.constant 0 : i32
    %c0_i32_0 = arith.constant 0 : i32
    %c0_i32_1 = arith.constant 0 : i32
    return %c0_i32, %c0_i32_0 : i32, i32
  }
  func.func @transform_8(%arg0: i32) -> (i32, i32) {
    %c0_i32 = arith.constant 0 : i32
    %c0_i32_0 = arith.constant 0 : i32
    %c0_i32_1 = arith.constant 0 : i32
    return %c0_i32, %c0_i32_0 : i32, i32
  }
  func.func @transform_9(%arg0: i32) -> (i32, i32) {
    %c0_i32 = arith.constant 0 : i32
    %c0_i32_0 = arith.constant 0 : i32
    %c0_i32_1 = arith.constant 0 : i32
    return %c0_i32, %c0_i32_0 : i32, i32
  }
  func.func @transform_10(%arg0: i32) -> (i32, i32) {
    %c0_i32 = arith.constant 0 : i32
    %c0_i32_0 = arith.constant 0 : i32
    %c0_i32_1 = arith.constant 0 : i32
    return %c0_i32, %c0_i32_0 : i32, i32
  }
  func.func @transform_11(%arg0: i32) -> (i32, i32) {
    %c0_i32 = arith.constant 0 : i32
    %c0_i32_0 = arith.constant 0 : i32
    %c0_i32_1 = arith.constant 0 : i32
    return %c0_i32, %c0_i32_0 : i32, i32
  }
  func.func @transform_12(%arg0: i32) -> (i32, i32) {
    %c0_i32 = arith.constant 0 : i32
    %c0_i32_0 = arith.constant 0 : i32
    %c0_i32_1 = arith.constant 0 : i32
    return %c0_i32, %c0_i32_0 : i32, i32
  }
  func.func @transform_13(%arg0: i32) -> (i32, i32) {
    %c0_i32 = arith.constant 0 : i32
    %c0_i32_0 = arith.constant 0 : i32
    %c0_i32_1 = arith.constant 0 : i32
    return %c0_i32, %c0_i32_0 : i32, i32
  }
  func.func @transform_14(%arg0: i32) -> (i32, i32) {
    %c0_i32 = arith.constant 0 : i32
    %c0_i32_0 = arith.constant 0 : i32
    %c0_i32_1 = arith.constant 0 : i32
    return %c0_i32, %c0_i32_0 : i32, i32
  }
  func.func @transform_15(%arg0: i32) -> (i32, i32) {
    %c0_i32 = arith.constant 0 : i32
    %c0_i32_0 = arith.constant 0 : i32
    %c0_i32_1 = arith.constant 0 : i32
    return %c0_i32, %c0_i32_0 : i32, i32
  }
  func.func @transform_16(%arg0: i32) -> (i32, i32) {
    %c0_i32 = arith.constant 0 : i32
    %c0_i32_0 = arith.constant 0 : i32
    %c0_i32_1 = arith.constant 0 : i32
    return %c0_i32, %c0_i32_0 : i32, i32
  }
  func.func @transform_17(%arg0: i32) -> (i32, i32) {
    %c0_i32 = arith.constant 0 : i32
    %c0_i32_0 = arith.constant 0 : i32
    %c0_i32_1 = arith.constant 0 : i32
    return %c0_i32, %c0_i32_0 : i32, i32
  }
  func.func @transform_18(%arg0: i32) -> (i32, i32) {
    %c0_i32 = arith.constant 0 : i32
    %c0_i32_0 = arith.constant 0 : i32
    %c0_i32_1 = arith.constant 0 : i32
    return %c0_i32, %c0_i32_0 : i32, i32
  }
  func.func @transform_19(%arg0: i32) -> (i32, i32) {
    %c0_i32 = arith.constant 0 : i32
    %c0_i32_0 = arith.constant 0 : i32
    %c0_i32_1 = arith.constant 0 : i32
    return %c0_i32, %c0_i32_0 : i32, i32
  }
  func.func @transform_20(%arg0: i32) -> (i32, i32) {
    %c0_i32 = arith.constant 0 : i32
    %c0_i32_0 = arith.constant 0 : i32
    %c0_i32_1 = arith.constant 0 : i32
    return %c0_i32, %c0_i32_0 : i32, i32
  }
  func.func @transform_21(%arg0: i32) -> (i32, i32) {
    %c0_i32 = arith.constant 0 : i32
    %c0_i32_0 = arith.constant 0 : i32
    %c0_i32_1 = arith.constant 0 : i32
    return %c0_i32, %c0_i32_0 : i32, i32
  }
  func.func @transform_22(%arg0: i32) -> (i32, i32) {
    %c0_i32 = arith.constant 0 : i32
    %c0_i32_0 = arith.constant 0 : i32
    %c0_i32_1 = arith.constant 0 : i32
    return %c0_i32, %c0_i32_0 : i32, i32
  }
  func.func @transform_23(%arg0: i32) -> (i32, i32) {
    %c0_i32 = arith.constant 0 : i32
    %c0_i32_0 = arith.constant 0 : i32
    %c0_i32_1 = arith.constant 0 : i32
    return %c0_i32, %c0_i32_0 : i32, i32
  }
  func.func @transform_24(%arg0: i32) -> (i32, i32) {
    %c0_i32 = arith.constant 0 : i32
    %c0_i32_0 = arith.constant 0 : i32
    return %arg0, %c0_i32 : i32, i32
  }
}

</mosaic_0001>

<llo_original>
// kernel: tpu_custom_call.1
$region0: #{tpu_custom_call.1}
  #allocation0 [shape = 'u32[]', space=smem, size = 0x4, offset = 0x4, fixed_abs, tag = 'smem constant byte address 0x4 - core index']
  #allocation1 [shape = 'u32[144,128]{1,0:T(1,128)}', space=vmem, size = 0x12000, scoped, tag = 'internal scratch']
  #allocation2 [shape = 'f32[1,1]{1,0:T(1,128)S(1)}', space=vmem, size = 0x200, scoped, tag = 'scoped memory for tpu_custom_call.1']
  #allocation3 [shape = 'f32[1,1]{1,0:T(1,128)S(1)}', space=vmem, size = 0x200, scoped, tag = 'scoped memory for tpu_custom_call.1']
  %s0 = inlined_call_operand.hbm [shape: f32[8,32], index: 0, kind: input, shape index: {}]
  %s1 = inlined_call_operand.hbm [shape: f32[8,32], index: 1, kind: input, shape index: {}]
  %s2 = inlined_call_operand.hbm [shape: f32[8,49], index: 2, kind: input, shape index: {}]
  %s3 = inlined_call_operand.hbm [shape: bf16[32,768], index: 3, kind: input, shape index: {}]
  %s4 = inlined_call_operand.hbm [shape: f32[1,768], index: 4, kind: input, shape index: {}]
  %s5 = inlined_call_operand.hbm [shape: bf16[32,768], index: 5, kind: input, shape index: {}]
  %s6 = inlined_call_operand.hbm [shape: f32[1,768], index: 6, kind: input, shape index: {}]
  %s7 = inlined_call_operand.hbm [shape: f32[1,768], index: 7, kind: input, shape index: {}]
  %s8 = inlined_call_operand.<no memory space> [shape: f32[1,1], index: 8, kind: input, shape index: {}]
  %s9 = inlined_call_operand.hbm [shape: f32[1,768], index: 9, kind: input, shape index: {}]
  %s10 = inlined_call_operand.<no memory space> [shape: f32[1,1], index: 10, kind: input, shape index: {}]
  %s11 = inlined_call_operand.hbm [shape: f32[49,49], index: 11, kind: input, shape index: {}]
  %s12 = inlined_call_operand.hbm [shape: f32[1,49], index: 12, kind: input, shape index: {}]
  %s13 = inlined_call_operand.hbm [shape: bf16[1536,768], index: 13, kind: input, shape index: {}]
  %s14 = inlined_call_operand.hbm [shape: bf16[49,768], index: 14, kind: input, shape index: {}]
  %s15 = inlined_call_operand.hbm [shape: f32[1,768], index: 15, kind: input, shape index: {}]
  %s16 = inlined_call_operand.hbm [shape: bf16[768,512], index: 16, kind: input, shape index: {}]
  %s17 = inlined_call_operand.hbm [shape: f32[1,512], index: 17, kind: input, shape index: {}]
  %s18 = inlined_call_operand.hbm [shape: bf16[512,256], index: 18, kind: input, shape index: {}]
  %s19 = inlined_call_operand.hbm [shape: f32[1,256], index: 19, kind: input, shape index: {}]
  %s20 = inlined_call_operand.hbm [shape: bf16[256,128], index: 20, kind: input, shape index: {}]
  %s21 = inlined_call_operand.hbm [shape: f32[1,128], index: 21, kind: input, shape index: {}]
  %s22 = inlined_call_operand.hbm [shape: bf16[128,128], index: 22, kind: input, shape index: {}]
  %s23 = inlined_call_operand.hbm [shape: f32[1,128], index: 23, kind: input, shape index: {}]
  %s24 = inlined_call_operand.hbm [shape: f32[8,128], index: 24, kind: output, shape index: {}]
  %s25 = sld [smem:[#allocation0]]
  $region194: #{tpu_custom_call.1} parent=0
    _
  %s27 = ssub.s32 1, %s25
  %s28 = scalar_select 0, %s27, %s25
  %v29 = vstv %s8
  %30 = vst [vmem:[#allocation2] sm:$0x1] %v29
  %v31 = vstv %s10
  %32 = vst [vmem:[#allocation3] sm:$0x1] %v31
  $region1: #{tpu_custom_call.1} parent=0
    #allocation4 [shape = 'u8[4096]{0}', space=vmem, size = 0x1000, scoped, tag = 'input window, operand 0, single buffered']
    #allocation5 [shape = 's32[1]{0}', space=sflag, size = 0x4, scoped, tag = 'scoped memory for tpu_custom_call.1']
    #allocation6 [shape = 's32[1]{0}', space=sflag, size = 0x4, scoped, tag = 'scoped memory for tpu_custom_call.1']
    #allocation7 [shape = 'u8[4096]{0}', space=vmem, size = 0x1000, scoped, tag = 'input window, operand 1, single buffered']
    #allocation8 [shape = 's32[1]{0}', space=sflag, size = 0x4, scoped, tag = 'scoped memory for tpu_custom_call.1']
    #allocation9 [shape = 'u8[4096]{0}', space=vmem, size = 0x1000, scoped, tag = 'input window, operand 2, single buffered']
    #allocation10 [shape = 'u8[49152]{0}', space=vmem, size = 0xc000, scoped, tag = 'input window, operand 3, single buffered']
    #allocation11 [shape = 's32[1]{0}', space=sflag, size = 0x4, scoped, tag = 'scoped memory for tpu_custom_call.1']
    #allocation12 [shape = 'u8[3072]{0}', space=vmem, size = 0xc00, scoped, tag = 'input window, operand 4, single buffered']
    #allocation13 [shape = 'u8[49152]{0}', space=vmem, size = 0xc000, scoped, tag = 'input window, operand 5, single buffered']
    #allocation14 [shape = 's32[1]{0}', space=sflag, size = 0x4, scoped, tag = 'scoped memory for tpu_custom_call.1']
    #allocation15 [shape = 'u8[3072]{0}', space=vmem, size = 0xc00, scoped, tag = 'input window, operand 6, single buffered']
    #allocation16 [shape = 'u8[3072]{0}', space=vmem, size = 0xc00, scoped, tag = 'input window, operand 7, single buffered']
    #allocation17 [shape = 's32[1]{0}', space=sflag, size = 0x4, scoped, tag = 'scoped memory for tpu_custom_call.1']
    #allocation18 [shape = 'u8[3072]{0}', space=vmem, size = 0xc00, scoped, tag = 'input window, operand 9, single buffered']
    #allocation19 [shape = 'u8[28672]{0}', space=vmem, size = 0x7000, scoped, tag = 'input window, operand 11, single buffered']
    #allocation20 [shape = 's32[1]{0}', space=sflag, size = 0x4, scoped, tag = 'scoped memory for tpu_custom_call.1']
    #allocation21 [shape = 'u8[512]{0}', space=vmem, size = 0x400, scoped, tag = 'input window, operand 12, single buffered']
    #allocation22 [shape = 'u8[2359296]{0}', space=vmem, size = 0x240000, scoped, tag = 'input window, operand 13, single buffered']
    #allocation23 [shape = 's32[1]{0}', space=sflag, size = 0x4, scoped, tag = 'scoped memory for tpu_custom_call.1']
    #allocation24 [shape = 'u8[86016]{0}', space=vmem, size = 0x15000, scoped, tag = 'input window, operand 14, single buffered']
    #allocation25 [shape = 'u8[3072]{0}', space=vmem, size = 0xc00, scoped, tag = 'input window, operand 15, single buffered']
    #allocation26 [shape = 's32[1]{0}', space=sflag, size = 0x4, scoped, tag = 'scoped memory for tpu_custom_call.1']
    #allocation27 [shape = 'u8[786432]{0}', space=vmem, size = 0xc0000, scoped, tag = 'input window, operand 16, single buffered']
    #allocation28 [shape = 'u8[2048]{0}', space=vmem, size = 0x800, scoped, tag = 'input window, operand 17, single buffered']
    #allocation29 [shape = 's32[1]{0}', space=sflag, size = 0x4, scoped, tag = 'scoped memory for tpu_custom_call.1']
    #allocation30 [shape = 'u8[262144]{0}', space=vmem, size = 0x40000, scoped, tag = 'input window, operand 18, single buffered']
    #allocation31 [shape = 'u8[1024]{0}', space=vmem, size = 0x400, scoped, tag = 'input window, operand 19, single buffered']
    #allocation32 [shape = 's32[1]{0}', space=sflag, size = 0x4, scoped, tag = 'scoped memory for tpu_custom_call.1']
    #allocation33 [shape = 'u8[65536]{0}', space=vmem, size = 0x10000, scoped, tag = 'input window, operand 20, single buffered']
    #allocation34 [shape = 'u8[512]{0}', space=vmem, size = 0x400, scoped, tag = 'input window, operand 21, single buffered']
    #allocation35 [shape = 's32[1]{0}', space=sflag, size = 0x4, scoped, tag = 'scoped memory for tpu_custom_call.1']
    #allocation36 [shape = 'u8[32768]{0}', space=vmem, size = 0x8000, scoped, tag = 'input window, operand 22, single buffered']
    #allocation37 [shape = 'u8[512]{0}', space=vmem, size = 0x400, scoped, tag = 'input window, operand 23, single buffered']
    #allocation38 [shape = 's32[1]{0}', space=sflag, size = 0x4, scoped, tag = 'scoped memory for tpu_custom_call.1']
    #allocation39 [shape = 'u8[4096]{0}', space=vmem, size = 0x1000, scoped, tag = 'output window, operand 0, single buffered']
    %33 = vsyncpa [#allocation5], 0
    %34 = vsyncpa [#allocation8], 0
    %35 = vsyncpa [#allocation11], 0
    %36 = vsyncpa [#allocation14], 0
    %37 = vsyncpa [#allocation17], 0
    %38 = vsyncpa [#allocation20], 0
    %39 = vsyncpa [#allocation23], 0
    %40 = vsyncpa [#allocation26], 0
    %41 = vsyncpa [#allocation29], 0
    %42 = vsyncpa [#allocation32], 0
    %43 = vsyncpa [#allocation35], 0
    %44 = vsyncpa [#allocation38], 0
    %45 = vsyncpa [#allocation6], 0
    // Predicated region
    $region2: #{tpu_custom_call.1} parent=1 // pred_check
      _
    $region3: #{tpu_custom_call.1} parent=1 // pred_check_branch
      %47 = sbr.rel (0) target = $region5
    $region4: #{tpu_custom_call.1} parent=1 // pred_region
      %s49 = ssub.s32 128, 128
      %50 = vsyncadd [#allocation5], %s49
      %s52 = sshll.u32 [#allocation4], 4
      %s53 = int_to_ptr.vmem [resolvable:$true] %s52
      %55 = dma.hbm_to_vmem [thread:$0]  %s0, 128, %s53, [#allocation5]
    $region5: #{tpu_custom_call.1} parent=1 // pred_fallthru
      _
    // Predicated region
    $region6: #{tpu_custom_call.1} parent=1 // pred_check
      _
    $region7: #{tpu_custom_call.1} parent=1 // pred_check_branch
      %57 = sbr.rel (0) target = $region9
    $region8: #{tpu_custom_call.1} parent=1 // pred_region
      %s59 = ssub.s32 128, 128
      %60 = vsyncadd [#allocation8], %s59
      %s62 = sshll.u32 [#allocation7], 4
      %s63 = int_to_ptr.vmem [resolvable:$true] %s62
      %65 = dma.hbm_to_vmem [thread:$0]  %s1, 128, %s63, [#allocation8]
    $region9: #{tpu_custom_call.1} parent=1 // pred_fallthru
      _
    // Predicated region
    $region10: #{tpu_custom_call.1} parent=1 // pred_check
      _
    $region11: #{tpu_custom_call.1} parent=1 // pred_check_branch
      %67 = sbr.rel (0) target = $region13
    $region12: #{tpu_custom_call.1} parent=1 // pred_region
      %s69 = ssub.s32 128, 128
      %70 = vsyncadd [#allocation8], %s69
      %s72 = sshll.u32 [#allocation9], 4
      %s73 = int_to_ptr.vmem [resolvable:$true] %s72
      %75 = dma.hbm_to_vmem [thread:$0]  %s2, 128, %s73, [#allocation8]
    $region13: #{tpu_custom_call.1} parent=1 // pred_fallthru
      _
    // Predicated region
    $region14: #{tpu_custom_call.1} parent=1 // pred_check
      _
    $region15: #{tpu_custom_call.1} parent=1 // pred_check_branch
      %77 = sbr.rel (0) target = $region17
    $region16: #{tpu_custom_call.1} parent=1 // pred_region
      %s79 = ssub.s32 1536, 1536
      %80 = vsyncadd [#allocation11], %s79
      %s81 = sshll.u32 [#allocation10], 4
      %s82 = int_to_ptr.vmem [resolvable:$true] %s81
      %87 = dma.hbm_to_vmem [thread:$0]  %s3, 1536, %s82, [#allocation11], 384, 384, 24
    $region17: #{tpu_custom_call.1} parent=1 // pred_fallthru
      _
    // Predicated region
    $region18: #{tpu_custom_call.1} parent=1 // pred_check
      _
    $region19: #{tpu_custom_call.1} parent=1 // pred_check_branch
      %89 = sbr.rel (0) target = $region21
    $region20: #{tpu_custom_call.1} parent=1 // pred_region
      %s91 = ssub.s32 96, 96
      %92 = vsyncadd [#allocation11], %s91
      %s94 = sshll.u32 [#allocation12], 4
      %s95 = int_to_ptr.vmem [resolvable:$true] %s94
      %97 = dma.hbm_to_vmem [thread:$0]  %s4, 96, %s95, [#allocation11]
    $region21: #{tpu_custom_call.1} parent=1 // pred_fallthru
      _
    // Predicated region
    $region22: #{tpu_custom_call.1} parent=1 // pred_check
      _
    $region23: #{tpu_custom_call.1} parent=1 // pred_check_branch
      %99 = sbr.rel (0) target = $region25
    $region24: #{tpu_custom_call.1} parent=1 // pred_region
      %s101 = ssub.s32 1536, 1536
      %102 = vsyncadd [#allocation14], %s101
      %s103 = sshll.u32 [#allocation13], 4
      %s104 = int_to_ptr.vmem [resolvable:$true] %s103
      %109 = dma.hbm_to_vmem [thread:$0]  %s5, 1536, %s104, [#allocation14], 384, 384, 24
    $region25: #{tpu_custom_call.1} parent=1 // pred_fallthru
      _
    // Predicated region
    $region26: #{tpu_custom_call.1} parent=1 // pred_check
      _
    $region27: #{tpu_custom_call.1} parent=1 // pred_check_branch
      %111 = sbr.rel (0) target = $region29
    $region28: #{tpu_custom_call.1} parent=1 // pred_region
      %s113 = ssub.s32 96, 96
      %114 = vsyncadd [#allocation14], %s113
      %s116 = sshll.u32 [#allocation15], 4
      %s117 = int_to_ptr.vmem [resolvable:$true] %s116
      %119 = dma.hbm_to_vmem [thread:$0]  %s6, 96, %s117, [#allocation14]
    $region29: #{tpu_custom_call.1} parent=1 // pred_fallthru
      _
    // Predicated region
    $region30: #{tpu_custom_call.1} parent=1 // pred_check
      _
    $region31: #{tpu_custom_call.1} parent=1 // pred_check_branch
      %121 = sbr.rel (0) target = $region33
    $region32: #{tpu_custom_call.1} parent=1 // pred_region
      %s123 = ssub.s32 96, 96
      %124 = vsyncadd [#allocation17], %s123
      %s126 = sshll.u32 [#allocation16], 4
      %s127 = int_to_ptr.vmem [resolvable:$true] %s126
      %129 = dma.hbm_to_vmem [thread:$0]  %s7, 96, %s127, [#allocation17]
    $region33: #{tpu_custom_call.1} parent=1 // pred_fallthru
      _
    // Predicated region
    $region34: #{tpu_custom_call.1} parent=1 // pred_check
      _
    $region35: #{tpu_custom_call.1} parent=1 // pred_check_branch
      %131 = sbr.rel (0) target = $region37
    $region36: #{tpu_custom_call.1} parent=1 // pred_region
      _
    $region37: #{tpu_custom_call.1} parent=1 // pred_fallthru
      _
    // Predicated region
    $region38: #{tpu_custom_call.1} parent=1 // pred_check
      _
    $region39: #{tpu_custom_call.1} parent=1 // pred_check_branch
      %133 = sbr.rel (0) target = $region41
    $region40: #{tpu_custom_call.1} parent=1 // pred_region
      %s135 = ssub.s32 96, 96
      %136 = vsyncadd [#allocation17], %s135
      %s138 = sshll.u32 [#allocation18], 4
      %s139 = int_to_ptr.vmem [resolvable:$true] %s138
      %141 = dma.hbm_to_vmem [thread:$0]  %s9, 96, %s139, [#allocation17]
    $region41: #{tpu_custom_call.1} parent=1 // pred_fallthru
      _
    // Predicated region
    $region42: #{tpu_custom_call.1} parent=1 // pred_check
      _
    $region43: #{tpu_custom_call.1} parent=1 // pred_check_branch
      %143 = sbr.rel (0) target = $region45
    $region44: #{tpu_custom_call.1} parent=1 // pred_region
      _
    $region45: #{tpu_custom_call.1} parent=1 // pred_fallthru
      _
    // Predicated region
    $region46: #{tpu_custom_call.1} parent=1 // pred_check
      _
    $region47: #{tpu_custom_call.1} parent=1 // pred_check_branch
      %145 = sbr.rel (0) target = $region49
    $region48: #{tpu_custom_call.1} parent=1 // pred_region
      %s147 = ssub.s32 896, 896
      %148 = vsyncadd [#allocation20], %s147
      %s149 = sshll.u32 [#allocation19], 4
      %s150 = int_to_ptr.vmem [resolvable:$true] %s149
      %155 = dma.hbm_to_vmem [thread:$0]  %s11, 896, %s150, [#allocation20], 128, 128, 8
    $region49: #{tpu_custom_call.1} parent=1 // pred_fallthru
      _
    // Predicated region
    $region50: #{tpu_custom_call.1} parent=1 // pred_check
      _
    $region51: #{tpu_custom_call.1} parent=1 // pred_check_branch
      %157 = sbr.rel (0) target = $region53
    $region52: #{tpu_custom_call.1} parent=1 // pred_region
      %s159 = ssub.s32 16, 16
      %160 = vsyncadd [#allocation20], %s159
      %s162 = sshll.u32 [#allocation21], 4
      %s163 = int_to_ptr.vmem [resolvable:$true] %s162
      %165 = dma.hbm_to_vmem [thread:$0]  %s12, 16, %s163, [#allocation20]
    $region53: #{tpu_custom_call.1} parent=1 // pred_fallthru
      _
    // Predicated region
    $region54: #{tpu_custom_call.1} parent=1 // pred_check
      _
    $region55: #{tpu_custom_call.1} parent=1 // pred_check_branch
      %167 = sbr.rel (0) target = $region57
    $region56: #{tpu_custom_call.1} parent=1 // pred_region
      %s169 = ssub.s32 73728, 73728
      %170 = vsyncadd [#allocation23], %s169
      %s171 = sshll.u32 [#allocation22], 4
      %s172 = int_to_ptr.vmem [resolvable:$true] %s171
      %177 = dma.hbm_to_vmem [thread:$0]  %s13, 73728, %s172, [#allocation23], 384, 384, 24
    $region57: #{tpu_custom_call.1} parent=1 // pred_fallthru
      _
    // Predicated region
    $region58: #{tpu_custom_call.1} parent=1 // pred_check
      _
    $region59: #{tpu_custom_call.1} parent=1 // pred_check_branch
      %179 = sbr.rel (0) target = $region61
    $region60: #{tpu_custom_call.1} parent=1 // pred_region
      %s181 = ssub.s32 2688, 2688
      %182 = vsyncadd [#allocation23], %s181
      %s183 = sshll.u32 [#allocation24], 4
      %s184 = int_to_ptr.vmem [resolvable:$true] %s183
      %189 = dma.hbm_to_vmem [thread:$0]  %s14, 2688, %s184, [#allocation23], 384, 384, 24
    $region61: #{tpu_custom_call.1} parent=1 // pred_fallthru
      _
    // Predicated region
    $region62: #{tpu_custom_call.1} parent=1 // pred_check
      _
    $region63: #{tpu_custom_call.1} parent=1 // pred_check_branch
      %191 = sbr.rel (0) target = $region65
    $region64: #{tpu_custom_call.1} parent=1 // pred_region
      %s193 = ssub.s32 96, 96
      %194 = vsyncadd [#allocation26], %s193
      %s196 = sshll.u32 [#allocation25], 4
      %s197 = int_to_ptr.vmem [resolvable:$true] %s196
      %199 = dma.hbm_to_vmem [thread:$0]  %s15, 96, %s197, [#allocation26]
    $region65: #{tpu_custom_call.1} parent=1 // pred_fallthru
      _
    // Predicated region
    $region66: #{tpu_custom_call.1} parent=1 // pred_check
      _
    $region67: #{tpu_custom_call.1} parent=1 // pred_check_branch
      %201 = sbr.rel (0) target = $region69
    $region68: #{tpu_custom_call.1} parent=1 // pred_region
      %s203 = ssub.s32 24576, 24576
      %204 = vsyncadd [#allocation26], %s203
      %s205 = sshll.u32 [#allocation27], 4
      %s206 = int_to_ptr.vmem [resolvable:$true] %s205
      %211 = dma.hbm_to_vmem [thread:$0]  %s16, 24576, %s206, [#allocation26], 256, 256, 16
    $region69: #{tpu_custom_call.1} parent=1 // pred_fallthru
      _
    // Predicated region
    $region70: #{tpu_custom_call.1} parent=1 // pred_check
      _
    $region71: #{tpu_custom_call.1} parent=1 // pred_check_branch
      %213 = sbr.rel (0) target = $region73
    $region72: #{tpu_custom_call.1} parent=1 // pred_region
      %s215 = ssub.s32 64, 64
      %216 = vsyncadd [#allocation29], %s215
      %s218 = sshll.u32 [#allocation28], 4
      %s219 = int_to_ptr.vmem [resolvable:$true] %s218
      %221 = dma.hbm_to_vmem [thread:$0]  %s17, 64, %s219, [#allocation29]
    $region73: #{tpu_custom_call.1} parent=1 // pred_fallthru
      _
    // Predicated region
    $region74: #{tpu_custom_call.1} parent=1 // pred_check
      _
    $region75: #{tpu_custom_call.1} parent=1 // pred_check_branch
      %223 = sbr.rel (0) target = $region77
    $region76: #{tpu_custom_call.1} parent=1 // pred_region
      %s225 = ssub.s32 8192, 8192
      %226 = vsyncadd [#allocation29], %s225
      %s227 = sshll.u32 [#allocation30], 4
      %s228 = int_to_ptr.vmem [resolvable:$true] %s227
      %233 = dma.hbm_to_vmem [thread:$0]  %s18, 8192, %s228, [#allocation29], 128, 128, 8
    $region77: #{tpu_custom_call.1} parent=1 // pred_fallthru
      _
    // Predicated region
    $region78: #{tpu_custom_call.1} parent=1 // pred_check
      _
    $region79: #{tpu_custom_call.1} parent=1 // pred_check_branch
      %235 = sbr.rel (0) target = $region81
    $region80: #{tpu_custom_call.1} parent=1 // pred_region
      %s237 = ssub.s32 32, 32
      %238 = vsyncadd [#allocation32], %s237
      %s240 = sshll.u32 [#allocation31], 4
      %s241 = int_to_ptr.vmem [resolvable:$true] %s240
      %243 = dma.hbm_to_vmem [thread:$0]  %s19, 32, %s241, [#allocation32]
    $region81: #{tpu_custom_call.1} parent=1 // pred_fallthru
      _
    // Predicated region
    $region82: #{tpu_custom_call.1} parent=1 // pred_check
      _
    $region83: #{tpu_custom_call.1} parent=1 // pred_check_branch
      %245 = sbr.rel (0) target = $region85
    $region84: #{tpu_custom_call.1} parent=1 // pred_region
      %s247 = ssub.s32 2048, 2048
      %248 = vsyncadd [#allocation32], %s247
      %s249 = sshll.u32 [#allocation33], 4
      %s250 = int_to_ptr.vmem [resolvable:$true] %s249
      %255 = dma.hbm_to_vmem [thread:$0]  %s20, 2048, %s250, [#allocation32], 64, 64, 4
    $region85: #{tpu_custom_call.1} parent=1 // pred_fallthru
      _
    // Predicated region
    $region86: #{tpu_custom_call.1} parent=1 // pred_check
      _
    $region87: #{tpu_custom_call.1} parent=1 // pred_check_branch
      %257 = sbr.rel (0) target = $region89
    $region88: #{tpu_custom_call.1} parent=1 // pred_region
      %s259 = ssub.s32 16, 16
      %260 = vsyncadd [#allocation35], %s259
      %s262 = sshll.u32 [#allocation34], 4
      %s263 = int_to_ptr.vmem [resolvable:$true] %s262
      %265 = dma.hbm_to_vmem [thread:$0]  %s21, 16, %s263, [#allocation35]
    $region89: #{tpu_custom_call.1} parent=1 // pred_fallthru
      _
    // Predicated region
    $region90: #{tpu_custom_call.1} parent=1 // pred_check
      _
    $region91: #{tpu_custom_call.1} parent=1 // pred_check_branch
      %267 = sbr.rel (0) target = $region93
    $region92: #{tpu_custom_call.1} parent=1 // pred_region
      %s269 = ssub.s32 1024, 1024
      %270 = vsyncadd [#allocation35], %s269
      %s271 = sshll.u32 [#allocation36], 4
      %s272 = int_to_ptr.vmem [resolvable:$true] %s271
      %277 = dma.hbm_to_vmem [thread:$0]  %s22, 1024, %s272, [#allocation35], 64, 64, 4
    $region93: #{tpu_custom_call.1} parent=1 // pred_fallthru
      _
    // Predicated region
    $region94: #{tpu_custom_call.1} parent=1 // pred_check
      _
    $region95: #{tpu_custom_call.1} parent=1 // pred_check_branch
      %279 = sbr.rel (0) target = $region97
    $region96: #{tpu_custom_call.1} parent=1 // pred_region
      %s281 = ssub.s32 16, 16
      %282 = vsyncadd [#allocation38], %s281
      %s284 = sshll.u32 [#allocation37], 4
      %s285 = int_to_ptr.vmem [resolvable:$true] %s284
      %287 = dma.hbm_to_vmem [thread:$0]  %s23, 16, %s285, [#allocation38]
    $region97: #{tpu_custom_call.1} parent=1 // pred_fallthru
      _
    // Predicated region
    $region98: #{tpu_custom_call.1} parent=1 // pred_check
      _
    $region99: #{tpu_custom_call.1} parent=1 // pred_check_branch
      %289 = sbr.rel (0) target = $region101
    $region100: #{tpu_custom_call.1} parent=1 // pred_region
      %290 = dma.done [#allocation5], 128
    $region101: #{tpu_custom_call.1} parent=1 // pred_fallthru
      _
    // Predicated region
    $region102: #{tpu_custom_call.1} parent=1 // pred_check
      _
    $region103: #{tpu_custom_call.1} parent=1 // pred_check_branch
      %292 = sbr.rel (0) target = $region105
    $region104: #{tpu_custom_call.1} parent=1 // pred_region
      %293 = dma.done [#allocation8], 128
    $region105: #{tpu_custom_call.1} parent=1 // pred_fallthru
      _
    // Predicated region
    $region106: #{tpu_custom_call.1} parent=1 // pred_check
      _
    $region107: #{tpu_custom_call.1} parent=1 // pred_check_branch
      %295 = sbr.rel (0) target = $region109
    $region108: #{tpu_custom_call.1} parent=1 // pred_region
      %296 = dma.done [#allocation8], 128
    $region109: #{tpu_custom_call.1} parent=1 // pred_fallthru
      _
    // Predicated region
    $region110: #{tpu_custom_call.1} parent=1 // pred_check
      _
    $region111: #{tpu_custom_call.1} parent=1 // pred_check_branch
      %298 = sbr.rel (0) target = $region113
    $region112: #{tpu_custom_call.1} parent=1 // pred_region
      %299 = dma.done [#allocation11], 1536
    $region113: #{tpu_custom_call.1} parent=1 // pred_fallthru
      _
    // Predicated region
    $region114: #{tpu_custom_call.1} parent=1 // pred_check
      _
    $region115: #{tpu_custom_call.1} parent=1 // pred_check_branch
      %301 = sbr.rel (0) target = $region117
    $region116: #{tpu_custom_call.1} parent=1 // pred_region
      %302 = dma.done [#allocation11], 96
    $region117: #{tpu_custom_call.1} parent=1 // pred_fallthru
      _
    // Predicated region
    $region118: #{tpu_custom_call.1} parent=1 // pred_check
      _
    $region119: #{tpu_custom_call.1} parent=1 // pred_check_branch
      %304 = sbr.rel (0) target = $region121
    $region120: #{tpu_custom_call.1} parent=1 // pred_region
      %305 = dma.done [#allocation14], 1536
    $region121: #{tpu_custom_call.1} parent=1 // pred_fallthru
      _
    // Predicated region
    $region122: #{tpu_custom_call.1} parent=1 // pred_check
      _
    $region123: #{tpu_custom_call.1} parent=1 // pred_check_branch
      %307 = sbr.rel (0) target = $region125
    $region124: #{tpu_custom_call.1} parent=1 // pred_region
      %308 = dma.done [#allocation14], 96
    $region125: #{tpu_custom_call.1} parent=1 // pred_fallthru
      _
    // Predicated region
    $region126: #{tpu_custom_call.1} parent=1 // pred_check
      _
    $region127: #{tpu_custom_call.1} parent=1 // pred_check_branch
      %310 = sbr.rel (0) target = $region129
    $region128: #{tpu_custom_call.1} parent=1 // pred_region
      %311 = dma.done [#allocation17], 96
    $region129: #{tpu_custom_call.1} parent=1 // pred_fallthru
      _
    // Predicated region
    $region130: #{tpu_custom_call.1} parent=1 // pred_check
      _
    $region131: #{tpu_custom_call.1} parent=1 // pred_check_branch
      %313 = sbr.rel (0) target = $region133
    $region132: #{tpu_custom_call.1} parent=1 // pred_region
      %314 = dma.done [#allocation17], 96
    $region133: #{tpu_custom_call.1} parent=1 // pred_fallthru
      _
    // Predicated region
    $region134: #{tpu_custom_call.1} parent=1 // pred_check
      _
    $region135: #{tpu_custom_call.1} parent=1 // pred_check_branch
      %316 = sbr.rel (0) target = $region137
    $region136: #{tpu_custom_call.1} parent=1 // pred_region
      %317 = dma.done [#allocation20], 896
    $region137: #{tpu_custom_call.1} parent=1 // pred_fallthru
      _
    // Predicated region
    $region138: #{tpu_custom_call.1} parent=1 // pred_check
      _
    $region139: #{tpu_custom_call.1} parent=1 // pred_check_branch
      %319 = sbr.rel (0) target = $region141
    $region140: #{tpu_custom_call.1} parent=1 // pred_region
      %320 = dma.done [#allocation20], 16
    $region141: #{tpu_custom_call.1} parent=1 // pred_fallthru
      _
    // Predicated region
    $region142: #{tpu_custom_call.1} parent=1 // pred_check
      _
    $region143: #{tpu_custom_call.1} parent=1 // pred_check_branch
      %322 = sbr.rel (0) target = $region145
    $region144: #{tpu_custom_call.1} parent=1 // pred_region
      %323 = dma.done [#allocation23], 73728
    $region145: #{tpu_custom_call.1} parent=1 // pred_fallthru
      _
    // Predicated region
    $region146: #{tpu_custom_call.1} parent=1 // pred_check
      _
    $region147: #{tpu_custom_call.1} parent=1 // pred_check_branch
      %325 = sbr.rel (0) target = $region149
    $region148: #{tpu_custom_call.1} parent=1 // pred_region
      %326 = dma.done [#allocation23], 2688
    $region149: #{tpu_custom_call.1} parent=1 // pred_fallthru
      _
    // Predicated region
    $region150: #{tpu_custom_call.1} parent=1 // pred_check
      _
    $region151: #{tpu_custom_call.1} parent=1 // pred_check_branch
      %328 = sbr.rel (0) target = $region153
    $region152: #{tpu_custom_call.1} parent=1 // pred_region
      %329 = dma.done [#allocation26], 96
    $region153: #{tpu_custom_call.1} parent=1 // pred_fallthru
      _
    // Predicated region
    $region154: #{tpu_custom_call.1} parent=1 // pred_check
      _
    $region155: #{tpu_custom_call.1} parent=1 // pred_check_branch
      %331 = sbr.rel (0) target = $region157
    $region156: #{tpu_custom_call.1} parent=1 // pred_region
      %332 = dma.done [#allocation26], 24576
    $region157: #{tpu_custom_call.1} parent=1 // pred_fallthru
      _
    // Predicated region
    $region158: #{tpu_custom_call.1} parent=1 // pred_check
      _
    $region159: #{tpu_custom_call.1} parent=1 // pred_check_branch
      %334 = sbr.rel (0) target = $region161
    $region160: #{tpu_custom_call.1} parent=1 // pred_region
      %335 = dma.done [#allocation29], 64
    $region161: #{tpu_custom_call.1} parent=1 // pred_fallthru
      _
    // Predicated region
    $region162: #{tpu_custom_call.1} parent=1 // pred_check
      _
    $region163: #{tpu_custom_call.1} parent=1 // pred_check_branch
      %337 = sbr.rel (0) target = $region165
    $region164: #{tpu_custom_call.1} parent=1 // pred_region
      %338 = dma.done [#allocation29], 8192
    $region165: #{tpu_custom_call.1} parent=1 // pred_fallthru
      _
    // Predicated region
    $region166: #{tpu_custom_call.1} parent=1 // pred_check
      _
    $region167: #{tpu_custom_call.1} parent=1 // pred_check_branch
      %340 = sbr.rel (0) target = $region169
    $region168: #{tpu_custom_call.1} parent=1 // pred_region
      %341 = dma.done [#allocation32], 32
    $region169: #{tpu_custom_call.1} parent=1 // pred_fallthru
      _
    // Predicated region
    $region170: #{tpu_custom_call.1} parent=1 // pred_check
      _
    $region171: #{tpu_custom_call.1} parent=1 // pred_check_branch
      %343 = sbr.rel (0) target = $region173
    $region172: #{tpu_custom_call.1} parent=1 // pred_region
      %344 = dma.done [#allocation32], 2048
    $region173: #{tpu_custom_call.1} parent=1 // pred_fallthru
      _
    // Predicated region
    $region174: #{tpu_custom_call.1} parent=1 // pred_check
      _
    $region175: #{tpu_custom_call.1} parent=1 // pred_check_branch
      %346 = sbr.rel (0) target = $region177
    $region176: #{tpu_custom_call.1} parent=1 // pred_region
      %347 = dma.done [#allocation35], 16
    $region177: #{tpu_custom_call.1} parent=1 // pred_fallthru
      _
    // Predicated region
    $region178: #{tpu_custom_call.1} parent=1 // pred_check
      _
    $region179: #{tpu_custom_call.1} parent=1 // pred_check_branch
      %349 = sbr.rel (0) target = $region181
    $region180: #{tpu_custom_call.1} parent=1 // pred_region
      %350 = dma.done [#allocation35], 1024
    $region181: #{tpu_custom_call.1} parent=1 // pred_fallthru
      _
    // Predicated region
    $region182: #{tpu_custom_call.1} parent=1 // pred_check
      _
    $region183: #{tpu_custom_call.1} parent=1 // pred_check_branch
      %352 = sbr.rel (0) target = $region185
    $region184: #{tpu_custom_call.1} parent=1 // pred_region
      %353 = dma.done [#allocation38], 16
    $region185: #{tpu_custom_call.1} parent=1 // pred_fallthru
      _
    %v355 = vld [vmem:[#allocation4] sm:$0xff]
    %v356 = vpack.c.bf16 %v355, %v355
    %v357 = vld [vmem:[#allocation10] sm:$0xff]
    %v358 = vld [vmem:[#allocation10 + $0x8] sm:$0xff]
    %v359 = vld [vmem:[#allocation10 + $0x10] sm:$0xff]
    %v360 = vld [vmem:[#allocation10 + $0x18] sm:$0xff]
    %v361 = vld [vmem:[#allocation10 + $0x20] sm:$0xff]
    %v362 = vld [vmem:[#allocation10 + $0x28] sm:$0xff]
    %v363 = vld [vmem:[#allocation10 + $0x30] sm:$0xff]
    %v364 = vld [vmem:[#allocation10 + $0x38] sm:$0xff]
    %v365 = vld [vmem:[#allocation10 + $0x40] sm:$0xff]
    %v366 = vld [vmem:[#allocation10 + $0x48] sm:$0xff]
    %v367 = vld [vmem:[#allocation10 + $0x50] sm:$0xff]
    %v368 = vld [vmem:[#allocation10 + $0x58] sm:$0xff]
    %v369 = vld [vmem:[#allocation12] sm:$0x3f]
    %v371 = vlaneseq
    %v372 = vshrl.u32 %v371, 7
    %v373 = vsub.s32 0, %v372
    %v374 = vrot.slane %v369, %v373
    %v375 = vlaneseq
    %v376 = vshrl.u32 %v375, 7
    %v377 = vsub.s32 1, %v376
    %v378 = vrot.slane %v369, %v377
    %v379 = vlaneseq
    %v380 = vshrl.u32 %v379, 7
    %v381 = vsub.s32 2, %v380
    %v382 = vrot.slane %v369, %v381
    %v383 = vlaneseq
    %v384 = vshrl.u32 %v383, 7
    %v385 = vsub.s32 3, %v384
    %v386 = vrot.slane %v369, %v385
    %v387 = vlaneseq
    %v388 = vshrl.u32 %v387, 7
    %v389 = vsub.s32 4, %v388
    %v390 = vrot.slane %v369, %v389
    %v391 = vlaneseq
    %v392 = vshrl.u32 %v391, 7
    %v393 = vsub.s32 5, %v392
    %v394 = vrot.slane %v369, %v393
    %v413 = vunpack.c.l.b16 %v357
    %v414 = vunpack.c.h.b16 %v357
    %v415 = vunpack.c.l.b16 %v358
    %v416 = vunpack.c.h.b16 %v358
    %v417 = vunpack.c.l.b16 %v359
    %v418 = vunpack.c.h.b16 %v359
    %v419 = vunpack.c.l.b16 %v360
    %v420 = vunpack.c.h.b16 %v360
    %v421 = vunpack.c.l.b16 %v361
    %v422 = vunpack.c.h.b16 %v361
    %v423 = vunpack.c.l.b16 %v362
    %v424 = vunpack.c.h.b16 %v362
    %v425 = vunpack.c.l.b16 %v363
    %v426 = vunpack.c.h.b16 %v363
    %v427 = vunpack.c.l.b16 %v364
    %v428 = vunpack.c.h.b16 %v364
    %v429 = vunpack.c.l.b16 %v365
    %v430 = vunpack.c.h.b16 %v365
    %v431 = vunpack.c.l.b16 %v366
    %v432 = vunpack.c.h.b16 %v366
    %v433 = vunpack.c.l.b16 %v367
    %v434 = vunpack.c.h.b16 %v367
    %v435 = vunpack.c.l.b16 %v368
    %v436 = vunpack.c.h.b16 %v368
    %v437 = vpack.c.b16 %v419, %v413
    %v438 = vpack.c.b16 %v420, %v414
    %v439 = vpack.c.b16 %v421, %v415
    %v440 = vpack.c.b16 %v422, %v416
    %v441 = vpack.c.b16 %v423, %v417
    %v442 = vpack.c.b16 %v424, %v418
    %v443 = vpack.c.b16 %v431, %v425
    %v444 = vpack.c.b16 %v432, %v426
    %v445 = vpack.c.b16 %v433, %v427
    %v446 = vpack.c.b16 %v434, %v428
    %v447 = vpack.c.b16 %v435, %v429
    %v448 = vpack.c.b16 %v436, %v430
    %vm461 = vcmask 261120
    %v463 = vsel %vm461, %v356, 0
    %465 = vmatprep.subr.bf16.mxu0 %v438
    %466 = vmatpush1.bf16.msra.mxu0 %v437
    %467 = vmatprep.subr.bf16.mxu0 %v444
    %468 = vmatpush1.bf16.msra.mxu0 %v443
    %469 = vmatprep.subr.bf16.mxu0 0
    %470 = vmatpush1.bf16.msra.mxu0 0
    %471 = vmatprep.subr.bf16.mxu0 0
    %472 = vmatpush1.bf16.msra.mxu0 0
    %473 = vmatprep.subr.bf16.mxu0 0
    %474 = vmatpush1.bf16.msra.mxu0 0
    %475 = vmatprep.subr.bf16.mxu0 0
    %476 = vmatpush1.bf16.msra.mxu0 0
    %477 = vmatprep.subr.bf16.mxu0 0
    %478 = vmatpush1.bf16.msra.mxu0 0
    %479 = vmatprep.subr.bf16.mxu0 0
    %480 = vmatpush1.bf16.msra.mxu0 0
    %481 = vmatprep.subr.bf16.mxu0 0
    %482 = vmatpush1.bf16.msra.mxu0 0
    %483 = vmatprep.subr.bf16.mxu0 0
    %484 = vmatpush1.bf16.msra.mxu0 0
    %485 = vmatprep.subr.bf16.mxu0 0
    %486 = vmatpush1.bf16.msra.mxu0 0
    %487 = vmatprep.subr.bf16.mxu0 0
    %488 = vmatpush1.bf16.msra.mxu0 0
    %489 = vmatprep.subr.bf16.mxu0 0
    %490 = vmatpush1.bf16.msra.mxu0 0
    %491 = vmatprep.subr.bf16.mxu0 0
    %492 = vmatpush1.bf16.msra.mxu0 0
    %493 = vmatprep.subr.bf16.mxu0 0
    %494 = vmatpush1.bf16.msra.mxu0 0
    %495 = vmatprep.subr.bf16.mxu0 0
    %496 = vmatpush1.bf16.msra.mxu0 0
    %497 = vmatprep.mubr.bf16.mxu0 0
    %498 = vmatmul.mubr.bf16.gmra.mrb[0].mxu0 %v463
    %v499 = vpop.f32.mrb[0].mxu0
    %v500 = vadd.f32 %v374, %v499
    %v501 = vpop.f32.mrb[0].mxu0
    %v502 = vadd.f32 %v378, %v501
    %v503 = vpop.f32.mrb[0].mxu0
    %v504 = vpop.f32.mrb[0].mxu0
    %505 = vdwg.mxu0
    %506 = vmatprep.subr.bf16.mxu0 %v440
    %507 = vmatpush1.bf16.msra.mxu0 %v439
    %508 = vmatprep.subr.bf16.mxu0 %v446
    %509 = vmatpush1.bf16.msra.mxu0 %v445
    %510 = vmatprep.subr.bf16.mxu0 0
    %511 = vmatpush1.bf16.msra.mxu0 0
    %512 = vmatprep.subr.bf16.mxu0 0
    %513 = vmatpush1.bf16.msra.mxu0 0
    %514 = vmatprep.subr.bf16.mxu0 0
    %515 = vmatpush1.bf16.msra.mxu0 0
    %516 = vmatprep.subr.bf16.mxu0 0
    %517 = vmatpush1.bf16.msra.mxu0 0
    %518 = vmatprep.subr.bf16.mxu0 0
    %519 = vmatpush1.bf16.msra.mxu0 0
    %520 = vmatprep.subr.bf16.mxu0 0
    %521 = vmatpush1.bf16.msra.mxu0 0
    %522 = vmatprep.subr.bf16.mxu0 0
    %523 = vmatpush1.bf16.msra.mxu0 0
    %524 = vmatprep.subr.bf16.mxu0 0
    %525 = vmatpush1.bf16.msra.mxu0 0
    %526 = vmatprep.subr.bf16.mxu0 0
    %527 = vmatpush1.bf16.msra.mxu0 0
    %528 = vmatprep.subr.bf16.mxu0 0
    %529 = vmatpush1.bf16.msra.mxu0 0
    %530 = vmatprep.subr.bf16.mxu0 0
    %531 = vmatpush1.bf16.msra.mxu0 0
    %532 = vmatprep.subr.bf16.mxu0 0
    %533 = vmatpush1.bf16.msra.mxu0 0
    %534 = vmatprep.subr.bf16.mxu0 0
    %535 = vmatpush1.bf16.msra.mxu0 0
    %536 = vmatprep.subr.bf16.mxu0 0
    %537 = vmatpush1.bf16.msra.mxu0 0
    %538 = vmatprep.mubr.bf16.mxu0 0
    %539 = vmatmul.mubr.bf16.gmra.mrb[0].mxu0 %v463
    %v540 = vpop.f32.mrb[0].mxu0
    %v541 = vadd.f32 %v382, %v540
    %v542 = vpop.f32.mrb[0].mxu0
    %v543 = vadd.f32 %v386, %v542
    %v544 = vpop.f32.mrb[0].mxu0
    %v545 = vpop.f32.mrb[0].mxu0
    %546 = vdwg.mxu0
    %547 = vmatprep.subr.bf16.mxu0 %v442
    %548 = vmatpush1.bf16.msra.mxu0 %v441
    %549 = vmatprep.subr.bf16.mxu0 %v448
    %550 = vmatpush1.bf16.msra.mxu0 %v447
    %551 = vmatprep.subr.bf16.mxu0 0
    %552 = vmatpush1.bf16.msra.mxu0 0
    %553 = vmatprep.subr.bf16.mxu0 0
    %554 = vmatpush1.bf16.msra.mxu0 0
    %555 = vmatprep.subr.bf16.mxu0 0
    %556 = vmatpush1.bf16.msra.mxu0 0
    %557 = vmatprep.subr.bf16.mxu0 0
    %558 = vmatpush1.bf16.msra.mxu0 0
    %559 = vmatprep.subr.bf16.mxu0 0
    %560 = vmatpush1.bf16.msra.mxu0 0
    %561 = vmatprep.subr.bf16.mxu0 0
    %562 = vmatpush1.bf16.msra.mxu0 0
    %563 = vmatprep.subr.bf16.mxu0 0
    %564 = vmatpush1.bf16.msra.mxu0 0
    %565 = vmatprep.subr.bf16.mxu0 0
    %566 = vmatpush1.bf16.msra.mxu0 0
    %567 = vmatprep.subr.bf16.mxu0 0
    %568 = vmatpush1.bf16.msra.mxu0 0
    %569 = vmatprep.subr.bf16.mxu0 0
    %570 = vmatpush1.bf16.msra.mxu0 0
    %571 = vmatprep.subr.bf16.mxu0 0
    %572 = vmatpush1.bf16.msra.mxu0 0
    %573 = vmatprep.subr.bf16.mxu0 0
    %574 = vmatpush1.bf16.msra.mxu0 0
    %575 = vmatprep.subr.bf16.mxu0 0
    %576 = vmatpush1.bf16.msra.mxu0 0
    %577 = vmatprep.subr.bf16.mxu0 0
    %578 = vmatpush1.bf16.msra.mxu0 0
    %579 = vmatprep.mubr.bf16.mxu0 0
    %580 = vmatmul.mubr.bf16.gmra.mrb[0].mxu0 %v463
    %v581 = vpop.f32.mrb[0].mxu0
    %v582 = vadd.f32 %v390, %v581
    %v583 = vpop.f32.mrb[0].mxu0
    %v584 = vadd.f32 %v394, %v583
    %v585 = vpop.f32.mrb[0].mxu0
    %v586 = vpop.f32.mrb[0].mxu0
    %587 = vdwg.mxu0
    %v588 = vld [vmem:[#allocation7] sm:$0xff]
    %v589 = vpack.c.bf16 %v588, %v588
    %v590 = vld [vmem:[#allocation13] sm:$0xff]
    %v591 = vld [vmem:[#allocation13 + $0x8] sm:$0xff]
    %v592 = vld [vmem:[#allocation13 + $0x10] sm:$0xff]
    %v593 = vld [vmem:[#allocation13 + $0x18] sm:$0xff]
    %v594 = vld [vmem:[#allocation13 + $0x20] sm:$0xff]
    %v595 = vld [vmem:[#allocation13 + $0x28] sm:$0xff]
    %v596 = vld [vmem:[#allocation13 + $0x30] sm:$0xff]
    %v597 = vld [vmem:[#allocation13 + $0x38] sm:$0xff]
    %v598 = vld [vmem:[#allocation13 + $0x40] sm:$0xff]
    %v599 = vld [vmem:[#allocation13 + $0x48] sm:$0xff]
    %v600 = vld [vmem:[#allocation13 + $0x50] sm:$0xff]
    %v601 = vld [vmem:[#allocation13 + $0x58] sm:$0xff]
    %v602 = vld [vmem:[#allocation15] sm:$0x3f]
    %v604 = vlaneseq
    %v605 = vshrl.u32 %v604, 7
    %v606 = vsub.s32 0, %v605
    %v607 = vrot.slane %v602, %v606
    %v608 = vlaneseq
    %v609 = vshrl.u32 %v608, 7
    %v610 = vsub.s32 1, %v609
    %v611 = vrot.slane %v602, %v610
    %v612 = vlaneseq
    %v613 = vshrl.u32 %v612, 7
    %v614 = vsub.s32 2, %v613
    %v615 = vrot.slane %v602, %v614
    %v616 = vlaneseq
    %v617 = vshrl.u32 %v616, 7
    %v618 = vsub.s32 3, %v617
    %v619 = vrot.slane %v602, %v618
    %v620 = vlaneseq
    %v621 = vshrl.u32 %v620, 7
    %v622 = vsub.s32 4, %v621
    %v623 = vrot.slane %v602, %v622
    %v624 = vlaneseq
    %v625 = vshrl.u32 %v624, 7
    %v626 = vsub.s32 5, %v625
    %v627 = vrot.slane %v602, %v626
    %v646 = vunpack.c.l.b16 %v590
    %v647 = vunpack.c.h.b16 %v590
    %v648 = vunpack.c.l.b16 %v591
    %v649 = vunpack.c.h.b16 %v591
    %v650 = vunpack.c.l.b16 %v592
    %v651 = vunpack.c.h.b16 %v592
    %v652 = vunpack.c.l.b16 %v593
    %v653 = vunpack.c.h.b16 %v593
    %v654 = vunpack.c.l.b16 %v594
    %v655 = vunpack.c.h.b16 %v594
    %v656 = vunpack.c.l.b16 %v595
    %v657 = vunpack.c.h.b16 %v595
    %v658 = vunpack.c.l.b16 %v596
    %v659 = vunpack.c.h.b16 %v596
    %v660 = vunpack.c.l.b16 %v597
    %v661 = vunpack.c.h.b16 %v597
    %v662 = vunpack.c.l.b16 %v598
    %v663 = vunpack.c.h.b16 %v598
    %v664 = vunpack.c.l.b16 %v599
    %v665 = vunpack.c.h.b16 %v599
    %v666 = vunpack.c.l.b16 %v600
    %v667 = vunpack.c.h.b16 %v600
    %v668 = vunpack.c.l.b16 %v601
    %v669 = vunpack.c.h.b16 %v601
    %v670 = vpack.c.b16 %v652, %v646
    %v671 = vpack.c.b16 %v653, %v647
    %v672 = vpack.c.b16 %v654, %v648
    %v673 = vpack.c.b16 %v655, %v649
    %v674 = vpack.c.b16 %v656, %v650
    %v675 = vpack.c.b16 %v657, %v651
    %v676 = vpack.c.b16 %v664, %v658
    %v677 = vpack.c.b16 %v665, %v659
    %v678 = vpack.c.b16 %v666, %v660
    %v679 = vpack.c.b16 %v667, %v661
    %v680 = vpack.c.b16 %v668, %v662
    %v681 = vpack.c.b16 %v669, %v663
    %v695 = vsel %vm461, %v589, 0
    %697 = vmatprep.subr.bf16.mxu0 %v671
    %698 = vmatpush1.bf16.msra.mxu0 %v670
    %699 = vmatprep.subr.bf16.mxu0 %v677
    %700 = vmatpush1.bf16.msra.mxu0 %v676
    %701 = vmatprep.subr.bf16.mxu0 0
    %702 = vmatpush1.bf16.msra.mxu0 0
    %703 = vmatprep.subr.bf16.mxu0 0
    %704 = vmatpush1.bf16.msra.mxu0 0
    %705 = vmatprep.subr.bf16.mxu0 0
    %706 = vmatpush1.bf16.msra.mxu0 0
    %707 = vmatprep.subr.bf16.mxu0 0
    %708 = vmatpush1.bf16.msra.mxu0 0
    %709 = vmatprep.subr.bf16.mxu0 0
    %710 = vmatpush1.bf16.msra.mxu0 0
    %711 = vmatprep.subr.bf16.mxu0 0
    %712 = vmatpush1.bf16.msra.mxu0 0
    %713 = vmatprep.subr.bf16.mxu0 0
    %714 = vmatpush1.bf16.msra.mxu0 0
    %715 = vmatprep.subr.bf16.mxu0 0
    %716 = vmatpush1.bf16.msra.mxu0 0
    %717 = vmatprep.subr.bf16.mxu0 0
    %718 = vmatpush1.bf16.msra.mxu0 0
    %719 = vmatprep.subr.bf16.mxu0 0
    %720 = vmatpush1.bf16.msra.mxu0 0
    %721 = vmatprep.subr.bf16.mxu0 0
    %722 = vmatpush1.bf16.msra.mxu0 0
    %723 = vmatprep.subr.bf16.mxu0 0
    %724 = vmatpush1.bf16.msra.mxu0 0
    %725 = vmatprep.subr.bf16.mxu0 0
    %726 = vmatpush1.bf16.msra.mxu0 0
    %727 = vmatprep.subr.bf16.mxu0 0
    %728 = vmatpush1.bf16.msra.mxu0 0
    %729 = vmatprep.mubr.bf16.mxu0 0
    %730 = vmatmul.mubr.bf16.gmra.mrb[0].mxu0 %v695
    %v731 = vpop.f32.mrb[0].mxu0
    %v732 = vadd.f32 %v607, %v731
    %v733 = vpop.f32.mrb[0].mxu0
    %v734 = vadd.f32 %v611, %v733
    %v735 = vpop.f32.mrb[0].mxu0
    %v736 = vpop.f32.mrb[0].mxu0
    %737 = vdwg.mxu0
    %738 = vmatprep.subr.bf16.mxu0 %v673
    %739 = vmatpush1.bf16.msra.mxu0 %v672
    %740 = vmatprep.subr.bf16.mxu0 %v679
    %741 = vmatpush1.bf16.msra.mxu0 %v678
    %742 = vmatprep.subr.bf16.mxu0 0
    %743 = vmatpush1.bf16.msra.mxu0 0
    %744 = vmatprep.subr.bf16.mxu0 0
    %745 = vmatpush1.bf16.msra.mxu0 0
    %746 = vmatprep.subr.bf16.mxu0 0
    %747 = vmatpush1.bf16.msra.mxu0 0
    %748 = vmatprep.subr.bf16.mxu0 0
    %749 = vmatpush1.bf16.msra.mxu0 0
    %750 = vmatprep.subr.bf16.mxu0 0
    %751 = vmatpush1.bf16.msra.mxu0 0
    %752 = vmatprep.subr.bf16.mxu0 0
    %753 = vmatpush1.bf16.msra.mxu0 0
    %754 = vmatprep.subr.bf16.mxu0 0
    %755 = vmatpush1.bf16.msra.mxu0 0
    %756 = vmatprep.subr.bf16.mxu0 0
    %757 = vmatpush1.bf16.msra.mxu0 0
    %758 = vmatprep.subr.bf16.mxu0 0
    %759 = vmatpush1.bf16.msra.mxu0 0
    %760 = vmatprep.subr.bf16.mxu0 0
    %761 = vmatpush1.bf16.msra.mxu0 0
    %762 = vmatprep.subr.bf16.mxu0 0
    %763 = vmatpush1.bf16.msra.mxu0 0
    %764 = vmatprep.subr.bf16.mxu0 0
    %765 = vmatpush1.bf16.msra.mxu0 0
    %766 = vmatprep.subr.bf16.mxu0 0
    %767 = vmatpush1.bf16.msra.mxu0 0
    %768 = vmatprep.subr.bf16.mxu0 0
    %769 = vmatpush1.bf16.msra.mxu0 0
    %770 = vmatprep.mubr.bf16.mxu0 0
    %771 = vmatmul.mubr.bf16.gmra.mrb[0].mxu0 %v695
    %v772 = vpop.f32.mrb[0].mxu0
    %v773 = vadd.f32 %v615, %v772
    %v774 = vpop.f32.mrb[0].mxu0
    %v775 = vadd.f32 %v619, %v774
    %v776 = vpop.f32.mrb[0].mxu0
    %v777 = vpop.f32.mrb[0].mxu0
    %778 = vdwg.mxu0
    %779 = vmatprep.subr.bf16.mxu0 %v675
    %780 = vmatpush1.bf16.msra.mxu0 %v674
    %781 = vmatprep.subr.bf16.mxu0 %v681
    %782 = vmatpush1.bf16.msra.mxu0 %v680
    %783 = vmatprep.subr.bf16.mxu0 0
    %784 = vmatpush1.bf16.msra.mxu0 0
    %785 = vmatprep.subr.bf16.mxu0 0
    %786 = vmatpush1.bf16.msra.mxu0 0
    %787 = vmatprep.subr.bf16.mxu0 0
    %788 = vmatpush1.bf16.msra.mxu0 0
    %789 = vmatprep.subr.bf16.mxu0 0
    %790 = vmatpush1.bf16.msra.mxu0 0
    %791 = vmatprep.subr.bf16.mxu0 0
    %792 = vmatpush1.bf16.msra.mxu0 0
    %793 = vmatprep.subr.bf16.mxu0 0
    %794 = vmatpush1.bf16.msra.mxu0 0
    %795 = vmatprep.subr.bf16.mxu0 0
    %796 = vmatpush1.bf16.msra.mxu0 0
    %797 = vmatprep.subr.bf16.mxu0 0
    %798 = vmatpush1.bf16.msra.mxu0 0
    %799 = vmatprep.subr.bf16.mxu0 0
    %800 = vmatpush1.bf16.msra.mxu0 0
    %801 = vmatprep.subr.bf16.mxu0 0
    %802 = vmatpush1.bf16.msra.mxu0 0
    %803 = vmatprep.subr.bf16.mxu0 0
    %804 = vmatpush1.bf16.msra.mxu0 0
    %805 = vmatprep.subr.bf16.mxu0 0
    %806 = vmatpush1.bf16.msra.mxu0 0
    %807 = vmatprep.subr.bf16.mxu0 0
    %808 = vmatpush1.bf16.msra.mxu0 0
    %809 = vmatprep.subr.bf16.mxu0 0
    %810 = vmatpush1.bf16.msra.mxu0 0
    %811 = vmatprep.mubr.bf16.mxu0 0
    %812 = vmatmul.mubr.bf16.gmra.mrb[0].mxu0 %v695
    %v813 = vpop.f32.mrb[0].mxu0
    %v814 = vadd.f32 %v623, %v813
    %v815 = vpop.f32.mrb[0].mxu0
    %v816 = vadd.f32 %v627, %v815
    %v817 = vpop.f32.mrb[0].mxu0
    %v818 = vpop.f32.mrb[0].mxu0
    %819 = vdwg.mxu0
    %v820 = vld [vmem:[#allocation9] sm:$0xff]
    %v821 = vld [vmem:[#allocation16] sm:$0x3f]
    %v823 = vlaneseq
    %v824 = vshrl.u32 %v823, 7
    %v825 = vsub.s32 0, %v824
    %v826 = vrot.slane %v821, %v825
    %v827 = vlaneseq
    %v828 = vshrl.u32 %v827, 7
    %v829 = vsub.s32 1, %v828
    %v830 = vrot.slane %v821, %v829
    %v831 = vlaneseq
    %v832 = vshrl.u32 %v831, 7
    %v833 = vsub.s32 2, %v832
    %v834 = vrot.slane %v821, %v833
    %v835 = vlaneseq
    %v836 = vshrl.u32 %v835, 7
    %v837 = vsub.s32 3, %v836
    %v838 = vrot.slane %v821, %v837
    %v839 = vlaneseq
    %v840 = vshrl.u32 %v839, 7
    %v841 = vsub.s32 4, %v840
    %v842 = vrot.slane %v821, %v841
    %v843 = vlaneseq
    %v844 = vshrl.u32 %v843, 7
    %v845 = vsub.s32 5, %v844
    %v846 = vrot.slane %v821, %v845
    %v853 = vmul.f32 %v500, %v826
    %v854 = vmul.f32 %v502, %v830
    %v855 = vmul.f32 %v541, %v834
    %v856 = vmul.f32 %v543, %v838
    %v857 = vmul.f32 %v582, %v842
    %v858 = vmul.f32 %v584, %v846
    %v859 = vadd.f32 %v853, %v854
    %v860 = vadd.f32 %v859, %v855
    %v861 = vadd.f32 %v860, %v856
    %v862 = vadd.f32 %v861, %v857
    %v863 = vadd.f32 %v862, %v858
    %864 = vadd.xlane.f32.xlu0 %v863
    %v865 = vpop.xlane.xlu0 %864
    %v866 = vld [vmem:[#allocation2] sm:$0x1]
    %v868 = vlaneseq
    %v869 = vshrl.u32 %v868, 7
    %v870 = vsub.s32 0, %v869
    %v871 = vrot.slane %v866, %v870
    %v873 = vadd.f32 %v865, %v871
    %v874 = vxor.u32 %v873, 2147483648
    %v875 = vmul.f32 %v874, 1.442695
    %v876 = vpow.pop %v875
    %v877 = vadd.f32 %v876, 1.0
    %v878 = vrcp.pop %v877
    %v879 = vmul.f32 1.0, %v878
    %881 = vset.pattern.permute.xlu0 0
    %882 = vperm.xlu0 %881, %v879
    %v883 = vpop.permute.xlu0 %882
    %v885 = vmul.f32 %v883, %v500
    %v886 = vmul.f32 %v883, %v502
    %v887 = vmul.f32 %v883, %v541
    %v888 = vmul.f32 %v883, %v543
    %v889 = vmul.f32 %v883, %v582
    %v890 = vmul.f32 %v883, %v584
    %v891 = vld [vmem:[#allocation18] sm:$0x3f]
    %v893 = vlaneseq
    %v894 = vshrl.u32 %v893, 7
    %v895 = vsub.s32 0, %v894
    %v896 = vrot.slane %v891, %v895
    %v897 = vlaneseq
    %v898 = vshrl.u32 %v897, 7
    %v899 = vsub.s32 1, %v898
    %v900 = vrot.slane %v891, %v899
    %v901 = vlaneseq
    %v902 = vshrl.u32 %v901, 7
    %v903 = vsub.s32 2, %v902
    %v904 = vrot.slane %v891, %v903
    %v905 = vlaneseq
    %v906 = vshrl.u32 %v905, 7
    %v907 = vsub.s32 3, %v906
    %v908 = vrot.slane %v891, %v907
    %v909 = vlaneseq
    %v910 = vshrl.u32 %v909, 7
    %v911 = vsub.s32 4, %v910
    %v912 = vrot.slane %v891, %v911
    %v913 = vlaneseq
    %v914 = vshrl.u32 %v913, 7
    %v915 = vsub.s32 5, %v914
    %v916 = vrot.slane %v891, %v915
    %v923 = vmul.f32 %v732, %v896
    %v924 = vmul.f32 %v734, %v900
    %v925 = vmul.f32 %v773, %v904
    %v926 = vmul.f32 %v775, %v908
    %v927 = vmul.f32 %v814, %v912
    %v928 = vmul.f32 %v816, %v916
    %v929 = vadd.f32 %v923, %v924
    %v930 = vadd.f32 %v929, %v925
    %v931 = vadd.f32 %v930, %v926
    %v932 = vadd.f32 %v931, %v927
    %v933 = vadd.f32 %v932, %v928
    %934 = vadd.xlane.f32.xlu0 %v933
    %v935 = vpop.xlane.xlu0 %934
    %v936 = vld [vmem:[#allocation3] sm:$0x1]
    %v938 = vlaneseq
    %v939 = vshrl.u32 %v938, 7
    %v940 = vsub.s32 0, %v939
    %v941 = vrot.slane %v936, %v940
    %v943 = vadd.f32 %v935, %v941
    %v944 = vxor.u32 %v943, 2147483648
    %v945 = vmul.f32 %v944, 1.442695
    %v946 = vpow.pop %v945
    %v947 = vadd.f32 %v946, 1.0
    %v948 = vrcp.pop %v947
    %v949 = vmul.f32 1.0, %v948
    %951 = vset.pattern.permute.xlu0 0
    %952 = vperm.xlu0 %951, %v949
    %v953 = vpop.permute.xlu0 %952
    %v955 = vmul.f32 %v953, %v732
    %v956 = vmul.f32 %v953, %v734
    %v957 = vmul.f32 %v953, %v773
    %v958 = vmul.f32 %v953, %v775
    %v959 = vmul.f32 %v953, %v814
    %v960 = vmul.f32 %v953, %v816
    %v961 = vld [vmem:[#allocation19] sm:$0xff]
    %v962 = vld [vmem:[#allocation19 + $0x8] sm:$0xff]
    %v963 = vld [vmem:[#allocation19 + $0x10] sm:$0xff]
    %v964 = vld [vmem:[#allocation19 + $0x18] sm:$0xff]
    %v965 = vld [vmem:[#allocation19 + $0x20] sm:$0xff]
    %v966 = vld [vmem:[#allocation19 + $0x28] sm:$0xff]
    %v967 = vld [vmem:[#allocation19 + $0x30] sm:$0x1]
    %v968 = vld [vmem:[#allocation21] sm:$0x1]
    %v970 = vlaneseq
    %v971 = vshrl.u32 %v970, 7
    %v972 = vsub.s32 0, %v971
    %v973 = vrot.slane %v968, %v972
    %vm975 = vcmask 400384
    %v977 = vsel %vm975, %v820, 0
    %vm979 = vcmask 1040384
    %v981 = vsel %vm979, %v967, 0
    %983 = vmatprep.subr.mxu0 0.0
    %984 = vmatpush1.msra.mxu0 %v961
    %985 = vmatprep.subr.mxu0 0.0
    %986 = vmatpush1.msra.mxu0 %v962
    %987 = vmatprep.subr.mxu0 0.0
    %988 = vmatpush1.msra.mxu0 %v963
    %989 = vmatprep.subr.mxu0 0.0
    %990 = vmatpush1.msra.mxu0 %v964
    %991 = vmatprep.subr.mxu0 0.0
    %992 = vmatpush1.msra.mxu0 %v965
    %993 = vmatprep.subr.mxu0 0.0
    %994 = vmatpush1.msra.mxu0 %v966
    %995 = vmatprep.subr.mxu0 0.0
    %996 = vmatpush1.msra.mxu0 %v981
    %997 = vmatprep.subr.mxu0 0.0
    %998 = vmatpush1.msra.mxu0 0.0
    %999 = vmatprep.subr.mxu0 0.0
    %1000 = vmatpush1.msra.mxu0 0.0
    %1001 = vmatprep.subr.mxu0 0.0
    %1002 = vmatpush1.msra.mxu0 0.0
    %1003 = vmatprep.subr.mxu0 0.0
    %1004 = vmatpush1.msra.mxu0 0.0
    %1005 = vmatprep.subr.mxu0 0.0
    %1006 = vmatpush1.msra.mxu0 0.0
    %1007 = vmatprep.subr.mxu0 0.0
    %1008 = vmatpush1.msra.mxu0 0.0
    %1009 = vmatprep.subr.mxu0 0.0
    %1010 = vmatpush1.msra.mxu0 0.0
    %1011 = vmatprep.subr.mxu0 0.0
    %1012 = vmatpush1.msra.mxu0 0.0
    %1013 = vmatprep.subr.mxu0 0.0
    %1014 = vmatpush1.msra.mxu0 0.0
    %1015 = vmatprep.subr.mxu0 0.0
    %1016 = vmatpush1.msra.mxu0 0.0
    %1017 = vmatprep.subr.mxu0 0.0
    %1018 = vmatpush1.msra.mxu0 0.0
    %1019 = vmatprep.subr.mxu0 0.0
    %1020 = vmatpush1.msra.mxu0 0.0
    %1021 = vmatprep.subr.mxu0 0.0
    %1022 = vmatpush1.msra.mxu0 0.0
    %1023 = vmatprep.subr.mxu0 0.0
    %1024 = vmatpush1.msra.mxu0 0.0
    %1025 = vmatprep.subr.mxu0 0.0
    %1026 = vmatpush1.msra.mxu0 0.0
    %1027 = vmatprep.subr.mxu0 0.0
    %1028 = vmatpush1.msra.mxu0 0.0
    %1029 = vmatprep.subr.mxu0 0.0
    %1030 = vmatpush1.msra.mxu0 0.0
    %1031 = vmatprep.subr.mxu0 0.0
    %1032 = vmatpush1.msra.mxu0 0.0
    %1033 = vmatprep.subr.mxu0 0.0
    %1034 = vmatpush1.msra.mxu0 0.0
    %1035 = vmatprep.subr.mxu0 0.0
    %1036 = vmatpush1.msra.mxu0 0.0
    %1037 = vmatprep.subr.mxu0 0.0
    %1038 = vmatpush1.msra.mxu0 0.0
    %1039 = vmatprep.subr.mxu0 0.0
    %1040 = vmatpush1.msra.mxu0 0.0
    %1041 = vmatprep.subr.mxu0 0.0
    %1042 = vmatpush1.msra.mxu0 0.0
    %1043 = vmatprep.subr.mxu0 0.0
    %1044 = vmatpush1.msra.mxu0 0.0
    %1045 = vmatprep.subr.mxu0 0.0
    %1046 = vmatpush1.msra.mxu0 0.0
    %1047 = vmatprep.mubr.f32.mxu0 0.0
    %1048 = vmatmul.mubr.f32.gmra.mrb[0].mxu0 %v977
    %v1049 = vpop.f32.mrb[0].mxu0
    %v1050 = vadd.f32 %v973, %v1049
    %v1051 = vpop.f32.mrb[0].mxu0
    %1052 = vdwg.mxu0
    %v1053 = vsel %vm975, %v1050, -inf
    %1054 = vmax.xlane.f32.xlu0 %v1053
    %v1055 = vpop.xlane.xlu0 %1054
    %v1056 = vsub.f32 %v1050, %v1055
    %v1057 = vmul.f32 %v1056, 1.442695
    %v1058 = vpow.pop %v1057
    %v1059 = vsel %vm975, %v1058, 0.0
    %1060 = vadd.xlane.f32.xlu0 %v1059
    %v1061 = vpop.xlane.xlu0 %1060
    %v1062 = vrcp.pop %v1061
    %v1063 = vmul.f32 %v1058, %v1062
    %v1064 = vmul.f32 %v1063, %v820
    %v1065 = vpack.c.bf16 %v885, %v885
    %v1066 = vpack.c.bf16 %v886, %v886
    %v1067 = vpack.c.bf16 %v887, %v887
    %v1068 = vpack.c.bf16 %v888, %v888
    %v1069 = vpack.c.bf16 %v889, %v889
    %v1070 = vpack.c.bf16 %v890, %v890
    %v1071 = vpack.c.bf16 %v955, %v955
    %v1072 = vpack.c.bf16 %v956, %v956
    %v1073 = vpack.c.bf16 %v957, %v957
    %v1074 = vpack.c.bf16 %v958, %v958
    %v1075 = vpack.c.bf16 %v959, %v959
    %v1076 = vpack.c.bf16 %v960, %v960
    %v1077 = vld [vmem:[#allocation22] sm:$0xff]
    %v1078 = vld [vmem:[#allocation22 + $0x8] sm:$0xff]
    %v1079 = vld [vmem:[#allocation22 + $0x10] sm:$0xff]
    %v1080 = vld [vmem:[#allocation22 + $0x18] sm:$0xff]
    %v1081 = vld [vmem:[#allocation22 + $0x20] sm:$0xff]
    %v1082 = vld [vmem:[#allocation22 + $0x28] sm:$0xff]
    %v1083 = vld [vmem:[#allocation22 + $0x30] sm:$0xff]
    %v1084 = vld [vmem:[#allocation22 + $0x38] sm:$0xff]
    %v1085 = vld [vmem:[#allocation22 + $0x40] sm:$0xff]
    %v1086 = vld [vmem:[#allocation22 + $0x48] sm:$0xff]
    %v1087 = vld [vmem:[#allocation22 + $0x50] sm:$0xff]
    %v1088 = vld [vmem:[#allocation22 + $0x58] sm:$0xff]
    %v1089 = vld [vmem:[#allocation22 + $0x60] sm:$0xff]
    %v1090 = vld [vmem:[#allocation22 + $0x68] sm:$0xff]
    %v1091 = vld [vmem:[#allocation22 + $0x70] sm:$0xff]
    %v1092 = vld [vmem:[#allocation22 + $0x78] sm:$0xff]
    %v1093 = vld [vmem:[#allocation22 + $0x80] sm:$0xff]
    %v1094 = vld [vmem:[#allocation22 + $0x88] sm:$0xff]
    %v1095 = vld [vmem:[#allocation22 + $0x90] sm:$0xff]
    %v1096 = vld [vmem:[#allocation22 + $0x98] sm:$0xff]
    %v1097 = vld [vmem:[#allocation22 + $0xa0] sm:$0xff]
    %v1098 = vld [vmem:[#allocation22 + $0xa8] sm:$0xff]
    %v1099 = vld [vmem:[#allocation22 + $0xb0] sm:$0xff]
    %v1100 = vld [vmem:[#allocation22 + $0xb8] sm:$0xff]
    %v1101 = vld [vmem:[#allocation22 + $0xc0] sm:$0xff]
    %v1102 = vld [vmem:[#allocation22 + $0xc8] sm:$0xff]
    %v1103 = vld [vmem:[#allocation22 + $0xd0] sm:$0xff]
    %v1104 = vld [vmem:[#allocation22 + $0xd8] sm:$0xff]
    %v1105 = vld [vmem:[#allocation22 + $0xe0] sm:$0xff]
    %v1106 = vld [vmem:[#allocation22 + $0xe8] sm:$0xff]
    %v1107 = vld [vmem:[#allocation22 + $0xf0] sm:$0xff]
    %v1108 = vld [vmem:[#allocation22 + $0xf8] sm:$0xff]
    %v1109 = vld [vmem:[#allocation22 + $0x100] sm:$0xff]
    %v1110 = vld [vmem:[#allocation22 + $0x108] sm:$0xff]
    %v1111 = vld [vmem:[#allocation22 + $0x110] sm:$0xff]
    %v1112 = vld [vmem:[#allocation22 + $0x118] sm:$0xff]
    %v1113 = vld [vmem:[#allocation22 + $0x120] sm:$0xff]
    %v1114 = vld [vmem:[#allocation22 + $0x128] sm:$0xff]
    %v1115 = vld [vmem:[#allocation22 + $0x130] sm:$0xff]
    %v1116 = vld [vmem:[#allocation22 + $0x138] sm:$0xff]
    %v1117 = vld [vmem:[#allocation22 + $0x140] sm:$0xff]
    %v1118 = vld [vmem:[#allocation22 + $0x148] sm:$0xff]
    %v1119 = vld [vmem:[#allocation22 + $0x150] sm:$0xff]
    %v1120 = vld [vmem:[#allocation22 + $0x158] sm:$0xff]
    %v1121 = vld [vmem:[#allocation22 + $0x160] sm:$0xff]
    %v1122 = vld [vmem:[#allocation22 + $0x168] sm:$0xff]
    %v1123 = vld [vmem:[#allocation22 + $0x170] sm:$0xff]
    %v1124 = vld [vmem:[#allocation22 + $0x178] sm:$0xff]
    %v1125 = vld [vmem:[#allocation22 + $0x180] sm:$0xff]
    %v1126 = vld [vmem:[#allocation22 + $0x188] sm:$0xff]
    %v1127 = vld [vmem:[#allocation22 + $0x190] sm:$0xff]
    %v1128 = vld [vmem:[#allocation22 + $0x198] sm:$0xff]
    %v1129 = vld [vmem:[#allocation22 + $0x1a0] sm:$0xff]
    %v1130 = vld [vmem:[#allocation22 + $0x1a8] sm:$0xff]
    %v1131 = vld [vmem:[#allocation22 + $0x1b0] sm:$0xff]
    %v1132 = vld [vmem:[#allocation22 + $0x1b8] sm:$0xff]
    %v1133 = vld [vmem:[#allocation22 + $0x1c0] sm:$0xff]
    %v1134 = vld [vmem:[#allocation22 + $0x1c8] sm:$0xff]
    %v1135 = vld [vmem:[#allocation22 + $0x1d0] sm:$0xff]
    %v1136 = vld [vmem:[#allocation22 + $0x1d8] sm:$0xff]
    %v1137 = vld [vmem:[#allocation22 + $0x1e0] sm:$0xff]
    %v1138 = vld [vmem:[#allocation22 + $0x1e8] sm:$0xff]
    %v1139 = vld [vmem:[#allocation22 + $0x1f0] sm:$0xff]
    %v1140 = vld [vmem:[#allocation22 + $0x1f8] sm:$0xff]
    %v1141 = vld [vmem:[#allocation22 + $0x200] sm:$0xff]
    %v1142 = vld [vmem:[#allocation22 + $0x208] sm:$0xff]
    %v1143 = vld [vmem:[#allocation22 + $0x210] sm:$0xff]
    %v1144 = vld [vmem:[#allocation22 + $0x218] sm:$0xff]
    %v1145 = vld [vmem:[#allocation22 + $0x220] sm:$0xff]
    %v1146 = vld [vmem:[#allocation22 + $0x228] sm:$0xff]
    %v1147 = vld [vmem:[#allocation22 + $0x230] sm:$0xff]
    %v1148 = vld [vmem:[#allocation22 + $0x238] sm:$0xff]
    %v1149 = vld [vmem:[#allocation22 + $0x240] sm:$0xff]
    %v1150 = vld [vmem:[#allocation22 + $0x248] sm:$0xff]
    %v1151 = vld [vmem:[#allocation22 + $0x250] sm:$0xff]
    %v1152 = vld [vmem:[#allocation22 + $0x258] sm:$0xff]
    %v1153 = vld [vmem:[#allocation22 + $0x260] sm:$0xff]
    %v1154 = vld [vmem:[#allocation22 + $0x268] sm:$0xff]
    %v1155 = vld [vmem:[#allocation22 + $0x270] sm:$0xff]
    %v1156 = vld [vmem:[#allocation22 + $0x278] sm:$0xff]
    %v1157 = vld [vmem:[#allocation22 + $0x280] sm:$0xff]
    %v1158 = vld [vmem:[#allocation22 + $0x288] sm:$0xff]
    %v1159 = vld [vmem:[#allocation22 + $0x290] sm:$0xff]
    %v1160 = vld [vmem:[#allocation22 + $0x298] sm:$0xff]
    %v1161 = vld [vmem:[#allocation22 + $0x2a0] sm:$0xff]
    %v1162 = vld [vmem:[#allocation22 + $0x2a8] sm:$0xff]
    %v1163 = vld [vmem:[#allocation22 + $0x2b0] sm:$0xff]
    %v1164 = vld [vmem:[#allocation22 + $0x2b8] sm:$0xff]
    %v1165 = vld [vmem:[#allocation22 + $0x2c0] sm:$0xff]
    %v1166 = vld [vmem:[#allocation22 + $0x2c8] sm:$0xff]
    %v1167 = vld [vmem:[#allocation22 + $0x2d0] sm:$0xff]
    %v1168 = vld [vmem:[#allocation22 + $0x2d8] sm:$0xff]
    %v1169 = vld [vmem:[#allocation22 + $0x2e0] sm:$0xff]
    %v1170 = vld [vmem:[#allocation22 + $0x2e8] sm:$0xff]
    %v1171 = vld [vmem:[#allocation22 + $0x2f0] sm:$0xff]
    %v1172 = vld [vmem:[#allocation22 + $0x2f8] sm:$0xff]
    %v1173 = vld [vmem:[#allocation22 + $0x300] sm:$0xff]
    %v1174 = vld [vmem:[#allocation22 + $0x308] sm:$0xff]
    %v1175 = vld [vmem:[#allocation22 + $0x310] sm:$0xff]
    %v1176 = vld [vmem:[#allocation22 + $0x318] sm:$0xff]
    %v1177 = vld [vmem:[#allocation22 + $0x320] sm:$0xff]
    %v1178 = vld [vmem:[#allocation22 + $0x328] sm:$0xff]
    %v1179 = vld [vmem:[#allocation22 + $0x330] sm:$0xff]
    %v1180 = vld [vmem:[#allocation22 + $0x338] sm:$0xff]
    %v1181 = vld [vmem:[#allocation22 + $0x340] sm:$0xff]
    %v1182 = vld [vmem:[#allocation22 + $0x348] sm:$0xff]
    %v1183 = vld [vmem:[#allocation22 + $0x350] sm:$0xff]
    %v1184 = vld [vmem:[#allocation22 + $0x358] sm:$0xff]
    %v1185 = vld [vmem:[#allocation22 + $0x360] sm:$0xff]
    %v1186 = vld [vmem:[#allocation22 + $0x368] sm:$0xff]
    %v1187 = vld [vmem:[#allocation22 + $0x370] sm:$0xff]
    %v1188 = vld [vmem:[#allocation22 + $0x378] sm:$0xff]
    %v1189 = vld [vmem:[#allocation22 + $0x380] sm:$0xff]
    %v1190 = vld [vmem:[#allocation22 + $0x388] sm:$0xff]
    %v1191 = vld [vmem:[#allocation22 + $0x390] sm:$0xff]
    %v1192 = vld [vmem:[#allocation22 + $0x398] sm:$0xff]
    %v1193 = vld [vmem:[#allocation22 + $0x3a0] sm:$0xff]
    %v1194 = vld [vmem:[#allocation22 + $0x3a8] sm:$0xff]
    %v1195 = vld [vmem:[#allocation22 + $0x3b0] sm:$0xff]
    %v1196 = vld [vmem:[#allocation22 + $0x3b8] sm:$0xff]
    %v1197 = vld [vmem:[#allocation22 + $0x3c0] sm:$0xff]
    %v1198 = vld [vmem:[#allocation22 + $0x3c8] sm:$0xff]
    %v1199 = vld [vmem:[#allocation22 + $0x3d0] sm:$0xff]
    %v1200 = vld [vmem:[#allocation22 + $0x3d8] sm:$0xff]
    %v1201 = vld [vmem:[#allocation22 + $0x3e0] sm:$0xff]
    %v1202 = vld [vmem:[#allocation22 + $0x3e8] sm:$0xff]
    %v1203 = vld [vmem:[#allocation22 + $0x3f0] sm:$0xff]
    %v1204 = vld [vmem:[#allocation22 + $0x3f8] sm:$0xff]
    %v1205 = vld [vmem:[#allocation22 + $0x400] sm:$0xff]
    %v1206 = vld [vmem:[#allocation22 + $0x408] sm:$0xff]
    %v1207 = vld [vmem:[#allocation22 + $0x410] sm:$0xff]
    %v1208 = vld [vmem:[#allocation22 + $0x418] sm:$0xff]
    %v1209 = vld [vmem:[#allocation22 + $0x420] sm:$0xff]
    %v1210 = vld [vmem:[#allocation22 + $0x428] sm:$0xff]
    %v1211 = vld [vmem:[#allocation22 + $0x430] sm:$0xff]
    %v1212 = vld [vmem:[#allocation22 + $0x438] sm:$0xff]
    %v1213 = vld [vmem:[#allocation22 + $0x440] sm:$0xff]
    %v1214 = vld [vmem:[#allocation22 + $0x448] sm:$0xff]
    %v1215 = vld [vmem:[#allocation22 + $0x450] sm:$0xff]
    %v1216 = vld [vmem:[#allocation22 + $0x458] sm:$0xff]
    %v1217 = vld [vmem:[#allocation22 + $0x460] sm:$0xff]
    %v1218 = vld [vmem:[#allocation22 + $0x468] sm:$0xff]
    %v1219 = vld [vmem:[#allocation22 + $0x470] sm:$0xff]
    %v1220 = vld [vmem:[#allocation22 + $0x478] sm:$0xff]
    %v1221 = vld [vmem:[#allocation22 + $0x480] sm:$0xff]
    %v1222 = vld [vmem:[#allocation22 + $0x488] sm:$0xff]
    %v1223 = vld [vmem:[#allocation22 + $0x490] sm:$0xff]
    %v1224 = vld [vmem:[#allocation22 + $0x498] sm:$0xff]
    %v1225 = vld [vmem:[#allocation22 + $0x4a0] sm:$0xff]
    %v1226 = vld [vmem:[#allocation22 + $0x4a8] sm:$0xff]
    %v1227 = vld [vmem:[#allocation22 + $0x4b0] sm:$0xff]
    %v1228 = vld [vmem:[#allocation22 + $0x4b8] sm:$0xff]
    %v1229 = vld [vmem:[#allocation22 + $0x4c0] sm:$0xff]
    %v1230 = vld [vmem:[#allocation22 + $0x4c8] sm:$0xff]
    %v1231 = vld [vmem:[#allocation22 + $0x4d0] sm:$0xff]
    %v1232 = vld [vmem:[#allocation22 + $0x4d8] sm:$0xff]
    %v1233 = vld [vmem:[#allocation22 + $0x4e0] sm:$0xff]
    %v1234 = vld [vmem:[#allocation22 + $0x4e8] sm:$0xff]
    %v1235 = vld [vmem:[#allocation22 + $0x4f0] sm:$0xff]
    %v1236 = vld [vmem:[#allocation22 + $0x4f8] sm:$0xff]
    %v1237 = vld [vmem:[#allocation22 + $0x500] sm:$0xff]
    %v1238 = vld [vmem:[#allocation22 + $0x508] sm:$0xff]
    %v1239 = vld [vmem:[#allocation22 + $0x510] sm:$0xff]
    %v1240 = vld [vmem:[#allocation22 + $0x518] sm:$0xff]
    %v1241 = vld [vmem:[#allocation22 + $0x520] sm:$0xff]
    %v1242 = vld [vmem:[#allocation22 + $0x528] sm:$0xff]
    %v1243 = vld [vmem:[#allocation22 + $0x530] sm:$0xff]
    %v1244 = vld [vmem:[#allocation22 + $0x538] sm:$0xff]
    %v1245 = vld [vmem:[#allocation22 + $0x540] sm:$0xff]
    %v1246 = vld [vmem:[#allocation22 + $0x548] sm:$0xff]
    %v1247 = vld [vmem:[#allocation22 + $0x550] sm:$0xff]
    %v1248 = vld [vmem:[#allocation22 + $0x558] sm:$0xff]
    %v1249 = vld [vmem:[#allocation22 + $0x560] sm:$0xff]
    %v1250 = vld [vmem:[#allocation22 + $0x568] sm:$0xff]
    %v1251 = vld [vmem:[#allocation22 + $0x570] sm:$0xff]
    %v1252 = vld [vmem:[#allocation22 + $0x578] sm:$0xff]
    %v1253 = vld [vmem:[#allocation22 + $0x580] sm:$0xff]
    %v1254 = vld [vmem:[#allocation22 + $0x588] sm:$0xff]
    %v1255 = vld [vmem:[#allocation22 + $0x590] sm:$0xff]
    %v1256 = vld [vmem:[#allocation22 + $0x598] sm:$0xff]
    %v1257 = vld [vmem:[#allocation22 + $0x5a0] sm:$0xff]
    %v1258 = vld [vmem:[#allocation22 + $0x5a8] sm:$0xff]
    %v1259 = vld [vmem:[#allocation22 + $0x5b0] sm:$0xff]
    %v1260 = vld [vmem:[#allocation22 + $0x5b8] sm:$0xff]
    %v1261 = vld [vmem:[#allocation22 + $0x5c0] sm:$0xff]
    %v1262 = vld [vmem:[#allocation22 + $0x5c8] sm:$0xff]
    %v1263 = vld [vmem:[#allocation22 + $0x5d0] sm:$0xff]
    %v1264 = vld [vmem:[#allocation22 + $0x5d8] sm:$0xff]
    %v1265 = vld [vmem:[#allocation22 + $0x5e0] sm:$0xff]
    %v1266 = vld [vmem:[#allocation22 + $0x5e8] sm:$0xff]
    %v1267 = vld [vmem:[#allocation22 + $0x5f0] sm:$0xff]
    %v1268 = vld [vmem:[#allocation22 + $0x5f8] sm:$0xff]
    %v1269 = vld [vmem:[#allocation22 + $0x600] sm:$0xff]
    %v1270 = vld [vmem:[#allocation22 + $0x608] sm:$0xff]
    %v1271 = vld [vmem:[#allocation22 + $0x610] sm:$0xff]
    %v1272 = vld [vmem:[#allocation22 + $0x618] sm:$0xff]
    %v1273 = vld [vmem:[#allocation22 + $0x620] sm:$0xff]
    %v1274 = vld [vmem:[#allocation22 + $0x628] sm:$0xff]
    %v1275 = vld [vmem:[#allocation22 + $0x630] sm:$0xff]
    %v1276 = vld [vmem:[#allocation22 + $0x638] sm:$0xff]
    %v1277 = vld [vmem:[#allocation22 + $0x640] sm:$0xff]
    %v1278 = vld [vmem:[#allocation22 + $0x648] sm:$0xff]
    %v1279 = vld [vmem:[#allocation22 + $0x650] sm:$0xff]
    %v1280 = vld [vmem:[#allocation22 + $0x658] sm:$0xff]
    %v1281 = vld [vmem:[#allocation22 + $0x660] sm:$0xff]
    %v1282 = vld [vmem:[#allocation22 + $0x668] sm:$0xff]
    %v1283 = vld [vmem:[#allocation22 + $0x670] sm:$0xff]
    %v1284 = vld [vmem:[#allocation22 + $0x678] sm:$0xff]
    %v1285 = vld [vmem:[#allocation22 + $0x680] sm:$0xff]
    %v1286 = vld [vmem:[#allocation22 + $0x688] sm:$0xff]
    %v1287 = vld [vmem:[#allocation22 + $0x690] sm:$0xff]
    %v1288 = vld [vmem:[#allocation22 + $0x698] sm:$0xff]
    %v1289 = vld [vmem:[#allocation22 + $0x6a0] sm:$0xff]
    %v1290 = vld [vmem:[#allocation22 + $0x6a8] sm:$0xff]
    %v1291 = vld [vmem:[#allocation22 + $0x6b0] sm:$0xff]
    %v1292 = vld [vmem:[#allocation22 + $0x6b8] sm:$0xff]
    %v1293 = vld [vmem:[#allocation22 + $0x6c0] sm:$0xff]
    %v1294 = vld [vmem:[#allocation22 + $0x6c8] sm:$0xff]
    %v1295 = vld [vmem:[#allocation22 + $0x6d0] sm:$0xff]
    %v1296 = vld [vmem:[#allocation22 + $0x6d8] sm:$0xff]
    %v1297 = vld [vmem:[#allocation22 + $0x6e0] sm:$0xff]
    %v1298 = vld [vmem:[#allocation22 + $0x6e8] sm:$0xff]
    %v1299 = vld [vmem:[#allocation22 + $0x6f0] sm:$0xff]
    %v1300 = vld [vmem:[#allocation22 + $0x6f8] sm:$0xff]
    %v1301 = vld [vmem:[#allocation22 + $0x700] sm:$0xff]
    %v1302 = vld [vmem:[#allocation22 + $0x708] sm:$0xff]
    %v1303 = vld [vmem:[#allocation22 + $0x710] sm:$0xff]
    %v1304 = vld [vmem:[#allocation22 + $0x718] sm:$0xff]
    %v1305 = vld [vmem:[#allocation22 + $0x720] sm:$0xff]
    %v1306 = vld [vmem:[#allocation22 + $0x728] sm:$0xff]
    %v1307 = vld [vmem:[#allocation22 + $0x730] sm:$0xff]
    %v1308 = vld [vmem:[#allocation22 + $0x738] sm:$0xff]
    %v1309 = vld [vmem:[#allocation22 + $0x740] sm:$0xff]
    %v1310 = vld [vmem:[#allocation22 + $0x748] sm:$0xff]
    %v1311 = vld [vmem:[#allocation22 + $0x750] sm:$0xff]
    %v1312 = vld [vmem:[#allocation22 + $0x758] sm:$0xff]
    %v1313 = vld [vmem:[#allocation22 + $0x760] sm:$0xff]
    %v1314 = vld [vmem:[#allocation22 + $0x768] sm:$0xff]
    %v1315 = vld [vmem:[#allocation22 + $0x770] sm:$0xff]
    %v1316 = vld [vmem:[#allocation22 + $0x778] sm:$0xff]
    %v1317 = vld [vmem:[#allocation22 + $0x780] sm:$0xff]
    %v1318 = vld [vmem:[#allocation22 + $0x788] sm:$0xff]
    %v1319 = vld [vmem:[#allocation22 + $0x790] sm:$0xff]
    %v1320 = vld [vmem:[#allocation22 + $0x798] sm:$0xff]
    %v1321 = vld [vmem:[#allocation22 + $0x7a0] sm:$0xff]
    %v1322 = vld [vmem:[#allocation22 + $0x7a8] sm:$0xff]
    %v1323 = vld [vmem:[#allocation22 + $0x7b0] sm:$0xff]
    %v1324 = vld [vmem:[#allocation22 + $0x7b8] sm:$0xff]
    %v1325 = vld [vmem:[#allocation22 + $0x7c0] sm:$0xff]
    %v1326 = vld [vmem:[#allocation22 + $0x7c8] sm:$0xff]
    %v1327 = vld [vmem:[#allocation22 + $0x7d0] sm:$0xff]
    %v1328 = vld [vmem:[#allocation22 + $0x7d8] sm:$0xff]
    %v1329 = vld [vmem:[#allocation22 + $0x7e0] sm:$0xff]
    %v1330 = vld [vmem:[#allocation22 + $0x7e8] sm:$0xff]
    %v1331 = vld [vmem:[#allocation22 + $0x7f0] sm:$0xff]
    %v1332 = vld [vmem:[#allocation22 + $0x7f8] sm:$0xff]
    %v1333 = vld [vmem:[#allocation22 + $0x800] sm:$0xff]
    %v1334 = vld [vmem:[#allocation22 + $0x808] sm:$0xff]
    %v1335 = vld [vmem:[#allocation22 + $0x810] sm:$0xff]
    %v1336 = vld [vmem:[#allocation22 + $0x818] sm:$0xff]
    %v1337 = vld [vmem:[#allocation22 + $0x820] sm:$0xff]
    %v1338 = vld [vmem:[#allocation22 + $0x828] sm:$0xff]
    %v1339 = vld [vmem:[#allocation22 + $0x830] sm:$0xff]
    %v1340 = vld [vmem:[#allocation22 + $0x838] sm:$0xff]
    %v1341 = vld [vmem:[#allocation22 + $0x840] sm:$0xff]
    %v1342 = vld [vmem:[#allocation22 + $0x848] sm:$0xff]
    %v1343 = vld [vmem:[#allocation22 + $0x850] sm:$0xff]
    %v1344 = vld [vmem:[#allocation22 + $0x858] sm:$0xff]
    %v1345 = vld [vmem:[#allocation22 + $0x860] sm:$0xff]
    %v1346 = vld [vmem:[#allocation22 + $0x868] sm:$0xff]
    %v1347 = vld [vmem:[#allocation22 + $0x870] sm:$0xff]
    %v1348 = vld [vmem:[#allocation22 + $0x878] sm:$0xff]
    %v1349 = vld [vmem:[#allocation22 + $0x880] sm:$0xff]
    %v1350 = vld [vmem:[#allocation22 + $0x888] sm:$0xff]
    %v1351 = vld [vmem:[#allocation22 + $0x890] sm:$0xff]
    %v1352 = vld [vmem:[#allocation22 + $0x898] sm:$0xff]
    %v1353 = vld [vmem:[#allocation22 + $0x8a0] sm:$0xff]
    %v1354 = vld [vmem:[#allocation22 + $0x8a8] sm:$0xff]
    %v1355 = vld [vmem:[#allocation22 + $0x8b0] sm:$0xff]
    %v1356 = vld [vmem:[#allocation22 + $0x8b8] sm:$0xff]
    %v1357 = vld [vmem:[#allocation22 + $0x8c0] sm:$0xff]
    %v1358 = vld [vmem:[#allocation22 + $0x8c8] sm:$0xff]
    %v1359 = vld [vmem:[#allocation22 + $0x8d0] sm:$0xff]
    %v1360 = vld [vmem:[#allocation22 + $0x8d8] sm:$0xff]
    %v1361 = vld [vmem:[#allocation22 + $0x8e0] sm:$0xff]
    %v1362 = vld [vmem:[#allocation22 + $0x8e8] sm:$0xff]
    %v1363 = vld [vmem:[#allocation22 + $0x8f0] sm:$0xff]
    %v1364 = vld [vmem:[#allocation22 + $0x8f8] sm:$0xff]
    %v1365 = vld [vmem:[#allocation22 + $0x900] sm:$0xff]
    %v1366 = vld [vmem:[#allocation22 + $0x908] sm:$0xff]
    %v1367 = vld [vmem:[#allocation22 + $0x910] sm:$0xff]
    %v1368 = vld [vmem:[#allocation22 + $0x918] sm:$0xff]
    %v1369 = vld [vmem:[#allocation22 + $0x920] sm:$0xff]
    %v1370 = vld [vmem:[#allocation22 + $0x928] sm:$0xff]
    %v1371 = vld [vmem:[#allocation22 + $0x930] sm:$0xff]
    %v1372 = vld [vmem:[#allocation22 + $0x938] sm:$0xff]
    %v1373 = vld [vmem:[#allocation22 + $0x940] sm:$0xff]
    %v1374 = vld [vmem:[#allocation22 + $0x948] sm:$0xff]
    %v1375 = vld [vmem:[#allocation22 + $0x950] sm:$0xff]
    %v1376 = vld [vmem:[#allocation22 + $0x958] sm:$0xff]
    %v1377 = vld [vmem:[#allocation22 + $0x960] sm:$0xff]
    %v1378 = vld [vmem:[#allocation22 + $0x968] sm:$0xff]
    %v1379 = vld [vmem:[#allocation22 + $0x970] sm:$0xff]
    %v1380 = vld [vmem:[#allocation22 + $0x978] sm:$0xff]
    %v1381 = vld [vmem:[#allocation22 + $0x980] sm:$0xff]
    %v1382 = vld [vmem:[#allocation22 + $0x988] sm:$0xff]
    %v1383 = vld [vmem:[#allocation22 + $0x990] sm:$0xff]
    %v1384 = vld [vmem:[#allocation22 + $0x998] sm:$0xff]
    %v1385 = vld [vmem:[#allocation22 + $0x9a0] sm:$0xff]
    %v1386 = vld [vmem:[#allocation22 + $0x9a8] sm:$0xff]
    %v1387 = vld [vmem:[#allocation22 + $0x9b0] sm:$0xff]
    %v1388 = vld [vmem:[#allocation22 + $0x9b8] sm:$0xff]
    %v1389 = vld [vmem:[#allocation22 + $0x9c0] sm:$0xff]
    %v1390 = vld [vmem:[#allocation22 + $0x9c8] sm:$0xff]
    %v1391 = vld [vmem:[#allocation22 + $0x9d0] sm:$0xff]
    %v1392 = vld [vmem:[#allocation22 + $0x9d8] sm:$0xff]
    %v1393 = vld [vmem:[#allocation22 + $0x9e0] sm:$0xff]
    %v1394 = vld [vmem:[#allocation22 + $0x9e8] sm:$0xff]
    %v1395 = vld [vmem:[#allocation22 + $0x9f0] sm:$0xff]
    %v1396 = vld [vmem:[#allocation22 + $0x9f8] sm:$0xff]
    %v1397 = vld [vmem:[#allocation22 + $0xa00] sm:$0xff]
    %v1398 = vld [vmem:[#allocation22 + $0xa08] sm:$0xff]
    %v1399 = vld [vmem:[#allocation22 + $0xa10] sm:$0xff]
    %v1400 = vld [vmem:[#allocation22 + $0xa18] sm:$0xff]
    %v1401 = vld [vmem:[#allocation22 + $0xa20] sm:$0xff]
    %v1402 = vld [vmem:[#allocation22 + $0xa28] sm:$0xff]
    %v1403 = vld [vmem:[#allocation22 + $0xa30] sm:$0xff]
    %v1404 = vld [vmem:[#allocation22 + $0xa38] sm:$0xff]
    %v1405 = vld [vmem:[#allocation22 + $0xa40] sm:$0xff]
    %v1406 = vld [vmem:[#allocation22 + $0xa48] sm:$0xff]
    %v1407 = vld [vmem:[#allocation22 + $0xa50] sm:$0xff]
    %v1408 = vld [vmem:[#allocation22 + $0xa58] sm:$0xff]
    %v1409 = vld [vmem:[#allocation22 + $0xa60] sm:$0xff]
    %v1410 = vld [vmem:[#allocation22 + $0xa68] sm:$0xff]
    %v1411 = vld [vmem:[#allocation22 + $0xa70] sm:$0xff]
    %v1412 = vld [vmem:[#allocation22 + $0xa78] sm:$0xff]
    %v1413 = vld [vmem:[#allocation22 + $0xa80] sm:$0xff]
    %v1414 = vld [vmem:[#allocation22 + $0xa88] sm:$0xff]
    %v1415 = vld [vmem:[#allocation22 + $0xa90] sm:$0xff]
    %v1416 = vld [vmem:[#allocation22 + $0xa98] sm:$0xff]
    %v1417 = vld [vmem:[#allocation22 + $0xaa0] sm:$0xff]
    %v1418 = vld [vmem:[#allocation22 + $0xaa8] sm:$0xff]
    %v1419 = vld [vmem:[#allocation22 + $0xab0] sm:$0xff]
    %v1420 = vld [vmem:[#allocation22 + $0xab8] sm:$0xff]
    %v1421 = vld [vmem:[#allocation22 + $0xac0] sm:$0xff]
    %v1422 = vld [vmem:[#allocation22 + $0xac8] sm:$0xff]
    %v1423 = vld [vmem:[#allocation22 + $0xad0] sm:$0xff]
    %v1424 = vld [vmem:[#allocation22 + $0xad8] sm:$0xff]
    %v1425 = vld [vmem:[#allocation22 + $0xae0] sm:$0xff]
    %v1426 = vld [vmem:[#allocation22 + $0xae8] sm:$0xff]
    %v1427 = vld [vmem:[#allocation22 + $0xaf0] sm:$0xff]
    %v1428 = vld [vmem:[#allocation22 + $0xaf8] sm:$0xff]
    %v1429 = vld [vmem:[#allocation22 + $0xb00] sm:$0xff]
    %v1430 = vld [vmem:[#allocation22 + $0xb08] sm:$0xff]
    %v1431 = vld [vmem:[#allocation22 + $0xb10] sm:$0xff]
    %v1432 = vld [vmem:[#allocation22 + $0xb18] sm:$0xff]
    %v1433 = vld [vmem:[#allocation22 + $0xb20] sm:$0xff]
    %v1434 = vld [vmem:[#allocation22 + $0xb28] sm:$0xff]
    %v1435 = vld [vmem:[#allocation22 + $0xb30] sm:$0xff]
    %v1436 = vld [vmem:[#allocation22 + $0xb38] sm:$0xff]
    %v1437 = vld [vmem:[#allocation22 + $0xb40] sm:$0xff]
    %v1438 = vld [vmem:[#allocation22 + $0xb48] sm:$0xff]
    %v1439 = vld [vmem:[#allocation22 + $0xb50] sm:$0xff]
    %v1440 = vld [vmem:[#allocation22 + $0xb58] sm:$0xff]
    %v1441 = vld [vmem:[#allocation22 + $0xb60] sm:$0xff]
    %v1442 = vld [vmem:[#allocation22 + $0xb68] sm:$0xff]
    %v1443 = vld [vmem:[#allocation22 + $0xb70] sm:$0xff]
    %v1444 = vld [vmem:[#allocation22 + $0xb78] sm:$0xff]
    %v1445 = vld [vmem:[#allocation22 + $0xb80] sm:$0xff]
    %v1446 = vld [vmem:[#allocation22 + $0xb88] sm:$0xff]
    %v1447 = vld [vmem:[#allocation22 + $0xb90] sm:$0xff]
    %v1448 = vld [vmem:[#allocation22 + $0xb98] sm:$0xff]
    %v1449 = vld [vmem:[#allocation22 + $0xba0] sm:$0xff]
    %v1450 = vld [vmem:[#allocation22 + $0xba8] sm:$0xff]
    %v1451 = vld [vmem:[#allocation22 + $0xbb0] sm:$0xff]
    %v1452 = vld [vmem:[#allocation22 + $0xbb8] sm:$0xff]
    %v1453 = vld [vmem:[#allocation22 + $0xbc0] sm:$0xff]
    %v1454 = vld [vmem:[#allocation22 + $0xbc8] sm:$0xff]
    %v1455 = vld [vmem:[#allocation22 + $0xbd0] sm:$0xff]
    %v1456 = vld [vmem:[#allocation22 + $0xbd8] sm:$0xff]
    %v1457 = vld [vmem:[#allocation22 + $0xbe0] sm:$0xff]
    %v1458 = vld [vmem:[#allocation22 + $0xbe8] sm:$0xff]
    %v1459 = vld [vmem:[#allocation22 + $0xbf0] sm:$0xff]
    %v1460 = vld [vmem:[#allocation22 + $0xbf8] sm:$0xff]
    %v1461 = vld [vmem:[#allocation22 + $0xc00] sm:$0xff]
    %v1462 = vld [vmem:[#allocation22 + $0xc08] sm:$0xff]
    %v1463 = vld [vmem:[#allocation22 + $0xc10] sm:$0xff]
    %v1464 = vld [vmem:[#allocation22 + $0xc18] sm:$0xff]
    %v1465 = vld [vmem:[#allocation22 + $0xc20] sm:$0xff]
    %v1466 = vld [vmem:[#allocation22 + $0xc28] sm:$0xff]
    %v1467 = vld [vmem:[#allocation22 + $0xc30] sm:$0xff]
    %v1468 = vld [vmem:[#allocation22 + $0xc38] sm:$0xff]
    %v1469 = vld [vmem:[#allocation22 + $0xc40] sm:$0xff]
    %v1470 = vld [vmem:[#allocation22 + $0xc48] sm:$0xff]
    %v1471 = vld [vmem:[#allocation22 + $0xc50] sm:$0xff]
    %v1472 = vld [vmem:[#allocation22 + $0xc58] sm:$0xff]
    %v1473 = vld [vmem:[#allocation22 + $0xc60] sm:$0xff]
    %v1474 = vld [vmem:[#allocation22 + $0xc68] sm:$0xff]
    %v1475 = vld [vmem:[#allocation22 + $0xc70] sm:$0xff]
    %v1476 = vld [vmem:[#allocation22 + $0xc78] sm:$0xff]
    %v1477 = vld [vmem:[#allocation22 + $0xc80] sm:$0xff]
    %v1478 = vld [vmem:[#allocation22 + $0xc88] sm:$0xff]
    %v1479 = vld [vmem:[#allocation22 + $0xc90] sm:$0xff]
    %v1480 = vld [vmem:[#allocation22 + $0xc98] sm:$0xff]
    %v1481 = vld [vmem:[#allocation22 + $0xca0] sm:$0xff]
    %v1482 = vld [vmem:[#allocation22 + $0xca8] sm:$0xff]
    %v1483 = vld [vmem:[#allocation22 + $0xcb0] sm:$0xff]
    %v1484 = vld [vmem:[#allocation22 + $0xcb8] sm:$0xff]
    %v1485 = vld [vmem:[#allocation22 + $0xcc0] sm:$0xff]
    %v1486 = vld [vmem:[#allocation22 + $0xcc8] sm:$0xff]
    %v1487 = vld [vmem:[#allocation22 + $0xcd0] sm:$0xff]
    %v1488 = vld [vmem:[#allocation22 + $0xcd8] sm:$0xff]
    %v1489 = vld [vmem:[#allocation22 + $0xce0] sm:$0xff]
    %v1490 = vld [vmem:[#allocation22 + $0xce8] sm:$0xff]
    %v1491 = vld [vmem:[#allocation22 + $0xcf0] sm:$0xff]
    %v1492 = vld [vmem:[#allocation22 + $0xcf8] sm:$0xff]
    %v1493 = vld [vmem:[#allocation22 + $0xd00] sm:$0xff]
    %v1494 = vld [vmem:[#allocation22 + $0xd08] sm:$0xff]
    %v1495 = vld [vmem:[#allocation22 + $0xd10] sm:$0xff]
    %v1496 = vld [vmem:[#allocation22 + $0xd18] sm:$0xff]
    %v1497 = vld [vmem:[#allocation22 + $0xd20] sm:$0xff]
    %v1498 = vld [vmem:[#allocation22 + $0xd28] sm:$0xff]
    %v1499 = vld [vmem:[#allocation22 + $0xd30] sm:$0xff]
    %v1500 = vld [vmem:[#allocation22 + $0xd38] sm:$0xff]
    %v1501 = vld [vmem:[#allocation22 + $0xd40] sm:$0xff]
    %v1502 = vld [vmem:[#allocation22 + $0xd48] sm:$0xff]
    %v1503 = vld [vmem:[#allocation22 + $0xd50] sm:$0xff]
    %v1504 = vld [vmem:[#allocation22 + $0xd58] sm:$0xff]
    %v1505 = vld [vmem:[#allocation22 + $0xd60] sm:$0xff]
    %v1506 = vld [vmem:[#allocation22 + $0xd68] sm:$0xff]
    %v1507 = vld [vmem:[#allocation22 + $0xd70] sm:$0xff]
    %v1508 = vld [vmem:[#allocation22 + $0xd78] sm:$0xff]
    %v1509 = vld [vmem:[#allocation22 + $0xd80] sm:$0xff]
    %v1510 = vld [vmem:[#allocation22 + $0xd88] sm:$0xff]
    %v1511 = vld [vmem:[#allocation22 + $0xd90] sm:$0xff]
    %v1512 = vld [vmem:[#allocation22 + $0xd98] sm:$0xff]
    %v1513 = vld [vmem:[#allocation22 + $0xda0] sm:$0xff]
    %v1514 = vld [vmem:[#allocation22 + $0xda8] sm:$0xff]
    %v1515 = vld [vmem:[#allocation22 + $0xdb0] sm:$0xff]
    %v1516 = vld [vmem:[#allocation22 + $0xdb8] sm:$0xff]
    %v1517 = vld [vmem:[#allocation22 + $0xdc0] sm:$0xff]
    %v1518 = vld [vmem:[#allocation22 + $0xdc8] sm:$0xff]
    %v1519 = vld [vmem:[#allocation22 + $0xdd0] sm:$0xff]
    %v1520 = vld [vmem:[#allocation22 + $0xdd8] sm:$0xff]
    %v1521 = vld [vmem:[#allocation22 + $0xde0] sm:$0xff]
    %v1522 = vld [vmem:[#allocation22 + $0xde8] sm:$0xff]
    %v1523 = vld [vmem:[#allocation22 + $0xdf0] sm:$0xff]
    %v1524 = vld [vmem:[#allocation22 + $0xdf8] sm:$0xff]
    %v1525 = vld [vmem:[#allocation22 + $0xe00] sm:$0xff]
    %v1526 = vld [vmem:[#allocation22 + $0xe08] sm:$0xff]
    %v1527 = vld [vmem:[#allocation22 + $0xe10] sm:$0xff]
    %v1528 = vld [vmem:[#allocation22 + $0xe18] sm:$0xff]
    %v1529 = vld [vmem:[#allocation22 + $0xe20] sm:$0xff]
    %v1530 = vld [vmem:[#allocation22 + $0xe28] sm:$0xff]
    %v1531 = vld [vmem:[#allocation22 + $0xe30] sm:$0xff]
    %v1532 = vld [vmem:[#allocation22 + $0xe38] sm:$0xff]
    %v1533 = vld [vmem:[#allocation22 + $0xe40] sm:$0xff]
    %v1534 = vld [vmem:[#allocation22 + $0xe48] sm:$0xff]
    %v1535 = vld [vmem:[#allocation22 + $0xe50] sm:$0xff]
    %v1536 = vld [vmem:[#allocation22 + $0xe58] sm:$0xff]
    %v1537 = vld [vmem:[#allocation22 + $0xe60] sm:$0xff]
    %v1538 = vld [vmem:[#allocation22 + $0xe68] sm:$0xff]
    %v1539 = vld [vmem:[#allocation22 + $0xe70] sm:$0xff]
    %v1540 = vld [vmem:[#allocation22 + $0xe78] sm:$0xff]
    %v1541 = vld [vmem:[#allocation22 + $0xe80] sm:$0xff]
    %v1542 = vld [vmem:[#allocation22 + $0xe88] sm:$0xff]
    %v1543 = vld [vmem:[#allocation22 + $0xe90] sm:$0xff]
    %v1544 = vld [vmem:[#allocation22 + $0xe98] sm:$0xff]
    %v1545 = vld [vmem:[#allocation22 + $0xea0] sm:$0xff]
    %v1546 = vld [vmem:[#allocation22 + $0xea8] sm:$0xff]
    %v1547 = vld [vmem:[#allocation22 + $0xeb0] sm:$0xff]
    %v1548 = vld [vmem:[#allocation22 + $0xeb8] sm:$0xff]
    %v1549 = vld [vmem:[#allocation22 + $0xec0] sm:$0xff]
    %v1550 = vld [vmem:[#allocation22 + $0xec8] sm:$0xff]
    %v1551 = vld [vmem:[#allocation22 + $0xed0] sm:$0xff]
    %v1552 = vld [vmem:[#allocation22 + $0xed8] sm:$0xff]
    %v1553 = vld [vmem:[#allocation22 + $0xee0] sm:$0xff]
    %v1554 = vld [vmem:[#allocation22 + $0xee8] sm:$0xff]
    %v1555 = vld [vmem:[#allocation22 + $0xef0] sm:$0xff]
    %v1556 = vld [vmem:[#allocation22 + $0xef8] sm:$0xff]
    %v1557 = vld [vmem:[#allocation22 + $0xf00] sm:$0xff]
    %v1558 = vld [vmem:[#allocation22 + $0xf08] sm:$0xff]
    %v1559 = vld [vmem:[#allocation22 + $0xf10] sm:$0xff]
    %v1560 = vld [vmem:[#allocation22 + $0xf18] sm:$0xff]
    %v1561 = vld [vmem:[#allocation22 + $0xf20] sm:$0xff]
    %v1562 = vld [vmem:[#allocation22 + $0xf28] sm:$0xff]
    %v1563 = vld [vmem:[#allocation22 + $0xf30] sm:$0xff]
    %v1564 = vld [vmem:[#allocation22 + $0xf38] sm:$0xff]
    %v1565 = vld [vmem:[#allocation22 + $0xf40] sm:$0xff]
    %v1566 = vld [vmem:[#allocation22 + $0xf48] sm:$0xff]
    %v1567 = vld [vmem:[#allocation22 + $0xf50] sm:$0xff]
    %v1568 = vld [vmem:[#allocation22 + $0xf58] sm:$0xff]
    %v1569 = vld [vmem:[#allocation22 + $0xf60] sm:$0xff]
    %v1570 = vld [vmem:[#allocation22 + $0xf68] sm:$0xff]
    %v1571 = vld [vmem:[#allocation22 + $0xf70] sm:$0xff]
    %v1572 = vld [vmem:[#allocation22 + $0xf78] sm:$0xff]
    %v1573 = vld [vmem:[#allocation22 + $0xf80] sm:$0xff]
    %v1574 = vld [vmem:[#allocation22 + $0xf88] sm:$0xff]
    %v1575 = vld [vmem:[#allocation22 + $0xf90] sm:$0xff]
    %v1576 = vld [vmem:[#allocation22 + $0xf98] sm:$0xff]
    %v1577 = vld [vmem:[#allocation22 + $0xfa0] sm:$0xff]
    %v1578 = vld [vmem:[#allocation22 + $0xfa8] sm:$0xff]
    %v1579 = vld [vmem:[#allocation22 + $0xfb0] sm:$0xff]
    %v1580 = vld [vmem:[#allocation22 + $0xfb8] sm:$0xff]
    %v1581 = vld [vmem:[#allocation22 + $0xfc0] sm:$0xff]
    %v1582 = vld [vmem:[#allocation22 + $0xfc8] sm:$0xff]
    %v1583 = vld [vmem:[#allocation22 + $0xfd0] sm:$0xff]
    %v1584 = vld [vmem:[#allocation22 + $0xfd8] sm:$0xff]
    %v1585 = vld [vmem:[#allocation22 + $0xfe0] sm:$0xff]
    %v1586 = vld [vmem:[#allocation22 + $0xfe8] sm:$0xff]
    %v1587 = vld [vmem:[#allocation22 + $0xff0] sm:$0xff]
    %v1588 = vld [vmem:[#allocation22 + $0xff8] sm:$0xff]
    %v1589 = vld [vmem:[#allocation22 + $0x1000] sm:$0xff]
    %v1590 = vld [vmem:[#allocation22 + $0x1008] sm:$0xff]
    %v1591 = vld [vmem:[#allocation22 + $0x1010] sm:$0xff]
    %v1592 = vld [vmem:[#allocation22 + $0x1018] sm:$0xff]
    %v1593 = vld [vmem:[#allocation22 + $0x1020] sm:$0xff]
    %v1594 = vld [vmem:[#allocation22 + $0x1028] sm:$0xff]
    %v1595 = vld [vmem:[#allocation22 + $0x1030] sm:$0xff]
    %v1596 = vld [vmem:[#allocation22 + $0x1038] sm:$0xff]
    %v1597 = vld [vmem:[#allocation22 + $0x1040] sm:$0xff]
    %v1598 = vld [vmem:[#allocation22 + $0x1048] sm:$0xff]
    %v1599 = vld [vmem:[#allocation22 + $0x1050] sm:$0xff]
    %v1600 = vld [vmem:[#allocation22 + $0x1058] sm:$0xff]
    %v1601 = vld [vmem:[#allocation22 + $0x1060] sm:$0xff]
    %v1602 = vld [vmem:[#allocation22 + $0x1068] sm:$0xff]
    %v1603 = vld [vmem:[#allocation22 + $0x1070] sm:$0xff]
    %v1604 = vld [vmem:[#allocation22 + $0x1078] sm:$0xff]
    %v1605 = vld [vmem:[#allocation22 + $0x1080] sm:$0xff]
    %v1606 = vld [vmem:[#allocation22 + $0x1088] sm:$0xff]
    %v1607 = vld [vmem:[#allocation22 + $0x1090] sm:$0xff]
    %v1608 = vld [vmem:[#allocation22 + $0x1098] sm:$0xff]
    %v1609 = vld [vmem:[#allocation22 + $0x10a0] sm:$0xff]
    %v1610 = vld [vmem:[#allocation22 + $0x10a8] sm:$0xff]
    %v1611 = vld [vmem:[#allocation22 + $0x10b0] sm:$0xff]
    %v1612 = vld [vmem:[#allocation22 + $0x10b8] sm:$0xff]
    %v1613 = vld [vmem:[#allocation22 + $0x10c0] sm:$0xff]
    %v1614 = vld [vmem:[#allocation22 + $0x10c8] sm:$0xff]
    %v1615 = vld [vmem:[#allocation22 + $0x10d0] sm:$0xff]
    %v1616 = vld [vmem:[#allocation22 + $0x10d8] sm:$0xff]
    %v1617 = vld [vmem:[#allocation22 + $0x10e0] sm:$0xff]
    %v1618 = vld [vmem:[#allocation22 + $0x10e8] sm:$0xff]
    %v1619 = vld [vmem:[#allocation22 + $0x10f0] sm:$0xff]
    %v1620 = vld [vmem:[#allocation22 + $0x10f8] sm:$0xff]
    %v1621 = vld [vmem:[#allocation22 + $0x1100] sm:$0xff]
    %v1622 = vld [vmem:[#allocation22 + $0x1108] sm:$0xff]
    %v1623 = vld [vmem:[#allocation22 + $0x1110] sm:$0xff]
    %v1624 = vld [vmem:[#allocation22 + $0x1118] sm:$0xff]
    %v1625 = vld [vmem:[#allocation22 + $0x1120] sm:$0xff]
    %v1626 = vld [vmem:[#allocation22 + $0x1128] sm:$0xff]
    %v1627 = vld [vmem:[#allocation22 + $0x1130] sm:$0xff]
    %v1628 = vld [vmem:[#allocation22 + $0x1138] sm:$0xff]
    %v1629 = vld [vmem:[#allocation22 + $0x1140] sm:$0xff]
    %v1630 = vld [vmem:[#allocation22 + $0x1148] sm:$0xff]
    %v1631 = vld [vmem:[#allocation22 + $0x1150] sm:$0xff]
    %v1632 = vld [vmem:[#allocation22 + $0x1158] sm:$0xff]
    %v1633 = vld [vmem:[#allocation22 + $0x1160] sm:$0xff]
    %v1634 = vld [vmem:[#allocation22 + $0x1168] sm:$0xff]
    %v1635 = vld [vmem:[#allocation22 + $0x1170] sm:$0xff]
    %v1636 = vld [vmem:[#allocation22 + $0x1178] sm:$0xff]
    %v1637 = vld [vmem:[#allocation22 + $0x1180] sm:$0xff]
    %v1638 = vld [vmem:[#allocation22 + $0x1188] sm:$0xff]
    %v1639 = vld [vmem:[#allocation22 + $0x1190] sm:$0xff]
    %v1640 = vld [vmem:[#allocation22 + $0x1198] sm:$0xff]
    %v1641 = vld [vmem:[#allocation22 + $0x11a0] sm:$0xff]
    %v1642 = vld [vmem:[#allocation22 + $0x11a8] sm:$0xff]
    %v1643 = vld [vmem:[#allocation22 + $0x11b0] sm:$0xff]
    %v1644 = vld [vmem:[#allocation22 + $0x11b8] sm:$0xff]
    %v1645 = vld [vmem:[#allocation22 + $0x11c0] sm:$0xff]
    %v1646 = vld [vmem:[#allocation22 + $0x11c8] sm:$0xff]
    %v1647 = vld [vmem:[#allocation22 + $0x11d0] sm:$0xff]
    %v1648 = vld [vmem:[#allocation22 + $0x11d8] sm:$0xff]
    %v1649 = vld [vmem:[#allocation22 + $0x11e0] sm:$0xff]
    %v1650 = vld [vmem:[#allocation22 + $0x11e8] sm:$0xff]
    %v1651 = vld [vmem:[#allocation22 + $0x11f0] sm:$0xff]
    %v1652 = vld [vmem:[#allocation22 + $0x11f8] sm:$0xff]
    %v1653 = vpack.c.bf16 %v1064, %v1064
    %v1654 = vld [vmem:[#allocation24] sm:$0xff]
    %v1655 = vld [vmem:[#allocation24 + $0x8] sm:$0xff]
    %v1656 = vld [vmem:[#allocation24 + $0x10] sm:$0xff]
    %v1657 = vld [vmem:[#allocation24 + $0x18] sm:$0xff]
    %v1658 = vld [vmem:[#allocation24 + $0x20] sm:$0xff]
    %v1659 = vld [vmem:[#allocation24 + $0x28] sm:$0xff]
    %v1660 = vld [vmem:[#allocation24 + $0x30] sm:$0xff]
    %v1661 = vld [vmem:[#allocation24 + $0x38] sm:$0xff]
    %v1662 = vld [vmem:[#allocation24 + $0x40] sm:$0xff]
    %v1663 = vld [vmem:[#allocation24 + $0x48] sm:$0xff]
    %v1664 = vld [vmem:[#allocation24 + $0x50] sm:$0xff]
    %v1665 = vld [vmem:[#allocation24 + $0x58] sm:$0xff]
    %v1666 = vld [vmem:[#allocation24 + $0x60] sm:$0xff]
    %v1667 = vld [vmem:[#allocation24 + $0x68] sm:$0xff]
    %v1668 = vld [vmem:[#allocation24 + $0x70] sm:$0xff]
    %v1669 = vld [vmem:[#allocation24 + $0x78] sm:$0xff]
    %v1670 = vld [vmem:[#allocation24 + $0x80] sm:$0xff]
    %v1671 = vld [vmem:[#allocation24 + $0x88] sm:$0xff]
    %v1672 = vld [vmem:[#allocation24 + $0x90] sm:$0x11]
    %v1673 = vld [vmem:[#allocation24 + $0x98] sm:$0x11]
    %v1674 = vld [vmem:[#allocation24 + $0xa0] sm:$0x11]
    %v1696 = vunpack.c.l.b16 %v1654
    %v1697 = vunpack.c.h.b16 %v1654
    %v1698 = vunpack.c.l.b16 %v1655
    %v1699 = vunpack.c.h.b16 %v1655
    %v1700 = vunpack.c.l.b16 %v1656
    %v1701 = vunpack.c.h.b16 %v1656
    %v1702 = vunpack.c.l.b16 %v1657
    %v1703 = vunpack.c.h.b16 %v1657
    %v1704 = vunpack.c.l.b16 %v1658
    %v1705 = vunpack.c.h.b16 %v1658
    %v1706 = vunpack.c.l.b16 %v1659
    %v1707 = vunpack.c.h.b16 %v1659
    %v1708 = vunpack.c.l.b16 %v1660
    %v1709 = vunpack.c.h.b16 %v1660
    %v1710 = vunpack.c.l.b16 %v1661
    %v1711 = vunpack.c.h.b16 %v1661
    %v1712 = vunpack.c.l.b16 %v1662
    %v1713 = vunpack.c.h.b16 %v1662
    %v1714 = vunpack.c.l.b16 %v1663
    %v1715 = vunpack.c.h.b16 %v1663
    %v1716 = vunpack.c.l.b16 %v1664
    %v1717 = vunpack.c.h.b16 %v1664
    %v1718 = vunpack.c.l.b16 %v1665
    %v1719 = vunpack.c.h.b16 %v1665
    %v1720 = vunpack.c.l.b16 %v1666
    %v1721 = vunpack.c.h.b16 %v1666
    %v1722 = vunpack.c.l.b16 %v1667
    %v1723 = vunpack.c.h.b16 %v1667
    %v1724 = vunpack.c.l.b16 %v1668
    %v1725 = vunpack.c.h.b16 %v1668
    %v1726 = vunpack.c.l.b16 %v1669
    %v1727 = vunpack.c.h.b16 %v1669
    %v1728 = vunpack.c.l.b16 %v1670
    %v1729 = vunpack.c.h.b16 %v1670
    %v1730 = vunpack.c.l.b16 %v1671
    %v1731 = vunpack.c.h.b16 %v1671
    %v1732 = vunpack.c.l.b16 %v1672
    %v1733 = vunpack.c.h.b16 %v1672
    %v1734 = vunpack.c.l.b16 %v1673
    %v1735 = vunpack.c.h.b16 %v1673
    %v1736 = vunpack.c.l.b16 %v1674
    %v1737 = vunpack.c.h.b16 %v1674
    %v1738 = vpack.c.b16 %v1702, %v1696
    %v1739 = vpack.c.b16 %v1703, %v1697
    %v1740 = vpack.c.b16 %v1704, %v1698
    %v1741 = vpack.c.b16 %v1705, %v1699
    %v1742 = vpack.c.b16 %v1706, %v1700
    %v1743 = vpack.c.b16 %v1707, %v1701
    %v1744 = vpack.c.b16 %v1714, %v1708
    %v1745 = vpack.c.b16 %v1715, %v1709
    %v1746 = vpack.c.b16 %v1716, %v1710
    %v1747 = vpack.c.b16 %v1717, %v1711
    %v1748 = vpack.c.b16 %v1718, %v1712
    %v1749 = vpack.c.b16 %v1719, %v1713
    %v1750 = vpack.c.b16 %v1726, %v1720
    %v1751 = vpack.c.b16 %v1727, %v1721
    %v1752 = vpack.c.b16 %v1728, %v1722
    %v1753 = vpack.c.b16 %v1729, %v1723
    %v1754 = vpack.c.b16 %v1730, %v1724
    %v1755 = vpack.c.b16 %v1731, %v1725
    %v1756 = vpack.c.b16 %v1732, %v1732
    %v1757 = vpack.c.b16 %v1733, %v1733
    %v1758 = vpack.c.b16 %v1734, %v1734
    %v1759 = vpack.c.b16 %v1735, %v1735
    %v1760 = vpack.c.b16 %v1736, %v1736
    %v1761 = vpack.c.b16 %v1737, %v1737
    %v1781 = vsel %vm975, %v1653, 0
    %v1783 = vsel 0, 4294967295, 65535
    %v1784 = vsel %vm979, %v1783, 0
    %v1786 = vand.u32 %v1756, %v1784
    %v1789 = vand.u32 %v1757, %v1784
    %v1792 = vand.u32 %v1758, %v1784
    %v1795 = vand.u32 %v1759, %v1784
    %v1798 = vand.u32 %v1760, %v1784
    %v1801 = vand.u32 %v1761, %v1784
    %1803 = vmatprep.subr.bf16.mxu0 %v1739
    %1804 = vmatpush1.bf16.msra.mxu0 %v1738
    %1805 = vmatprep.subr.bf16.mxu0 %v1745
    %1806 = vmatpush1.bf16.msra.mxu0 %v1744
    %1807 = vmatprep.subr.bf16.mxu0 %v1751
    %1808 = vmatpush1.bf16.msra.mxu0 %v1750
    %1809 = vmatprep.subr.bf16.mxu0 %v1789
    %1810 = vmatpush1.bf16.msra.mxu0 %v1786
    %1811 = vmatprep.subr.bf16.mxu0 0
    %1812 = vmatpush1.bf16.msra.mxu0 0
    %1813 = vmatprep.subr.bf16.mxu0 0
    %1814 = vmatpush1.bf16.msra.mxu0 0
    %1815 = vmatprep.subr.bf16.mxu0 0
    %1816 = vmatpush1.bf16.msra.mxu0 0
    %1817 = vmatprep.subr.bf16.mxu0 0
    %1818 = vmatpush1.bf16.msra.mxu0 0
    %1819 = vmatprep.subr.bf16.mxu0 0
    %1820 = vmatpush1.bf16.msra.mxu0 0
    %1821 = vmatprep.subr.bf16.mxu0 0
    %1822 = vmatpush1.bf16.msra.mxu0 0
    %1823 = vmatprep.subr.bf16.mxu0 0
    %1824 = vmatpush1.bf16.msra.mxu0 0
    %1825 = vmatprep.subr.bf16.mxu0 0
    %1826 = vmatpush1.bf16.msra.mxu0 0
    %1827 = vmatprep.subr.bf16.mxu0 0
    %1828 = vmatpush1.bf16.msra.mxu0 0
    %1829 = vmatprep.subr.bf16.mxu0 0
    %1830 = vmatpush1.bf16.msra.mxu0 0
    %1831 = vmatprep.subr.bf16.mxu0 0
    %1832 = vmatpush1.bf16.msra.mxu0 0
    %1833 = vmatprep.subr.bf16.mxu0 0
    %1834 = vmatpush1.bf16.msra.mxu0 0
    %1835 = vmatprep.mubr.bf16.mxu0 0
    %1836 = vmatmul.mubr.bf16.gmra.mrb[0].mxu0 %v1781
    %v1837 = vpop.f32.mrb[0].mxu0
    %v1838 = vadd.f32 0.0, %v1837
    %v1839 = vpop.f32.mrb[0].mxu0
    %v1840 = vadd.f32 0.0, %v1839
    %v1841 = vpop.f32.mrb[0].mxu0
    %v1842 = vpop.f32.mrb[0].mxu0
    %1843 = vdwg.mxu0
    %1844 = vmatprep.subr.bf16.mxu0 %v1741
    %1845 = vmatpush1.bf16.msra.mxu0 %v1740
    %1846 = vmatprep.subr.bf16.mxu0 %v1747
    %1847 = vmatpush1.bf16.msra.mxu0 %v1746
    %1848 = vmatprep.subr.bf16.mxu0 %v1753
    %1849 = vmatpush1.bf16.msra.mxu0 %v1752
    %1850 = vmatprep.subr.bf16.mxu0 %v1795
    %1851 = vmatpush1.bf16.msra.mxu0 %v1792
    %1852 = vmatprep.subr.bf16.mxu0 0
    %1853 = vmatpush1.bf16.msra.mxu0 0
    %1854 = vmatprep.subr.bf16.mxu0 0
    %1855 = vmatpush1.bf16.msra.mxu0 0
    %1856 = vmatprep.subr.bf16.mxu0 0
    %1857 = vmatpush1.bf16.msra.mxu0 0
    %1858 = vmatprep.subr.bf16.mxu0 0
    %1859 = vmatpush1.bf16.msra.mxu0 0
    %1860 = vmatprep.subr.bf16.mxu0 0
    %1861 = vmatpush1.bf16.msra.mxu0 0
    %1862 = vmatprep.subr.bf16.mxu0 0
    %1863 = vmatpush1.bf16.msra.mxu0 0
    %1864 = vmatprep.subr.bf16.mxu0 0
    %1865 = vmatpush1.bf16.msra.mxu0 0
    %1866 = vmatprep.subr.bf16.mxu0 0
    %1867 = vmatpush1.bf16.msra.mxu0 0
    %1868 = vmatprep.subr.bf16.mxu0 0
    %1869 = vmatpush1.bf16.msra.mxu0 0
    %1870 = vmatprep.subr.bf16.mxu0 0
    %1871 = vmatpush1.bf16.msra.mxu0 0
    %1872 = vmatprep.subr.bf16.mxu0 0
    %1873 = vmatpush1.bf16.msra.mxu0 0
    %1874 = vmatprep.subr.bf16.mxu0 0
    %1875 = vmatpush1.bf16.msra.mxu0 0
    %1876 = vmatprep.mubr.bf16.mxu0 0
    %1877 = vmatmul.mubr.bf16.gmra.mrb[0].mxu0 %v1781
    %v1878 = vpop.f32.mrb[0].mxu0
    %v1879 = vadd.f32 0.0, %v1878
    %v1880 = vpop.f32.mrb[0].mxu0
    %v1881 = vadd.f32 0.0, %v1880
    %v1882 = vpop.f32.mrb[0].mxu0
    %v1883 = vpop.f32.mrb[0].mxu0
    %1884 = vdwg.mxu0
    %1885 = vmatprep.subr.bf16.mxu0 %v1743
    %1886 = vmatpush1.bf16.msra.mxu0 %v1742
    %1887 = vmatprep.subr.bf16.mxu0 %v1749
    %1888 = vmatpush1.bf16.msra.mxu0 %v1748
    %1889 = vmatprep.subr.bf16.mxu0 %v1755
    %1890 = vmatpush1.bf16.msra.mxu0 %v1754
    %1891 = vmatprep.subr.bf16.mxu0 %v1801
    %1892 = vmatpush1.bf16.msra.mxu0 %v1798
    %1893 = vmatprep.subr.bf16.mxu0 0
    %1894 = vmatpush1.bf16.msra.mxu0 0
    %1895 = vmatprep.subr.bf16.mxu0 0
    %1896 = vmatpush1.bf16.msra.mxu0 0
    %1897 = vmatprep.subr.bf16.mxu0 0
    %1898 = vmatpush1.bf16.msra.mxu0 0
    %1899 = vmatprep.subr.bf16.mxu0 0
    %1900 = vmatpush1.bf16.msra.mxu0 0
    %1901 = vmatprep.subr.bf16.mxu0 0
    %1902 = vmatpush1.bf16.msra.mxu0 0
    %1903 = vmatprep.subr.bf16.mxu0 0
    %1904 = vmatpush1.bf16.msra.mxu0 0
    %1905 = vmatprep.subr.bf16.mxu0 0
    %1906 = vmatpush1.bf16.msra.mxu0 0
    %1907 = vmatprep.subr.bf16.mxu0 0
    %1908 = vmatpush1.bf16.msra.mxu0 0
    %1909 = vmatprep.subr.bf16.mxu0 0
    %1910 = vmatpush1.bf16.msra.mxu0 0
    %1911 = vmatprep.subr.bf16.mxu0 0
    %1912 = vmatpush1.bf16.msra.mxu0 0
    %1913 = vmatprep.subr.bf16.mxu0 0
    %1914 = vmatpush1.bf16.msra.mxu0 0
    %1915 = vmatprep.subr.bf16.mxu0 0
    %1916 = vmatpush1.bf16.msra.mxu0 0
    %1917 = vmatprep.mubr.bf16.mxu0 0
    %1918 = vmatmul.mubr.bf16.gmra.mrb[0].mxu0 %v1781
    %v1919 = vpop.f32.mrb[0].mxu0
    %v1920 = vadd.f32 0.0, %v1919
    %v1921 = vpop.f32.mrb[0].mxu0
    %v1922 = vadd.f32 0.0, %v1921
    %v1923 = vpop.f32.mrb[0].mxu0
    %v1924 = vpop.f32.mrb[0].mxu0
    %1925 = vdwg.mxu0
    %v2502 = vunpack.c.l.b16 %v1077
    %v2503 = vunpack.c.h.b16 %v1077
    %v2504 = vunpack.c.l.b16 %v1078
    %v2505 = vunpack.c.h.b16 %v1078
    %v2506 = vunpack.c.l.b16 %v1079
    %v2507 = vunpack.c.h.b16 %v1079
    %v2508 = vunpack.c.l.b16 %v1080
    %v2509 = vunpack.c.h.b16 %v1080
    %v2510 = vunpack.c.l.b16 %v1081
    %v2511 = vunpack.c.h.b16 %v1081
    %v2512 = vunpack.c.l.b16 %v1082
    %v2513 = vunpack.c.h.b16 %v1082
    %v2514 = vunpack.c.l.b16 %v1083
    %v2515 = vunpack.c.h.b16 %v1083
    %v2516 = vunpack.c.l.b16 %v1084
    %v2517 = vunpack.c.h.b16 %v1084
    %v2518 = vunpack.c.l.b16 %v1085
    %v2519 = vunpack.c.h.b16 %v1085
    %v2520 = vunpack.c.l.b16 %v1086
    %v2521 = vunpack.c.h.b16 %v1086
    %v2522 = vunpack.c.l.b16 %v1087
    %v2523 = vunpack.c.h.b16 %v1087
    %v2524 = vunpack.c.l.b16 %v1088
    %v2525 = vunpack.c.h.b16 %v1088
    %v2526 = vunpack.c.l.b16 %v1089
    %v2527 = vunpack.c.h.b16 %v1089
    %v2528 = vunpack.c.l.b16 %v1090
    %v2529 = vunpack.c.h.b16 %v1090
    %v2530 = vunpack.c.l.b16 %v1091
    %v2531 = vunpack.c.h.b16 %v1091
    %v2532 = vunpack.c.l.b16 %v1092
    %v2533 = vunpack.c.h.b16 %v1092
    %v2534 = vunpack.c.l.b16 %v1093
    %v2535 = vunpack.c.h.b16 %v1093
    %v2536 = vunpack.c.l.b16 %v1094
    %v2537 = vunpack.c.h.b16 %v1094
    %v2538 = vunpack.c.l.b16 %v1095
    %v2539 = vunpack.c.h.b16 %v1095
    %v2540 = vunpack.c.l.b16 %v1096
    %v2541 = vunpack.c.h.b16 %v1096
    %v2542 = vunpack.c.l.b16 %v1097
    %v2543 = vunpack.c.h.b16 %v1097
    %v2544 = vunpack.c.l.b16 %v1098
    %v2545 = vunpack.c.h.b16 %v1098
    %v2546 = vunpack.c.l.b16 %v1099
    %v2547 = vunpack.c.h.b16 %v1099
    %v2548 = vunpack.c.l.b16 %v1100
    %v2549 = vunpack.c.h.b16 %v1100
    %v2550 = vunpack.c.l.b16 %v1101
    %v2551 = vunpack.c.h.b16 %v1101
    %v2552 = vunpack.c.l.b16 %v1102
    %v2553 = vunpack.c.h.b16 %v1102
    %v2554 = vunpack.c.l.b16 %v1103
    %v2555 = vunpack.c.h.b16 %v1103
    %v2556 = vunpack.c.l.b16 %v1104
    %v2557 = vunpack.c.h.b16 %v1104
    %v2558 = vunpack.c.l.b16 %v1105
    %v2559 = vunpack.c.h.b16 %v1105
    %v2560 = vunpack.c.l.b16 %v1106
    %v2561 = vunpack.c.h.b16 %v1106
    %v2562 = vunpack.c.l.b16 %v1107
    %v2563 = vunpack.c.h.b16 %v1107
    %v2564 = vunpack.c.l.b16 %v1108
    %v2565 = vunpack.c.h.b16 %v1108
    %v2566 = vunpack.c.l.b16 %v1109
    %v2567 = vunpack.c.h.b16 %v1109
    %v2568 = vunpack.c.l.b16 %v1110
    %v2569 = vunpack.c.h.b16 %v1110
    %v2570 = vunpack.c.l.b16 %v1111
    %v2571 = vunpack.c.h.b16 %v1111
    %v2572 = vunpack.c.l.b16 %v1112
    %v2573 = vunpack.c.h.b16 %v1112
    %v2574 = vunpack.c.l.b16 %v1113
    %v2575 = vunpack.c.h.b16 %v1113
    %v2576 = vunpack.c.l.b16 %v1114
    %v2577 = vunpack.c.h.b16 %v1114
    %v2578 = vunpack.c.l.b16 %v1115
    %v2579 = vunpack.c.h.b16 %v1115
    %v2580 = vunpack.c.l.b16 %v1116
    %v2581 = vunpack.c.h.b16 %v1116
    %v2582 = vunpack.c.l.b16 %v1117
    %v2583 = vunpack.c.h.b16 %v1117
    %v2584 = vunpack.c.l.b16 %v1118
    %v2585 = vunpack.c.h.b16 %v1118
    %v2586 = vunpack.c.l.b16 %v1119
    %v2587 = vunpack.c.h.b16 %v1119
    %v2588 = vunpack.c.l.b16 %v1120
    %v2589 = vunpack.c.h.b16 %v1120
    %v2590 = vunpack.c.l.b16 %v1121
    %v2591 = vunpack.c.h.b16 %v1121
    %v2592 = vunpack.c.l.b16 %v1122
    %v2593 = vunpack.c.h.b16 %v1122
    %v2594 = vunpack.c.l.b16 %v1123
    %v2595 = vunpack.c.h.b16 %v1123
    %v2596 = vunpack.c.l.b16 %v1124
    %v2597 = vunpack.c.h.b16 %v1124
    %v2598 = vunpack.c.l.b16 %v1125
    %v2599 = vunpack.c.h.b16 %v1125
    %v2600 = vunpack.c.l.b16 %v1126
    %v2601 = vunpack.c.h.b16 %v1126
    %v2602 = vunpack.c.l.b16 %v1127
    %v2603 = vunpack.c.h.b16 %v1127
    %v2604 = vunpack.c.l.b16 %v1128
    %v2605 = vunpack.c.h.b16 %v1128
    %v2606 = vunpack.c.l.b16 %v1129
    %v2607 = vunpack.c.h.b16 %v1129
    %v2608 = vunpack.c.l.b16 %v1130
    %v2609 = vunpack.c.h.b16 %v1130
    %v2610 = vunpack.c.l.b16 %v1131
    %v2611 = vunpack.c.h.b16 %v1131
    %v2612 = vunpack.c.l.b16 %v1132
    %v2613 = vunpack.c.h.b16 %v1132
    %v2614 = vunpack.c.l.b16 %v1133
    %v2615 = vunpack.c.h.b16 %v1133
    %v2616 = vunpack.c.l.b16 %v1134
    %v2617 = vunpack.c.h.b16 %v1134
    %v2618 = vunpack.c.l.b16 %v1135
    %v2619 = vunpack.c.h.b16 %v1135
    %v2620 = vunpack.c.l.b16 %v1136
    %v2621 = vunpack.c.h.b16 %v1136
    %v2622 = vunpack.c.l.b16 %v1137
    %v2623 = vunpack.c.h.b16 %v1137
    %v2624 = vunpack.c.l.b16 %v1138
    %v2625 = vunpack.c.h.b16 %v1138
    %v2626 = vunpack.c.l.b16 %v1139
    %v2627 = vunpack.c.h.b16 %v1139
    %v2628 = vunpack.c.l.b16 %v1140
    %v2629 = vunpack.c.h.b16 %v1140
    %v2630 = vunpack.c.l.b16 %v1141
    %v2631 = vunpack.c.h.b16 %v1141
    %v2632 = vunpack.c.l.b16 %v1142
    %v2633 = vunpack.c.h.b16 %v1142
    %v2634 = vunpack.c.l.b16 %v1143
    %v2635 = vunpack.c.h.b16 %v1143
    %v2636 = vunpack.c.l.b16 %v1144
    %v2637 = vunpack.c.h.b16 %v1144
    %v2638 = vunpack.c.l.b16 %v1145
    %v2639 = vunpack.c.h.b16 %v1145
    %v2640 = vunpack.c.l.b16 %v1146
    %v2641 = vunpack.c.h.b16 %v1146
    %v2642 = vunpack.c.l.b16 %v1147
    %v2643 = vunpack.c.h.b16 %v1147
    %v2644 = vunpack.c.l.b16 %v1148
    %v2645 = vunpack.c.h.b16 %v1148
    %v2646 = vunpack.c.l.b16 %v1149
    %v2647 = vunpack.c.h.b16 %v1149
    %v2648 = vunpack.c.l.b16 %v1150
    %v2649 = vunpack.c.h.b16 %v1150
    %v2650 = vunpack.c.l.b16 %v1151
    %v2651 = vunpack.c.h.b16 %v1151
    %v2652 = vunpack.c.l.b16 %v1152
    %v2653 = vunpack.c.h.b16 %v1152
    %v2654 = vunpack.c.l.b16 %v1153
    %v2655 = vunpack.c.h.b16 %v1153
    %v2656 = vunpack.c.l.b16 %v1154
    %v2657 = vunpack.c.h.b16 %v1154
    %v2658 = vunpack.c.l.b16 %v1155
    %v2659 = vunpack.c.h.b16 %v1155
    %v2660 = vunpack.c.l.b16 %v1156
    %v2661 = vunpack.c.h.b16 %v1156
    %v2662 = vunpack.c.l.b16 %v1157
    %v2663 = vunpack.c.h.b16 %v1157
    %v2664 = vunpack.c.l.b16 %v1158
    %v2665 = vunpack.c.h.b16 %v1158
    %v2666 = vunpack.c.l.b16 %v1159
    %v2667 = vunpack.c.h.b16 %v1159
    %v2668 = vunpack.c.l.b16 %v1160
    %v2669 = vunpack.c.h.b16 %v1160
    %v2670 = vunpack.c.l.b16 %v1161
    %v2671 = vunpack.c.h.b16 %v1161
    %v2672 = vunpack.c.l.b16 %v1162
    %v2673 = vunpack.c.h.b16 %v1162
    %v2674 = vunpack.c.l.b16 %v1163
    %v2675 = vunpack.c.h.b16 %v1163
    %v2676 = vunpack.c.l.b16 %v1164
    %v2677 = vunpack.c.h.b16 %v1164
    %v2678 = vunpack.c.l.b16 %v1165
    %v2679 = vunpack.c.h.b16 %v1165
    %v2680 = vunpack.c.l.b16 %v1166
    %v2681 = vunpack.c.h.b16 %v1166
    %v2682 = vunpack.c.l.b16 %v1167
    %v2683 = vunpack.c.h.b16 %v1167
    %v2684 = vunpack.c.l.b16 %v1168
    %v2685 = vunpack.c.h.b16 %v1168
    %v2686 = vunpack.c.l.b16 %v1169
    %v2687 = vunpack.c.h.b16 %v1169
    %v2688 = vunpack.c.l.b16 %v1170
    %v2689 = vunpack.c.h.b16 %v1170
    %v2690 = vunpack.c.l.b16 %v1171
    %v2691 = vunpack.c.h.b16 %v1171
    %v2692 = vunpack.c.l.b16 %v1172
    %v2693 = vunpack.c.h.b16 %v1172
    %v2694 = vunpack.c.l.b16 %v1173
    %v2695 = vunpack.c.h.b16 %v1173
    %v2696 = vunpack.c.l.b16 %v1174
    %v2697 = vunpack.c.h.b16 %v1174
    %v2698 = vunpack.c.l.b16 %v1175
    %v2699 = vunpack.c.h.b16 %v1175
    %v2700 = vunpack.c.l.b16 %v1176
    %v2701 = vunpack.c.h.b16 %v1176
    %v2702 = vunpack.c.l.b16 %v1177
    %v2703 = vunpack.c.h.b16 %v1177
    %v2704 = vunpack.c.l.b16 %v1178
    %v2705 = vunpack.c.h.b16 %v1178
    %v2706 = vunpack.c.l.b16 %v1179
    %v2707 = vunpack.c.h.b16 %v1179
    %v2708 = vunpack.c.l.b16 %v1180
    %v2709 = vunpack.c.h.b16 %v1180
    %v2710 = vunpack.c.l.b16 %v1181
    %v2711 = vunpack.c.h.b16 %v1181
    %v2712 = vunpack.c.l.b16 %v1182
    %v2713 = vunpack.c.h.b16 %v1182
    %v2714 = vunpack.c.l.b16 %v1183
    %v2715 = vunpack.c.h.b16 %v1183
    %v2716 = vunpack.c.l.b16 %v1184
    %v2717 = vunpack.c.h.b16 %v1184
    %v2718 = vunpack.c.l.b16 %v1185
    %v2719 = vunpack.c.h.b16 %v1185
    %v2720 = vunpack.c.l.b16 %v1186
    %v2721 = vunpack.c.h.b16 %v1186
    %v2722 = vunpack.c.l.b16 %v1187
    %v2723 = vunpack.c.h.b16 %v1187
    %v2724 = vunpack.c.l.b16 %v1188
    %v2725 = vunpack.c.h.b16 %v1188
    %v2726 = vunpack.c.l.b16 %v1189
    %v2727 = vunpack.c.h.b16 %v1189
    %v2728 = vunpack.c.l.b16 %v1190
    %v2729 = vunpack.c.h.b16 %v1190
    %v2730 = vunpack.c.l.b16 %v1191
    %v2731 = vunpack.c.h.b16 %v1191
    %v2732 = vunpack.c.l.b16 %v1192
    %v2733 = vunpack.c.h.b16 %v1192
    %v2734 = vunpack.c.l.b16 %v1193
    %v2735 = vunpack.c.h.b16 %v1193
    %v2736 = vunpack.c.l.b16 %v1194
    %v2737 = vunpack.c.h.b16 %v1194
    %v2738 = vunpack.c.l.b16 %v1195
    %v2739 = vunpack.c.h.b16 %v1195
    %v2740 = vunpack.c.l.b16 %v1196
    %v2741 = vunpack.c.h.b16 %v1196
    %v2742 = vunpack.c.l.b16 %v1197
    %v2743 = vunpack.c.h.b16 %v1197
    %v2744 = vunpack.c.l.b16 %v1198
    %v2745 = vunpack.c.h.b16 %v1198
    %v2746 = vunpack.c.l.b16 %v1199
    %v2747 = vunpack.c.h.b16 %v1199
    %v2748 = vunpack.c.l.b16 %v1200
    %v2749 = vunpack.c.h.b16 %v1200
    %v2750 = vunpack.c.l.b16 %v1201
    %v2751 = vunpack.c.h.b16 %v1201
    %v2752 = vunpack.c.l.b16 %v1202
    %v2753 = vunpack.c.h.b16 %v1202
    %v2754 = vunpack.c.l.b16 %v1203
    %v2755 = vunpack.c.h.b16 %v1203
    %v2756 = vunpack.c.l.b16 %v1204
    %v2757 = vunpack.c.h.b16 %v1204
    %v2758 = vunpack.c.l.b16 %v1205
    %v2759 = vunpack.c.h.b16 %v1205
    %v2760 = vunpack.c.l.b16 %v1206
    %v2761 = vunpack.c.h.b16 %v1206
    %v2762 = vunpack.c.l.b16 %v1207
    %v2763 = vunpack.c.h.b16 %v1207
    %v2764 = vunpack.c.l.b16 %v1208
    %v2765 = vunpack.c.h.b16 %v1208
    %v2766 = vunpack.c.l.b16 %v1209
    %v2767 = vunpack.c.h.b16 %v1209
    %v2768 = vunpack.c.l.b16 %v1210
    %v2769 = vunpack.c.h.b16 %v1210
    %v2770 = vunpack.c.l.b16 %v1211
    %v2771 = vunpack.c.h.b16 %v1211
    %v2772 = vunpack.c.l.b16 %v1212
    %v2773 = vunpack.c.h.b16 %v1212
    %v2774 = vunpack.c.l.b16 %v1213
    %v2775 = vunpack.c.h.b16 %v1213
    %v2776 = vunpack.c.l.b16 %v1214
    %v2777 = vunpack.c.h.b16 %v1214
    %v2778 = vunpack.c.l.b16 %v1215
    %v2779 = vunpack.c.h.b16 %v1215
    %v2780 = vunpack.c.l.b16 %v1216
    %v2781 = vunpack.c.h.b16 %v1216
    %v2782 = vunpack.c.l.b16 %v1217
    %v2783 = vunpack.c.h.b16 %v1217
    %v2784 = vunpack.c.l.b16 %v1218
    %v2785 = vunpack.c.h.b16 %v1218
    %v2786 = vunpack.c.l.b16 %v1219
    %v2787 = vunpack.c.h.b16 %v1219
    %v2788 = vunpack.c.l.b16 %v1220
    %v2789 = vunpack.c.h.b16 %v1220
    %v2790 = vunpack.c.l.b16 %v1221
    %v2791 = vunpack.c.h.b16 %v1221
    %v2792 = vunpack.c.l.b16 %v1222
    %v2793 = vunpack.c.h.b16 %v1222
    %v2794 = vunpack.c.l.b16 %v1223
    %v2795 = vunpack.c.h.b16 %v1223
    %v2796 = vunpack.c.l.b16 %v1224
    %v2797 = vunpack.c.h.b16 %v1224
    %v2798 = vunpack.c.l.b16 %v1225
    %v2799 = vunpack.c.h.b16 %v1225
    %v2800 = vunpack.c.l.b16 %v1226
    %v2801 = vunpack.c.h.b16 %v1226
    %v2802 = vunpack.c.l.b16 %v1227
    %v2803 = vunpack.c.h.b16 %v1227
    %v2804 = vunpack.c.l.b16 %v1228
    %v2805 = vunpack.c.h.b16 %v1228
    %v2806 = vunpack.c.l.b16 %v1229
    %v2807 = vunpack.c.h.b16 %v1229
    %v2808 = vunpack.c.l.b16 %v1230
    %v2809 = vunpack.c.h.b16 %v1230
    %v2810 = vunpack.c.l.b16 %v1231
    %v2811 = vunpack.c.h.b16 %v1231
    %v2812 = vunpack.c.l.b16 %v1232
    %v2813 = vunpack.c.h.b16 %v1232
    %v2814 = vunpack.c.l.b16 %v1233
    %v2815 = vunpack.c.h.b16 %v1233
    %v2816 = vunpack.c.l.b16 %v1234
    %v2817 = vunpack.c.h.b16 %v1234
    %v2818 = vunpack.c.l.b16 %v1235
    %v2819 = vunpack.c.h.b16 %v1235
    %v2820 = vunpack.c.l.b16 %v1236
    %v2821 = vunpack.c.h.b16 %v1236
    %v2822 = vunpack.c.l.b16 %v1237
    %v2823 = vunpack.c.h.b16 %v1237
    %v2824 = vunpack.c.l.b16 %v1238
    %v2825 = vunpack.c.h.b16 %v1238
    %v2826 = vunpack.c.l.b16 %v1239
    %v2827 = vunpack.c.h.b16 %v1239
    %v2828 = vunpack.c.l.b16 %v1240
    %v2829 = vunpack.c.h.b16 %v1240
    %v2830 = vunpack.c.l.b16 %v1241
    %v2831 = vunpack.c.h.b16 %v1241
    %v2832 = vunpack.c.l.b16 %v1242
    %v2833 = vunpack.c.h.b16 %v1242
    %v2834 = vunpack.c.l.b16 %v1243
    %v2835 = vunpack.c.h.b16 %v1243
    %v2836 = vunpack.c.l.b16 %v1244
    %v2837 = vunpack.c.h.b16 %v1244
    %v2838 = vunpack.c.l.b16 %v1245
    %v2839 = vunpack.c.h.b16 %v1245
    %v2840 = vunpack.c.l.b16 %v1246
    %v2841 = vunpack.c.h.b16 %v1246
    %v2842 = vunpack.c.l.b16 %v1247
    %v2843 = vunpack.c.h.b16 %v1247
    %v2844 = vunpack.c.l.b16 %v1248
    %v2845 = vunpack.c.h.b16 %v1248
    %v2846 = vunpack.c.l.b16 %v1249
    %v2847 = vunpack.c.h.b16 %v1249
    %v2848 = vunpack.c.l.b16 %v1250
    %v2849 = vunpack.c.h.b16 %v1250
    %v2850 = vunpack.c.l.b16 %v1251
    %v2851 = vunpack.c.h.b16 %v1251
    %v2852 = vunpack.c.l.b16 %v1252
    %v2853 = vunpack.c.h.b16 %v1252
    %v2854 = vunpack.c.l.b16 %v1253
    %v2855 = vunpack.c.h.b16 %v1253
    %v2856 = vunpack.c.l.b16 %v1254
    %v2857 = vunpack.c.h.b16 %v1254
    %v2858 = vunpack.c.l.b16 %v1255
    %v2859 = vunpack.c.h.b16 %v1255
    %v2860 = vunpack.c.l.b16 %v1256
    %v2861 = vunpack.c.h.b16 %v1256
    %v2862 = vunpack.c.l.b16 %v1257
    %v2863 = vunpack.c.h.b16 %v1257
    %v2864 = vunpack.c.l.b16 %v1258
    %v2865 = vunpack.c.h.b16 %v1258
    %v2866 = vunpack.c.l.b16 %v1259
    %v2867 = vunpack.c.h.b16 %v1259
    %v2868 = vunpack.c.l.b16 %v1260
    %v2869 = vunpack.c.h.b16 %v1260
    %v2870 = vunpack.c.l.b16 %v1261
    %v2871 = vunpack.c.h.b16 %v1261
    %v2872 = vunpack.c.l.b16 %v1262
    %v2873 = vunpack.c.h.b16 %v1262
    %v2874 = vunpack.c.l.b16 %v1263
    %v2875 = vunpack.c.h.b16 %v1263
    %v2876 = vunpack.c.l.b16 %v1264
    %v2877 = vunpack.c.h.b16 %v1264
    %v2878 = vunpack.c.l.b16 %v1265
    %v2879 = vunpack.c.h.b16 %v1265
    %v2880 = vunpack.c.l.b16 %v1266
    %v2881 = vunpack.c.h.b16 %v1266
    %v2882 = vunpack.c.l.b16 %v1267
    %v2883 = vunpack.c.h.b16 %v1267
    %v2884 = vunpack.c.l.b16 %v1268
    %v2885 = vunpack.c.h.b16 %v1268
    %v2886 = vunpack.c.l.b16 %v1269
    %v2887 = vunpack.c.h.b16 %v1269
    %v2888 = vunpack.c.l.b16 %v1270
    %v2889 = vunpack.c.h.b16 %v1270
    %v2890 = vunpack.c.l.b16 %v1271
    %v2891 = vunpack.c.h.b16 %v1271
    %v2892 = vunpack.c.l.b16 %v1272
    %v2893 = vunpack.c.h.b16 %v1272
    %v2894 = vunpack.c.l.b16 %v1273
    %v2895 = vunpack.c.h.b16 %v1273
    %v2896 = vunpack.c.l.b16 %v1274
    %v2897 = vunpack.c.h.b16 %v1274
    %v2898 = vunpack.c.l.b16 %v1275
    %v2899 = vunpack.c.h.b16 %v1275
    %v2900 = vunpack.c.l.b16 %v1276
    %v2901 = vunpack.c.h.b16 %v1276
    %v2902 = vunpack.c.l.b16 %v1277
    %v2903 = vunpack.c.h.b16 %v1277
    %v2904 = vunpack.c.l.b16 %v1278
    %v2905 = vunpack.c.h.b16 %v1278
    %v2906 = vunpack.c.l.b16 %v1279
    %v2907 = vunpack.c.h.b16 %v1279
    %v2908 = vunpack.c.l.b16 %v1280
    %v2909 = vunpack.c.h.b16 %v1280
    %v2910 = vunpack.c.l.b16 %v1281
    %v2911 = vunpack.c.h.b16 %v1281
    %v2912 = vunpack.c.l.b16 %v1282
    %v2913 = vunpack.c.h.b16 %v1282
    %v2914 = vunpack.c.l.b16 %v1283
    %v2915 = vunpack.c.h.b16 %v1283
    %v2916 = vunpack.c.l.b16 %v1284
    %v2917 = vunpack.c.h.b16 %v1284
    %v2918 = vunpack.c.l.b16 %v1285
    %v2919 = vunpack.c.h.b16 %v1285
    %v2920 = vunpack.c.l.b16 %v1286
    %v2921 = vunpack.c.h.b16 %v1286
    %v2922 = vunpack.c.l.b16 %v1287
    %v2923 = vunpack.c.h.b16 %v1287
    %v2924 = vunpack.c.l.b16 %v1288
    %v2925 = vunpack.c.h.b16 %v1288
    %v2926 = vunpack.c.l.b16 %v1289
    %v2927 = vunpack.c.h.b16 %v1289
    %v2928 = vunpack.c.l.b16 %v1290
    %v2929 = vunpack.c.h.b16 %v1290
    %v2930 = vunpack.c.l.b16 %v1291
    %v2931 = vunpack.c.h.b16 %v1291
    %v2932 = vunpack.c.l.b16 %v1292
    %v2933 = vunpack.c.h.b16 %v1292
    %v2934 = vunpack.c.l.b16 %v1293
    %v2935 = vunpack.c.h.b16 %v1293
    %v2936 = vunpack.c.l.b16 %v1294
    %v2937 = vunpack.c.h.b16 %v1294
    %v2938 = vunpack.c.l.b16 %v1295
    %v2939 = vunpack.c.h.b16 %v1295
    %v2940 = vunpack.c.l.b16 %v1296
    %v2941 = vunpack.c.h.b16 %v1296
    %v2942 = vunpack.c.l.b16 %v1297
    %v2943 = vunpack.c.h.b16 %v1297
    %v2944 = vunpack.c.l.b16 %v1298
    %v2945 = vunpack.c.h.b16 %v1298
    %v2946 = vunpack.c.l.b16 %v1299
    %v2947 = vunpack.c.h.b16 %v1299
    %v2948 = vunpack.c.l.b16 %v1300
    %v2949 = vunpack.c.h.b16 %v1300
    %v2950 = vunpack.c.l.b16 %v1301
    %v2951 = vunpack.c.h.b16 %v1301
    %v2952 = vunpack.c.l.b16 %v1302
    %v2953 = vunpack.c.h.b16 %v1302
    %v2954 = vunpack.c.l.b16 %v1303
    %v2955 = vunpack.c.h.b16 %v1303
    %v2956 = vunpack.c.l.b16 %v1304
    %v2957 = vunpack.c.h.b16 %v1304
    %v2958 = vunpack.c.l.b16 %v1305
    %v2959 = vunpack.c.h.b16 %v1305
    %v2960 = vunpack.c.l.b16 %v1306
    %v2961 = vunpack.c.h.b16 %v1306
    %v2962 = vunpack.c.l.b16 %v1307
    %v2963 = vunpack.c.h.b16 %v1307
    %v2964 = vunpack.c.l.b16 %v1308
    %v2965 = vunpack.c.h.b16 %v1308
    %v2966 = vunpack.c.l.b16 %v1309
    %v2967 = vunpack.c.h.b16 %v1309
    %v2968 = vunpack.c.l.b16 %v1310
    %v2969 = vunpack.c.h.b16 %v1310
    %v2970 = vunpack.c.l.b16 %v1311
    %v2971 = vunpack.c.h.b16 %v1311
    %v2972 = vunpack.c.l.b16 %v1312
    %v2973 = vunpack.c.h.b16 %v1312
    %v2974 = vunpack.c.l.b16 %v1313
    %v2975 = vunpack.c.h.b16 %v1313
    %v2976 = vunpack.c.l.b16 %v1314
    %v2977 = vunpack.c.h.b16 %v1314
    %v2978 = vunpack.c.l.b16 %v1315
    %v2979 = vunpack.c.h.b16 %v1315
    %v2980 = vunpack.c.l.b16 %v1316
    %v2981 = vunpack.c.h.b16 %v1316
    %v2982 = vunpack.c.l.b16 %v1317
    %v2983 = vunpack.c.h.b16 %v1317
    %v2984 = vunpack.c.l.b16 %v1318
    %v2985 = vunpack.c.h.b16 %v1318
    %v2986 = vunpack.c.l.b16 %v1319
    %v2987 = vunpack.c.h.b16 %v1319
    %v2988 = vunpack.c.l.b16 %v1320
    %v2989 = vunpack.c.h.b16 %v1320
    %v2990 = vunpack.c.l.b16 %v1321
    %v2991 = vunpack.c.h.b16 %v1321
    %v2992 = vunpack.c.l.b16 %v1322
    %v2993 = vunpack.c.h.b16 %v1322
    %v2994 = vunpack.c.l.b16 %v1323
    %v2995 = vunpack.c.h.b16 %v1323
    %v2996 = vunpack.c.l.b16 %v1324
    %v2997 = vunpack.c.h.b16 %v1324
    %v2998 = vunpack.c.l.b16 %v1325
    %v2999 = vunpack.c.h.b16 %v1325
    %v3000 = vunpack.c.l.b16 %v1326
    %v3001 = vunpack.c.h.b16 %v1326
    %v3002 = vunpack.c.l.b16 %v1327
    %v3003 = vunpack.c.h.b16 %v1327
    %v3004 = vunpack.c.l.b16 %v1328
    %v3005 = vunpack.c.h.b16 %v1328
    %v3006 = vunpack.c.l.b16 %v1329
    %v3007 = vunpack.c.h.b16 %v1329
    %v3008 = vunpack.c.l.b16 %v1330
    %v3009 = vunpack.c.h.b16 %v1330
    %v3010 = vunpack.c.l.b16 %v1331
    %v3011 = vunpack.c.h.b16 %v1331
    %v3012 = vunpack.c.l.b16 %v1332
    %v3013 = vunpack.c.h.b16 %v1332
    %v3014 = vunpack.c.l.b16 %v1333
    %v3015 = vunpack.c.h.b16 %v1333
    %v3016 = vunpack.c.l.b16 %v1334
    %v3017 = vunpack.c.h.b16 %v1334
    %v3018 = vunpack.c.l.b16 %v1335
    %v3019 = vunpack.c.h.b16 %v1335
    %v3020 = vunpack.c.l.b16 %v1336
    %v3021 = vunpack.c.h.b16 %v1336
    %v3022 = vunpack.c.l.b16 %v1337
    %v3023 = vunpack.c.h.b16 %v1337
    %v3024 = vunpack.c.l.b16 %v1338
    %v3025 = vunpack.c.h.b16 %v1338
    %v3026 = vunpack.c.l.b16 %v1339
    %v3027 = vunpack.c.h.b16 %v1339
    %v3028 = vunpack.c.l.b16 %v1340
    %v3029 = vunpack.c.h.b16 %v1340
    %v3030 = vunpack.c.l.b16 %v1341
    %v3031 = vunpack.c.h.b16 %v1341
    %v3032 = vunpack.c.l.b16 %v1342
    %v3033 = vunpack.c.h.b16 %v1342
    %v3034 = vunpack.c.l.b16 %v1343
    %v3035 = vunpack.c.h.b16 %v1343
    %v3036 = vunpack.c.l.b16 %v1344
    %v3037 = vunpack.c.h.b16 %v1344
    %v3038 = vunpack.c.l.b16 %v1345
    %v3039 = vunpack.c.h.b16 %v1345
    %v3040 = vunpack.c.l.b16 %v1346
    %v3041 = vunpack.c.h.b16 %v1346
    %v3042 = vunpack.c.l.b16 %v1347
    %v3043 = vunpack.c.h.b16 %v1347
    %v3044 = vunpack.c.l.b16 %v1348
    %v3045 = vunpack.c.h.b16 %v1348
    %v3046 = vunpack.c.l.b16 %v1349
    %v3047 = vunpack.c.h.b16 %v1349
    %v3048 = vunpack.c.l.b16 %v1350
    %v3049 = vunpack.c.h.b16 %v1350
    %v3050 = vunpack.c.l.b16 %v1351
    %v3051 = vunpack.c.h.b16 %v1351
    %v3052 = vunpack.c.l.b16 %v1352
    %v3053 = vunpack.c.h.b16 %v1352
    %v3054 = vunpack.c.l.b16 %v1353
    %v3055 = vunpack.c.h.b16 %v1353
    %v3056 = vunpack.c.l.b16 %v1354
    %v3057 = vunpack.c.h.b16 %v1354
    %v3058 = vunpack.c.l.b16 %v1355
    %v3059 = vunpack.c.h.b16 %v1355
    %v3060 = vunpack.c.l.b16 %v1356
    %v3061 = vunpack.c.h.b16 %v1356
    %v3062 = vunpack.c.l.b16 %v1357
    %v3063 = vunpack.c.h.b16 %v1357
    %v3064 = vunpack.c.l.b16 %v1358
    %v3065 = vunpack.c.h.b16 %v1358
    %v3066 = vunpack.c.l.b16 %v1359
    %v3067 = vunpack.c.h.b16 %v1359
    %v3068 = vunpack.c.l.b16 %v1360
    %v3069 = vunpack.c.h.b16 %v1360
    %v3070 = vunpack.c.l.b16 %v1361
    %v3071 = vunpack.c.h.b16 %v1361
    %v3072 = vunpack.c.l.b16 %v1362
    %v3073 = vunpack.c.h.b16 %v1362
    %v3074 = vunpack.c.l.b16 %v1363
    %v3075 = vunpack.c.h.b16 %v1363
    %v3076 = vunpack.c.l.b16 %v1364
    %v3077 = vunpack.c.h.b16 %v1364
    %v3078 = vunpack.c.l.b16 %v1365
    %v3079 = vunpack.c.h.b16 %v1365
    %v3080 = vunpack.c.l.b16 %v1366
    %v3081 = vunpack.c.h.b16 %v1366
    %v3082 = vunpack.c.l.b16 %v1367
    %v3083 = vunpack.c.h.b16 %v1367
    %v3084 = vunpack.c.l.b16 %v1368
    %v3085 = vunpack.c.h.b16 %v1368
    %v3086 = vunpack.c.l.b16 %v1369
    %v3087 = vunpack.c.h.b16 %v1369
    %v3088 = vunpack.c.l.b16 %v1370
    %v3089 = vunpack.c.h.b16 %v1370
    %v3090 = vunpack.c.l.b16 %v1371
    %v3091 = vunpack.c.h.b16 %v1371
    %v3092 = vunpack.c.l.b16 %v1372
    %v3093 = vunpack.c.h.b16 %v1372
    %v3094 = vunpack.c.l.b16 %v1373
    %v3095 = vunpack.c.h.b16 %v1373
    %v3096 = vunpack.c.l.b16 %v1374
    %v3097 = vunpack.c.h.b16 %v1374
    %v3098 = vunpack.c.l.b16 %v1375
    %v3099 = vunpack.c.h.b16 %v1375
    %v3100 = vunpack.c.l.b16 %v1376
    %v3101 = vunpack.c.h.b16 %v1376
    %v3102 = vunpack.c.l.b16 %v1377
    %v3103 = vunpack.c.h.b16 %v1377
    %v3104 = vunpack.c.l.b16 %v1378
    %v3105 = vunpack.c.h.b16 %v1378
    %v3106 = vunpack.c.l.b16 %v1379
    %v3107 = vunpack.c.h.b16 %v1379
    %v3108 = vunpack.c.l.b16 %v1380
    %v3109 = vunpack.c.h.b16 %v1380
    %v3110 = vunpack.c.l.b16 %v1381
    %v3111 = vunpack.c.h.b16 %v1381
    %v3112 = vunpack.c.l.b16 %v1382
    %v3113 = vunpack.c.h.b16 %v1382
    %v3114 = vunpack.c.l.b16 %v1383
    %v3115 = vunpack.c.h.b16 %v1383
    %v3116 = vunpack.c.l.b16 %v1384
    %v3117 = vunpack.c.h.b16 %v1384
    %v3118 = vunpack.c.l.b16 %v1385
    %v3119 = vunpack.c.h.b16 %v1385
    %v3120 = vunpack.c.l.b16 %v1386
    %v3121 = vunpack.c.h.b16 %v1386
    %v3122 = vunpack.c.l.b16 %v1387
    %v3123 = vunpack.c.h.b16 %v1387
    %v3124 = vunpack.c.l.b16 %v1388
    %v3125 = vunpack.c.h.b16 %v1388
    %v3126 = vunpack.c.l.b16 %v1389
    %v3127 = vunpack.c.h.b16 %v1389
    %v3128 = vunpack.c.l.b16 %v1390
    %v3129 = vunpack.c.h.b16 %v1390
    %v3130 = vunpack.c.l.b16 %v1391
    %v3131 = vunpack.c.h.b16 %v1391
    %v3132 = vunpack.c.l.b16 %v1392
    %v3133 = vunpack.c.h.b16 %v1392
    %v3134 = vunpack.c.l.b16 %v1393
    %v3135 = vunpack.c.h.b16 %v1393
    %v3136 = vunpack.c.l.b16 %v1394
    %v3137 = vunpack.c.h.b16 %v1394
    %v3138 = vunpack.c.l.b16 %v1395
    %v3139 = vunpack.c.h.b16 %v1395
    %v3140 = vunpack.c.l.b16 %v1396
    %v3141 = vunpack.c.h.b16 %v1396
    %v3142 = vunpack.c.l.b16 %v1397
    %v3143 = vunpack.c.h.b16 %v1397
    %v3144 = vunpack.c.l.b16 %v1398
    %v3145 = vunpack.c.h.b16 %v1398
    %v3146 = vunpack.c.l.b16 %v1399
    %v3147 = vunpack.c.h.b16 %v1399
    %v3148 = vunpack.c.l.b16 %v1400
    %v3149 = vunpack.c.h.b16 %v1400
    %v3150 = vunpack.c.l.b16 %v1401
    %v3151 = vunpack.c.h.b16 %v1401
    %v3152 = vunpack.c.l.b16 %v1402
    %v3153 = vunpack.c.h.b16 %v1402
    %v3154 = vunpack.c.l.b16 %v1403
    %v3155 = vunpack.c.h.b16 %v1403
    %v3156 = vunpack.c.l.b16 %v1404
    %v3157 = vunpack.c.h.b16 %v1404
    %v3158 = vunpack.c.l.b16 %v1405
    %v3159 = vunpack.c.h.b16 %v1405
    %v3160 = vunpack.c.l.b16 %v1406
    %v3161 = vunpack.c.h.b16 %v1406
    %v3162 = vunpack.c.l.b16 %v1407
    %v3163 = vunpack.c.h.b16 %v1407
    %v3164 = vunpack.c.l.b16 %v1408
    %v3165 = vunpack.c.h.b16 %v1408
    %v3166 = vunpack.c.l.b16 %v1409
    %v3167 = vunpack.c.h.b16 %v1409
    %v3168 = vunpack.c.l.b16 %v1410
    %v3169 = vunpack.c.h.b16 %v1410
    %v3170 = vunpack.c.l.b16 %v1411
    %v3171 = vunpack.c.h.b16 %v1411
    %v3172 = vunpack.c.l.b16 %v1412
    %v3173 = vunpack.c.h.b16 %v1412
    %v3174 = vunpack.c.l.b16 %v1413
    %v3175 = vunpack.c.h.b16 %v1413
    %v3176 = vunpack.c.l.b16 %v1414
    %v3177 = vunpack.c.h.b16 %v1414
    %v3178 = vunpack.c.l.b16 %v1415
    %v3179 = vunpack.c.h.b16 %v1415
    %v3180 = vunpack.c.l.b16 %v1416
    %v3181 = vunpack.c.h.b16 %v1416
    %v3182 = vunpack.c.l.b16 %v1417
    %v3183 = vunpack.c.h.b16 %v1417
    %v3184 = vunpack.c.l.b16 %v1418
    %v3185 = vunpack.c.h.b16 %v1418
    %v3186 = vunpack.c.l.b16 %v1419
    %v3187 = vunpack.c.h.b16 %v1419
    %v3188 = vunpack.c.l.b16 %v1420
    %v3189 = vunpack.c.h.b16 %v1420
    %v3190 = vunpack.c.l.b16 %v1421
    %v3191 = vunpack.c.h.b16 %v1421
    %v3192 = vunpack.c.l.b16 %v1422
    %v3193 = vunpack.c.h.b16 %v1422
    %v3194 = vunpack.c.l.b16 %v1423
    %v3195 = vunpack.c.h.b16 %v1423
    %v3196 = vunpack.c.l.b16 %v1424
    %v3197 = vunpack.c.h.b16 %v1424
    %v3198 = vunpack.c.l.b16 %v1425
    %v3199 = vunpack.c.h.b16 %v1425
    %v3200 = vunpack.c.l.b16 %v1426
    %v3201 = vunpack.c.h.b16 %v1426
    %v3202 = vunpack.c.l.b16 %v1427
    %v3203 = vunpack.c.h.b16 %v1427
    %v3204 = vunpack.c.l.b16 %v1428
    %v3205 = vunpack.c.h.b16 %v1428
    %v3206 = vunpack.c.l.b16 %v1429
    %v3207 = vunpack.c.h.b16 %v1429
    %v3208 = vunpack.c.l.b16 %v1430
    %v3209 = vunpack.c.h.b16 %v1430
    %v3210 = vunpack.c.l.b16 %v1431
    %v3211 = vunpack.c.h.b16 %v1431
    %v3212 = vunpack.c.l.b16 %v1432
    %v3213 = vunpack.c.h.b16 %v1432
    %v3214 = vunpack.c.l.b16 %v1433
    %v3215 = vunpack.c.h.b16 %v1433
    %v3216 = vunpack.c.l.b16 %v1434
    %v3217 = vunpack.c.h.b16 %v1434
    %v3218 = vunpack.c.l.b16 %v1435
    %v3219 = vunpack.c.h.b16 %v1435
    %v3220 = vunpack.c.l.b16 %v1436
    %v3221 = vunpack.c.h.b16 %v1436
    %v3222 = vunpack.c.l.b16 %v1437
    %v3223 = vunpack.c.h.b16 %v1437
    %v3224 = vunpack.c.l.b16 %v1438
    %v3225 = vunpack.c.h.b16 %v1438
    %v3226 = vunpack.c.l.b16 %v1439
    %v3227 = vunpack.c.h.b16 %v1439
    %v3228 = vunpack.c.l.b16 %v1440
    %v3229 = vunpack.c.h.b16 %v1440
    %v3230 = vunpack.c.l.b16 %v1441
    %v3231 = vunpack.c.h.b16 %v1441
    %v3232 = vunpack.c.l.b16 %v1442
    %v3233 = vunpack.c.h.b16 %v1442
    %v3234 = vunpack.c.l.b16 %v1443
    %v3235 = vunpack.c.h.b16 %v1443
    %v3236 = vunpack.c.l.b16 %v1444
    %v3237 = vunpack.c.h.b16 %v1444
    %v3238 = vunpack.c.l.b16 %v1445
    %v3239 = vunpack.c.h.b16 %v1445
    %v3240 = vunpack.c.l.b16 %v1446
    %v3241 = vunpack.c.h.b16 %v1446
    %v3242 = vunpack.c.l.b16 %v1447
    %v3243 = vunpack.c.h.b16 %v1447
    %v3244 = vunpack.c.l.b16 %v1448
    %v3245 = vunpack.c.h.b16 %v1448
    %v3246 = vunpack.c.l.b16 %v1449
    %v3247 = vunpack.c.h.b16 %v1449
    %v3248 = vunpack.c.l.b16 %v1450
    %v3249 = vunpack.c.h.b16 %v1450
    %v3250 = vunpack.c.l.b16 %v1451
    %v3251 = vunpack.c.h.b16 %v1451
    %v3252 = vunpack.c.l.b16 %v1452
    %v3253 = vunpack.c.h.b16 %v1452
    %v3254 = vunpack.c.l.b16 %v1453
    %v3255 = vunpack.c.h.b16 %v1453
    %v3256 = vunpack.c.l.b16 %v1454
    %v3257 = vunpack.c.h.b16 %v1454
    %v3258 = vunpack.c.l.b16 %v1455
    %v3259 = vunpack.c.h.b16 %v1455
    %v3260 = vunpack.c.l.b16 %v1456
    %v3261 = vunpack.c.h.b16 %v1456
    %v3262 = vunpack.c.l.b16 %v1457
    %v3263 = vunpack.c.h.b16 %v1457
    %v3264 = vunpack.c.l.b16 %v1458
    %v3265 = vunpack.c.h.b16 %v1458
    %v3266 = vunpack.c.l.b16 %v1459
    %v3267 = vunpack.c.h.b16 %v1459
    %v3268 = vunpack.c.l.b16 %v1460
    %v3269 = vunpack.c.h.b16 %v1460
    %v3270 = vunpack.c.l.b16 %v1461
    %v3271 = vunpack.c.h.b16 %v1461
    %v3272 = vunpack.c.l.b16 %v1462
    %v3273 = vunpack.c.h.b16 %v1462
    %v3274 = vunpack.c.l.b16 %v1463
    %v3275 = vunpack.c.h.b16 %v1463
    %v3276 = vunpack.c.l.b16 %v1464
    %v3277 = vunpack.c.h.b16 %v1464
    %v3278 = vunpack.c.l.b16 %v1465
    %v3279 = vunpack.c.h.b16 %v1465
    %v3280 = vunpack.c.l.b16 %v1466
    %v3281 = vunpack.c.h.b16 %v1466
    %v3282 = vunpack.c.l.b16 %v1467
    %v3283 = vunpack.c.h.b16 %v1467
    %v3284 = vunpack.c.l.b16 %v1468
    %v3285 = vunpack.c.h.b16 %v1468
    %v3286 = vunpack.c.l.b16 %v1469
    %v3287 = vunpack.c.h.b16 %v1469
    %v3288 = vunpack.c.l.b16 %v1470
    %v3289 = vunpack.c.h.b16 %v1470
    %v3290 = vunpack.c.l.b16 %v1471
    %v3291 = vunpack.c.h.b16 %v1471
    %v3292 = vunpack.c.l.b16 %v1472
    %v3293 = vunpack.c.h.b16 %v1472
    %v3294 = vunpack.c.l.b16 %v1473
    %v3295 = vunpack.c.h.b16 %v1473
    %v3296 = vunpack.c.l.b16 %v1474
    %v3297 = vunpack.c.h.b16 %v1474
    %v3298 = vunpack.c.l.b16 %v1475
    %v3299 = vunpack.c.h.b16 %v1475
    %v3300 = vunpack.c.l.b16 %v1476
    %v3301 = vunpack.c.h.b16 %v1476
    %v3302 = vunpack.c.l.b16 %v1477
    %v3303 = vunpack.c.h.b16 %v1477
    %v3304 = vunpack.c.l.b16 %v1478
    %v3305 = vunpack.c.h.b16 %v1478
    %v3306 = vunpack.c.l.b16 %v1479
    %v3307 = vunpack.c.h.b16 %v1479
    %v3308 = vunpack.c.l.b16 %v1480
    %v3309 = vunpack.c.h.b16 %v1480
    %v3310 = vunpack.c.l.b16 %v1481
    %v3311 = vunpack.c.h.b16 %v1481
    %v3312 = vunpack.c.l.b16 %v1482
    %v3313 = vunpack.c.h.b16 %v1482
    %v3314 = vunpack.c.l.b16 %v1483
    %v3315 = vunpack.c.h.b16 %v1483
    %v3316 = vunpack.c.l.b16 %v1484
    %v3317 = vunpack.c.h.b16 %v1484
    %v3318 = vunpack.c.l.b16 %v1485
    %v3319 = vunpack.c.h.b16 %v1485
    %v3320 = vunpack.c.l.b16 %v1486
    %v3321 = vunpack.c.h.b16 %v1486
    %v3322 = vunpack.c.l.b16 %v1487
    %v3323 = vunpack.c.h.b16 %v1487
    %v3324 = vunpack.c.l.b16 %v1488
    %v3325 = vunpack.c.h.b16 %v1488
    %v3326 = vunpack.c.l.b16 %v1489
    %v3327 = vunpack.c.h.b16 %v1489
    %v3328 = vunpack.c.l.b16 %v1490
    %v3329 = vunpack.c.h.b16 %v1490
    %v3330 = vunpack.c.l.b16 %v1491
    %v3331 = vunpack.c.h.b16 %v1491
    %v3332 = vunpack.c.l.b16 %v1492
    %v3333 = vunpack.c.h.b16 %v1492
    %v3334 = vunpack.c.l.b16 %v1493
    %v3335 = vunpack.c.h.b16 %v1493
    %v3336 = vunpack.c.l.b16 %v1494
    %v3337 = vunpack.c.h.b16 %v1494
    %v3338 = vunpack.c.l.b16 %v1495
    %v3339 = vunpack.c.h.b16 %v1495
    %v3340 = vunpack.c.l.b16 %v1496
    %v3341 = vunpack.c.h.b16 %v1496
    %v3342 = vunpack.c.l.b16 %v1497
    %v3343 = vunpack.c.h.b16 %v1497
    %v3344 = vunpack.c.l.b16 %v1498
    %v3345 = vunpack.c.h.b16 %v1498
    %v3346 = vunpack.c.l.b16 %v1499
    %v3347 = vunpack.c.h.b16 %v1499
    %v3348 = vunpack.c.l.b16 %v1500
    %v3349 = vunpack.c.h.b16 %v1500
    %v3350 = vunpack.c.l.b16 %v1501
    %v3351 = vunpack.c.h.b16 %v1501
    %v3352 = vunpack.c.l.b16 %v1502
    %v3353 = vunpack.c.h.b16 %v1502
    %v3354 = vunpack.c.l.b16 %v1503
    %v3355 = vunpack.c.h.b16 %v1503
    %v3356 = vunpack.c.l.b16 %v1504
    %v3357 = vunpack.c.h.b16 %v1504
    %v3358 = vunpack.c.l.b16 %v1505
    %v3359 = vunpack.c.h.b16 %v1505
    %v3360 = vunpack.c.l.b16 %v1506
    %v3361 = vunpack.c.h.b16 %v1506
    %v3362 = vunpack.c.l.b16 %v1507
    %v3363 = vunpack.c.h.b16 %v1507
    %v3364 = vunpack.c.l.b16 %v1508
    %v3365 = vunpack.c.h.b16 %v1508
    %v3366 = vunpack.c.l.b16 %v1509
    %v3367 = vunpack.c.h.b16 %v1509
    %v3368 = vunpack.c.l.b16 %v1510
    %v3369 = vunpack.c.h.b16 %v1510
    %v3370 = vunpack.c.l.b16 %v1511
    %v3371 = vunpack.c.h.b16 %v1511
    %v3372 = vunpack.c.l.b16 %v1512
    %v3373 = vunpack.c.h.b16 %v1512
    %v3374 = vunpack.c.l.b16 %v1513
    %v3375 = vunpack.c.h.b16 %v1513
    %v3376 = vunpack.c.l.b16 %v1514
    %v3377 = vunpack.c.h.b16 %v1514
    %v3378 = vunpack.c.l.b16 %v1515
    %v3379 = vunpack.c.h.b16 %v1515
    %v3380 = vunpack.c.l.b16 %v1516
    %v3381 = vunpack.c.h.b16 %v1516
    %v3382 = vunpack.c.l.b16 %v1517
    %v3383 = vunpack.c.h.b16 %v1517
    %v3384 = vunpack.c.l.b16 %v1518
    %v3385 = vunpack.c.h.b16 %v1518
    %v3386 = vunpack.c.l.b16 %v1519
    %v3387 = vunpack.c.h.b16 %v1519
    %v3388 = vunpack.c.l.b16 %v1520
    %v3389 = vunpack.c.h.b16 %v1520
    %v3390 = vunpack.c.l.b16 %v1521
    %v3391 = vunpack.c.h.b16 %v1521
    %v3392 = vunpack.c.l.b16 %v1522
    %v3393 = vunpack.c.h.b16 %v1522
    %v3394 = vunpack.c.l.b16 %v1523
    %v3395 = vunpack.c.h.b16 %v1523
    %v3396 = vunpack.c.l.b16 %v1524
    %v3397 = vunpack.c.h.b16 %v1524
    %v3398 = vunpack.c.l.b16 %v1525
    %v3399 = vunpack.c.h.b16 %v1525
    %v3400 = vunpack.c.l.b16 %v1526
    %v3401 = vunpack.c.h.b16 %v1526
    %v3402 = vunpack.c.l.b16 %v1527
    %v3403 = vunpack.c.h.b16 %v1527
    %v3404 = vunpack.c.l.b16 %v1528
    %v3405 = vunpack.c.h.b16 %v1528
    %v3406 = vunpack.c.l.b16 %v1529
    %v3407 = vunpack.c.h.b16 %v1529
    %v3408 = vunpack.c.l.b16 %v1530
    %v3409 = vunpack.c.h.b16 %v1530
    %v3410 = vunpack.c.l.b16 %v1531
    %v3411 = vunpack.c.h.b16 %v1531
    %v3412 = vunpack.c.l.b16 %v1532
    %v3413 = vunpack.c.h.b16 %v1532
    %v3414 = vunpack.c.l.b16 %v1533
    %v3415 = vunpack.c.h.b16 %v1533
    %v3416 = vunpack.c.l.b16 %v1534
    %v3417 = vunpack.c.h.b16 %v1534
    %v3418 = vunpack.c.l.b16 %v1535
    %v3419 = vunpack.c.h.b16 %v1535
    %v3420 = vunpack.c.l.b16 %v1536
    %v3421 = vunpack.c.h.b16 %v1536
    %v3422 = vunpack.c.l.b16 %v1537
    %v3423 = vunpack.c.h.b16 %v1537
    %v3424 = vunpack.c.l.b16 %v1538
    %v3425 = vunpack.c.h.b16 %v1538
    %v3426 = vunpack.c.l.b16 %v1539
    %v3427 = vunpack.c.h.b16 %v1539
    %v3428 = vunpack.c.l.b16 %v1540
    %v3429 = vunpack.c.h.b16 %v1540
    %v3430 = vunpack.c.l.b16 %v1541
    %v3431 = vunpack.c.h.b16 %v1541
    %v3432 = vunpack.c.l.b16 %v1542
    %v3433 = vunpack.c.h.b16 %v1542
    %v3434 = vunpack.c.l.b16 %v1543
    %v3435 = vunpack.c.h.b16 %v1543
    %v3436 = vunpack.c.l.b16 %v1544
    %v3437 = vunpack.c.h.b16 %v1544
    %v3438 = vunpack.c.l.b16 %v1545
    %v3439 = vunpack.c.h.b16 %v1545
    %v3440 = vunpack.c.l.b16 %v1546
    %v3441 = vunpack.c.h.b16 %v1546
    %v3442 = vunpack.c.l.b16 %v1547
    %v3443 = vunpack.c.h.b16 %v1547
    %v3444 = vunpack.c.l.b16 %v1548
    %v3445 = vunpack.c.h.b16 %v1548
    %v3446 = vunpack.c.l.b16 %v1549
    %v3447 = vunpack.c.h.b16 %v1549
    %v3448 = vunpack.c.l.b16 %v1550
    %v3449 = vunpack.c.h.b16 %v1550
    %v3450 = vunpack.c.l.b16 %v1551
    %v3451 = vunpack.c.h.b16 %v1551
    %v3452 = vunpack.c.l.b16 %v1552
    %v3453 = vunpack.c.h.b16 %v1552
    %v3454 = vunpack.c.l.b16 %v1553
    %v3455 = vunpack.c.h.b16 %v1553
    %v3456 = vunpack.c.l.b16 %v1554
    %v3457 = vunpack.c.h.b16 %v1554
    %v3458 = vunpack.c.l.b16 %v1555
    %v3459 = vunpack.c.h.b16 %v1555
    %v3460 = vunpack.c.l.b16 %v1556
    %v3461 = vunpack.c.h.b16 %v1556
    %v3462 = vunpack.c.l.b16 %v1557
    %v3463 = vunpack.c.h.b16 %v1557
    %v3464 = vunpack.c.l.b16 %v1558
    %v3465 = vunpack.c.h.b16 %v1558
    %v3466 = vunpack.c.l.b16 %v1559
    %v3467 = vunpack.c.h.b16 %v1559
    %v3468 = vunpack.c.l.b16 %v1560
    %v3469 = vunpack.c.h.b16 %v1560
    %v3470 = vunpack.c.l.b16 %v1561
    %v3471 = vunpack.c.h.b16 %v1561
    %v3472 = vunpack.c.l.b16 %v1562
    %v3473 = vunpack.c.h.b16 %v1562
    %v3474 = vunpack.c.l.b16 %v1563
    %v3475 = vunpack.c.h.b16 %v1563
    %v3476 = vunpack.c.l.b16 %v1564
    %v3477 = vunpack.c.h.b16 %v1564
    %v3478 = vunpack.c.l.b16 %v1565
    %v3479 = vunpack.c.h.b16 %v1565
    %v3480 = vunpack.c.l.b16 %v1566
    %v3481 = vunpack.c.h.b16 %v1566
    %v3482 = vunpack.c.l.b16 %v1567
    %v3483 = vunpack.c.h.b16 %v1567
    %v3484 = vunpack.c.l.b16 %v1568
    %v3485 = vunpack.c.h.b16 %v1568
    %v3486 = vunpack.c.l.b16 %v1569
    %v3487 = vunpack.c.h.b16 %v1569
    %v3488 = vunpack.c.l.b16 %v1570
    %v3489 = vunpack.c.h.b16 %v1570
    %v3490 = vunpack.c.l.b16 %v1571
    %v3491 = vunpack.c.h.b16 %v1571
    %v3492 = vunpack.c.l.b16 %v1572
    %v3493 = vunpack.c.h.b16 %v1572
    %v3494 = vunpack.c.l.b16 %v1573
    %v3495 = vunpack.c.h.b16 %v1573
    %v3496 = vunpack.c.l.b16 %v1574
    %v3497 = vunpack.c.h.b16 %v1574
    %v3498 = vunpack.c.l.b16 %v1575
    %v3499 = vunpack.c.h.b16 %v1575
    %v3500 = vunpack.c.l.b16 %v1576
    %v3501 = vunpack.c.h.b16 %v1576
    %v3502 = vunpack.c.l.b16 %v1577
    %v3503 = vunpack.c.h.b16 %v1577
    %v3504 = vunpack.c.l.b16 %v1578
    %v3505 = vunpack.c.h.b16 %v1578
    %v3506 = vunpack.c.l.b16 %v1579
    %v3507 = vunpack.c.h.b16 %v1579
    %v3508 = vunpack.c.l.b16 %v1580
    %v3509 = vunpack.c.h.b16 %v1580
    %v3510 = vunpack.c.l.b16 %v1581
    %v3511 = vunpack.c.h.b16 %v1581
    %v3512 = vunpack.c.l.b16 %v1582
    %v3513 = vunpack.c.h.b16 %v1582
    %v3514 = vunpack.c.l.b16 %v1583
    %v3515 = vunpack.c.h.b16 %v1583
    %v3516 = vunpack.c.l.b16 %v1584
    %v3517 = vunpack.c.h.b16 %v1584
    %v3518 = vunpack.c.l.b16 %v1585
    %v3519 = vunpack.c.h.b16 %v1585
    %v3520 = vunpack.c.l.b16 %v1586
    %v3521 = vunpack.c.h.b16 %v1586
    %v3522 = vunpack.c.l.b16 %v1587
    %v3523 = vunpack.c.h.b16 %v1587
    %v3524 = vunpack.c.l.b16 %v1588
    %v3525 = vunpack.c.h.b16 %v1588
    %v3526 = vunpack.c.l.b16 %v1589
    %v3527 = vunpack.c.h.b16 %v1589
    %v3528 = vunpack.c.l.b16 %v1590
    %v3529 = vunpack.c.h.b16 %v1590
    %v3530 = vunpack.c.l.b16 %v1591
    %v3531 = vunpack.c.h.b16 %v1591
    %v3532 = vunpack.c.l.b16 %v1592
    %v3533 = vunpack.c.h.b16 %v1592
    %v3534 = vunpack.c.l.b16 %v1593
    %v3535 = vunpack.c.h.b16 %v1593
    %v3536 = vunpack.c.l.b16 %v1594
    %v3537 = vunpack.c.h.b16 %v1594
    %v3538 = vunpack.c.l.b16 %v1595
    %v3539 = vunpack.c.h.b16 %v1595
    %v3540 = vunpack.c.l.b16 %v1596
    %v3541 = vunpack.c.h.b16 %v1596
    %v3542 = vunpack.c.l.b16 %v1597
    %v3543 = vunpack.c.h.b16 %v1597
    %v3544 = vunpack.c.l.b16 %v1598
    %v3545 = vunpack.c.h.b16 %v1598
    %v3546 = vunpack.c.l.b16 %v1599
    %v3547 = vunpack.c.h.b16 %v1599
    %v3548 = vunpack.c.l.b16 %v1600
    %v3549 = vunpack.c.h.b16 %v1600
    %v3550 = vunpack.c.l.b16 %v1601
    %v3551 = vunpack.c.h.b16 %v1601
    %v3552 = vunpack.c.l.b16 %v1602
    %v3553 = vunpack.c.h.b16 %v1602
    %v3554 = vunpack.c.l.b16 %v1603
    %v3555 = vunpack.c.h.b16 %v1603
    %v3556 = vunpack.c.l.b16 %v1604
    %v3557 = vunpack.c.h.b16 %v1604
    %v3558 = vunpack.c.l.b16 %v1605
    %v3559 = vunpack.c.h.b16 %v1605
    %v3560 = vunpack.c.l.b16 %v1606
    %v3561 = vunpack.c.h.b16 %v1606
    %v3562 = vunpack.c.l.b16 %v1607
    %v3563 = vunpack.c.h.b16 %v1607
    %v3564 = vunpack.c.l.b16 %v1608
    %v3565 = vunpack.c.h.b16 %v1608
    %v3566 = vunpack.c.l.b16 %v1609
    %v3567 = vunpack.c.h.b16 %v1609
    %v3568 = vunpack.c.l.b16 %v1610
    %v3569 = vunpack.c.h.b16 %v1610
    %v3570 = vunpack.c.l.b16 %v1611
    %v3571 = vunpack.c.h.b16 %v1611
    %v3572 = vunpack.c.l.b16 %v1612
    %v3573 = vunpack.c.h.b16 %v1612
    %v3574 = vunpack.c.l.b16 %v1613
    %v3575 = vunpack.c.h.b16 %v1613
    %v3576 = vunpack.c.l.b16 %v1614
    %v3577 = vunpack.c.h.b16 %v1614
    %v3578 = vunpack.c.l.b16 %v1615
    %v3579 = vunpack.c.h.b16 %v1615
    %v3580 = vunpack.c.l.b16 %v1616
    %v3581 = vunpack.c.h.b16 %v1616
    %v3582 = vunpack.c.l.b16 %v1617
    %v3583 = vunpack.c.h.b16 %v1617
    %v3584 = vunpack.c.l.b16 %v1618
    %v3585 = vunpack.c.h.b16 %v1618
    %v3586 = vunpack.c.l.b16 %v1619
    %v3587 = vunpack.c.h.b16 %v1619
    %v3588 = vunpack.c.l.b16 %v1620
    %v3589 = vunpack.c.h.b16 %v1620
    %v3590 = vunpack.c.l.b16 %v1621
    %v3591 = vunpack.c.h.b16 %v1621
    %v3592 = vunpack.c.l.b16 %v1622
    %v3593 = vunpack.c.h.b16 %v1622
    %v3594 = vunpack.c.l.b16 %v1623
    %v3595 = vunpack.c.h.b16 %v1623
    %v3596 = vunpack.c.l.b16 %v1624
    %v3597 = vunpack.c.h.b16 %v1624
    %v3598 = vunpack.c.l.b16 %v1625
    %v3599 = vunpack.c.h.b16 %v1625
    %v3600 = vunpack.c.l.b16 %v1626
    %v3601 = vunpack.c.h.b16 %v1626
    %v3602 = vunpack.c.l.b16 %v1627
    %v3603 = vunpack.c.h.b16 %v1627
    %v3604 = vunpack.c.l.b16 %v1628
    %v3605 = vunpack.c.h.b16 %v1628
    %v3606 = vunpack.c.l.b16 %v1629
    %v3607 = vunpack.c.h.b16 %v1629
    %v3608 = vunpack.c.l.b16 %v1630
    %v3609 = vunpack.c.h.b16 %v1630
    %v3610 = vunpack.c.l.b16 %v1631
    %v3611 = vunpack.c.h.b16 %v1631
    %v3612 = vunpack.c.l.b16 %v1632
    %v3613 = vunpack.c.h.b16 %v1632
    %v3614 = vunpack.c.l.b16 %v1633
    %v3615 = vunpack.c.h.b16 %v1633
    %v3616 = vunpack.c.l.b16 %v1634
    %v3617 = vunpack.c.h.b16 %v1634
    %v3618 = vunpack.c.l.b16 %v1635
    %v3619 = vunpack.c.h.b16 %v1635
    %v3620 = vunpack.c.l.b16 %v1636
    %v3621 = vunpack.c.h.b16 %v1636
    %v3622 = vunpack.c.l.b16 %v1637
    %v3623 = vunpack.c.h.b16 %v1637
    %v3624 = vunpack.c.l.b16 %v1638
    %v3625 = vunpack.c.h.b16 %v1638
    %v3626 = vunpack.c.l.b16 %v1639
    %v3627 = vunpack.c.h.b16 %v1639
    %v3628 = vunpack.c.l.b16 %v1640
    %v3629 = vunpack.c.h.b16 %v1640
    %v3630 = vunpack.c.l.b16 %v1641
    %v3631 = vunpack.c.h.b16 %v1641
    %v3632 = vunpack.c.l.b16 %v1642
    %v3633 = vunpack.c.h.b16 %v1642
    %v3634 = vunpack.c.l.b16 %v1643
    %v3635 = vunpack.c.h.b16 %v1643
    %v3636 = vunpack.c.l.b16 %v1644
    %v3637 = vunpack.c.h.b16 %v1644
    %v3638 = vunpack.c.l.b16 %v1645
    %v3639 = vunpack.c.h.b16 %v1645
    %v3640 = vunpack.c.l.b16 %v1646
    %v3641 = vunpack.c.h.b16 %v1646
    %v3642 = vunpack.c.l.b16 %v1647
    %v3643 = vunpack.c.h.b16 %v1647
    %v3644 = vunpack.c.l.b16 %v1648
    %v3645 = vunpack.c.h.b16 %v1648
    %v3646 = vunpack.c.l.b16 %v1649
    %v3647 = vunpack.c.h.b16 %v1649
    %v3648 = vunpack.c.l.b16 %v1650
    %v3649 = vunpack.c.h.b16 %v1650
    %v3650 = vunpack.c.l.b16 %v1651
    %v3651 = vunpack.c.h.b16 %v1651
    %v3652 = vunpack.c.l.b16 %v1652
    %v3653 = vunpack.c.h.b16 %v1652
    %v3654 = vpack.c.b16 %v2508, %v2502
    %v3655 = vpack.c.b16 %v2509, %v2503
    %v3656 = vpack.c.b16 %v2510, %v2504
    %v3657 = vpack.c.b16 %v2511, %v2505
    %v3658 = vpack.c.b16 %v2512, %v2506
    %v3659 = vpack.c.b16 %v2513, %v2507
    %v3660 = vpack.c.b16 %v2520, %v2514
    %v3661 = vpack.c.b16 %v2521, %v2515
    %v3662 = vpack.c.b16 %v2522, %v2516
    %v3663 = vpack.c.b16 %v2523, %v2517
    %v3664 = vpack.c.b16 %v2524, %v2518
    %v3665 = vpack.c.b16 %v2525, %v2519
    %v3666 = vpack.c.b16 %v2532, %v2526
    %v3667 = vpack.c.b16 %v2533, %v2527
    %v3668 = vpack.c.b16 %v2534, %v2528
    %v3669 = vpack.c.b16 %v2535, %v2529
    %v3670 = vpack.c.b16 %v2536, %v2530
    %v3671 = vpack.c.b16 %v2537, %v2531
    %v3672 = vpack.c.b16 %v2544, %v2538
    %v3673 = vpack.c.b16 %v2545, %v2539
    %v3674 = vpack.c.b16 %v2546, %v2540
    %v3675 = vpack.c.b16 %v2547, %v2541
    %v3676 = vpack.c.b16 %v2548, %v2542
    %v3677 = vpack.c.b16 %v2549, %v2543
    %v3678 = vpack.c.b16 %v2556, %v2550
    %v3679 = vpack.c.b16 %v2557, %v2551
    %v3680 = vpack.c.b16 %v2558, %v2552
    %v3681 = vpack.c.b16 %v2559, %v2553
    %v3682 = vpack.c.b16 %v2560, %v2554
    %v3683 = vpack.c.b16 %v2561, %v2555
    %v3684 = vpack.c.b16 %v2568, %v2562
    %v3685 = vpack.c.b16 %v2569, %v2563
    %v3686 = vpack.c.b16 %v2570, %v2564
    %v3687 = vpack.c.b16 %v2571, %v2565
    %v3688 = vpack.c.b16 %v2572, %v2566
    %v3689 = vpack.c.b16 %v2573, %v2567
    %v3690 = vpack.c.b16 %v2580, %v2574
    %v3691 = vpack.c.b16 %v2581, %v2575
    %v3692 = vpack.c.b16 %v2582, %v2576
    %v3693 = vpack.c.b16 %v2583, %v2577
    %v3694 = vpack.c.b16 %v2584, %v2578
    %v3695 = vpack.c.b16 %v2585, %v2579
    %v3696 = vpack.c.b16 %v2592, %v2586
    %v3697 = vpack.c.b16 %v2593, %v2587
    %v3698 = vpack.c.b16 %v2594, %v2588
    %v3699 = vpack.c.b16 %v2595, %v2589
    %v3700 = vpack.c.b16 %v2596, %v2590
    %v3701 = vpack.c.b16 %v2597, %v2591
    %v3702 = vpack.c.b16 %v2604, %v2598
    %v3703 = vpack.c.b16 %v2605, %v2599
    %v3704 = vpack.c.b16 %v2606, %v2600
    %v3705 = vpack.c.b16 %v2607, %v2601
    %v3706 = vpack.c.b16 %v2608, %v2602
    %v3707 = vpack.c.b16 %v2609, %v2603
    %v3708 = vpack.c.b16 %v2616, %v2610
    %v3709 = vpack.c.b16 %v2617, %v2611
    %v3710 = vpack.c.b16 %v2618, %v2612
    %v3711 = vpack.c.b16 %v2619, %v2613
    %v3712 = vpack.c.b16 %v2620, %v2614
    %v3713 = vpack.c.b16 %v2621, %v2615
    %v3714 = vpack.c.b16 %v2628, %v2622
    %v3715 = vpack.c.b16 %v2629, %v2623
    %v3716 = vpack.c.b16 %v2630, %v2624
    %v3717 = vpack.c.b16 %v2631, %v2625
    %v3718 = vpack.c.b16 %v2632, %v2626
    %v3719 = vpack.c.b16 %v2633, %v2627
    %v3720 = vpack.c.b16 %v2640, %v2634
    %v3721 = vpack.c.b16 %v2641, %v2635
    %v3722 = vpack.c.b16 %v2642, %v2636
    %v3723 = vpack.c.b16 %v2643, %v2637
    %v3724 = vpack.c.b16 %v2644, %v2638
    %v3725 = vpack.c.b16 %v2645, %v2639
    %v3726 = vpack.c.b16 %v2652, %v2646
    %v3727 = vpack.c.b16 %v2653, %v2647
    %v3728 = vpack.c.b16 %v2654, %v2648
    %v3729 = vpack.c.b16 %v2655, %v2649
    %v3730 = vpack.c.b16 %v2656, %v2650
    %v3731 = vpack.c.b16 %v2657, %v2651
    %v3732 = vpack.c.b16 %v2664, %v2658
    %v3733 = vpack.c.b16 %v2665, %v2659
    %v3734 = vpack.c.b16 %v2666, %v2660
    %v3735 = vpack.c.b16 %v2667, %v2661
    %v3736 = vpack.c.b16 %v2668, %v2662
    %v3737 = vpack.c.b16 %v2669, %v2663
    %v3738 = vpack.c.b16 %v2676, %v2670
    %v3739 = vpack.c.b16 %v2677, %v2671
    %v3740 = vpack.c.b16 %v2678, %v2672
    %v3741 = vpack.c.b16 %v2679, %v2673
    %v3742 = vpack.c.b16 %v2680, %v2674
    %v3743 = vpack.c.b16 %v2681, %v2675
    %v3744 = vpack.c.b16 %v2688, %v2682
    %v3745 = vpack.c.b16 %v2689, %v2683
    %v3746 = vpack.c.b16 %v2690, %v2684
    %v3747 = vpack.c.b16 %v2691, %v2685
    %v3748 = vpack.c.b16 %v2692, %v2686
    %v3749 = vpack.c.b16 %v2693, %v2687
    %v3750 = vpack.c.b16 %v2700, %v2694
    %v3751 = vpack.c.b16 %v2701, %v2695
    %v3752 = vpack.c.b16 %v2702, %v2696
    %v3753 = vpack.c.b16 %v2703, %v2697
    %v3754 = vpack.c.b16 %v2704, %v2698
    %v3755 = vpack.c.b16 %v2705, %v2699
    %v3756 = vpack.c.b16 %v2712, %v2706
    %v3757 = vpack.c.b16 %v2713, %v2707
    %v3758 = vpack.c.b16 %v2714, %v2708
    %v3759 = vpack.c.b16 %v2715, %v2709
    %v3760 = vpack.c.b16 %v2716, %v2710
    %v3761 = vpack.c.b16 %v2717, %v2711
    %v3762 = vpack.c.b16 %v2724, %v2718
    %v3763 = vpack.c.b16 %v2725, %v2719
    %v3764 = vpack.c.b16 %v2726, %v2720
    %v3765 = vpack.c.b16 %v2727, %v2721
    %v3766 = vpack.c.b16 %v2728, %v2722
    %v3767 = vpack.c.b16 %v2729, %v2723
    %v3768 = vpack.c.b16 %v2736, %v2730
    %v3769 = vpack.c.b16 %v2737, %v2731
    %v3770 = vpack.c.b16 %v2738, %v2732
    %v3771 = vpack.c.b16 %v2739, %v2733
    %v3772 = vpack.c.b16 %v2740, %v2734
    %v3773 = vpack.c.b16 %v2741, %v2735
    %v3774 = vpack.c.b16 %v2748, %v2742
    %v3775 = vpack.c.b16 %v2749, %v2743
    %v3776 = vpack.c.b16 %v2750, %v2744
    %v3777 = vpack.c.b16 %v2751, %v2745
    %v3778 = vpack.c.b16 %v2752, %v2746
    %v3779 = vpack.c.b16 %v2753, %v2747
    %v3780 = vpack.c.b16 %v2760, %v2754
    %v3781 = vpack.c.b16 %v2761, %v2755
    %v3782 = vpack.c.b16 %v2762, %v2756
    %v3783 = vpack.c.b16 %v2763, %v2757
    %v3784 = vpack.c.b16 %v2764, %v2758
    %v3785 = vpack.c.b16 %v2765, %v2759
    %v3786 = vpack.c.b16 %v2772, %v2766
    %v3787 = vpack.c.b16 %v2773, %v2767
    %v3788 = vpack.c.b16 %v2774, %v2768
    %v3789 = vpack.c.b16 %v2775, %v2769
    %v3790 = vpack.c.b16 %v2776, %v2770
    %v3791 = vpack.c.b16 %v2777, %v2771
    %v3792 = vpack.c.b16 %v2784, %v2778
    %v3793 = vpack.c.b16 %v2785, %v2779
    %v3794 = vpack.c.b16 %v2786, %v2780
    %v3795 = vpack.c.b16 %v2787, %v2781
    %v3796 = vpack.c.b16 %v2788, %v2782
    %v3797 = vpack.c.b16 %v2789, %v2783
    %v3798 = vpack.c.b16 %v2796, %v2790
    %v3799 = vpack.c.b16 %v2797, %v2791
    %v3800 = vpack.c.b16 %v2798, %v2792
    %v3801 = vpack.c.b16 %v2799, %v2793
    %v3802 = vpack.c.b16 %v2800, %v2794
    %v3803 = vpack.c.b16 %v2801, %v2795
    %v3804 = vpack.c.b16 %v2808, %v2802
    %v3805 = vpack.c.b16 %v2809, %v2803
    %v3806 = vpack.c.b16 %v2810, %v2804
    %v3807 = vpack.c.b16 %v2811, %v2805
    %v3808 = vpack.c.b16 %v2812, %v2806
    %v3809 = vpack.c.b16 %v2813, %v2807
    %v3810 = vpack.c.b16 %v2820, %v2814
    %v3811 = vpack.c.b16 %v2821, %v2815
    %v3812 = vpack.c.b16 %v2822, %v2816
    %v3813 = vpack.c.b16 %v2823, %v2817
    %v3814 = vpack.c.b16 %v2824, %v2818
    %v3815 = vpack.c.b16 %v2825, %v2819
    %v3816 = vpack.c.b16 %v2832, %v2826
    %v3817 = vpack.c.b16 %v2833, %v2827
    %v3818 = vpack.c.b16 %v2834, %v2828
    %v3819 = vpack.c.b16 %v2835, %v2829
    %v3820 = vpack.c.b16 %v2836, %v2830
    %v3821 = vpack.c.b16 %v2837, %v2831
    %v3822 = vpack.c.b16 %v2844, %v2838
    %v3823 = vpack.c.b16 %v2845, %v2839
    %v3824 = vpack.c.b16 %v2846, %v2840
    %v3825 = vpack.c.b16 %v2847, %v2841
    %v3826 = vpack.c.b16 %v2848, %v2842
    %v3827 = vpack.c.b16 %v2849, %v2843
    %v3828 = vpack.c.b16 %v2856, %v2850
    %v3829 = vpack.c.b16 %v2857, %v2851
    %v3830 = vpack.c.b16 %v2858, %v2852
    %v3831 = vpack.c.b16 %v2859, %v2853
    %v3832 = vpack.c.b16 %v2860, %v2854
    %v3833 = vpack.c.b16 %v2861, %v2855
    %v3834 = vpack.c.b16 %v2868, %v2862
    %v3835 = vpack.c.b16 %v2869, %v2863
    %v3836 = vpack.c.b16 %v2870, %v2864
    %v3837 = vpack.c.b16 %v2871, %v2865
    %v3838 = vpack.c.b16 %v2872, %v2866
    %v3839 = vpack.c.b16 %v2873, %v2867
    %v3840 = vpack.c.b16 %v2880, %v2874
    %v3841 = vpack.c.b16 %v2881, %v2875
    %v3842 = vpack.c.b16 %v2882, %v2876
    %v3843 = vpack.c.b16 %v2883, %v2877
    %v3844 = vpack.c.b16 %v2884, %v2878
    %v3845 = vpack.c.b16 %v2885, %v2879
    %v3846 = vpack.c.b16 %v2892, %v2886
    %v3847 = vpack.c.b16 %v2893, %v2887
    %v3848 = vpack.c.b16 %v2894, %v2888
    %v3849 = vpack.c.b16 %v2895, %v2889
    %v3850 = vpack.c.b16 %v2896, %v2890
    %v3851 = vpack.c.b16 %v2897, %v2891
    %v3852 = vpack.c.b16 %v2904, %v2898
    %v3853 = vpack.c.b16 %v2905, %v2899
    %v3854 = vpack.c.b16 %v2906, %v2900
    %v3855 = vpack.c.b16 %v2907, %v2901
    %v3856 = vpack.c.b16 %v2908, %v2902
    %v3857 = vpack.c.b16 %v2909, %v2903
    %v3858 = vpack.c.b16 %v2916, %v2910
    %v3859 = vpack.c.b16 %v2917, %v2911
    %v3860 = vpack.c.b16 %v2918, %v2912
    %v3861 = vpack.c.b16 %v2919, %v2913
    %v3862 = vpack.c.b16 %v2920, %v2914
    %v3863 = vpack.c.b16 %v2921, %v2915
    %v3864 = vpack.c.b16 %v2928, %v2922
    %v3865 = vpack.c.b16 %v2929, %v2923
    %v3866 = vpack.c.b16 %v2930, %v2924
    %v3867 = vpack.c.b16 %v2931, %v2925
    %v3868 = vpack.c.b16 %v2932, %v2926
    %v3869 = vpack.c.b16 %v2933, %v2927
    %v3870 = vpack.c.b16 %v2940, %v2934
    %v3871 = vpack.c.b16 %v2941, %v2935
    %v3872 = vpack.c.b16 %v2942, %v2936
    %v3873 = vpack.c.b16 %v2943, %v2937
    %v3874 = vpack.c.b16 %v2944, %v2938
    %v3875 = vpack.c.b16 %v2945, %v2939
    %v3876 = vpack.c.b16 %v2952, %v2946
    %v3877 = vpack.c.b16 %v2953, %v2947
    %v3878 = vpack.c.b16 %v2954, %v2948
    %v3879 = vpack.c.b16 %v2955, %v2949
    %v3880 = vpack.c.b16 %v2956, %v2950
    %v3881 = vpack.c.b16 %v2957, %v2951
    %v3882 = vpack.c.b16 %v2964, %v2958
    %v3883 = vpack.c.b16 %v2965, %v2959
    %v3884 = vpack.c.b16 %v2966, %v2960
    %v3885 = vpack.c.b16 %v2967, %v2961
    %v3886 = vpack.c.b16 %v2968, %v2962
    %v3887 = vpack.c.b16 %v2969, %v2963
    %v3888 = vpack.c.b16 %v2976, %v2970
    %v3889 = vpack.c.b16 %v2977, %v2971
    %v3890 = vpack.c.b16 %v2978, %v2972
    %v3891 = vpack.c.b16 %v2979, %v2973
    %v3892 = vpack.c.b16 %v2980, %v2974
    %v3893 = vpack.c.b16 %v2981, %v2975
    %v3894 = vpack.c.b16 %v2988, %v2982
    %v3895 = vpack.c.b16 %v2989, %v2983
    %v3896 = vpack.c.b16 %v2990, %v2984
    %v3897 = vpack.c.b16 %v2991, %v2985
    %v3898 = vpack.c.b16 %v2992, %v2986
    %v3899 = vpack.c.b16 %v2993, %v2987
    %v3900 = vpack.c.b16 %v3000, %v2994
    %v3901 = vpack.c.b16 %v3001, %v2995
    %v3902 = vpack.c.b16 %v3002, %v2996
    %v3903 = vpack.c.b16 %v3003, %v2997
    %v3904 = vpack.c.b16 %v3004, %v2998
    %v3905 = vpack.c.b16 %v3005, %v2999
    %v3906 = vpack.c.b16 %v3012, %v3006
    %v3907 = vpack.c.b16 %v3013, %v3007
    %v3908 = vpack.c.b16 %v3014, %v3008
    %v3909 = vpack.c.b16 %v3015, %v3009
    %v3910 = vpack.c.b16 %v3016, %v3010
    %v3911 = vpack.c.b16 %v3017, %v3011
    %v3912 = vpack.c.b16 %v3024, %v3018
    %v3913 = vpack.c.b16 %v3025, %v3019
    %v3914 = vpack.c.b16 %v3026, %v3020
    %v3915 = vpack.c.b16 %v3027, %v3021
    %v3916 = vpack.c.b16 %v3028, %v3022
    %v3917 = vpack.c.b16 %v3029, %v3023
    %v3918 = vpack.c.b16 %v3036, %v3030
    %v3919 = vpack.c.b16 %v3037, %v3031
    %v3920 = vpack.c.b16 %v3038, %v3032
    %v3921 = vpack.c.b16 %v3039, %v3033
    %v3922 = vpack.c.b16 %v3040, %v3034
    %v3923 = vpack.c.b16 %v3041, %v3035
    %v3924 = vpack.c.b16 %v3048, %v3042
    %v3925 = vpack.c.b16 %v3049, %v3043
    %v3926 = vpack.c.b16 %v3050, %v3044
    %v3927 = vpack.c.b16 %v3051, %v3045
    %v3928 = vpack.c.b16 %v3052, %v3046
    %v3929 = vpack.c.b16 %v3053, %v3047
    %v3930 = vpack.c.b16 %v3060, %v3054
    %v3931 = vpack.c.b16 %v3061, %v3055
    %v3932 = vpack.c.b16 %v3062, %v3056
    %v3933 = vpack.c.b16 %v3063, %v3057
    %v3934 = vpack.c.b16 %v3064, %v3058
    %v3935 = vpack.c.b16 %v3065, %v3059
    %v3936 = vpack.c.b16 %v3072, %v3066
    %v3937 = vpack.c.b16 %v3073, %v3067
    %v3938 = vpack.c.b16 %v3074, %v3068
    %v3939 = vpack.c.b16 %v3075, %v3069
    %v3940 = vpack.c.b16 %v3076, %v3070
    %v3941 = vpack.c.b16 %v3077, %v3071
    %v3942 = vpack.c.b16 %v3084, %v3078
    %v3943 = vpack.c.b16 %v3085, %v3079
    %v3944 = vpack.c.b16 %v3086, %v3080
    %v3945 = vpack.c.b16 %v3087, %v3081
    %v3946 = vpack.c.b16 %v3088, %v3082
    %v3947 = vpack.c.b16 %v3089, %v3083
    %v3948 = vpack.c.b16 %v3096, %v3090
    %v3949 = vpack.c.b16 %v3097, %v3091
    %v3950 = vpack.c.b16 %v3098, %v3092
    %v3951 = vpack.c.b16 %v3099, %v3093
    %v3952 = vpack.c.b16 %v3100, %v3094
    %v3953 = vpack.c.b16 %v3101, %v3095
    %v3954 = vpack.c.b16 %v3108, %v3102
    %v3955 = vpack.c.b16 %v3109, %v3103
    %v3956 = vpack.c.b16 %v3110, %v3104
    %v3957 = vpack.c.b16 %v3111, %v3105
    %v3958 = vpack.c.b16 %v3112, %v3106
    %v3959 = vpack.c.b16 %v3113, %v3107
    %v3960 = vpack.c.b16 %v3120, %v3114
    %v3961 = vpack.c.b16 %v3121, %v3115
    %v3962 = vpack.c.b16 %v3122, %v3116
    %v3963 = vpack.c.b16 %v3123, %v3117
    %v3964 = vpack.c.b16 %v3124, %v3118
    %v3965 = vpack.c.b16 %v3125, %v3119
    %v3966 = vpack.c.b16 %v3132, %v3126
    %v3967 = vpack.c.b16 %v3133, %v3127
    %v3968 = vpack.c.b16 %v3134, %v3128
    %v3969 = vpack.c.b16 %v3135, %v3129
    %v3970 = vpack.c.b16 %v3136, %v3130
    %v3971 = vpack.c.b16 %v3137, %v3131
    %v3972 = vpack.c.b16 %v3144, %v3138
    %v3973 = vpack.c.b16 %v3145, %v3139
    %v3974 = vpack.c.b16 %v3146, %v3140
    %v3975 = vpack.c.b16 %v3147, %v3141
    %v3976 = vpack.c.b16 %v3148, %v3142
    %v3977 = vpack.c.b16 %v3149, %v3143
    %v3978 = vpack.c.b16 %v3156, %v3150
    %v3979 = vpack.c.b16 %v3157, %v3151
    %v3980 = vpack.c.b16 %v3158, %v3152
    %v3981 = vpack.c.b16 %v3159, %v3153
    %v3982 = vpack.c.b16 %v3160, %v3154
    %v3983 = vpack.c.b16 %v3161, %v3155
    %v3984 = vpack.c.b16 %v3168, %v3162
    %v3985 = vpack.c.b16 %v3169, %v3163
    %v3986 = vpack.c.b16 %v3170, %v3164
    %v3987 = vpack.c.b16 %v3171, %v3165
    %v3988 = vpack.c.b16 %v3172, %v3166
    %v3989 = vpack.c.b16 %v3173, %v3167
    %v3990 = vpack.c.b16 %v3180, %v3174
    %v3991 = vpack.c.b16 %v3181, %v3175
    %v3992 = vpack.c.b16 %v3182, %v3176
    %v3993 = vpack.c.b16 %v3183, %v3177
    %v3994 = vpack.c.b16 %v3184, %v3178
    %v3995 = vpack.c.b16 %v3185, %v3179
    %v3996 = vpack.c.b16 %v3192, %v3186
    %v3997 = vpack.c.b16 %v3193, %v3187
    %v3998 = vpack.c.b16 %v3194, %v3188
    %v3999 = vpack.c.b16 %v3195, %v3189
    %v4000 = vpack.c.b16 %v3196, %v3190
    %v4001 = vpack.c.b16 %v3197, %v3191
    %v4002 = vpack.c.b16 %v3204, %v3198
    %v4003 = vpack.c.b16 %v3205, %v3199
    %v4004 = vpack.c.b16 %v3206, %v3200
    %v4005 = vpack.c.b16 %v3207, %v3201
    %v4006 = vpack.c.b16 %v3208, %v3202
    %v4007 = vpack.c.b16 %v3209, %v3203
    %v4008 = vpack.c.b16 %v3216, %v3210
    %v4009 = vpack.c.b16 %v3217, %v3211
    %v4010 = vpack.c.b16 %v3218, %v3212
    %v4011 = vpack.c.b16 %v3219, %v3213
    %v4012 = vpack.c.b16 %v3220, %v3214
    %v4013 = vpack.c.b16 %v3221, %v3215
    %v4014 = vpack.c.b16 %v3228, %v3222
    %v4015 = vpack.c.b16 %v3229, %v3223
    %v4016 = vpack.c.b16 %v3230, %v3224
    %v4017 = vpack.c.b16 %v3231, %v3225
    %v4018 = vpack.c.b16 %v3232, %v3226
    %v4019 = vpack.c.b16 %v3233, %v3227
    %v4020 = vpack.c.b16 %v3240, %v3234
    %v4021 = vpack.c.b16 %v3241, %v3235
    %v4022 = vpack.c.b16 %v3242, %v3236
    %v4023 = vpack.c.b16 %v3243, %v3237
    %v4024 = vpack.c.b16 %v3244, %v3238
    %v4025 = vpack.c.b16 %v3245, %v3239
    %v4026 = vpack.c.b16 %v3252, %v3246
    %v4027 = vpack.c.b16 %v3253, %v3247
    %v4028 = vpack.c.b16 %v3254, %v3248
    %v4029 = vpack.c.b16 %v3255, %v3249
    %v4030 = vpack.c.b16 %v3256, %v3250
    %v4031 = vpack.c.b16 %v3257, %v3251
    %v4032 = vpack.c.b16 %v3264, %v3258
    %v4033 = vpack.c.b16 %v3265, %v3259
    %v4034 = vpack.c.b16 %v3266, %v3260
    %v4035 = vpack.c.b16 %v3267, %v3261
    %v4036 = vpack.c.b16 %v3268, %v3262
    %v4037 = vpack.c.b16 %v3269, %v3263
    %v4038 = vpack.c.b16 %v3276, %v3270
    %v4039 = vpack.c.b16 %v3277, %v3271
    %v4040 = vpack.c.b16 %v3278, %v3272
    %v4041 = vpack.c.b16 %v3279, %v3273
    %v4042 = vpack.c.b16 %v3280, %v3274
    %v4043 = vpack.c.b16 %v3281, %v3275
    %v4044 = vpack.c.b16 %v3288, %v3282
    %v4045 = vpack.c.b16 %v3289, %v3283
    %v4046 = vpack.c.b16 %v3290, %v3284
    %v4047 = vpack.c.b16 %v3291, %v3285
    %v4048 = vpack.c.b16 %v3292, %v3286
    %v4049 = vpack.c.b16 %v3293, %v3287
    %v4050 = vpack.c.b16 %v3300, %v3294
    %v4051 = vpack.c.b16 %v3301, %v3295
    %v4052 = vpack.c.b16 %v3302, %v3296
    %v4053 = vpack.c.b16 %v3303, %v3297
    %v4054 = vpack.c.b16 %v3304, %v3298
    %v4055 = vpack.c.b16 %v3305, %v3299
    %v4056 = vpack.c.b16 %v3312, %v3306
    %v4057 = vpack.c.b16 %v3313, %v3307
    %v4058 = vpack.c.b16 %v3314, %v3308
    %v4059 = vpack.c.b16 %v3315, %v3309
    %v4060 = vpack.c.b16 %v3316, %v3310
    %v4061 = vpack.c.b16 %v3317, %v3311
    %v4062 = vpack.c.b16 %v3324, %v3318
    %v4063 = vpack.c.b16 %v3325, %v3319
    %v4064 = vpack.c.b16 %v3326, %v3320
    %v4065 = vpack.c.b16 %v3327, %v3321
    %v4066 = vpack.c.b16 %v3328, %v3322
    %v4067 = vpack.c.b16 %v3329, %v3323
    %v4068 = vpack.c.b16 %v3336, %v3330
    %v4069 = vpack.c.b16 %v3337, %v3331
    %v4070 = vpack.c.b16 %v3338, %v3332
    %v4071 = vpack.c.b16 %v3339, %v3333
    %v4072 = vpack.c.b16 %v3340, %v3334
    %v4073 = vpack.c.b16 %v3341, %v3335
    %v4074 = vpack.c.b16 %v3348, %v3342
    %v4075 = vpack.c.b16 %v3349, %v3343
    %v4076 = vpack.c.b16 %v3350, %v3344
    %v4077 = vpack.c.b16 %v3351, %v3345
    %v4078 = vpack.c.b16 %v3352, %v3346
    %v4079 = vpack.c.b16 %v3353, %v3347
    %v4080 = vpack.c.b16 %v3360, %v3354
    %v4081 = vpack.c.b16 %v3361, %v3355
    %v4082 = vpack.c.b16 %v3362, %v3356
    %v4083 = vpack.c.b16 %v3363, %v3357
    %v4084 = vpack.c.b16 %v3364, %v3358
    %v4085 = vpack.c.b16 %v3365, %v3359
    %v4086 = vpack.c.b16 %v3372, %v3366
    %v4087 = vpack.c.b16 %v3373, %v3367
    %v4088 = vpack.c.b16 %v3374, %v3368
    %v4089 = vpack.c.b16 %v3375, %v3369
    %v4090 = vpack.c.b16 %v3376, %v3370
    %v4091 = vpack.c.b16 %v3377, %v3371
    %v4092 = vpack.c.b16 %v3384, %v3378
    %v4093 = vpack.c.b16 %v3385, %v3379
    %v4094 = vpack.c.b16 %v3386, %v3380
    %v4095 = vpack.c.b16 %v3387, %v3381
    %v4096 = vpack.c.b16 %v3388, %v3382
    %v4097 = vpack.c.b16 %v3389, %v3383
    %v4098 = vpack.c.b16 %v3396, %v3390
    %v4099 = vpack.c.b16 %v3397, %v3391
    %v4100 = vpack.c.b16 %v3398, %v3392
    %v4101 = vpack.c.b16 %v3399, %v3393
    %v4102 = vpack.c.b16 %v3400, %v3394
    %v4103 = vpack.c.b16 %v3401, %v3395
    %v4104 = vpack.c.b16 %v3408, %v3402
    %v4105 = vpack.c.b16 %v3409, %v3403
    %v4106 = vpack.c.b16 %v3410, %v3404
    %v4107 = vpack.c.b16 %v3411, %v3405
    %v4108 = vpack.c.b16 %v3412, %v3406
    %v4109 = vpack.c.b16 %v3413, %v3407
    %v4110 = vpack.c.b16 %v3420, %v3414
    %v4111 = vpack.c.b16 %v3421, %v3415
    %v4112 = vpack.c.b16 %v3422, %v3416
    %v4113 = vpack.c.b16 %v3423, %v3417
    %v4114 = vpack.c.b16 %v3424, %v3418
    %v4115 = vpack.c.b16 %v3425, %v3419
    %v4116 = vpack.c.b16 %v3432, %v3426
    %v4117 = vpack.c.b16 %v3433, %v3427
    %v4118 = vpack.c.b16 %v3434, %v3428
    %v4119 = vpack.c.b16 %v3435, %v3429
    %v4120 = vpack.c.b16 %v3436, %v3430
    %v4121 = vpack.c.b16 %v3437, %v3431
    %v4122 = vpack.c.b16 %v3444, %v3438
    %v4123 = vpack.c.b16 %v3445, %v3439
    %v4124 = vpack.c.b16 %v3446, %v3440
    %v4125 = vpack.c.b16 %v3447, %v3441
    %v4126 = vpack.c.b16 %v3448, %v3442
    %v4127 = vpack.c.b16 %v3449, %v3443
    %v4128 = vpack.c.b16 %v3456, %v3450
    %v4129 = vpack.c.b16 %v3457, %v3451
    %v4130 = vpack.c.b16 %v3458, %v3452
    %v4131 = vpack.c.b16 %v3459, %v3453
    %v4132 = vpack.c.b16 %v3460, %v3454
    %v4133 = vpack.c.b16 %v3461, %v3455
    %v4134 = vpack.c.b16 %v3468, %v3462
    %v4135 = vpack.c.b16 %v3469, %v3463
    %v4136 = vpack.c.b16 %v3470, %v3464
    %v4137 = vpack.c.b16 %v3471, %v3465
    %v4138 = vpack.c.b16 %v3472, %v3466
    %v4139 = vpack.c.b16 %v3473, %v3467
    %v4140 = vpack.c.b16 %v3480, %v3474
    %v4141 = vpack.c.b16 %v3481, %v3475
    %v4142 = vpack.c.b16 %v3482, %v3476
    %v4143 = vpack.c.b16 %v3483, %v3477
    %v4144 = vpack.c.b16 %v3484, %v3478
    %v4145 = vpack.c.b16 %v3485, %v3479
    %v4146 = vpack.c.b16 %v3492, %v3486
    %v4147 = vpack.c.b16 %v3493, %v3487
    %v4148 = vpack.c.b16 %v3494, %v3488
    %v4149 = vpack.c.b16 %v3495, %v3489
    %v4150 = vpack.c.b16 %v3496, %v3490
    %v4151 = vpack.c.b16 %v3497, %v3491
    %v4152 = vpack.c.b16 %v3504, %v3498
    %v4153 = vpack.c.b16 %v3505, %v3499
    %v4154 = vpack.c.b16 %v3506, %v3500
    %v4155 = vpack.c.b16 %v3507, %v3501
    %v4156 = vpack.c.b16 %v3508, %v3502
    %v4157 = vpack.c.b16 %v3509, %v3503
    %v4158 = vpack.c.b16 %v3516, %v3510
    %v4159 = vpack.c.b16 %v3517, %v3511
    %v4160 = vpack.c.b16 %v3518, %v3512
    %v4161 = vpack.c.b16 %v3519, %v3513
    %v4162 = vpack.c.b16 %v3520, %v3514
    %v4163 = vpack.c.b16 %v3521, %v3515
    %v4164 = vpack.c.b16 %v3528, %v3522
    %v4165 = vpack.c.b16 %v3529, %v3523
    %v4166 = vpack.c.b16 %v3530, %v3524
    %v4167 = vpack.c.b16 %v3531, %v3525
    %v4168 = vpack.c.b16 %v3532, %v3526
    %v4169 = vpack.c.b16 %v3533, %v3527
    %v4170 = vpack.c.b16 %v3540, %v3534
    %v4171 = vpack.c.b16 %v3541, %v3535
    %v4172 = vpack.c.b16 %v3542, %v3536
    %v4173 = vpack.c.b16 %v3543, %v3537
    %v4174 = vpack.c.b16 %v3544, %v3538
    %v4175 = vpack.c.b16 %v3545, %v3539
    %v4176 = vpack.c.b16 %v3552, %v3546
    %v4177 = vpack.c.b16 %v3553, %v3547
    %v4178 = vpack.c.b16 %v3554, %v3548
    %v4179 = vpack.c.b16 %v3555, %v3549
    %v4180 = vpack.c.b16 %v3556, %v3550
    %v4181 = vpack.c.b16 %v3557, %v3551
    %v4182 = vpack.c.b16 %v3564, %v3558
    %v4183 = vpack.c.b16 %v3565, %v3559
    %v4184 = vpack.c.b16 %v3566, %v3560
    %v4185 = vpack.c.b16 %v3567, %v3561
    %v4186 = vpack.c.b16 %v3568, %v3562
    %v4187 = vpack.c.b16 %v3569, %v3563
    %v4188 = vpack.c.b16 %v3576, %v3570
    %v4189 = vpack.c.b16 %v3577, %v3571
    %v4190 = vpack.c.b16 %v3578, %v3572
    %v4191 = vpack.c.b16 %v3579, %v3573
    %v4192 = vpack.c.b16 %v3580, %v3574
    %v4193 = vpack.c.b16 %v3581, %v3575
    %v4194 = vpack.c.b16 %v3588, %v3582
    %v4195 = vpack.c.b16 %v3589, %v3583
    %v4196 = vpack.c.b16 %v3590, %v3584
    %v4197 = vpack.c.b16 %v3591, %v3585
    %v4198 = vpack.c.b16 %v3592, %v3586
    %v4199 = vpack.c.b16 %v3593, %v3587
    %v4200 = vpack.c.b16 %v3600, %v3594
    %v4201 = vpack.c.b16 %v3601, %v3595
    %v4202 = vpack.c.b16 %v3602, %v3596
    %v4203 = vpack.c.b16 %v3603, %v3597
    %v4204 = vpack.c.b16 %v3604, %v3598
    %v4205 = vpack.c.b16 %v3605, %v3599
    %v4206 = vpack.c.b16 %v3612, %v3606
    %v4207 = vpack.c.b16 %v3613, %v3607
    %v4208 = vpack.c.b16 %v3614, %v3608
    %v4209 = vpack.c.b16 %v3615, %v3609
    %v4210 = vpack.c.b16 %v3616, %v3610
    %v4211 = vpack.c.b16 %v3617, %v3611
    %v4212 = vpack.c.b16 %v3624, %v3618
    %v4213 = vpack.c.b16 %v3625, %v3619
    %v4214 = vpack.c.b16 %v3626, %v3620
    %v4215 = vpack.c.b16 %v3627, %v3621
    %v4216 = vpack.c.b16 %v3628, %v3622
    %v4217 = vpack.c.b16 %v3629, %v3623
    %v4218 = vpack.c.b16 %v3636, %v3630
    %v4219 = vpack.c.b16 %v3637, %v3631
    %v4220 = vpack.c.b16 %v3638, %v3632
    %v4221 = vpack.c.b16 %v3639, %v3633
    %v4222 = vpack.c.b16 %v3640, %v3634
    %v4223 = vpack.c.b16 %v3641, %v3635
    %v4224 = vpack.c.b16 %v3648, %v3642
    %v4225 = vpack.c.b16 %v3649, %v3643
    %v4226 = vpack.c.b16 %v3650, %v3644
    %v4227 = vpack.c.b16 %v3651, %v3645
    %v4228 = vpack.c.b16 %v3652, %v3646
    %v4229 = vpack.c.b16 %v3653, %v3647
    %4806 = vmatprep.subr.bf16.mxu0 %v3655
    %4807 = vmatpush1.bf16.msra.mxu0 %v3654
    %4808 = vmatprep.subr.bf16.mxu0 %v3661
    %4809 = vmatpush1.bf16.msra.mxu0 %v3660
    %4810 = vmatprep.subr.bf16.mxu0 %v3667
    %4811 = vmatpush1.bf16.msra.mxu0 %v3666
    %4812 = vmatprep.subr.bf16.mxu0 %v3673
    %4813 = vmatpush1.bf16.msra.mxu0 %v3672
    %4814 = vmatprep.subr.bf16.mxu0 %v3679
    %4815 = vmatpush1.bf16.msra.mxu0 %v3678
    %4816 = vmatprep.subr.bf16.mxu0 %v3685
    %4817 = vmatpush1.bf16.msra.mxu0 %v3684
    %4818 = vmatprep.subr.bf16.mxu0 %v3691
    %4819 = vmatpush1.bf16.msra.mxu0 %v3690
    %4820 = vmatprep.subr.bf16.mxu0 %v3697
    %4821 = vmatpush1.bf16.msra.mxu0 %v3696
    %4822 = vmatprep.subr.bf16.mxu0 %v3703
    %4823 = vmatpush1.bf16.msra.mxu0 %v3702
    %4824 = vmatprep.subr.bf16.mxu0 %v3709
    %4825 = vmatpush1.bf16.msra.mxu0 %v3708
    %4826 = vmatprep.subr.bf16.mxu0 %v3715
    %4827 = vmatpush1.bf16.msra.mxu0 %v3714
    %4828 = vmatprep.subr.bf16.mxu0 %v3721
    %4829 = vmatpush1.bf16.msra.mxu0 %v3720
    %4830 = vmatprep.subr.bf16.mxu0 %v3727
    %4831 = vmatpush1.bf16.msra.mxu0 %v3726
    %4832 = vmatprep.subr.bf16.mxu0 %v3733
    %4833 = vmatpush1.bf16.msra.mxu0 %v3732
    %4834 = vmatprep.subr.bf16.mxu0 %v3739
    %4835 = vmatpush1.bf16.msra.mxu0 %v3738
    %4836 = vmatprep.subr.bf16.mxu0 %v3745
    %4837 = vmatpush1.bf16.msra.mxu0 %v3744
    %4838 = vmatprep.mubr.bf16.mxu0 %v1066
    %4839 = vmatmul.mubr.bf16.gmra.mrb[0].mxu0 %v1065
    %v4840 = vpop.f32.mrb[0].mxu0
    %v4841 = vadd.f32 %v1838, %v4840
    %v4842 = vpop.f32.mrb[0].mxu0
    %v4843 = vadd.f32 %v1840, %v4842
    %v4844 = vpop.f32.mrb[0].mxu0
    %v4845 = vpop.f32.mrb[0].mxu0
    %4846 = vdwg.mxu0
    %4847 = vmatprep.subr.bf16.mxu0 %v3751
    %4848 = vmatpush1.bf16.msra.mxu0 %v3750
    %4849 = vmatprep.subr.bf16.mxu0 %v3757
    %4850 = vmatpush1.bf16.msra.mxu0 %v3756
    %4851 = vmatprep.subr.bf16.mxu0 %v3763
    %4852 = vmatpush1.bf16.msra.mxu0 %v3762
    %4853 = vmatprep.subr.bf16.mxu0 %v3769
    %4854 = vmatpush1.bf16.msra.mxu0 %v3768
    %4855 = vmatprep.subr.bf16.mxu0 %v3775
    %4856 = vmatpush1.bf16.msra.mxu0 %v3774
    %4857 = vmatprep.subr.bf16.mxu0 %v3781
    %4858 = vmatpush1.bf16.msra.mxu0 %v3780
    %4859 = vmatprep.subr.bf16.mxu0 %v3787
    %4860 = vmatpush1.bf16.msra.mxu0 %v3786
    %4861 = vmatprep.subr.bf16.mxu0 %v3793
    %4862 = vmatpush1.bf16.msra.mxu0 %v3792
    %4863 = vmatprep.subr.bf16.mxu0 %v3799
    %4864 = vmatpush1.bf16.msra.mxu0 %v3798
    %4865 = vmatprep.subr.bf16.mxu0 %v3805
    %4866 = vmatpush1.bf16.msra.mxu0 %v3804
    %4867 = vmatprep.subr.bf16.mxu0 %v3811
    %4868 = vmatpush1.bf16.msra.mxu0 %v3810
    %4869 = vmatprep.subr.bf16.mxu0 %v3817
    %4870 = vmatpush1.bf16.msra.mxu0 %v3816
    %4871 = vmatprep.subr.bf16.mxu0 %v3823
    %4872 = vmatpush1.bf16.msra.mxu0 %v3822
    %4873 = vmatprep.subr.bf16.mxu0 %v3829
    %4874 = vmatpush1.bf16.msra.mxu0 %v3828
    %4875 = vmatprep.subr.bf16.mxu0 %v3835
    %4876 = vmatpush1.bf16.msra.mxu0 %v3834
    %4877 = vmatprep.subr.bf16.mxu0 %v3841
    %4878 = vmatpush1.bf16.msra.mxu0 %v3840
    %4879 = vmatprep.mubr.bf16.mxu0 %v1068
    %4880 = vmatmul.mubr.bf16.gmra.mrb[0].mxu0 %v1067
    %v4881 = vpop.f32.mrb[0].mxu0
    %v4882 = vadd.f32 %v4841, %v4881
    %v4883 = vpop.f32.mrb[0].mxu0
    %v4884 = vadd.f32 %v4843, %v4883
    %v4885 = vpop.f32.mrb[0].mxu0
    %v4886 = vpop.f32.mrb[0].mxu0
    %4887 = vdwg.mxu0
    %4888 = vmatprep.subr.bf16.mxu0 %v3847
    %4889 = vmatpush1.bf16.msra.mxu0 %v3846
    %4890 = vmatprep.subr.bf16.mxu0 %v3853
    %4891 = vmatpush1.bf16.msra.mxu0 %v3852
    %4892 = vmatprep.subr.bf16.mxu0 %v3859
    %4893 = vmatpush1.bf16.msra.mxu0 %v3858
    %4894 = vmatprep.subr.bf16.mxu0 %v3865
    %4895 = vmatpush1.bf16.msra.mxu0 %v3864
    %4896 = vmatprep.subr.bf16.mxu0 %v3871
    %4897 = vmatpush1.bf16.msra.mxu0 %v3870
    %4898 = vmatprep.subr.bf16.mxu0 %v3877
    %4899 = vmatpush1.bf16.msra.mxu0 %v3876
    %4900 = vmatprep.subr.bf16.mxu0 %v3883
    %4901 = vmatpush1.bf16.msra.mxu0 %v3882
    %4902 = vmatprep.subr.bf16.mxu0 %v3889
    %4903 = vmatpush1.bf16.msra.mxu0 %v3888
    %4904 = vmatprep.subr.bf16.mxu0 %v3895
    %4905 = vmatpush1.bf16.msra.mxu0 %v3894
    %4906 = vmatprep.subr.bf16.mxu0 %v3901
    %4907 = vmatpush1.bf16.msra.mxu0 %v3900
    %4908 = vmatprep.subr.bf16.mxu0 %v3907
    %4909 = vmatpush1.bf16.msra.mxu0 %v3906
    %4910 = vmatprep.subr.bf16.mxu0 %v3913
    %4911 = vmatpush1.bf16.msra.mxu0 %v3912
    %4912 = vmatprep.subr.bf16.mxu0 %v3919
    %4913 = vmatpush1.bf16.msra.mxu0 %v3918
    %4914 = vmatprep.subr.bf16.mxu0 %v3925
    %4915 = vmatpush1.bf16.msra.mxu0 %v3924
    %4916 = vmatprep.subr.bf16.mxu0 %v3931
    %4917 = vmatpush1.bf16.msra.mxu0 %v3930
    %4918 = vmatprep.subr.bf16.mxu0 %v3937
    %4919 = vmatpush1.bf16.msra.mxu0 %v3936
    %4920 = vmatprep.mubr.bf16.mxu0 %v1070
    %4921 = vmatmul.mubr.bf16.gmra.mrb[0].mxu0 %v1069
    %v4922 = vpop.f32.mrb[0].mxu0
    %v4923 = vadd.f32 %v4882, %v4922
    %v4924 = vpop.f32.mrb[0].mxu0
    %v4925 = vadd.f32 %v4884, %v4924
    %v4926 = vpop.f32.mrb[0].mxu0
    %v4927 = vpop.f32.mrb[0].mxu0
    %4928 = vdwg.mxu0
    %4929 = vmatprep.subr.bf16.mxu0 %v3943
    %4930 = vmatpush1.bf16.msra.mxu0 %v3942
    %4931 = vmatprep.subr.bf16.mxu0 %v3949
    %4932 = vmatpush1.bf16.msra.mxu0 %v3948
    %4933 = vmatprep.subr.bf16.mxu0 %v3955
    %4934 = vmatpush1.bf16.msra.mxu0 %v3954
    %4935 = vmatprep.subr.bf16.mxu0 %v3961
    %4936 = vmatpush1.bf16.msra.mxu0 %v3960
    %4937 = vmatprep.subr.bf16.mxu0 %v3967
    %4938 = vmatpush1.bf16.msra.mxu0 %v3966
    %4939 = vmatprep.subr.bf16.mxu0 %v3973
    %4940 = vmatpush1.bf16.msra.mxu0 %v3972
    %4941 = vmatprep.subr.bf16.mxu0 %v3979
    %4942 = vmatpush1.bf16.msra.mxu0 %v3978
    %4943 = vmatprep.subr.bf16.mxu0 %v3985
    %4944 = vmatpush1.bf16.msra.mxu0 %v3984
    %4945 = vmatprep.subr.bf16.mxu0 %v3991
    %4946 = vmatpush1.bf16.msra.mxu0 %v3990
    %4947 = vmatprep.subr.bf16.mxu0 %v3997
    %4948 = vmatpush1.bf16.msra.mxu0 %v3996
    %4949 = vmatprep.subr.bf16.mxu0 %v4003
    %4950 = vmatpush1.bf16.msra.mxu0 %v4002
    %4951 = vmatprep.subr.bf16.mxu0 %v4009
    %4952 = vmatpush1.bf16.msra.mxu0 %v4008
    %4953 = vmatprep.subr.bf16.mxu0 %v4015
    %4954 = vmatpush1.bf16.msra.mxu0 %v4014
    %4955 = vmatprep.subr.bf16.mxu0 %v4021
    %4956 = vmatpush1.bf16.msra.mxu0 %v4020
    %4957 = vmatprep.subr.bf16.mxu0 %v4027
    %4958 = vmatpush1.bf16.msra.mxu0 %v4026
    %4959 = vmatprep.subr.bf16.mxu0 %v4033
    %4960 = vmatpush1.bf16.msra.mxu0 %v4032
    %4961 = vmatprep.mubr.bf16.mxu0 %v1072
    %4962 = vmatmul.mubr.bf16.gmra.mrb[0].mxu0 %v1071
    %v4963 = vpop.f32.mrb[0].mxu0
    %v4964 = vadd.f32 %v4923, %v4963
    %v4965 = vpop.f32.mrb[0].mxu0
    %v4966 = vadd.f32 %v4925, %v4965
    %v4967 = vpop.f32.mrb[0].mxu0
    %v4968 = vpop.f32.mrb[0].mxu0
    %4969 = vdwg.mxu0
    %4970 = vmatprep.subr.bf16.mxu0 %v4039
    %4971 = vmatpush1.bf16.msra.mxu0 %v4038
    %4972 = vmatprep.subr.bf16.mxu0 %v4045
    %4973 = vmatpush1.bf16.msra.mxu0 %v4044
    %4974 = vmatprep.subr.bf16.mxu0 %v4051
    %4975 = vmatpush1.bf16.msra.mxu0 %v4050
    %4976 = vmatprep.subr.bf16.mxu0 %v4057
    %4977 = vmatpush1.bf16.msra.mxu0 %v4056
    %4978 = vmatprep.subr.bf16.mxu0 %v4063
    %4979 = vmatpush1.bf16.msra.mxu0 %v4062
    %4980 = vmatprep.subr.bf16.mxu0 %v4069
    %4981 = vmatpush1.bf16.msra.mxu0 %v4068
    %4982 = vmatprep.subr.bf16.mxu0 %v4075
    %4983 = vmatpush1.bf16.msra.mxu0 %v4074
    %4984 = vmatprep.subr.bf16.mxu0 %v4081
    %4985 = vmatpush1.bf16.msra.mxu0 %v4080
    %4986 = vmatprep.subr.bf16.mxu0 %v4087
    %4987 = vmatpush1.bf16.msra.mxu0 %v4086
    %4988 = vmatprep.subr.bf16.mxu0 %v4093
    %4989 = vmatpush1.bf16.msra.mxu0 %v4092
    %4990 = vmatprep.subr.bf16.mxu0 %v4099
    %4991 = vmatpush1.bf16.msra.mxu0 %v4098
    %4992 = vmatprep.subr.bf16.mxu0 %v4105
    %4993 = vmatpush1.bf16.msra.mxu0 %v4104
    %4994 = vmatprep.subr.bf16.mxu0 %v4111
    %4995 = vmatpush1.bf16.msra.mxu0 %v4110
    %4996 = vmatprep.subr.bf16.mxu0 %v4117
    %4997 = vmatpush1.bf16.msra.mxu0 %v4116
    %4998 = vmatprep.subr.bf16.mxu0 %v4123
    %4999 = vmatpush1.bf16.msra.mxu0 %v4122
    %5000 = vmatprep.subr.bf16.mxu0 %v4129
    %5001 = vmatpush1.bf16.msra.mxu0 %v4128
    %5002 = vmatprep.mubr.bf16.mxu0 %v1074
    %5003 = vmatmul.mubr.bf16.gmra.mrb[0].mxu0 %v1073
    %v5004 = vpop.f32.mrb[0].mxu0
    %v5005 = vadd.f32 %v4964, %v5004
    %v5006 = vpop.f32.mrb[0].mxu0
    %v5007 = vadd.f32 %v4966, %v5006
    %v5008 = vpop.f32.mrb[0].mxu0
    %v5009 = vpop.f32.mrb[0].mxu0
    %5010 = vdwg.mxu0
    %5011 = vmatprep.subr.bf16.mxu0 %v4135
    %5012 = vmatpush1.bf16.msra.mxu0 %v4134
    %5013 = vmatprep.subr.bf16.mxu0 %v4141
    %5014 = vmatpush1.bf16.msra.mxu0 %v4140
    %5015 = vmatprep.subr.bf16.mxu0 %v4147
    %5016 = vmatpush1.bf16.msra.mxu0 %v4146
    %5017 = vmatprep.subr.bf16.mxu0 %v4153
    %5018 = vmatpush1.bf16.msra.mxu0 %v4152
    %5019 = vmatprep.subr.bf16.mxu0 %v4159
    %5020 = vmatpush1.bf16.msra.mxu0 %v4158
    %5021 = vmatprep.subr.bf16.mxu0 %v4165
    %5022 = vmatpush1.bf16.msra.mxu0 %v4164
    %5023 = vmatprep.subr.bf16.mxu0 %v4171
    %5024 = vmatpush1.bf16.msra.mxu0 %v4170
    %5025 = vmatprep.subr.bf16.mxu0 %v4177
    %5026 = vmatpush1.bf16.msra.mxu0 %v4176
    %5027 = vmatprep.subr.bf16.mxu0 %v4183
    %5028 = vmatpush1.bf16.msra.mxu0 %v4182
    %5029 = vmatprep.subr.bf16.mxu0 %v4189
    %5030 = vmatpush1.bf16.msra.mxu0 %v4188
    %5031 = vmatprep.subr.bf16.mxu0 %v4195
    %5032 = vmatpush1.bf16.msra.mxu0 %v4194
    %5033 = vmatprep.subr.bf16.mxu0 %v4201
    %5034 = vmatpush1.bf16.msra.mxu0 %v4200
    %5035 = vmatprep.subr.bf16.mxu0 %v4207
    %5036 = vmatpush1.bf16.msra.mxu0 %v4206
    %5037 = vmatprep.subr.bf16.mxu0 %v4213
    %5038 = vmatpush1.bf16.msra.mxu0 %v4212
    %5039 = vmatprep.subr.bf16.mxu0 %v4219
    %5040 = vmatpush1.bf16.msra.mxu0 %v4218
    %5041 = vmatprep.subr.bf16.mxu0 %v4225
    %5042 = vmatpush1.bf16.msra.mxu0 %v4224
    %5043 = vmatprep.mubr.bf16.mxu0 %v1076
    %5044 = vmatmul.mubr.bf16.gmra.mrb[0].mxu0 %v1075
    %v5045 = vpop.f32.mrb[0].mxu0
    %v5046 = vadd.f32 %v5005, %v5045
    %v5047 = vpop.f32.mrb[0].mxu0
    %v5048 = vadd.f32 %v5007, %v5047
    %v5049 = vpop.f32.mrb[0].mxu0
    %v5050 = vpop.f32.mrb[0].mxu0
    %5051 = vdwg.mxu0
    %5052 = vmatprep.subr.bf16.mxu0 %v3657
    %5053 = vmatpush1.bf16.msra.mxu0 %v3656
    %5054 = vmatprep.subr.bf16.mxu0 %v3663
    %5055 = vmatpush1.bf16.msra.mxu0 %v3662
    %5056 = vmatprep.subr.bf16.mxu0 %v3669
    %5057 = vmatpush1.bf16.msra.mxu0 %v3668
    %5058 = vmatprep.subr.bf16.mxu0 %v3675
    %5059 = vmatpush1.bf16.msra.mxu0 %v3674
    %5060 = vmatprep.subr.bf16.mxu0 %v3681
    %5061 = vmatpush1.bf16.msra.mxu0 %v3680
    %5062 = vmatprep.subr.bf16.mxu0 %v3687
    %5063 = vmatpush1.bf16.msra.mxu0 %v3686
    %5064 = vmatprep.subr.bf16.mxu0 %v3693
    %5065 = vmatpush1.bf16.msra.mxu0 %v3692
    %5066 = vmatprep.subr.bf16.mxu0 %v3699
    %5067 = vmatpush1.bf16.msra.mxu0 %v3698
    %5068 = vmatprep.subr.bf16.mxu0 %v3705
    %5069 = vmatpush1.bf16.msra.mxu0 %v3704
    %5070 = vmatprep.subr.bf16.mxu0 %v3711
    %5071 = vmatpush1.bf16.msra.mxu0 %v3710
    %5072 = vmatprep.subr.bf16.mxu0 %v3717
    %5073 = vmatpush1.bf16.msra.mxu0 %v3716
    %5074 = vmatprep.subr.bf16.mxu0 %v3723
    %5075 = vmatpush1.bf16.msra.mxu0 %v3722
    %5076 = vmatprep.subr.bf16.mxu0 %v3729
    %5077 = vmatpush1.bf16.msra.mxu0 %v3728
    %5078 = vmatprep.subr.bf16.mxu0 %v3735
    %5079 = vmatpush1.bf16.msra.mxu0 %v3734
    %5080 = vmatprep.subr.bf16.mxu0 %v3741
    %5081 = vmatpush1.bf16.msra.mxu0 %v3740
    %5082 = vmatprep.subr.bf16.mxu0 %v3747
    %5083 = vmatpush1.bf16.msra.mxu0 %v3746
    %5084 = vmatprep.mubr.bf16.mxu0 %v1066
    %5085 = vmatmul.mubr.bf16.gmra.mrb[0].mxu0 %v1065
    %v5086 = vpop.f32.mrb[0].mxu0
    %v5087 = vadd.f32 %v1879, %v5086
    %v5088 = vpop.f32.mrb[0].mxu0
    %v5089 = vadd.f32 %v1881, %v5088
    %v5090 = vpop.f32.mrb[0].mxu0
    %v5091 = vpop.f32.mrb[0].mxu0
    %5092 = vdwg.mxu0
    %5093 = vmatprep.subr.bf16.mxu0 %v3753
    %5094 = vmatpush1.bf16.msra.mxu0 %v3752
    %5095 = vmatprep.subr.bf16.mxu0 %v3759
    %5096 = vmatpush1.bf16.msra.mxu0 %v3758
    %5097 = vmatprep.subr.bf16.mxu0 %v3765
    %5098 = vmatpush1.bf16.msra.mxu0 %v3764
    %5099 = vmatprep.subr.bf16.mxu0 %v3771
    %5100 = vmatpush1.bf16.msra.mxu0 %v3770
    %5101 = vmatprep.subr.bf16.mxu0 %v3777
    %5102 = vmatpush1.bf16.msra.mxu0 %v3776
    %5103 = vmatprep.subr.bf16.mxu0 %v3783
    %5104 = vmatpush1.bf16.msra.mxu0 %v3782
    %5105 = vmatprep.subr.bf16.mxu0 %v3789
    %5106 = vmatpush1.bf16.msra.mxu0 %v3788
    %5107 = vmatprep.subr.bf16.mxu0 %v3795
    %5108 = vmatpush1.bf16.msra.mxu0 %v3794
    %5109 = vmatprep.subr.bf16.mxu0 %v3801
    %5110 = vmatpush1.bf16.msra.mxu0 %v3800
    %5111 = vmatprep.subr.bf16.mxu0 %v3807
    %5112 = vmatpush1.bf16.msra.mxu0 %v3806
    %5113 = vmatprep.subr.bf16.mxu0 %v3813
    %5114 = vmatpush1.bf16.msra.mxu0 %v3812
    %5115 = vmatprep.subr.bf16.mxu0 %v3819
    %5116 = vmatpush1.bf16.msra.mxu0 %v3818
    %5117 = vmatprep.subr.bf16.mxu0 %v3825
    %5118 = vmatpush1.bf16.msra.mxu0 %v3824
    %5119 = vmatprep.subr.bf16.mxu0 %v3831
    %5120 = vmatpush1.bf16.msra.mxu0 %v3830
    %5121 = vmatprep.subr.bf16.mxu0 %v3837
    %5122 = vmatpush1.bf16.msra.mxu0 %v3836
    %5123 = vmatprep.subr.bf16.mxu0 %v3843
    %5124 = vmatpush1.bf16.msra.mxu0 %v3842
    %5125 = vmatprep.mubr.bf16.mxu0 %v1068
    %5126 = vmatmul.mubr.bf16.gmra.mrb[0].mxu0 %v1067
    %v5127 = vpop.f32.mrb[0].mxu0
    %v5128 = vadd.f32 %v5087, %v5127
    %v5129 = vpop.f32.mrb[0].mxu0
    %v5130 = vadd.f32 %v5089, %v5129
    %v5131 = vpop.f32.mrb[0].mxu0
    %v5132 = vpop.f32.mrb[0].mxu0
    %5133 = vdwg.mxu0
    %5134 = vmatprep.subr.bf16.mxu0 %v3849
    %5135 = vmatpush1.bf16.msra.mxu0 %v3848
    %5136 = vmatprep.subr.bf16.mxu0 %v3855
    %5137 = vmatpush1.bf16.msra.mxu0 %v3854
    %5138 = vmatprep.subr.bf16.mxu0 %v3861
    %5139 = vmatpush1.bf16.msra.mxu0 %v3860
    %5140 = vmatprep.subr.bf16.mxu0 %v3867
    %5141 = vmatpush1.bf16.msra.mxu0 %v3866
    %5142 = vmatprep.subr.bf16.mxu0 %v3873
    %5143 = vmatpush1.bf16.msra.mxu0 %v3872
    %5144 = vmatprep.subr.bf16.mxu0 %v3879
    %5145 = vmatpush1.bf16.msra.mxu0 %v3878
    %5146 = vmatprep.subr.bf16.mxu0 %v3885
    %5147 = vmatpush1.bf16.msra.mxu0 %v3884
    %5148 = vmatprep.subr.bf16.mxu0 %v3891
    %5149 = vmatpush1.bf16.msra.mxu0 %v3890
    %5150 = vmatprep.subr.bf16.mxu0 %v3897
    %5151 = vmatpush1.bf16.msra.mxu0 %v3896
    %5152 = vmatprep.subr.bf16.mxu0 %v3903
    %5153 = vmatpush1.bf16.msra.mxu0 %v3902
    %5154 = vmatprep.subr.bf16.mxu0 %v3909
    %5155 = vmatpush1.bf16.msra.mxu0 %v3908
    %5156 = vmatprep.subr.bf16.mxu0 %v3915
    %5157 = vmatpush1.bf16.msra.mxu0 %v3914
    %5158 = vmatprep.subr.bf16.mxu0 %v3921
    %5159 = vmatpush1.bf16.msra.mxu0 %v3920
    %5160 = vmatprep.subr.bf16.mxu0 %v3927
    %5161 = vmatpush1.bf16.msra.mxu0 %v3926
    %5162 = vmatprep.subr.bf16.mxu0 %v3933
    %5163 = vmatpush1.bf16.msra.mxu0 %v3932
    %5164 = vmatprep.subr.bf16.mxu0 %v3939
    %5165 = vmatpush1.bf16.msra.mxu0 %v3938
    %5166 = vmatprep.mubr.bf16.mxu0 %v1070
    %5167 = vmatmul.mubr.bf16.gmra.mrb[0].mxu0 %v1069
    %v5168 = vpop.f32.mrb[0].mxu0
    %v5169 = vadd.f32 %v5128, %v5168
    %v5170 = vpop.f32.mrb[0].mxu0
    %v5171 = vadd.f32 %v5130, %v5170
    %v5172 = vpop.f32.mrb[0].mxu0
    %v5173 = vpop.f32.mrb[0].mxu0
    %5174 = vdwg.mxu0
    %5175 = vmatprep.subr.bf16.mxu0 %v3945
    %5176 = vmatpush1.bf16.msra.mxu0 %v3944
    %5177 = vmatprep.subr.bf16.mxu0 %v3951
    %5178 = vmatpush1.bf16.msra.mxu0 %v3950
    %5179 = vmatprep.subr.bf16.mxu0 %v3957
    %5180 = vmatpush1.bf16.msra.mxu0 %v3956
    %5181 = vmatprep.subr.bf16.mxu0 %v3963
    %5182 = vmatpush1.bf16.msra.mxu0 %v3962
    %5183 = vmatprep.subr.bf16.mxu0 %v3969
    %5184 = vmatpush1.bf16.msra.mxu0 %v3968
    %5185 = vmatprep.subr.bf16.mxu0 %v3975
    %5186 = vmatpush1.bf16.msra.mxu0 %v3974
    %5187 = vmatprep.subr.bf16.mxu0 %v3981
    %5188 = vmatpush1.bf16.msra.mxu0 %v3980
    %5189 = vmatprep.subr.bf16.mxu0 %v3987
    %5190 = vmatpush1.bf16.msra.mxu0 %v3986
    %5191 = vmatprep.subr.bf16.mxu0 %v3993
    %5192 = vmatpush1.bf16.msra.mxu0 %v3992
    %5193 = vmatprep.subr.bf16.mxu0 %v3999
    %5194 = vmatpush1.bf16.msra.mxu0 %v3998
    %5195 = vmatprep.subr.bf16.mxu0 %v4005
    %5196 = vmatpush1.bf16.msra.mxu0 %v4004
    %5197 = vmatprep.subr.bf16.mxu0 %v4011
    %5198 = vmatpush1.bf16.msra.mxu0 %v4010
    %5199 = vmatprep.subr.bf16.mxu0 %v4017
    %5200 = vmatpush1.bf16.msra.mxu0 %v4016
    %5201 = vmatprep.subr.bf16.mxu0 %v4023
    %5202 = vmatpush1.bf16.msra.mxu0 %v4022
    %5203 = vmatprep.subr.bf16.mxu0 %v4029
    %5204 = vmatpush1.bf16.msra.mxu0 %v4028
    %5205 = vmatprep.subr.bf16.mxu0 %v4035
    %5206 = vmatpush1.bf16.msra.mxu0 %v4034
    %5207 = vmatprep.mubr.bf16.mxu0 %v1072
    %5208 = vmatmul.mubr.bf16.gmra.mrb[0].mxu0 %v1071
    %v5209 = vpop.f32.mrb[0].mxu0
    %v5210 = vadd.f32 %v5169, %v5209
    %v5211 = vpop.f32.mrb[0].mxu0
    %v5212 = vadd.f32 %v5171, %v5211
    %v5213 = vpop.f32.mrb[0].mxu0
    %v5214 = vpop.f32.mrb[0].mxu0
    %5215 = vdwg.mxu0
    %5216 = vmatprep.subr.bf16.mxu0 %v4041
    %5217 = vmatpush1.bf16.msra.mxu0 %v4040
    %5218 = vmatprep.subr.bf16.mxu0 %v4047
    %5219 = vmatpush1.bf16.msra.mxu0 %v4046
    %5220 = vmatprep.subr.bf16.mxu0 %v4053
    %5221 = vmatpush1.bf16.msra.mxu0 %v4052
    %5222 = vmatprep.subr.bf16.mxu0 %v4059
    %5223 = vmatpush1.bf16.msra.mxu0 %v4058
    %5224 = vmatprep.subr.bf16.mxu0 %v4065
    %5225 = vmatpush1.bf16.msra.mxu0 %v4064
    %5226 = vmatprep.subr.bf16.mxu0 %v4071
    %5227 = vmatpush1.bf16.msra.mxu0 %v4070
    %5228 = vmatprep.subr.bf16.mxu0 %v4077
    %5229 = vmatpush1.bf16.msra.mxu0 %v4076
    %5230 = vmatprep.subr.bf16.mxu0 %v4083
    %5231 = vmatpush1.bf16.msra.mxu0 %v4082
    %5232 = vmatprep.subr.bf16.mxu0 %v4089
    %5233 = vmatpush1.bf16.msra.mxu0 %v4088
    %5234 = vmatprep.subr.bf16.mxu0 %v4095
    %5235 = vmatpush1.bf16.msra.mxu0 %v4094
    %5236 = vmatprep.subr.bf16.mxu0 %v4101
    %5237 = vmatpush1.bf16.msra.mxu0 %v4100
    %5238 = vmatprep.subr.bf16.mxu0 %v4107
    %5239 = vmatpush1.bf16.msra.mxu0 %v4106
    %5240 = vmatprep.subr.bf16.mxu0 %v4113
    %5241 = vmatpush1.bf16.msra.mxu0 %v4112
    %5242 = vmatprep.subr.bf16.mxu0 %v4119
    %5243 = vmatpush1.bf16.msra.mxu0 %v4118
    %5244 = vmatprep.subr.bf16.mxu0 %v4125
    %5245 = vmatpush1.bf16.msra.mxu0 %v4124
    %5246 = vmatprep.subr.bf16.mxu0 %v4131
    %5247 = vmatpush1.bf16.msra.mxu0 %v4130
    %5248 = vmatprep.mubr.bf16.mxu0 %v1074
    %5249 = vmatmul.mubr.bf16.gmra.mrb[0].mxu0 %v1073
    %v5250 = vpop.f32.mrb[0].mxu0
    %v5251 = vadd.f32 %v5210, %v5250
    %v5252 = vpop.f32.mrb[0].mxu0
    %v5253 = vadd.f32 %v5212, %v5252
    %v5254 = vpop.f32.mrb[0].mxu0
    %v5255 = vpop.f32.mrb[0].mxu0
    %5256 = vdwg.mxu0
    %5257 = vmatprep.subr.bf16.mxu0 %v4137
    %5258 = vmatpush1.bf16.msra.mxu0 %v4136
    %5259 = vmatprep.subr.bf16.mxu0 %v4143
    %5260 = vmatpush1.bf16.msra.mxu0 %v4142
    %5261 = vmatprep.subr.bf16.mxu0 %v4149
    %5262 = vmatpush1.bf16.msra.mxu0 %v4148
    %5263 = vmatprep.subr.bf16.mxu0 %v4155
    %5264 = vmatpush1.bf16.msra.mxu0 %v4154
    %5265 = vmatprep.subr.bf16.mxu0 %v4161
    %5266 = vmatpush1.bf16.msra.mxu0 %v4160
    %5267 = vmatprep.subr.bf16.mxu0 %v4167
    %5268 = vmatpush1.bf16.msra.mxu0 %v4166
    %5269 = vmatprep.subr.bf16.mxu0 %v4173
    %5270 = vmatpush1.bf16.msra.mxu0 %v4172
    %5271 = vmatprep.subr.bf16.mxu0 %v4179
    %5272 = vmatpush1.bf16.msra.mxu0 %v4178
    %5273 = vmatprep.subr.bf16.mxu0 %v4185
    %5274 = vmatpush1.bf16.msra.mxu0 %v4184
    %5275 = vmatprep.subr.bf16.mxu0 %v4191
    %5276 = vmatpush1.bf16.msra.mxu0 %v4190
    %5277 = vmatprep.subr.bf16.mxu0 %v4197
    %5278 = vmatpush1.bf16.msra.mxu0 %v4196
    %5279 = vmatprep.subr.bf16.mxu0 %v4203
    %5280 = vmatpush1.bf16.msra.mxu0 %v4202
    %5281 = vmatprep.subr.bf16.mxu0 %v4209
    %5282 = vmatpush1.bf16.msra.mxu0 %v4208
    %5283 = vmatprep.subr.bf16.mxu0 %v4215
    %5284 = vmatpush1.bf16.msra.mxu0 %v4214
    %5285 = vmatprep.subr.bf16.mxu0 %v4221
    %5286 = vmatpush1.bf16.msra.mxu0 %v4220
    %5287 = vmatprep.subr.bf16.mxu0 %v4227
    %5288 = vmatpush1.bf16.msra.mxu0 %v4226
    %5289 = vmatprep.mubr.bf16.mxu0 %v1076
    %5290 = vmatmul.mubr.bf16.gmra.mrb[0].mxu0 %v1075
    %v5291 = vpop.f32.mrb[0].mxu0
    %v5292 = vadd.f32 %v5251, %v5291
    %v5293 = vpop.f32.mrb[0].mxu0
    %v5294 = vadd.f32 %v5253, %v5293
    %v5295 = vpop.f32.mrb[0].mxu0
    %v5296 = vpop.f32.mrb[0].mxu0
    %5297 = vdwg.mxu0
    %5298 = vmatprep.subr.bf16.mxu0 %v3659
    %5299 = vmatpush1.bf16.msra.mxu0 %v3658
    %5300 = vmatprep.subr.bf16.mxu0 %v3665
    %5301 = vmatpush1.bf16.msra.mxu0 %v3664
    %5302 = vmatprep.subr.bf16.mxu0 %v3671
    %5303 = vmatpush1.bf16.msra.mxu0 %v3670
    %5304 = vmatprep.subr.bf16.mxu0 %v3677
    %5305 = vmatpush1.bf16.msra.mxu0 %v3676
    %5306 = vmatprep.subr.bf16.mxu0 %v3683
    %5307 = vmatpush1.bf16.msra.mxu0 %v3682
    %5308 = vmatprep.subr.bf16.mxu0 %v3689
    %5309 = vmatpush1.bf16.msra.mxu0 %v3688
    %5310 = vmatprep.subr.bf16.mxu0 %v3695
    %5311 = vmatpush1.bf16.msra.mxu0 %v3694
    %5312 = vmatprep.subr.bf16.mxu0 %v3701
    %5313 = vmatpush1.bf16.msra.mxu0 %v3700
    %5314 = vmatprep.subr.bf16.mxu0 %v3707
    %5315 = vmatpush1.bf16.msra.mxu0 %v3706
    %5316 = vmatprep.subr.bf16.mxu0 %v3713
    %5317 = vmatpush1.bf16.msra.mxu0 %v3712
    %5318 = vmatprep.subr.bf16.mxu0 %v3719
    %5319 = vmatpush1.bf16.msra.mxu0 %v3718
    %5320 = vmatprep.subr.bf16.mxu0 %v3725
    %5321 = vmatpush1.bf16.msra.mxu0 %v3724
    %5322 = vmatprep.subr.bf16.mxu0 %v3731
    %5323 = vmatpush1.bf16.msra.mxu0 %v3730
    %5324 = vmatprep.subr.bf16.mxu0 %v3737
    %5325 = vmatpush1.bf16.msra.mxu0 %v3736
    %5326 = vmatprep.subr.bf16.mxu0 %v3743
    %5327 = vmatpush1.bf16.msra.mxu0 %v3742
    %5328 = vmatprep.subr.bf16.mxu0 %v3749
    %5329 = vmatpush1.bf16.msra.mxu0 %v3748
    %5330 = vmatprep.mubr.bf16.mxu0 %v1066
    %5331 = vmatmul.mubr.bf16.gmra.mrb[0].mxu0 %v1065
    %v5332 = vpop.f32.mrb[0].mxu0
    %v5333 = vadd.f32 %v1920, %v5332
    %v5334 = vpop.f32.mrb[0].mxu0
    %v5335 = vadd.f32 %v1922, %v5334
    %v5336 = vpop.f32.mrb[0].mxu0
    %v5337 = vpop.f32.mrb[0].mxu0
    %5338 = vdwg.mxu0
    %5339 = vmatprep.subr.bf16.mxu0 %v3755
    %5340 = vmatpush1.bf16.msra.mxu0 %v3754
    %5341 = vmatprep.subr.bf16.mxu0 %v3761
    %5342 = vmatpush1.bf16.msra.mxu0 %v3760
    %5343 = vmatprep.subr.bf16.mxu0 %v3767
    %5344 = vmatpush1.bf16.msra.mxu0 %v3766
    %5345 = vmatprep.subr.bf16.mxu0 %v3773
    %5346 = vmatpush1.bf16.msra.mxu0 %v3772
    %5347 = vmatprep.subr.bf16.mxu0 %v3779
    %5348 = vmatpush1.bf16.msra.mxu0 %v3778
    %5349 = vmatprep.subr.bf16.mxu0 %v3785
    %5350 = vmatpush1.bf16.msra.mxu0 %v3784
    %5351 = vmatprep.subr.bf16.mxu0 %v3791
    %5352 = vmatpush1.bf16.msra.mxu0 %v3790
    %5353 = vmatprep.subr.bf16.mxu0 %v3797
    %5354 = vmatpush1.bf16.msra.mxu0 %v3796
    %5355 = vmatprep.subr.bf16.mxu0 %v3803
    %5356 = vmatpush1.bf16.msra.mxu0 %v3802
    %5357 = vmatprep.subr.bf16.mxu0 %v3809
    %5358 = vmatpush1.bf16.msra.mxu0 %v3808
    %5359 = vmatprep.subr.bf16.mxu0 %v3815
    %5360 = vmatpush1.bf16.msra.mxu0 %v3814
    %5361 = vmatprep.subr.bf16.mxu0 %v3821
    %5362 = vmatpush1.bf16.msra.mxu0 %v3820
    %5363 = vmatprep.subr.bf16.mxu0 %v3827
    %5364 = vmatpush1.bf16.msra.mxu0 %v3826
    %5365 = vmatprep.subr.bf16.mxu0 %v3833
    %5366 = vmatpush1.bf16.msra.mxu0 %v3832
    %5367 = vmatprep.subr.bf16.mxu0 %v3839
    %5368 = vmatpush1.bf16.msra.mxu0 %v3838
    %5369 = vmatprep.subr.bf16.mxu0 %v3845
    %5370 = vmatpush1.bf16.msra.mxu0 %v3844
    %5371 = vmatprep.mubr.bf16.mxu0 %v1068
    %5372 = vmatmul.mubr.bf16.gmra.mrb[0].mxu0 %v1067
    %v5373 = vpop.f32.mrb[0].mxu0
    %v5374 = vadd.f32 %v5333, %v5373
    %v5375 = vpop.f32.mrb[0].mxu0
    %v5376 = vadd.f32 %v5335, %v5375
    %v5377 = vpop.f32.mrb[0].mxu0
    %v5378 = vpop.f32.mrb[0].mxu0
    %5379 = vdwg.mxu0
    %5380 = vmatprep.subr.bf16.mxu0 %v3851
    %5381 = vmatpush1.bf16.msra.mxu0 %v3850
    %5382 = vmatprep.subr.bf16.mxu0 %v3857
    %5383 = vmatpush1.bf16.msra.mxu0 %v3856
    %5384 = vmatprep.subr.bf16.mxu0 %v3863
    %5385 = vmatpush1.bf16.msra.mxu0 %v3862
    %5386 = vmatprep.subr.bf16.mxu0 %v3869
    %5387 = vmatpush1.bf16.msra.mxu0 %v3868
    %5388 = vmatprep.subr.bf16.mxu0 %v3875
    %5389 = vmatpush1.bf16.msra.mxu0 %v3874
    %5390 = vmatprep.subr.bf16.mxu0 %v3881
    %5391 = vmatpush1.bf16.msra.mxu0 %v3880
    %5392 = vmatprep.subr.bf16.mxu0 %v3887
    %5393 = vmatpush1.bf16.msra.mxu0 %v3886
    %5394 = vmatprep.subr.bf16.mxu0 %v3893
    %5395 = vmatpush1.bf16.msra.mxu0 %v3892
    %5396 = vmatprep.subr.bf16.mxu0 %v3899
    %5397 = vmatpush1.bf16.msra.mxu0 %v3898
    %5398 = vmatprep.subr.bf16.mxu0 %v3905
    %5399 = vmatpush1.bf16.msra.mxu0 %v3904
    %5400 = vmatprep.subr.bf16.mxu0 %v3911
    %5401 = vmatpush1.bf16.msra.mxu0 %v3910
    %5402 = vmatprep.subr.bf16.mxu0 %v3917
    %5403 = vmatpush1.bf16.msra.mxu0 %v3916
    %5404 = vmatprep.subr.bf16.mxu0 %v3923
    %5405 = vmatpush1.bf16.msra.mxu0 %v3922
    %5406 = vmatprep.subr.bf16.mxu0 %v3929
    %5407 = vmatpush1.bf16.msra.mxu0 %v3928
    %5408 = vmatprep.subr.bf16.mxu0 %v3935
    %5409 = vmatpush1.bf16.msra.mxu0 %v3934
    %5410 = vmatprep.subr.bf16.mxu0 %v3941
    %5411 = vmatpush1.bf16.msra.mxu0 %v3940
    %5412 = vmatprep.mubr.bf16.mxu0 %v1070
    %5413 = vmatmul.mubr.bf16.gmra.mrb[0].mxu0 %v1069
    %v5414 = vpop.f32.mrb[0].mxu0
    %v5415 = vadd.f32 %v5374, %v5414
    %v5416 = vpop.f32.mrb[0].mxu0
    %v5417 = vadd.f32 %v5376, %v5416
    %v5418 = vpop.f32.mrb[0].mxu0
    %v5419 = vpop.f32.mrb[0].mxu0
    %5420 = vdwg.mxu0
    %5421 = vmatprep.subr.bf16.mxu0 %v3947
    %5422 = vmatpush1.bf16.msra.mxu0 %v3946
    %5423 = vmatprep.subr.bf16.mxu0 %v3953
    %5424 = vmatpush1.bf16.msra.mxu0 %v3952
    %5425 = vmatprep.subr.bf16.mxu0 %v3959
    %5426 = vmatpush1.bf16.msra.mxu0 %v3958
    %5427 = vmatprep.subr.bf16.mxu0 %v3965
    %5428 = vmatpush1.bf16.msra.mxu0 %v3964
    %5429 = vmatprep.subr.bf16.mxu0 %v3971
    %5430 = vmatpush1.bf16.msra.mxu0 %v3970
    %5431 = vmatprep.subr.bf16.mxu0 %v3977
    %5432 = vmatpush1.bf16.msra.mxu0 %v3976
    %5433 = vmatprep.subr.bf16.mxu0 %v3983
    %5434 = vmatpush1.bf16.msra.mxu0 %v3982
    %5435 = vmatprep.subr.bf16.mxu0 %v3989
    %5436 = vmatpush1.bf16.msra.mxu0 %v3988
    %5437 = vmatprep.subr.bf16.mxu0 %v3995
    %5438 = vmatpush1.bf16.msra.mxu0 %v3994
    %5439 = vmatprep.subr.bf16.mxu0 %v4001
    %5440 = vmatpush1.bf16.msra.mxu0 %v4000
    %5441 = vmatprep.subr.bf16.mxu0 %v4007
    %5442 = vmatpush1.bf16.msra.mxu0 %v4006
    %5443 = vmatprep.subr.bf16.mxu0 %v4013
    %5444 = vmatpush1.bf16.msra.mxu0 %v4012
    %5445 = vmatprep.subr.bf16.mxu0 %v4019
    %5446 = vmatpush1.bf16.msra.mxu0 %v4018
    %5447 = vmatprep.subr.bf16.mxu0 %v4025
    %5448 = vmatpush1.bf16.msra.mxu0 %v4024
    %5449 = vmatprep.subr.bf16.mxu0 %v4031
    %5450 = vmatpush1.bf16.msra.mxu0 %v4030
    %5451 = vmatprep.subr.bf16.mxu0 %v4037
    %5452 = vmatpush1.bf16.msra.mxu0 %v4036
    %5453 = vmatprep.mubr.bf16.mxu0 %v1072
    %5454 = vmatmul.mubr.bf16.gmra.mrb[0].mxu0 %v1071
    %v5455 = vpop.f32.mrb[0].mxu0
    %v5456 = vadd.f32 %v5415, %v5455
    %v5457 = vpop.f32.mrb[0].mxu0
    %v5458 = vadd.f32 %v5417, %v5457
    %v5459 = vpop.f32.mrb[0].mxu0
    %v5460 = vpop.f32.mrb[0].mxu0
    %5461 = vdwg.mxu0
    %5462 = vmatprep.subr.bf16.mxu0 %v4043
    %5463 = vmatpush1.bf16.msra.mxu0 %v4042
    %5464 = vmatprep.subr.bf16.mxu0 %v4049
    %5465 = vmatpush1.bf16.msra.mxu0 %v4048
    %5466 = vmatprep.subr.bf16.mxu0 %v4055
    %5467 = vmatpush1.bf16.msra.mxu0 %v4054
    %5468 = vmatprep.subr.bf16.mxu0 %v4061
    %5469 = vmatpush1.bf16.msra.mxu0 %v4060
    %5470 = vmatprep.subr.bf16.mxu0 %v4067
    %5471 = vmatpush1.bf16.msra.mxu0 %v4066
    %5472 = vmatprep.subr.bf16.mxu0 %v4073
    %5473 = vmatpush1.bf16.msra.mxu0 %v4072
    %5474 = vmatprep.subr.bf16.mxu0 %v4079
    %5475 = vmatpush1.bf16.msra.mxu0 %v4078
    %5476 = vmatprep.subr.bf16.mxu0 %v4085
    %5477 = vmatpush1.bf16.msra.mxu0 %v4084
    %5478 = vmatprep.subr.bf16.mxu0 %v4091
    %5479 = vmatpush1.bf16.msra.mxu0 %v4090
    %5480 = vmatprep.subr.bf16.mxu0 %v4097
    %5481 = vmatpush1.bf16.msra.mxu0 %v4096
    %5482 = vmatprep.subr.bf16.mxu0 %v4103
    %5483 = vmatpush1.bf16.msra.mxu0 %v4102
    %5484 = vmatprep.subr.bf16.mxu0 %v4109
    %5485 = vmatpush1.bf16.msra.mxu0 %v4108
    %5486 = vmatprep.subr.bf16.mxu0 %v4115
    %5487 = vmatpush1.bf16.msra.mxu0 %v4114
    %5488 = vmatprep.subr.bf16.mxu0 %v4121
    %5489 = vmatpush1.bf16.msra.mxu0 %v4120
    %5490 = vmatprep.subr.bf16.mxu0 %v4127
    %5491 = vmatpush1.bf16.msra.mxu0 %v4126
    %5492 = vmatprep.subr.bf16.mxu0 %v4133
    %5493 = vmatpush1.bf16.msra.mxu0 %v4132
    %5494 = vmatprep.mubr.bf16.mxu0 %v1074
    %5495 = vmatmul.mubr.bf16.gmra.mrb[0].mxu0 %v1073
    %v5496 = vpop.f32.mrb[0].mxu0
    %v5497 = vadd.f32 %v5456, %v5496
    %v5498 = vpop.f32.mrb[0].mxu0
    %v5499 = vadd.f32 %v5458, %v5498
    %v5500 = vpop.f32.mrb[0].mxu0
    %v5501 = vpop.f32.mrb[0].mxu0
    %5502 = vdwg.mxu0
    %5503 = vmatprep.subr.bf16.mxu0 %v4139
    %5504 = vmatpush1.bf16.msra.mxu0 %v4138
    %5505 = vmatprep.subr.bf16.mxu0 %v4145
    %5506 = vmatpush1.bf16.msra.mxu0 %v4144
    %5507 = vmatprep.subr.bf16.mxu0 %v4151
    %5508 = vmatpush1.bf16.msra.mxu0 %v4150
    %5509 = vmatprep.subr.bf16.mxu0 %v4157
    %5510 = vmatpush1.bf16.msra.mxu0 %v4156
    %5511 = vmatprep.subr.bf16.mxu0 %v4163
    %5512 = vmatpush1.bf16.msra.mxu0 %v4162
    %5513 = vmatprep.subr.bf16.mxu0 %v4169
    %5514 = vmatpush1.bf16.msra.mxu0 %v4168
    %5515 = vmatprep.subr.bf16.mxu0 %v4175
    %5516 = vmatpush1.bf16.msra.mxu0 %v4174
    %5517 = vmatprep.subr.bf16.mxu0 %v4181
    %5518 = vmatpush1.bf16.msra.mxu0 %v4180
    %5519 = vmatprep.subr.bf16.mxu0 %v4187
    %5520 = vmatpush1.bf16.msra.mxu0 %v4186
    %5521 = vmatprep.subr.bf16.mxu0 %v4193
    %5522 = vmatpush1.bf16.msra.mxu0 %v4192
    %5523 = vmatprep.subr.bf16.mxu0 %v4199
    %5524 = vmatpush1.bf16.msra.mxu0 %v4198
    %5525 = vmatprep.subr.bf16.mxu0 %v4205
    %5526 = vmatpush1.bf16.msra.mxu0 %v4204
    %5527 = vmatprep.subr.bf16.mxu0 %v4211
    %5528 = vmatpush1.bf16.msra.mxu0 %v4210
    %5529 = vmatprep.subr.bf16.mxu0 %v4217
    %5530 = vmatpush1.bf16.msra.mxu0 %v4216
    %5531 = vmatprep.subr.bf16.mxu0 %v4223
    %5532 = vmatpush1.bf16.msra.mxu0 %v4222
    %5533 = vmatprep.subr.bf16.mxu0 %v4229
    %5534 = vmatpush1.bf16.msra.mxu0 %v4228
    %5535 = vmatprep.mubr.bf16.mxu0 %v1076
    %5536 = vmatmul.mubr.bf16.gmra.mrb[0].mxu0 %v1075
    %v5537 = vpop.f32.mrb[0].mxu0
    %v5538 = vadd.f32 %v5497, %v5537
    %v5539 = vpop.f32.mrb[0].mxu0
    %v5540 = vadd.f32 %v5499, %v5539
    %v5541 = vpop.f32.mrb[0].mxu0
    %v5542 = vpop.f32.mrb[0].mxu0
    %5543 = vdwg.mxu0
    %v5544 = vld [vmem:[#allocation25] sm:$0x3f]
    %v5546 = vlaneseq
    %v5547 = vshrl.u32 %v5546, 7
    %v5548 = vsub.s32 0, %v5547
    %v5549 = vrot.slane %v5544, %v5548
    %v5550 = vlaneseq
    %v5551 = vshrl.u32 %v5550, 7
    %v5552 = vsub.s32 1, %v5551
    %v5553 = vrot.slane %v5544, %v5552
    %v5554 = vlaneseq
    %v5555 = vshrl.u32 %v5554, 7
    %v5556 = vsub.s32 2, %v5555
    %v5557 = vrot.slane %v5544, %v5556
    %v5558 = vlaneseq
    %v5559 = vshrl.u32 %v5558, 7
    %v5560 = vsub.s32 3, %v5559
    %v5561 = vrot.slane %v5544, %v5560
    %v5562 = vlaneseq
    %v5563 = vshrl.u32 %v5562, 7
    %v5564 = vsub.s32 4, %v5563
    %v5565 = vrot.slane %v5544, %v5564
    %v5566 = vlaneseq
    %v5567 = vshrl.u32 %v5566, 7
    %v5568 = vsub.s32 5, %v5567
    %v5569 = vrot.slane %v5544, %v5568
    %v5576 = vadd.f32 %v5046, %v5549
    %v5577 = vadd.f32 %v5048, %v5553
    %v5578 = vadd.f32 %v5292, %v5557
    %v5579 = vadd.f32 %v5294, %v5561
    %v5580 = vadd.f32 %v5538, %v5565
    %v5581 = vadd.f32 %v5540, %v5569
    %v5582 = vmax.f32 %v5576, 0.0
    %v5583 = vmax.f32 %v5577, 0.0
    %v5584 = vmax.f32 %v5578, 0.0
    %v5585 = vmax.f32 %v5579, 0.0
    %v5586 = vmax.f32 %v5580, 0.0
    %v5587 = vmax.f32 %v5581, 0.0
    %v5588 = vpack.c.bf16 %v5582, %v5582
    %v5589 = vpack.c.bf16 %v5583, %v5583
    %v5590 = vpack.c.bf16 %v5584, %v5584
    %v5591 = vpack.c.bf16 %v5585, %v5585
    %v5592 = vpack.c.bf16 %v5586, %v5586
    %v5593 = vpack.c.bf16 %v5587, %v5587
    %v5594 = vld [vmem:[#allocation27] sm:$0xff]
    %v5595 = vld [vmem:[#allocation27 + $0x8] sm:$0xff]
    %v5596 = vld [vmem:[#allocation27 + $0x10] sm:$0xff]
    %v5597 = vld [vmem:[#allocation27 + $0x18] sm:$0xff]
    %v5598 = vld [vmem:[#allocation27 + $0x20] sm:$0xff]
    %v5599 = vld [vmem:[#allocation27 + $0x28] sm:$0xff]
    %v5600 = vld [vmem:[#allocation27 + $0x30] sm:$0xff]
    %v5601 = vld [vmem:[#allocation27 + $0x38] sm:$0xff]
    %v5602 = vld [vmem:[#allocation27 + $0x40] sm:$0xff]
    %v5603 = vld [vmem:[#allocation27 + $0x48] sm:$0xff]
    %v5604 = vld [vmem:[#allocation27 + $0x50] sm:$0xff]
    %v5605 = vld [vmem:[#allocation27 + $0x58] sm:$0xff]
    %v5606 = vld [vmem:[#allocation27 + $0x60] sm:$0xff]
    %v5607 = vld [vmem:[#allocation27 + $0x68] sm:$0xff]
    %v5608 = vld [vmem:[#allocation27 + $0x70] sm:$0xff]
    %v5609 = vld [vmem:[#allocation27 + $0x78] sm:$0xff]
    %v5610 = vld [vmem:[#allocation27 + $0x80] sm:$0xff]
    %v5611 = vld [vmem:[#allocation27 + $0x88] sm:$0xff]
    %v5612 = vld [vmem:[#allocation27 + $0x90] sm:$0xff]
    %v5613 = vld [vmem:[#allocation27 + $0x98] sm:$0xff]
    %v5614 = vld [vmem:[#allocation27 + $0xa0] sm:$0xff]
    %v5615 = vld [vmem:[#allocation27 + $0xa8] sm:$0xff]
    %v5616 = vld [vmem:[#allocation27 + $0xb0] sm:$0xff]
    %v5617 = vld [vmem:[#allocation27 + $0xb8] sm:$0xff]
    %v5618 = vld [vmem:[#allocation27 + $0xc0] sm:$0xff]
    %v5619 = vld [vmem:[#allocation27 + $0xc8] sm:$0xff]
    %v5620 = vld [vmem:[#allocation27 + $0xd0] sm:$0xff]
    %v5621 = vld [vmem:[#allocation27 + $0xd8] sm:$0xff]
    %v5622 = vld [vmem:[#allocation27 + $0xe0] sm:$0xff]
    %v5623 = vld [vmem:[#allocation27 + $0xe8] sm:$0xff]
    %v5624 = vld [vmem:[#allocation27 + $0xf0] sm:$0xff]
    %v5625 = vld [vmem:[#allocation27 + $0xf8] sm:$0xff]
    %v5626 = vld [vmem:[#allocation27 + $0x100] sm:$0xff]
    %v5627 = vld [vmem:[#allocation27 + $0x108] sm:$0xff]
    %v5628 = vld [vmem:[#allocation27 + $0x110] sm:$0xff]
    %v5629 = vld [vmem:[#allocation27 + $0x118] sm:$0xff]
    %v5630 = vld [vmem:[#allocation27 + $0x120] sm:$0xff]
    %v5631 = vld [vmem:[#allocation27 + $0x128] sm:$0xff]
    %v5632 = vld [vmem:[#allocation27 + $0x130] sm:$0xff]
    %v5633 = vld [vmem:[#allocation27 + $0x138] sm:$0xff]
    %v5634 = vld [vmem:[#allocation27 + $0x140] sm:$0xff]
    %v5635 = vld [vmem:[#allocation27 + $0x148] sm:$0xff]
    %v5636 = vld [vmem:[#allocation27 + $0x150] sm:$0xff]
    %v5637 = vld [vmem:[#allocation27 + $0x158] sm:$0xff]
    %v5638 = vld [vmem:[#allocation27 + $0x160] sm:$0xff]
    %v5639 = vld [vmem:[#allocation27 + $0x168] sm:$0xff]
    %v5640 = vld [vmem:[#allocation27 + $0x170] sm:$0xff]
    %v5641 = vld [vmem:[#allocation27 + $0x178] sm:$0xff]
    %v5642 = vld [vmem:[#allocation27 + $0x180] sm:$0xff]
    %v5643 = vld [vmem:[#allocation27 + $0x188] sm:$0xff]
    %v5644 = vld [vmem:[#allocation27 + $0x190] sm:$0xff]
    %v5645 = vld [vmem:[#allocation27 + $0x198] sm:$0xff]
    %v5646 = vld [vmem:[#allocation27 + $0x1a0] sm:$0xff]
    %v5647 = vld [vmem:[#allocation27 + $0x1a8] sm:$0xff]
    %v5648 = vld [vmem:[#allocation27 + $0x1b0] sm:$0xff]
    %v5649 = vld [vmem:[#allocation27 + $0x1b8] sm:$0xff]
    %v5650 = vld [vmem:[#allocation27 + $0x1c0] sm:$0xff]
    %v5651 = vld [vmem:[#allocation27 + $0x1c8] sm:$0xff]
    %v5652 = vld [vmem:[#allocation27 + $0x1d0] sm:$0xff]
    %v5653 = vld [vmem:[#allocation27 + $0x1d8] sm:$0xff]
    %v5654 = vld [vmem:[#allocation27 + $0x1e0] sm:$0xff]
    %v5655 = vld [vmem:[#allocation27 + $0x1e8] sm:$0xff]
    %v5656 = vld [vmem:[#allocation27 + $0x1f0] sm:$0xff]
    %v5657 = vld [vmem:[#allocation27 + $0x1f8] sm:$0xff]
    %v5658 = vld [vmem:[#allocation27 + $0x200] sm:$0xff]
    %v5659 = vld [vmem:[#allocation27 + $0x208] sm:$0xff]
    %v5660 = vld [vmem:[#allocation27 + $0x210] sm:$0xff]
    %v5661 = vld [vmem:[#allocation27 + $0x218] sm:$0xff]
    %v5662 = vld [vmem:[#allocation27 + $0x220] sm:$0xff]
    %v5663 = vld [vmem:[#allocation27 + $0x228] sm:$0xff]
    %v5664 = vld [vmem:[#allocation27 + $0x230] sm:$0xff]
    %v5665 = vld [vmem:[#allocation27 + $0x238] sm:$0xff]
    %v5666 = vld [vmem:[#allocation27 + $0x240] sm:$0xff]
    %v5667 = vld [vmem:[#allocation27 + $0x248] sm:$0xff]
    %v5668 = vld [vmem:[#allocation27 + $0x250] sm:$0xff]
    %v5669 = vld [vmem:[#allocation27 + $0x258] sm:$0xff]
    %v5670 = vld [vmem:[#allocation27 + $0x260] sm:$0xff]
    %v5671 = vld [vmem:[#allocation27 + $0x268] sm:$0xff]
    %v5672 = vld [vmem:[#allocation27 + $0x270] sm:$0xff]
    %v5673 = vld [vmem:[#allocation27 + $0x278] sm:$0xff]
    %v5674 = vld [vmem:[#allocation27 + $0x280] sm:$0xff]
    %v5675 = vld [vmem:[#allocation27 + $0x288] sm:$0xff]
    %v5676 = vld [vmem:[#allocation27 + $0x290] sm:$0xff]
    %v5677 = vld [vmem:[#allocation27 + $0x298] sm:$0xff]
    %v5678 = vld [vmem:[#allocation27 + $0x2a0] sm:$0xff]
    %v5679 = vld [vmem:[#allocation27 + $0x2a8] sm:$0xff]
    %v5680 = vld [vmem:[#allocation27 + $0x2b0] sm:$0xff]
    %v5681 = vld [vmem:[#allocation27 + $0x2b8] sm:$0xff]
    %v5682 = vld [vmem:[#allocation27 + $0x2c0] sm:$0xff]
    %v5683 = vld [vmem:[#allocation27 + $0x2c8] sm:$0xff]
    %v5684 = vld [vmem:[#allocation27 + $0x2d0] sm:$0xff]
    %v5685 = vld [vmem:[#allocation27 + $0x2d8] sm:$0xff]
    %v5686 = vld [vmem:[#allocation27 + $0x2e0] sm:$0xff]
    %v5687 = vld [vmem:[#allocation27 + $0x2e8] sm:$0xff]
    %v5688 = vld [vmem:[#allocation27 + $0x2f0] sm:$0xff]
    %v5689 = vld [vmem:[#allocation27 + $0x2f8] sm:$0xff]
    %v5690 = vld [vmem:[#allocation27 + $0x300] sm:$0xff]
    %v5691 = vld [vmem:[#allocation27 + $0x308] sm:$0xff]
    %v5692 = vld [vmem:[#allocation27 + $0x310] sm:$0xff]
    %v5693 = vld [vmem:[#allocation27 + $0x318] sm:$0xff]
    %v5694 = vld [vmem:[#allocation27 + $0x320] sm:$0xff]
    %v5695 = vld [vmem:[#allocation27 + $0x328] sm:$0xff]
    %v5696 = vld [vmem:[#allocation27 + $0x330] sm:$0xff]
    %v5697 = vld [vmem:[#allocation27 + $0x338] sm:$0xff]
    %v5698 = vld [vmem:[#allocation27 + $0x340] sm:$0xff]
    %v5699 = vld [vmem:[#allocation27 + $0x348] sm:$0xff]
    %v5700 = vld [vmem:[#allocation27 + $0x350] sm:$0xff]
    %v5701 = vld [vmem:[#allocation27 + $0x358] sm:$0xff]
    %v5702 = vld [vmem:[#allocation27 + $0x360] sm:$0xff]
    %v5703 = vld [vmem:[#allocation27 + $0x368] sm:$0xff]
    %v5704 = vld [vmem:[#allocation27 + $0x370] sm:$0xff]
    %v5705 = vld [vmem:[#allocation27 + $0x378] sm:$0xff]
    %v5706 = vld [vmem:[#allocation27 + $0x380] sm:$0xff]
    %v5707 = vld [vmem:[#allocation27 + $0x388] sm:$0xff]
    %v5708 = vld [vmem:[#allocation27 + $0x390] sm:$0xff]
    %v5709 = vld [vmem:[#allocation27 + $0x398] sm:$0xff]
    %v5710 = vld [vmem:[#allocation27 + $0x3a0] sm:$0xff]
    %v5711 = vld [vmem:[#allocation27 + $0x3a8] sm:$0xff]
    %v5712 = vld [vmem:[#allocation27 + $0x3b0] sm:$0xff]
    %v5713 = vld [vmem:[#allocation27 + $0x3b8] sm:$0xff]
    %v5714 = vld [vmem:[#allocation27 + $0x3c0] sm:$0xff]
    %v5715 = vld [vmem:[#allocation27 + $0x3c8] sm:$0xff]
    %v5716 = vld [vmem:[#allocation27 + $0x3d0] sm:$0xff]
    %v5717 = vld [vmem:[#allocation27 + $0x3d8] sm:$0xff]
    %v5718 = vld [vmem:[#allocation27 + $0x3e0] sm:$0xff]
    %v5719 = vld [vmem:[#allocation27 + $0x3e8] sm:$0xff]
    %v5720 = vld [vmem:[#allocation27 + $0x3f0] sm:$0xff]
    %v5721 = vld [vmem:[#allocation27 + $0x3f8] sm:$0xff]
    %v5722 = vld [vmem:[#allocation27 + $0x400] sm:$0xff]
    %v5723 = vld [vmem:[#allocation27 + $0x408] sm:$0xff]
    %v5724 = vld [vmem:[#allocation27 + $0x410] sm:$0xff]
    %v5725 = vld [vmem:[#allocation27 + $0x418] sm:$0xff]
    %v5726 = vld [vmem:[#allocation27 + $0x420] sm:$0xff]
    %v5727 = vld [vmem:[#allocation27 + $0x428] sm:$0xff]
    %v5728 = vld [vmem:[#allocation27 + $0x430] sm:$0xff]
    %v5729 = vld [vmem:[#allocation27 + $0x438] sm:$0xff]
    %v5730 = vld [vmem:[#allocation27 + $0x440] sm:$0xff]
    %v5731 = vld [vmem:[#allocation27 + $0x448] sm:$0xff]
    %v5732 = vld [vmem:[#allocation27 + $0x450] sm:$0xff]
    %v5733 = vld [vmem:[#allocation27 + $0x458] sm:$0xff]
    %v5734 = vld [vmem:[#allocation27 + $0x460] sm:$0xff]
    %v5735 = vld [vmem:[#allocation27 + $0x468] sm:$0xff]
    %v5736 = vld [vmem:[#allocation27 + $0x470] sm:$0xff]
    %v5737 = vld [vmem:[#allocation27 + $0x478] sm:$0xff]
    %v5738 = vld [vmem:[#allocation27 + $0x480] sm:$0xff]
    %v5739 = vld [vmem:[#allocation27 + $0x488] sm:$0xff]
    %v5740 = vld [vmem:[#allocation27 + $0x490] sm:$0xff]
    %v5741 = vld [vmem:[#allocation27 + $0x498] sm:$0xff]
    %v5742 = vld [vmem:[#allocation27 + $0x4a0] sm:$0xff]
    %v5743 = vld [vmem:[#allocation27 + $0x4a8] sm:$0xff]
    %v5744 = vld [vmem:[#allocation27 + $0x4b0] sm:$0xff]
    %v5745 = vld [vmem:[#allocation27 + $0x4b8] sm:$0xff]
    %v5746 = vld [vmem:[#allocation27 + $0x4c0] sm:$0xff]
    %v5747 = vld [vmem:[#allocation27 + $0x4c8] sm:$0xff]
    %v5748 = vld [vmem:[#allocation27 + $0x4d0] sm:$0xff]
    %v5749 = vld [vmem:[#allocation27 + $0x4d8] sm:$0xff]
    %v5750 = vld [vmem:[#allocation27 + $0x4e0] sm:$0xff]
    %v5751 = vld [vmem:[#allocation27 + $0x4e8] sm:$0xff]
    %v5752 = vld [vmem:[#allocation27 + $0x4f0] sm:$0xff]
    %v5753 = vld [vmem:[#allocation27 + $0x4f8] sm:$0xff]
    %v5754 = vld [vmem:[#allocation27 + $0x500] sm:$0xff]
    %v5755 = vld [vmem:[#allocation27 + $0x508] sm:$0xff]
    %v5756 = vld [vmem:[#allocation27 + $0x510] sm:$0xff]
    %v5757 = vld [vmem:[#allocation27 + $0x518] sm:$0xff]
    %v5758 = vld [vmem:[#allocation27 + $0x520] sm:$0xff]
    %v5759 = vld [vmem:[#allocation27 + $0x528] sm:$0xff]
    %v5760 = vld [vmem:[#allocation27 + $0x530] sm:$0xff]
    %v5761 = vld [vmem:[#allocation27 + $0x538] sm:$0xff]
    %v5762 = vld [vmem:[#allocation27 + $0x540] sm:$0xff]
    %v5763 = vld [vmem:[#allocation27 + $0x548] sm:$0xff]
    %v5764 = vld [vmem:[#allocation27 + $0x550] sm:$0xff]
    %v5765 = vld [vmem:[#allocation27 + $0x558] sm:$0xff]
    %v5766 = vld [vmem:[#allocation27 + $0x560] sm:$0xff]
    %v5767 = vld [vmem:[#allocation27 + $0x568] sm:$0xff]
    %v5768 = vld [vmem:[#allocation27 + $0x570] sm:$0xff]
    %v5769 = vld [vmem:[#allocation27 + $0x578] sm:$0xff]
    %v5770 = vld [vmem:[#allocation27 + $0x580] sm:$0xff]
    %v5771 = vld [vmem:[#allocation27 + $0x588] sm:$0xff]
    %v5772 = vld [vmem:[#allocation27 + $0x590] sm:$0xff]
    %v5773 = vld [vmem:[#allocation27 + $0x598] sm:$0xff]
    %v5774 = vld [vmem:[#allocation27 + $0x5a0] sm:$0xff]
    %v5775 = vld [vmem:[#allocation27 + $0x5a8] sm:$0xff]
    %v5776 = vld [vmem:[#allocation27 + $0x5b0] sm:$0xff]
    %v5777 = vld [vmem:[#allocation27 + $0x5b8] sm:$0xff]
    %v5778 = vld [vmem:[#allocation27 + $0x5c0] sm:$0xff]
    %v5779 = vld [vmem:[#allocation27 + $0x5c8] sm:$0xff]
    %v5780 = vld [vmem:[#allocation27 + $0x5d0] sm:$0xff]
    %v5781 = vld [vmem:[#allocation27 + $0x5d8] sm:$0xff]
    %v5782 = vld [vmem:[#allocation27 + $0x5e0] sm:$0xff]
    %v5783 = vld [vmem:[#allocation27 + $0x5e8] sm:$0xff]
    %v5784 = vld [vmem:[#allocation27 + $0x5f0] sm:$0xff]
    %v5785 = vld [vmem:[#allocation27 + $0x5f8] sm:$0xff]
    %v5786 = vld [vmem:[#allocation28] sm:$0xf]
    %v5788 = vlaneseq
    %v5789 = vshrl.u32 %v5788, 7
    %v5790 = vsub.s32 0, %v5789
    %v5791 = vrot.slane %v5786, %v5790
    %v5792 = vlaneseq
    %v5793 = vshrl.u32 %v5792, 7
    %v5794 = vsub.s32 1, %v5793
    %v5795 = vrot.slane %v5786, %v5794
    %v5796 = vlaneseq
    %v5797 = vshrl.u32 %v5796, 7
    %v5798 = vsub.s32 2, %v5797
    %v5799 = vrot.slane %v5786, %v5798
    %v5800 = vlaneseq
    %v5801 = vshrl.u32 %v5800, 7
    %v5802 = vsub.s32 3, %v5801
    %v5803 = vrot.slane %v5786, %v5802
    %v6000 = vunpack.c.l.b16 %v5594
    %v6001 = vunpack.c.h.b16 %v5594
    %v6002 = vunpack.c.l.b16 %v5595
    %v6003 = vunpack.c.h.b16 %v5595
    %v6004 = vunpack.c.l.b16 %v5596
    %v6005 = vunpack.c.h.b16 %v5596
    %v6006 = vunpack.c.l.b16 %v5597
    %v6007 = vunpack.c.h.b16 %v5597
    %v6008 = vunpack.c.l.b16 %v5598
    %v6009 = vunpack.c.h.b16 %v5598
    %v6010 = vunpack.c.l.b16 %v5599
    %v6011 = vunpack.c.h.b16 %v5599
    %v6012 = vunpack.c.l.b16 %v5600
    %v6013 = vunpack.c.h.b16 %v5600
    %v6014 = vunpack.c.l.b16 %v5601
    %v6015 = vunpack.c.h.b16 %v5601
    %v6016 = vunpack.c.l.b16 %v5602
    %v6017 = vunpack.c.h.b16 %v5602
    %v6018 = vunpack.c.l.b16 %v5603
    %v6019 = vunpack.c.h.b16 %v5603
    %v6020 = vunpack.c.l.b16 %v5604
    %v6021 = vunpack.c.h.b16 %v5604
    %v6022 = vunpack.c.l.b16 %v5605
    %v6023 = vunpack.c.h.b16 %v5605
    %v6024 = vunpack.c.l.b16 %v5606
    %v6025 = vunpack.c.h.b16 %v5606
    %v6026 = vunpack.c.l.b16 %v5607
    %v6027 = vunpack.c.h.b16 %v5607
    %v6028 = vunpack.c.l.b16 %v5608
    %v6029 = vunpack.c.h.b16 %v5608
    %v6030 = vunpack.c.l.b16 %v5609
    %v6031 = vunpack.c.h.b16 %v5609
    %v6032 = vunpack.c.l.b16 %v5610
    %v6033 = vunpack.c.h.b16 %v5610
    %v6034 = vunpack.c.l.b16 %v5611
    %v6035 = vunpack.c.h.b16 %v5611
    %v6036 = vunpack.c.l.b16 %v5612
    %v6037 = vunpack.c.h.b16 %v5612
    %v6038 = vunpack.c.l.b16 %v5613
    %v6039 = vunpack.c.h.b16 %v5613
    %v6040 = vunpack.c.l.b16 %v5614
    %v6041 = vunpack.c.h.b16 %v5614
    %v6042 = vunpack.c.l.b16 %v5615
    %v6043 = vunpack.c.h.b16 %v5615
    %v6044 = vunpack.c.l.b16 %v5616
    %v6045 = vunpack.c.h.b16 %v5616
    %v6046 = vunpack.c.l.b16 %v5617
    %v6047 = vunpack.c.h.b16 %v5617
    %v6048 = vunpack.c.l.b16 %v5618
    %v6049 = vunpack.c.h.b16 %v5618
    %v6050 = vunpack.c.l.b16 %v5619
    %v6051 = vunpack.c.h.b16 %v5619
    %v6052 = vunpack.c.l.b16 %v5620
    %v6053 = vunpack.c.h.b16 %v5620
    %v6054 = vunpack.c.l.b16 %v5621
    %v6055 = vunpack.c.h.b16 %v5621
    %v6056 = vunpack.c.l.b16 %v5622
    %v6057 = vunpack.c.h.b16 %v5622
    %v6058 = vunpack.c.l.b16 %v5623
    %v6059 = vunpack.c.h.b16 %v5623
    %v6060 = vunpack.c.l.b16 %v5624
    %v6061 = vunpack.c.h.b16 %v5624
    %v6062 = vunpack.c.l.b16 %v5625
    %v6063 = vunpack.c.h.b16 %v5625
    %v6064 = vunpack.c.l.b16 %v5626
    %v6065 = vunpack.c.h.b16 %v5626
    %v6066 = vunpack.c.l.b16 %v5627
    %v6067 = vunpack.c.h.b16 %v5627
    %v6068 = vunpack.c.l.b16 %v5628
    %v6069 = vunpack.c.h.b16 %v5628
    %v6070 = vunpack.c.l.b16 %v5629
    %v6071 = vunpack.c.h.b16 %v5629
    %v6072 = vunpack.c.l.b16 %v5630
    %v6073 = vunpack.c.h.b16 %v5630
    %v6074 = vunpack.c.l.b16 %v5631
    %v6075 = vunpack.c.h.b16 %v5631
    %v6076 = vunpack.c.l.b16 %v5632
    %v6077 = vunpack.c.h.b16 %v5632
    %v6078 = vunpack.c.l.b16 %v5633
    %v6079 = vunpack.c.h.b16 %v5633
    %v6080 = vunpack.c.l.b16 %v5634
    %v6081 = vunpack.c.h.b16 %v5634
    %v6082 = vunpack.c.l.b16 %v5635
    %v6083 = vunpack.c.h.b16 %v5635
    %v6084 = vunpack.c.l.b16 %v5636
    %v6085 = vunpack.c.h.b16 %v5636
    %v6086 = vunpack.c.l.b16 %v5637
    %v6087 = vunpack.c.h.b16 %v5637
    %v6088 = vunpack.c.l.b16 %v5638
    %v6089 = vunpack.c.h.b16 %v5638
    %v6090 = vunpack.c.l.b16 %v5639
    %v6091 = vunpack.c.h.b16 %v5639
    %v6092 = vunpack.c.l.b16 %v5640
    %v6093 = vunpack.c.h.b16 %v5640
    %v6094 = vunpack.c.l.b16 %v5641
    %v6095 = vunpack.c.h.b16 %v5641
    %v6096 = vunpack.c.l.b16 %v5642
    %v6097 = vunpack.c.h.b16 %v5642
    %v6098 = vunpack.c.l.b16 %v5643
    %v6099 = vunpack.c.h.b16 %v5643
    %v6100 = vunpack.c.l.b16 %v5644
    %v6101 = vunpack.c.h.b16 %v5644
    %v6102 = vunpack.c.l.b16 %v5645
    %v6103 = vunpack.c.h.b16 %v5645
    %v6104 = vunpack.c.l.b16 %v5646
    %v6105 = vunpack.c.h.b16 %v5646
    %v6106 = vunpack.c.l.b16 %v5647
    %v6107 = vunpack.c.h.b16 %v5647
    %v6108 = vunpack.c.l.b16 %v5648
    %v6109 = vunpack.c.h.b16 %v5648
    %v6110 = vunpack.c.l.b16 %v5649
    %v6111 = vunpack.c.h.b16 %v5649
    %v6112 = vunpack.c.l.b16 %v5650
    %v6113 = vunpack.c.h.b16 %v5650
    %v6114 = vunpack.c.l.b16 %v5651
    %v6115 = vunpack.c.h.b16 %v5651
    %v6116 = vunpack.c.l.b16 %v5652
    %v6117 = vunpack.c.h.b16 %v5652
    %v6118 = vunpack.c.l.b16 %v5653
    %v6119 = vunpack.c.h.b16 %v5653
    %v6120 = vunpack.c.l.b16 %v5654
    %v6121 = vunpack.c.h.b16 %v5654
    %v6122 = vunpack.c.l.b16 %v5655
    %v6123 = vunpack.c.h.b16 %v5655
    %v6124 = vunpack.c.l.b16 %v5656
    %v6125 = vunpack.c.h.b16 %v5656
    %v6126 = vunpack.c.l.b16 %v5657
    %v6127 = vunpack.c.h.b16 %v5657
    %v6128 = vunpack.c.l.b16 %v5658
    %v6129 = vunpack.c.h.b16 %v5658
    %v6130 = vunpack.c.l.b16 %v5659
    %v6131 = vunpack.c.h.b16 %v5659
    %v6132 = vunpack.c.l.b16 %v5660
    %v6133 = vunpack.c.h.b16 %v5660
    %v6134 = vunpack.c.l.b16 %v5661
    %v6135 = vunpack.c.h.b16 %v5661
    %v6136 = vunpack.c.l.b16 %v5662
    %v6137 = vunpack.c.h.b16 %v5662
    %v6138 = vunpack.c.l.b16 %v5663
    %v6139 = vunpack.c.h.b16 %v5663
    %v6140 = vunpack.c.l.b16 %v5664
    %v6141 = vunpack.c.h.b16 %v5664
    %v6142 = vunpack.c.l.b16 %v5665
    %v6143 = vunpack.c.h.b16 %v5665
    %v6144 = vunpack.c.l.b16 %v5666
    %v6145 = vunpack.c.h.b16 %v5666
    %v6146 = vunpack.c.l.b16 %v5667
    %v6147 = vunpack.c.h.b16 %v5667
    %v6148 = vunpack.c.l.b16 %v5668
    %v6149 = vunpack.c.h.b16 %v5668
    %v6150 = vunpack.c.l.b16 %v5669
    %v6151 = vunpack.c.h.b16 %v5669
    %v6152 = vunpack.c.l.b16 %v5670
    %v6153 = vunpack.c.h.b16 %v5670
    %v6154 = vunpack.c.l.b16 %v5671
    %v6155 = vunpack.c.h.b16 %v5671
    %v6156 = vunpack.c.l.b16 %v5672
    %v6157 = vunpack.c.h.b16 %v5672
    %v6158 = vunpack.c.l.b16 %v5673
    %v6159 = vunpack.c.h.b16 %v5673
    %v6160 = vunpack.c.l.b16 %v5674
    %v6161 = vunpack.c.h.b16 %v5674
    %v6162 = vunpack.c.l.b16 %v5675
    %v6163 = vunpack.c.h.b16 %v5675
    %v6164 = vunpack.c.l.b16 %v5676
    %v6165 = vunpack.c.h.b16 %v5676
    %v6166 = vunpack.c.l.b16 %v5677
    %v6167 = vunpack.c.h.b16 %v5677
    %v6168 = vunpack.c.l.b16 %v5678
    %v6169 = vunpack.c.h.b16 %v5678
    %v6170 = vunpack.c.l.b16 %v5679
    %v6171 = vunpack.c.h.b16 %v5679
    %v6172 = vunpack.c.l.b16 %v5680
    %v6173 = vunpack.c.h.b16 %v5680
    %v6174 = vunpack.c.l.b16 %v5681
    %v6175 = vunpack.c.h.b16 %v5681
    %v6176 = vunpack.c.l.b16 %v5682
    %v6177 = vunpack.c.h.b16 %v5682
    %v6178 = vunpack.c.l.b16 %v5683
    %v6179 = vunpack.c.h.b16 %v5683
    %v6180 = vunpack.c.l.b16 %v5684
    %v6181 = vunpack.c.h.b16 %v5684
    %v6182 = vunpack.c.l.b16 %v5685
    %v6183 = vunpack.c.h.b16 %v5685
    %v6184 = vunpack.c.l.b16 %v5686
    %v6185 = vunpack.c.h.b16 %v5686
    %v6186 = vunpack.c.l.b16 %v5687
    %v6187 = vunpack.c.h.b16 %v5687
    %v6188 = vunpack.c.l.b16 %v5688
    %v6189 = vunpack.c.h.b16 %v5688
    %v6190 = vunpack.c.l.b16 %v5689
    %v6191 = vunpack.c.h.b16 %v5689
    %v6192 = vunpack.c.l.b16 %v5690
    %v6193 = vunpack.c.h.b16 %v5690
    %v6194 = vunpack.c.l.b16 %v5691
    %v6195 = vunpack.c.h.b16 %v5691
    %v6196 = vunpack.c.l.b16 %v5692
    %v6197 = vunpack.c.h.b16 %v5692
    %v6198 = vunpack.c.l.b16 %v5693
    %v6199 = vunpack.c.h.b16 %v5693
    %v6200 = vunpack.c.l.b16 %v5694
    %v6201 = vunpack.c.h.b16 %v5694
    %v6202 = vunpack.c.l.b16 %v5695
    %v6203 = vunpack.c.h.b16 %v5695
    %v6204 = vunpack.c.l.b16 %v5696
    %v6205 = vunpack.c.h.b16 %v5696
    %v6206 = vunpack.c.l.b16 %v5697
    %v6207 = vunpack.c.h.b16 %v5697
    %v6208 = vunpack.c.l.b16 %v5698
    %v6209 = vunpack.c.h.b16 %v5698
    %v6210 = vunpack.c.l.b16 %v5699
    %v6211 = vunpack.c.h.b16 %v5699
    %v6212 = vunpack.c.l.b16 %v5700
    %v6213 = vunpack.c.h.b16 %v5700
    %v6214 = vunpack.c.l.b16 %v5701
    %v6215 = vunpack.c.h.b16 %v5701
    %v6216 = vunpack.c.l.b16 %v5702
    %v6217 = vunpack.c.h.b16 %v5702
    %v6218 = vunpack.c.l.b16 %v5703
    %v6219 = vunpack.c.h.b16 %v5703
    %v6220 = vunpack.c.l.b16 %v5704
    %v6221 = vunpack.c.h.b16 %v5704
    %v6222 = vunpack.c.l.b16 %v5705
    %v6223 = vunpack.c.h.b16 %v5705
    %v6224 = vunpack.c.l.b16 %v5706
    %v6225 = vunpack.c.h.b16 %v5706
    %v6226 = vunpack.c.l.b16 %v5707
    %v6227 = vunpack.c.h.b16 %v5707
    %v6228 = vunpack.c.l.b16 %v5708
    %v6229 = vunpack.c.h.b16 %v5708
    %v6230 = vunpack.c.l.b16 %v5709
    %v6231 = vunpack.c.h.b16 %v5709
    %v6232 = vunpack.c.l.b16 %v5710
    %v6233 = vunpack.c.h.b16 %v5710
    %v6234 = vunpack.c.l.b16 %v5711
    %v6235 = vunpack.c.h.b16 %v5711
    %v6236 = vunpack.c.l.b16 %v5712
    %v6237 = vunpack.c.h.b16 %v5712
    %v6238 = vunpack.c.l.b16 %v5713
    %v6239 = vunpack.c.h.b16 %v5713
    %v6240 = vunpack.c.l.b16 %v5714
    %v6241 = vunpack.c.h.b16 %v5714
    %v6242 = vunpack.c.l.b16 %v5715
    %v6243 = vunpack.c.h.b16 %v5715
    %v6244 = vunpack.c.l.b16 %v5716
    %v6245 = vunpack.c.h.b16 %v5716
    %v6246 = vunpack.c.l.b16 %v5717
    %v6247 = vunpack.c.h.b16 %v5717
    %v6248 = vunpack.c.l.b16 %v5718
    %v6249 = vunpack.c.h.b16 %v5718
    %v6250 = vunpack.c.l.b16 %v5719
    %v6251 = vunpack.c.h.b16 %v5719
    %v6252 = vunpack.c.l.b16 %v5720
    %v6253 = vunpack.c.h.b16 %v5720
    %v6254 = vunpack.c.l.b16 %v5721
    %v6255 = vunpack.c.h.b16 %v5721
    %v6256 = vunpack.c.l.b16 %v5722
    %v6257 = vunpack.c.h.b16 %v5722
    %v6258 = vunpack.c.l.b16 %v5723
    %v6259 = vunpack.c.h.b16 %v5723
    %v6260 = vunpack.c.l.b16 %v5724
    %v6261 = vunpack.c.h.b16 %v5724
    %v6262 = vunpack.c.l.b16 %v5725
    %v6263 = vunpack.c.h.b16 %v5725
    %v6264 = vunpack.c.l.b16 %v5726
    %v6265 = vunpack.c.h.b16 %v5726
    %v6266 = vunpack.c.l.b16 %v5727
    %v6267 = vunpack.c.h.b16 %v5727
    %v6268 = vunpack.c.l.b16 %v5728
    %v6269 = vunpack.c.h.b16 %v5728
    %v6270 = vunpack.c.l.b16 %v5729
    %v6271 = vunpack.c.h.b16 %v5729
    %v6272 = vunpack.c.l.b16 %v5730
    %v6273 = vunpack.c.h.b16 %v5730
    %v6274 = vunpack.c.l.b16 %v5731
    %v6275 = vunpack.c.h.b16 %v5731
    %v6276 = vunpack.c.l.b16 %v5732
    %v6277 = vunpack.c.h.b16 %v5732
    %v6278 = vunpack.c.l.b16 %v5733
    %v6279 = vunpack.c.h.b16 %v5733
    %v6280 = vunpack.c.l.b16 %v5734
    %v6281 = vunpack.c.h.b16 %v5734
    %v6282 = vunpack.c.l.b16 %v5735
    %v6283 = vunpack.c.h.b16 %v5735
    %v6284 = vunpack.c.l.b16 %v5736
    %v6285 = vunpack.c.h.b16 %v5736
    %v6286 = vunpack.c.l.b16 %v5737
    %v6287 = vunpack.c.h.b16 %v5737
    %v6288 = vunpack.c.l.b16 %v5738
    %v6289 = vunpack.c.h.b16 %v5738
    %v6290 = vunpack.c.l.b16 %v5739
    %v6291 = vunpack.c.h.b16 %v5739
    %v6292 = vunpack.c.l.b16 %v5740
    %v6293 = vunpack.c.h.b16 %v5740
    %v6294 = vunpack.c.l.b16 %v5741
    %v6295 = vunpack.c.h.b16 %v5741
    %v6296 = vunpack.c.l.b16 %v5742
    %v6297 = vunpack.c.h.b16 %v5742
    %v6298 = vunpack.c.l.b16 %v5743
    %v6299 = vunpack.c.h.b16 %v5743
    %v6300 = vunpack.c.l.b16 %v5744
    %v6301 = vunpack.c.h.b16 %v5744
    %v6302 = vunpack.c.l.b16 %v5745
    %v6303 = vunpack.c.h.b16 %v5745
    %v6304 = vunpack.c.l.b16 %v5746
    %v6305 = vunpack.c.h.b16 %v5746
    %v6306 = vunpack.c.l.b16 %v5747
    %v6307 = vunpack.c.h.b16 %v5747
    %v6308 = vunpack.c.l.b16 %v5748
    %v6309 = vunpack.c.h.b16 %v5748
    %v6310 = vunpack.c.l.b16 %v5749
    %v6311 = vunpack.c.h.b16 %v5749
    %v6312 = vunpack.c.l.b16 %v5750
    %v6313 = vunpack.c.h.b16 %v5750
    %v6314 = vunpack.c.l.b16 %v5751
    %v6315 = vunpack.c.h.b16 %v5751
    %v6316 = vunpack.c.l.b16 %v5752
    %v6317 = vunpack.c.h.b16 %v5752
    %v6318 = vunpack.c.l.b16 %v5753
    %v6319 = vunpack.c.h.b16 %v5753
    %v6320 = vunpack.c.l.b16 %v5754
    %v6321 = vunpack.c.h.b16 %v5754
    %v6322 = vunpack.c.l.b16 %v5755
    %v6323 = vunpack.c.h.b16 %v5755
    %v6324 = vunpack.c.l.b16 %v5756
    %v6325 = vunpack.c.h.b16 %v5756
    %v6326 = vunpack.c.l.b16 %v5757
    %v6327 = vunpack.c.h.b16 %v5757
    %v6328 = vunpack.c.l.b16 %v5758
    %v6329 = vunpack.c.h.b16 %v5758
    %v6330 = vunpack.c.l.b16 %v5759
    %v6331 = vunpack.c.h.b16 %v5759
    %v6332 = vunpack.c.l.b16 %v5760
    %v6333 = vunpack.c.h.b16 %v5760
    %v6334 = vunpack.c.l.b16 %v5761
    %v6335 = vunpack.c.h.b16 %v5761
    %v6336 = vunpack.c.l.b16 %v5762
    %v6337 = vunpack.c.h.b16 %v5762
    %v6338 = vunpack.c.l.b16 %v5763
    %v6339 = vunpack.c.h.b16 %v5763
    %v6340 = vunpack.c.l.b16 %v5764
    %v6341 = vunpack.c.h.b16 %v5764
    %v6342 = vunpack.c.l.b16 %v5765
    %v6343 = vunpack.c.h.b16 %v5765
    %v6344 = vunpack.c.l.b16 %v5766
    %v6345 = vunpack.c.h.b16 %v5766
    %v6346 = vunpack.c.l.b16 %v5767
    %v6347 = vunpack.c.h.b16 %v5767
    %v6348 = vunpack.c.l.b16 %v5768
    %v6349 = vunpack.c.h.b16 %v5768
    %v6350 = vunpack.c.l.b16 %v5769
    %v6351 = vunpack.c.h.b16 %v5769
    %v6352 = vunpack.c.l.b16 %v5770
    %v6353 = vunpack.c.h.b16 %v5770
    %v6354 = vunpack.c.l.b16 %v5771
    %v6355 = vunpack.c.h.b16 %v5771
    %v6356 = vunpack.c.l.b16 %v5772
    %v6357 = vunpack.c.h.b16 %v5772
    %v6358 = vunpack.c.l.b16 %v5773
    %v6359 = vunpack.c.h.b16 %v5773
    %v6360 = vunpack.c.l.b16 %v5774
    %v6361 = vunpack.c.h.b16 %v5774
    %v6362 = vunpack.c.l.b16 %v5775
    %v6363 = vunpack.c.h.b16 %v5775
    %v6364 = vunpack.c.l.b16 %v5776
    %v6365 = vunpack.c.h.b16 %v5776
    %v6366 = vunpack.c.l.b16 %v5777
    %v6367 = vunpack.c.h.b16 %v5777
    %v6368 = vunpack.c.l.b16 %v5778
    %v6369 = vunpack.c.h.b16 %v5778
    %v6370 = vunpack.c.l.b16 %v5779
    %v6371 = vunpack.c.h.b16 %v5779
    %v6372 = vunpack.c.l.b16 %v5780
    %v6373 = vunpack.c.h.b16 %v5780
    %v6374 = vunpack.c.l.b16 %v5781
    %v6375 = vunpack.c.h.b16 %v5781
    %v6376 = vunpack.c.l.b16 %v5782
    %v6377 = vunpack.c.h.b16 %v5782
    %v6378 = vunpack.c.l.b16 %v5783
    %v6379 = vunpack.c.h.b16 %v5783
    %v6380 = vunpack.c.l.b16 %v5784
    %v6381 = vunpack.c.h.b16 %v5784
    %v6382 = vunpack.c.l.b16 %v5785
    %v6383 = vunpack.c.h.b16 %v5785
    %v6384 = vpack.c.b16 %v6004, %v6000
    %v6385 = vpack.c.b16 %v6005, %v6001
    %v6386 = vpack.c.b16 %v6006, %v6002
    %v6387 = vpack.c.b16 %v6007, %v6003
    %v6388 = vpack.c.b16 %v6012, %v6008
    %v6389 = vpack.c.b16 %v6013, %v6009
    %v6390 = vpack.c.b16 %v6014, %v6010
    %v6391 = vpack.c.b16 %v6015, %v6011
    %v6392 = vpack.c.b16 %v6020, %v6016
    %v6393 = vpack.c.b16 %v6021, %v6017
    %v6394 = vpack.c.b16 %v6022, %v6018
    %v6395 = vpack.c.b16 %v6023, %v6019
    %v6396 = vpack.c.b16 %v6028, %v6024
    %v6397 = vpack.c.b16 %v6029, %v6025
    %v6398 = vpack.c.b16 %v6030, %v6026
    %v6399 = vpack.c.b16 %v6031, %v6027
    %v6400 = vpack.c.b16 %v6036, %v6032
    %v6401 = vpack.c.b16 %v6037, %v6033
    %v6402 = vpack.c.b16 %v6038, %v6034
    %v6403 = vpack.c.b16 %v6039, %v6035
    %v6404 = vpack.c.b16 %v6044, %v6040
    %v6405 = vpack.c.b16 %v6045, %v6041
    %v6406 = vpack.c.b16 %v6046, %v6042
    %v6407 = vpack.c.b16 %v6047, %v6043
    %v6408 = vpack.c.b16 %v6052, %v6048
    %v6409 = vpack.c.b16 %v6053, %v6049
    %v6410 = vpack.c.b16 %v6054, %v6050
    %v6411 = vpack.c.b16 %v6055, %v6051
    %v6412 = vpack.c.b16 %v6060, %v6056
    %v6413 = vpack.c.b16 %v6061, %v6057
    %v6414 = vpack.c.b16 %v6062, %v6058
    %v6415 = vpack.c.b16 %v6063, %v6059
    %v6416 = vpack.c.b16 %v6068, %v6064
    %v6417 = vpack.c.b16 %v6069, %v6065
    %v6418 = vpack.c.b16 %v6070, %v6066
    %v6419 = vpack.c.b16 %v6071, %v6067
    %v6420 = vpack.c.b16 %v6076, %v6072
    %v6421 = vpack.c.b16 %v6077, %v6073
    %v6422 = vpack.c.b16 %v6078, %v6074
    %v6423 = vpack.c.b16 %v6079, %v6075
    %v6424 = vpack.c.b16 %v6084, %v6080
    %v6425 = vpack.c.b16 %v6085, %v6081
    %v6426 = vpack.c.b16 %v6086, %v6082
    %v6427 = vpack.c.b16 %v6087, %v6083
    %v6428 = vpack.c.b16 %v6092, %v6088
    %v6429 = vpack.c.b16 %v6093, %v6089
    %v6430 = vpack.c.b16 %v6094, %v6090
    %v6431 = vpack.c.b16 %v6095, %v6091
    %v6432 = vpack.c.b16 %v6100, %v6096
    %v6433 = vpack.c.b16 %v6101, %v6097
    %v6434 = vpack.c.b16 %v6102, %v6098
    %v6435 = vpack.c.b16 %v6103, %v6099
    %v6436 = vpack.c.b16 %v6108, %v6104
    %v6437 = vpack.c.b16 %v6109, %v6105
    %v6438 = vpack.c.b16 %v6110, %v6106
    %v6439 = vpack.c.b16 %v6111, %v6107
    %v6440 = vpack.c.b16 %v6116, %v6112
    %v6441 = vpack.c.b16 %v6117, %v6113
    %v6442 = vpack.c.b16 %v6118, %v6114
    %v6443 = vpack.c.b16 %v6119, %v6115
    %v6444 = vpack.c.b16 %v6124, %v6120
    %v6445 = vpack.c.b16 %v6125, %v6121
    %v6446 = vpack.c.b16 %v6126, %v6122
    %v6447 = vpack.c.b16 %v6127, %v6123
    %v6448 = vpack.c.b16 %v6132, %v6128
    %v6449 = vpack.c.b16 %v6133, %v6129
    %v6450 = vpack.c.b16 %v6134, %v6130
    %v6451 = vpack.c.b16 %v6135, %v6131
    %v6452 = vpack.c.b16 %v6140, %v6136
    %v6453 = vpack.c.b16 %v6141, %v6137
    %v6454 = vpack.c.b16 %v6142, %v6138
    %v6455 = vpack.c.b16 %v6143, %v6139
    %v6456 = vpack.c.b16 %v6148, %v6144
    %v6457 = vpack.c.b16 %v6149, %v6145
    %v6458 = vpack.c.b16 %v6150, %v6146
    %v6459 = vpack.c.b16 %v6151, %v6147
    %v6460 = vpack.c.b16 %v6156, %v6152
    %v6461 = vpack.c.b16 %v6157, %v6153
    %v6462 = vpack.c.b16 %v6158, %v6154
    %v6463 = vpack.c.b16 %v6159, %v6155
    %v6464 = vpack.c.b16 %v6164, %v6160
    %v6465 = vpack.c.b16 %v6165, %v6161
    %v6466 = vpack.c.b16 %v6166, %v6162
    %v6467 = vpack.c.b16 %v6167, %v6163
    %v6468 = vpack.c.b16 %v6172, %v6168
    %v6469 = vpack.c.b16 %v6173, %v6169
    %v6470 = vpack.c.b16 %v6174, %v6170
    %v6471 = vpack.c.b16 %v6175, %v6171
    %v6472 = vpack.c.b16 %v6180, %v6176
    %v6473 = vpack.c.b16 %v6181, %v6177
    %v6474 = vpack.c.b16 %v6182, %v6178
    %v6475 = vpack.c.b16 %v6183, %v6179
    %v6476 = vpack.c.b16 %v6188, %v6184
    %v6477 = vpack.c.b16 %v6189, %v6185
    %v6478 = vpack.c.b16 %v6190, %v6186
    %v6479 = vpack.c.b16 %v6191, %v6187
    %v6480 = vpack.c.b16 %v6196, %v6192
    %v6481 = vpack.c.b16 %v6197, %v6193
    %v6482 = vpack.c.b16 %v6198, %v6194
    %v6483 = vpack.c.b16 %v6199, %v6195
    %v6484 = vpack.c.b16 %v6204, %v6200
    %v6485 = vpack.c.b16 %v6205, %v6201
    %v6486 = vpack.c.b16 %v6206, %v6202
    %v6487 = vpack.c.b16 %v6207, %v6203
    %v6488 = vpack.c.b16 %v6212, %v6208
    %v6489 = vpack.c.b16 %v6213, %v6209
    %v6490 = vpack.c.b16 %v6214, %v6210
    %v6491 = vpack.c.b16 %v6215, %v6211
    %v6492 = vpack.c.b16 %v6220, %v6216
    %v6493 = vpack.c.b16 %v6221, %v6217
    %v6494 = vpack.c.b16 %v6222, %v6218
    %v6495 = vpack.c.b16 %v6223, %v6219
    %v6496 = vpack.c.b16 %v6228, %v6224
    %v6497 = vpack.c.b16 %v6229, %v6225
    %v6498 = vpack.c.b16 %v6230, %v6226
    %v6499 = vpack.c.b16 %v6231, %v6227
    %v6500 = vpack.c.b16 %v6236, %v6232
    %v6501 = vpack.c.b16 %v6237, %v6233
    %v6502 = vpack.c.b16 %v6238, %v6234
    %v6503 = vpack.c.b16 %v6239, %v6235
    %v6504 = vpack.c.b16 %v6244, %v6240
    %v6505 = vpack.c.b16 %v6245, %v6241
    %v6506 = vpack.c.b16 %v6246, %v6242
    %v6507 = vpack.c.b16 %v6247, %v6243
    %v6508 = vpack.c.b16 %v6252, %v6248
    %v6509 = vpack.c.b16 %v6253, %v6249
    %v6510 = vpack.c.b16 %v6254, %v6250
    %v6511 = vpack.c.b16 %v6255, %v6251
    %v6512 = vpack.c.b16 %v6260, %v6256
    %v6513 = vpack.c.b16 %v6261, %v6257
    %v6514 = vpack.c.b16 %v6262, %v6258
    %v6515 = vpack.c.b16 %v6263, %v6259
    %v6516 = vpack.c.b16 %v6268, %v6264
    %v6517 = vpack.c.b16 %v6269, %v6265
    %v6518 = vpack.c.b16 %v6270, %v6266
    %v6519 = vpack.c.b16 %v6271, %v6267
    %v6520 = vpack.c.b16 %v6276, %v6272
    %v6521 = vpack.c.b16 %v6277, %v6273
    %v6522 = vpack.c.b16 %v6278, %v6274
    %v6523 = vpack.c.b16 %v6279, %v6275
    %v6524 = vpack.c.b16 %v6284, %v6280
    %v6525 = vpack.c.b16 %v6285, %v6281
    %v6526 = vpack.c.b16 %v6286, %v6282
    %v6527 = vpack.c.b16 %v6287, %v6283
    %v6528 = vpack.c.b16 %v6292, %v6288
    %v6529 = vpack.c.b16 %v6293, %v6289
    %v6530 = vpack.c.b16 %v6294, %v6290
    %v6531 = vpack.c.b16 %v6295, %v6291
    %v6532 = vpack.c.b16 %v6300, %v6296
    %v6533 = vpack.c.b16 %v6301, %v6297
    %v6534 = vpack.c.b16 %v6302, %v6298
    %v6535 = vpack.c.b16 %v6303, %v6299
    %v6536 = vpack.c.b16 %v6308, %v6304
    %v6537 = vpack.c.b16 %v6309, %v6305
    %v6538 = vpack.c.b16 %v6310, %v6306
    %v6539 = vpack.c.b16 %v6311, %v6307
    %v6540 = vpack.c.b16 %v6316, %v6312
    %v6541 = vpack.c.b16 %v6317, %v6313
    %v6542 = vpack.c.b16 %v6318, %v6314
    %v6543 = vpack.c.b16 %v6319, %v6315
    %v6544 = vpack.c.b16 %v6324, %v6320
    %v6545 = vpack.c.b16 %v6325, %v6321
    %v6546 = vpack.c.b16 %v6326, %v6322
    %v6547 = vpack.c.b16 %v6327, %v6323
    %v6548 = vpack.c.b16 %v6332, %v6328
    %v6549 = vpack.c.b16 %v6333, %v6329
    %v6550 = vpack.c.b16 %v6334, %v6330
    %v6551 = vpack.c.b16 %v6335, %v6331
    %v6552 = vpack.c.b16 %v6340, %v6336
    %v6553 = vpack.c.b16 %v6341, %v6337
    %v6554 = vpack.c.b16 %v6342, %v6338
    %v6555 = vpack.c.b16 %v6343, %v6339
    %v6556 = vpack.c.b16 %v6348, %v6344
    %v6557 = vpack.c.b16 %v6349, %v6345
    %v6558 = vpack.c.b16 %v6350, %v6346
    %v6559 = vpack.c.b16 %v6351, %v6347
    %v6560 = vpack.c.b16 %v6356, %v6352
    %v6561 = vpack.c.b16 %v6357, %v6353
    %v6562 = vpack.c.b16 %v6358, %v6354
    %v6563 = vpack.c.b16 %v6359, %v6355
    %v6564 = vpack.c.b16 %v6364, %v6360
    %v6565 = vpack.c.b16 %v6365, %v6361
    %v6566 = vpack.c.b16 %v6366, %v6362
    %v6567 = vpack.c.b16 %v6367, %v6363
    %v6568 = vpack.c.b16 %v6372, %v6368
    %v6569 = vpack.c.b16 %v6373, %v6369
    %v6570 = vpack.c.b16 %v6374, %v6370
    %v6571 = vpack.c.b16 %v6375, %v6371
    %v6572 = vpack.c.b16 %v6380, %v6376
    %v6573 = vpack.c.b16 %v6381, %v6377
    %v6574 = vpack.c.b16 %v6382, %v6378
    %v6575 = vpack.c.b16 %v6383, %v6379
    %6768 = vmatprep.subr.bf16.mxu0 %v6385
    %6769 = vmatpush1.bf16.msra.mxu0 %v6384
    %6770 = vmatprep.subr.bf16.mxu0 %v6389
    %6771 = vmatpush1.bf16.msra.mxu0 %v6388
    %6772 = vmatprep.subr.bf16.mxu0 %v6393
    %6773 = vmatpush1.bf16.msra.mxu0 %v6392
    %6774 = vmatprep.subr.bf16.mxu0 %v6397
    %6775 = vmatpush1.bf16.msra.mxu0 %v6396
    %6776 = vmatprep.subr.bf16.mxu0 %v6401
    %6777 = vmatpush1.bf16.msra.mxu0 %v6400
    %6778 = vmatprep.subr.bf16.mxu0 %v6405
    %6779 = vmatpush1.bf16.msra.mxu0 %v6404
    %6780 = vmatprep.subr.bf16.mxu0 %v6409
    %6781 = vmatpush1.bf16.msra.mxu0 %v6408
    %6782 = vmatprep.subr.bf16.mxu0 %v6413
    %6783 = vmatpush1.bf16.msra.mxu0 %v6412
    %6784 = vmatprep.subr.bf16.mxu0 %v6417
    %6785 = vmatpush1.bf16.msra.mxu0 %v6416
    %6786 = vmatprep.subr.bf16.mxu0 %v6421
    %6787 = vmatpush1.bf16.msra.mxu0 %v6420
    %6788 = vmatprep.subr.bf16.mxu0 %v6425
    %6789 = vmatpush1.bf16.msra.mxu0 %v6424
    %6790 = vmatprep.subr.bf16.mxu0 %v6429
    %6791 = vmatpush1.bf16.msra.mxu0 %v6428
    %6792 = vmatprep.subr.bf16.mxu0 %v6433
    %6793 = vmatpush1.bf16.msra.mxu0 %v6432
    %6794 = vmatprep.subr.bf16.mxu0 %v6437
    %6795 = vmatpush1.bf16.msra.mxu0 %v6436
    %6796 = vmatprep.subr.bf16.mxu0 %v6441
    %6797 = vmatpush1.bf16.msra.mxu0 %v6440
    %6798 = vmatprep.subr.bf16.mxu0 %v6445
    %6799 = vmatpush1.bf16.msra.mxu0 %v6444
    %6800 = vmatprep.mubr.bf16.mxu0 %v5589
    %6801 = vmatmul.mubr.bf16.gmra.mrb[0].mxu0 %v5588
    %v6802 = vpop.f32.mrb[0].mxu0
    %v6803 = vadd.f32 %v5791, %v6802
    %v6804 = vpop.f32.mrb[0].mxu0
    %v6805 = vadd.f32 %v5795, %v6804
    %v6806 = vpop.f32.mrb[0].mxu0
    %v6807 = vpop.f32.mrb[0].mxu0
    %6808 = vdwg.mxu0
    %6809 = vmatprep.subr.bf16.mxu0 %v6449
    %6810 = vmatpush1.bf16.msra.mxu0 %v6448
    %6811 = vmatprep.subr.bf16.mxu0 %v6453
    %6812 = vmatpush1.bf16.msra.mxu0 %v6452
    %6813 = vmatprep.subr.bf16.mxu0 %v6457
    %6814 = vmatpush1.bf16.msra.mxu0 %v6456
    %6815 = vmatprep.subr.bf16.mxu0 %v6461
    %6816 = vmatpush1.bf16.msra.mxu0 %v6460
    %6817 = vmatprep.subr.bf16.mxu0 %v6465
    %6818 = vmatpush1.bf16.msra.mxu0 %v6464
    %6819 = vmatprep.subr.bf16.mxu0 %v6469
    %6820 = vmatpush1.bf16.msra.mxu0 %v6468
    %6821 = vmatprep.subr.bf16.mxu0 %v6473
    %6822 = vmatpush1.bf16.msra.mxu0 %v6472
    %6823 = vmatprep.subr.bf16.mxu0 %v6477
    %6824 = vmatpush1.bf16.msra.mxu0 %v6476
    %6825 = vmatprep.subr.bf16.mxu0 %v6481
    %6826 = vmatpush1.bf16.msra.mxu0 %v6480
    %6827 = vmatprep.subr.bf16.mxu0 %v6485
    %6828 = vmatpush1.bf16.msra.mxu0 %v6484
    %6829 = vmatprep.subr.bf16.mxu0 %v6489
    %6830 = vmatpush1.bf16.msra.mxu0 %v6488
    %6831 = vmatprep.subr.bf16.mxu0 %v6493
    %6832 = vmatpush1.bf16.msra.mxu0 %v6492
    %6833 = vmatprep.subr.bf16.mxu0 %v6497
    %6834 = vmatpush1.bf16.msra.mxu0 %v6496
    %6835 = vmatprep.subr.bf16.mxu0 %v6501
    %6836 = vmatpush1.bf16.msra.mxu0 %v6500
    %6837 = vmatprep.subr.bf16.mxu0 %v6505
    %6838 = vmatpush1.bf16.msra.mxu0 %v6504
    %6839 = vmatprep.subr.bf16.mxu0 %v6509
    %6840 = vmatpush1.bf16.msra.mxu0 %v6508
    %6841 = vmatprep.mubr.bf16.mxu0 %v5591
    %6842 = vmatmul.mubr.bf16.gmra.mrb[0].mxu0 %v5590
    %v6843 = vpop.f32.mrb[0].mxu0
    %v6844 = vadd.f32 %v6803, %v6843
    %v6845 = vpop.f32.mrb[0].mxu0
    %v6846 = vadd.f32 %v6805, %v6845
    %v6847 = vpop.f32.mrb[0].mxu0
    %v6848 = vpop.f32.mrb[0].mxu0
    %6849 = vdwg.mxu0
    %6850 = vmatprep.subr.bf16.mxu0 %v6513
    %6851 = vmatpush1.bf16.msra.mxu0 %v6512
    %6852 = vmatprep.subr.bf16.mxu0 %v6517
    %6853 = vmatpush1.bf16.msra.mxu0 %v6516
    %6854 = vmatprep.subr.bf16.mxu0 %v6521
    %6855 = vmatpush1.bf16.msra.mxu0 %v6520
    %6856 = vmatprep.subr.bf16.mxu0 %v6525
    %6857 = vmatpush1.bf16.msra.mxu0 %v6524
    %6858 = vmatprep.subr.bf16.mxu0 %v6529
    %6859 = vmatpush1.bf16.msra.mxu0 %v6528
    %6860 = vmatprep.subr.bf16.mxu0 %v6533
    %6861 = vmatpush1.bf16.msra.mxu0 %v6532
    %6862 = vmatprep.subr.bf16.mxu0 %v6537
    %6863 = vmatpush1.bf16.msra.mxu0 %v6536
    %6864 = vmatprep.subr.bf16.mxu0 %v6541
    %6865 = vmatpush1.bf16.msra.mxu0 %v6540
    %6866 = vmatprep.subr.bf16.mxu0 %v6545
    %6867 = vmatpush1.bf16.msra.mxu0 %v6544
    %6868 = vmatprep.subr.bf16.mxu0 %v6549
    %6869 = vmatpush1.bf16.msra.mxu0 %v6548
    %6870 = vmatprep.subr.bf16.mxu0 %v6553
    %6871 = vmatpush1.bf16.msra.mxu0 %v6552
    %6872 = vmatprep.subr.bf16.mxu0 %v6557
    %6873 = vmatpush1.bf16.msra.mxu0 %v6556
    %6874 = vmatprep.subr.bf16.mxu0 %v6561
    %6875 = vmatpush1.bf16.msra.mxu0 %v6560
    %6876 = vmatprep.subr.bf16.mxu0 %v6565
    %6877 = vmatpush1.bf16.msra.mxu0 %v6564
    %6878 = vmatprep.subr.bf16.mxu0 %v6569
    %6879 = vmatpush1.bf16.msra.mxu0 %v6568
    %6880 = vmatprep.subr.bf16.mxu0 %v6573
    %6881 = vmatpush1.bf16.msra.mxu0 %v6572
    %6882 = vmatprep.mubr.bf16.mxu0 %v5593
    %6883 = vmatmul.mubr.bf16.gmra.mrb[0].mxu0 %v5592
    %v6884 = vpop.f32.mrb[0].mxu0
    %v6885 = vadd.f32 %v6844, %v6884
    %v6886 = vpop.f32.mrb[0].mxu0
    %v6887 = vadd.f32 %v6846, %v6886
    %v6888 = vpop.f32.mrb[0].mxu0
    %v6889 = vpop.f32.mrb[0].mxu0
    %6890 = vdwg.mxu0
    %6891 = vmatprep.subr.bf16.mxu0 %v6387
    %6892 = vmatpush1.bf16.msra.mxu0 %v6386
    %6893 = vmatprep.subr.bf16.mxu0 %v6391
    %6894 = vmatpush1.bf16.msra.mxu0 %v6390
    %6895 = vmatprep.subr.bf16.mxu0 %v6395
    %6896 = vmatpush1.bf16.msra.mxu0 %v6394
    %6897 = vmatprep.subr.bf16.mxu0 %v6399
    %6898 = vmatpush1.bf16.msra.mxu0 %v6398
    %6899 = vmatprep.subr.bf16.mxu0 %v6403
    %6900 = vmatpush1.bf16.msra.mxu0 %v6402
    %6901 = vmatprep.subr.bf16.mxu0 %v6407
    %6902 = vmatpush1.bf16.msra.mxu0 %v6406
    %6903 = vmatprep.subr.bf16.mxu0 %v6411
    %6904 = vmatpush1.bf16.msra.mxu0 %v6410
    %6905 = vmatprep.subr.bf16.mxu0 %v6415
    %6906 = vmatpush1.bf16.msra.mxu0 %v6414
    %6907 = vmatprep.subr.bf16.mxu0 %v6419
    %6908 = vmatpush1.bf16.msra.mxu0 %v6418
    %6909 = vmatprep.subr.bf16.mxu0 %v6423
    %6910 = vmatpush1.bf16.msra.mxu0 %v6422
    %6911 = vmatprep.subr.bf16.mxu0 %v6427
    %6912 = vmatpush1.bf16.msra.mxu0 %v6426
    %6913 = vmatprep.subr.bf16.mxu0 %v6431
    %6914 = vmatpush1.bf16.msra.mxu0 %v6430
    %6915 = vmatprep.subr.bf16.mxu0 %v6435
    %6916 = vmatpush1.bf16.msra.mxu0 %v6434
    %6917 = vmatprep.subr.bf16.mxu0 %v6439
    %6918 = vmatpush1.bf16.msra.mxu0 %v6438
    %6919 = vmatprep.subr.bf16.mxu0 %v6443
    %6920 = vmatpush1.bf16.msra.mxu0 %v6442
    %6921 = vmatprep.subr.bf16.mxu0 %v6447
    %6922 = vmatpush1.bf16.msra.mxu0 %v6446
    %6923 = vmatprep.mubr.bf16.mxu0 %v5589
    %6924 = vmatmul.mubr.bf16.gmra.mrb[0].mxu0 %v5588
    %v6925 = vpop.f32.mrb[0].mxu0
    %v6926 = vadd.f32 %v5799, %v6925
    %v6927 = vpop.f32.mrb[0].mxu0
    %v6928 = vadd.f32 %v5803, %v6927
    %v6929 = vpop.f32.mrb[0].mxu0
    %v6930 = vpop.f32.mrb[0].mxu0
    %6931 = vdwg.mxu0
    %6932 = vmatprep.subr.bf16.mxu0 %v6451
    %6933 = vmatpush1.bf16.msra.mxu0 %v6450
    %6934 = vmatprep.subr.bf16.mxu0 %v6455
    %6935 = vmatpush1.bf16.msra.mxu0 %v6454
    %6936 = vmatprep.subr.bf16.mxu0 %v6459
    %6937 = vmatpush1.bf16.msra.mxu0 %v6458
    %6938 = vmatprep.subr.bf16.mxu0 %v6463
    %6939 = vmatpush1.bf16.msra.mxu0 %v6462
    %6940 = vmatprep.subr.bf16.mxu0 %v6467
    %6941 = vmatpush1.bf16.msra.mxu0 %v6466
    %6942 = vmatprep.subr.bf16.mxu0 %v6471
    %6943 = vmatpush1.bf16.msra.mxu0 %v6470
    %6944 = vmatprep.subr.bf16.mxu0 %v6475
    %6945 = vmatpush1.bf16.msra.mxu0 %v6474
    %6946 = vmatprep.subr.bf16.mxu0 %v6479
    %6947 = vmatpush1.bf16.msra.mxu0 %v6478
    %6948 = vmatprep.subr.bf16.mxu0 %v6483
    %6949 = vmatpush1.bf16.msra.mxu0 %v6482
    %6950 = vmatprep.subr.bf16.mxu0 %v6487
    %6951 = vmatpush1.bf16.msra.mxu0 %v6486
    %6952 = vmatprep.subr.bf16.mxu0 %v6491
    %6953 = vmatpush1.bf16.msra.mxu0 %v6490
    %6954 = vmatprep.subr.bf16.mxu0 %v6495
    %6955 = vmatpush1.bf16.msra.mxu0 %v6494
    %6956 = vmatprep.subr.bf16.mxu0 %v6499
    %6957 = vmatpush1.bf16.msra.mxu0 %v6498
    %6958 = vmatprep.subr.bf16.mxu0 %v6503
    %6959 = vmatpush1.bf16.msra.mxu0 %v6502
    %6960 = vmatprep.subr.bf16.mxu0 %v6507
    %6961 = vmatpush1.bf16.msra.mxu0 %v6506
    %6962 = vmatprep.subr.bf16.mxu0 %v6511
    %6963 = vmatpush1.bf16.msra.mxu0 %v6510
    %6964 = vmatprep.mubr.bf16.mxu0 %v5591
    %6965 = vmatmul.mubr.bf16.gmra.mrb[0].mxu0 %v5590
    %v6966 = vpop.f32.mrb[0].mxu0
    %v6967 = vadd.f32 %v6926, %v6966
    %v6968 = vpop.f32.mrb[0].mxu0
    %v6969 = vadd.f32 %v6928, %v6968
    %v6970 = vpop.f32.mrb[0].mxu0
    %v6971 = vpop.f32.mrb[0].mxu0
    %6972 = vdwg.mxu0
    %6973 = vmatprep.subr.bf16.mxu0 %v6515
    %6974 = vmatpush1.bf16.msra.mxu0 %v6514
    %6975 = vmatprep.subr.bf16.mxu0 %v6519
    %6976 = vmatpush1.bf16.msra.mxu0 %v6518
    %6977 = vmatprep.subr.bf16.mxu0 %v6523
    %6978 = vmatpush1.bf16.msra.mxu0 %v6522
    %6979 = vmatprep.subr.bf16.mxu0 %v6527
    %6980 = vmatpush1.bf16.msra.mxu0 %v6526
    %6981 = vmatprep.subr.bf16.mxu0 %v6531
    %6982 = vmatpush1.bf16.msra.mxu0 %v6530
    %6983 = vmatprep.subr.bf16.mxu0 %v6535
    %6984 = vmatpush1.bf16.msra.mxu0 %v6534
    %6985 = vmatprep.subr.bf16.mxu0 %v6539
    %6986 = vmatpush1.bf16.msra.mxu0 %v6538
    %6987 = vmatprep.subr.bf16.mxu0 %v6543
    %6988 = vmatpush1.bf16.msra.mxu0 %v6542
    %6989 = vmatprep.subr.bf16.mxu0 %v6547
    %6990 = vmatpush1.bf16.msra.mxu0 %v6546
    %6991 = vmatprep.subr.bf16.mxu0 %v6551
    %6992 = vmatpush1.bf16.msra.mxu0 %v6550
    %6993 = vmatprep.subr.bf16.mxu0 %v6555
    %6994 = vmatpush1.bf16.msra.mxu0 %v6554
    %6995 = vmatprep.subr.bf16.mxu0 %v6559
    %6996 = vmatpush1.bf16.msra.mxu0 %v6558
    %6997 = vmatprep.subr.bf16.mxu0 %v6563
    %6998 = vmatpush1.bf16.msra.mxu0 %v6562
    %6999 = vmatprep.subr.bf16.mxu0 %v6567
    %7000 = vmatpush1.bf16.msra.mxu0 %v6566
    %7001 = vmatprep.subr.bf16.mxu0 %v6571
    %7002 = vmatpush1.bf16.msra.mxu0 %v6570
    %7003 = vmatprep.subr.bf16.mxu0 %v6575
    %7004 = vmatpush1.bf16.msra.mxu0 %v6574
    %7005 = vmatprep.mubr.bf16.mxu0 %v5593
    %7006 = vmatmul.mubr.bf16.gmra.mrb[0].mxu0 %v5592
    %v7007 = vpop.f32.mrb[0].mxu0
    %v7008 = vadd.f32 %v6967, %v7007
    %v7009 = vpop.f32.mrb[0].mxu0
    %v7010 = vadd.f32 %v6969, %v7009
    %v7011 = vpop.f32.mrb[0].mxu0
    %v7012 = vpop.f32.mrb[0].mxu0
    %7013 = vdwg.mxu0
    %v7014 = vmax.f32 %v6885, 0.0
    %v7015 = vmax.f32 %v6887, 0.0
    %v7016 = vmax.f32 %v7008, 0.0
    %v7017 = vmax.f32 %v7010, 0.0
    %v7018 = vpack.c.bf16 %v7014, %v7014
    %v7019 = vpack.c.bf16 %v7015, %v7015
    %v7020 = vpack.c.bf16 %v7016, %v7016
    %v7021 = vpack.c.bf16 %v7017, %v7017
    %v7022 = vld [vmem:[#allocation30] sm:$0xff]
    %v7023 = vld [vmem:[#allocation30 + $0x8] sm:$0xff]
    %v7024 = vld [vmem:[#allocation30 + $0x10] sm:$0xff]
    %v7025 = vld [vmem:[#allocation30 + $0x18] sm:$0xff]
    %v7026 = vld [vmem:[#allocation30 + $0x20] sm:$0xff]
    %v7027 = vld [vmem:[#allocation30 + $0x28] sm:$0xff]
    %v7028 = vld [vmem:[#allocation30 + $0x30] sm:$0xff]
    %v7029 = vld [vmem:[#allocation30 + $0x38] sm:$0xff]
    %v7030 = vld [vmem:[#allocation30 + $0x40] sm:$0xff]
    %v7031 = vld [vmem:[#allocation30 + $0x48] sm:$0xff]
    %v7032 = vld [vmem:[#allocation30 + $0x50] sm:$0xff]
    %v7033 = vld [vmem:[#allocation30 + $0x58] sm:$0xff]
    %v7034 = vld [vmem:[#allocation30 + $0x60] sm:$0xff]
    %v7035 = vld [vmem:[#allocation30 + $0x68] sm:$0xff]
    %v7036 = vld [vmem:[#allocation30 + $0x70] sm:$0xff]
    %v7037 = vld [vmem:[#allocation30 + $0x78] sm:$0xff]
    %v7038 = vld [vmem:[#allocation30 + $0x80] sm:$0xff]
    %v7039 = vld [vmem:[#allocation30 + $0x88] sm:$0xff]
    %v7040 = vld [vmem:[#allocation30 + $0x90] sm:$0xff]
    %v7041 = vld [vmem:[#allocation30 + $0x98] sm:$0xff]
    %v7042 = vld [vmem:[#allocation30 + $0xa0] sm:$0xff]
    %v7043 = vld [vmem:[#allocation30 + $0xa8] sm:$0xff]
    %v7044 = vld [vmem:[#allocation30 + $0xb0] sm:$0xff]
    %v7045 = vld [vmem:[#allocation30 + $0xb8] sm:$0xff]
    %v7046 = vld [vmem:[#allocation30 + $0xc0] sm:$0xff]
    %v7047 = vld [vmem:[#allocation30 + $0xc8] sm:$0xff]
    %v7048 = vld [vmem:[#allocation30 + $0xd0] sm:$0xff]
    %v7049 = vld [vmem:[#allocation30 + $0xd8] sm:$0xff]
    %v7050 = vld [vmem:[#allocation30 + $0xe0] sm:$0xff]
    %v7051 = vld [vmem:[#allocation30 + $0xe8] sm:$0xff]
    %v7052 = vld [vmem:[#allocation30 + $0xf0] sm:$0xff]
    %v7053 = vld [vmem:[#allocation30 + $0xf8] sm:$0xff]
    %v7054 = vld [vmem:[#allocation30 + $0x100] sm:$0xff]
    %v7055 = vld [vmem:[#allocation30 + $0x108] sm:$0xff]
    %v7056 = vld [vmem:[#allocation30 + $0x110] sm:$0xff]
    %v7057 = vld [vmem:[#allocation30 + $0x118] sm:$0xff]
    %v7058 = vld [vmem:[#allocation30 + $0x120] sm:$0xff]
    %v7059 = vld [vmem:[#allocation30 + $0x128] sm:$0xff]
    %v7060 = vld [vmem:[#allocation30 + $0x130] sm:$0xff]
    %v7061 = vld [vmem:[#allocation30 + $0x138] sm:$0xff]
    %v7062 = vld [vmem:[#allocation30 + $0x140] sm:$0xff]
    %v7063 = vld [vmem:[#allocation30 + $0x148] sm:$0xff]
    %v7064 = vld [vmem:[#allocation30 + $0x150] sm:$0xff]
    %v7065 = vld [vmem:[#allocation30 + $0x158] sm:$0xff]
    %v7066 = vld [vmem:[#allocation30 + $0x160] sm:$0xff]
    %v7067 = vld [vmem:[#allocation30 + $0x168] sm:$0xff]
    %v7068 = vld [vmem:[#allocation30 + $0x170] sm:$0xff]
    %v7069 = vld [vmem:[#allocation30 + $0x178] sm:$0xff]
    %v7070 = vld [vmem:[#allocation30 + $0x180] sm:$0xff]
    %v7071 = vld [vmem:[#allocation30 + $0x188] sm:$0xff]
    %v7072 = vld [vmem:[#allocation30 + $0x190] sm:$0xff]
    %v7073 = vld [vmem:[#allocation30 + $0x198] sm:$0xff]
    %v7074 = vld [vmem:[#allocation30 + $0x1a0] sm:$0xff]
    %v7075 = vld [vmem:[#allocation30 + $0x1a8] sm:$0xff]
    %v7076 = vld [vmem:[#allocation30 + $0x1b0] sm:$0xff]
    %v7077 = vld [vmem:[#allocation30 + $0x1b8] sm:$0xff]
    %v7078 = vld [vmem:[#allocation30 + $0x1c0] sm:$0xff]
    %v7079 = vld [vmem:[#allocation30 + $0x1c8] sm:$0xff]
    %v7080 = vld [vmem:[#allocation30 + $0x1d0] sm:$0xff]
    %v7081 = vld [vmem:[#allocation30 + $0x1d8] sm:$0xff]
    %v7082 = vld [vmem:[#allocation30 + $0x1e0] sm:$0xff]
    %v7083 = vld [vmem:[#allocation30 + $0x1e8] sm:$0xff]
    %v7084 = vld [vmem:[#allocation30 + $0x1f0] sm:$0xff]
    %v7085 = vld [vmem:[#allocation30 + $0x1f8] sm:$0xff]
    %v7086 = vld [vmem:[#allocation31] sm:$0x3]
    %v7088 = vlaneseq
    %v7089 = vshrl.u32 %v7088, 7
    %v7090 = vsub.s32 0, %v7089
    %v7091 = vrot.slane %v7086, %v7090
    %v7092 = vlaneseq
    %v7093 = vshrl.u32 %v7092, 7
    %v7094 = vsub.s32 1, %v7093
    %v7095 = vrot.slane %v7086, %v7094
    %v7162 = vunpack.c.l.b16 %v7022
    %v7163 = vunpack.c.h.b16 %v7022
    %v7164 = vunpack.c.l.b16 %v7023
    %v7165 = vunpack.c.h.b16 %v7023
    %v7166 = vunpack.c.l.b16 %v7024
    %v7167 = vunpack.c.h.b16 %v7024
    %v7168 = vunpack.c.l.b16 %v7025
    %v7169 = vunpack.c.h.b16 %v7025
    %v7170 = vunpack.c.l.b16 %v7026
    %v7171 = vunpack.c.h.b16 %v7026
    %v7172 = vunpack.c.l.b16 %v7027
    %v7173 = vunpack.c.h.b16 %v7027
    %v7174 = vunpack.c.l.b16 %v7028
    %v7175 = vunpack.c.h.b16 %v7028
    %v7176 = vunpack.c.l.b16 %v7029
    %v7177 = vunpack.c.h.b16 %v7029
    %v7178 = vunpack.c.l.b16 %v7030
    %v7179 = vunpack.c.h.b16 %v7030
    %v7180 = vunpack.c.l.b16 %v7031
    %v7181 = vunpack.c.h.b16 %v7031
    %v7182 = vunpack.c.l.b16 %v7032
    %v7183 = vunpack.c.h.b16 %v7032
    %v7184 = vunpack.c.l.b16 %v7033
    %v7185 = vunpack.c.h.b16 %v7033
    %v7186 = vunpack.c.l.b16 %v7034
    %v7187 = vunpack.c.h.b16 %v7034
    %v7188 = vunpack.c.l.b16 %v7035
    %v7189 = vunpack.c.h.b16 %v7035
    %v7190 = vunpack.c.l.b16 %v7036
    %v7191 = vunpack.c.h.b16 %v7036
    %v7192 = vunpack.c.l.b16 %v7037
    %v7193 = vunpack.c.h.b16 %v7037
    %v7194 = vunpack.c.l.b16 %v7038
    %v7195 = vunpack.c.h.b16 %v7038
    %v7196 = vunpack.c.l.b16 %v7039
    %v7197 = vunpack.c.h.b16 %v7039
    %v7198 = vunpack.c.l.b16 %v7040
    %v7199 = vunpack.c.h.b16 %v7040
    %v7200 = vunpack.c.l.b16 %v7041
    %v7201 = vunpack.c.h.b16 %v7041
    %v7202 = vunpack.c.l.b16 %v7042
    %v7203 = vunpack.c.h.b16 %v7042
    %v7204 = vunpack.c.l.b16 %v7043
    %v7205 = vunpack.c.h.b16 %v7043
    %v7206 = vunpack.c.l.b16 %v7044
    %v7207 = vunpack.c.h.b16 %v7044
    %v7208 = vunpack.c.l.b16 %v7045
    %v7209 = vunpack.c.h.b16 %v7045
    %v7210 = vunpack.c.l.b16 %v7046
    %v7211 = vunpack.c.h.b16 %v7046
    %v7212 = vunpack.c.l.b16 %v7047
    %v7213 = vunpack.c.h.b16 %v7047
    %v7214 = vunpack.c.l.b16 %v7048
    %v7215 = vunpack.c.h.b16 %v7048
    %v7216 = vunpack.c.l.b16 %v7049
    %v7217 = vunpack.c.h.b16 %v7049
    %v7218 = vunpack.c.l.b16 %v7050
    %v7219 = vunpack.c.h.b16 %v7050
    %v7220 = vunpack.c.l.b16 %v7051
    %v7221 = vunpack.c.h.b16 %v7051
    %v7222 = vunpack.c.l.b16 %v7052
    %v7223 = vunpack.c.h.b16 %v7052
    %v7224 = vunpack.c.l.b16 %v7053
    %v7225 = vunpack.c.h.b16 %v7053
    %v7226 = vunpack.c.l.b16 %v7054
    %v7227 = vunpack.c.h.b16 %v7054
    %v7228 = vunpack.c.l.b16 %v7055
    %v7229 = vunpack.c.h.b16 %v7055
    %v7230 = vunpack.c.l.b16 %v7056
    %v7231 = vunpack.c.h.b16 %v7056
    %v7232 = vunpack.c.l.b16 %v7057
    %v7233 = vunpack.c.h.b16 %v7057
    %v7234 = vunpack.c.l.b16 %v7058
    %v7235 = vunpack.c.h.b16 %v7058
    %v7236 = vunpack.c.l.b16 %v7059
    %v7237 = vunpack.c.h.b16 %v7059
    %v7238 = vunpack.c.l.b16 %v7060
    %v7239 = vunpack.c.h.b16 %v7060
    %v7240 = vunpack.c.l.b16 %v7061
    %v7241 = vunpack.c.h.b16 %v7061
    %v7242 = vunpack.c.l.b16 %v7062
    %v7243 = vunpack.c.h.b16 %v7062
    %v7244 = vunpack.c.l.b16 %v7063
    %v7245 = vunpack.c.h.b16 %v7063
    %v7246 = vunpack.c.l.b16 %v7064
    %v7247 = vunpack.c.h.b16 %v7064
    %v7248 = vunpack.c.l.b16 %v7065
    %v7249 = vunpack.c.h.b16 %v7065
    %v7250 = vunpack.c.l.b16 %v7066
    %v7251 = vunpack.c.h.b16 %v7066
    %v7252 = vunpack.c.l.b16 %v7067
    %v7253 = vunpack.c.h.b16 %v7067
    %v7254 = vunpack.c.l.b16 %v7068
    %v7255 = vunpack.c.h.b16 %v7068
    %v7256 = vunpack.c.l.b16 %v7069
    %v7257 = vunpack.c.h.b16 %v7069
    %v7258 = vunpack.c.l.b16 %v7070
    %v7259 = vunpack.c.h.b16 %v7070
    %v7260 = vunpack.c.l.b16 %v7071
    %v7261 = vunpack.c.h.b16 %v7071
    %v7262 = vunpack.c.l.b16 %v7072
    %v7263 = vunpack.c.h.b16 %v7072
    %v7264 = vunpack.c.l.b16 %v7073
    %v7265 = vunpack.c.h.b16 %v7073
    %v7266 = vunpack.c.l.b16 %v7074
    %v7267 = vunpack.c.h.b16 %v7074
    %v7268 = vunpack.c.l.b16 %v7075
    %v7269 = vunpack.c.h.b16 %v7075
    %v7270 = vunpack.c.l.b16 %v7076
    %v7271 = vunpack.c.h.b16 %v7076
    %v7272 = vunpack.c.l.b16 %v7077
    %v7273 = vunpack.c.h.b16 %v7077
    %v7274 = vunpack.c.l.b16 %v7078
    %v7275 = vunpack.c.h.b16 %v7078
    %v7276 = vunpack.c.l.b16 %v7079
    %v7277 = vunpack.c.h.b16 %v7079
    %v7278 = vunpack.c.l.b16 %v7080
    %v7279 = vunpack.c.h.b16 %v7080
    %v7280 = vunpack.c.l.b16 %v7081
    %v7281 = vunpack.c.h.b16 %v7081
    %v7282 = vunpack.c.l.b16 %v7082
    %v7283 = vunpack.c.h.b16 %v7082
    %v7284 = vunpack.c.l.b16 %v7083
    %v7285 = vunpack.c.h.b16 %v7083
    %v7286 = vunpack.c.l.b16 %v7084
    %v7287 = vunpack.c.h.b16 %v7084
    %v7288 = vunpack.c.l.b16 %v7085
    %v7289 = vunpack.c.h.b16 %v7085
    %v7290 = vpack.c.b16 %v7164, %v7162
    %v7291 = vpack.c.b16 %v7165, %v7163
    %v7292 = vpack.c.b16 %v7168, %v7166
    %v7293 = vpack.c.b16 %v7169, %v7167
    %v7294 = vpack.c.b16 %v7172, %v7170
    %v7295 = vpack.c.b16 %v7173, %v7171
    %v7296 = vpack.c.b16 %v7176, %v7174
    %v7297 = vpack.c.b16 %v7177, %v7175
    %v7298 = vpack.c.b16 %v7180, %v7178
    %v7299 = vpack.c.b16 %v7181, %v7179
    %v7300 = vpack.c.b16 %v7184, %v7182
    %v7301 = vpack.c.b16 %v7185, %v7183
    %v7302 = vpack.c.b16 %v7188, %v7186
    %v7303 = vpack.c.b16 %v7189, %v7187
    %v7304 = vpack.c.b16 %v7192, %v7190
    %v7305 = vpack.c.b16 %v7193, %v7191
    %v7306 = vpack.c.b16 %v7196, %v7194
    %v7307 = vpack.c.b16 %v7197, %v7195
    %v7308 = vpack.c.b16 %v7200, %v7198
    %v7309 = vpack.c.b16 %v7201, %v7199
    %v7310 = vpack.c.b16 %v7204, %v7202
    %v7311 = vpack.c.b16 %v7205, %v7203
    %v7312 = vpack.c.b16 %v7208, %v7206
    %v7313 = vpack.c.b16 %v7209, %v7207
    %v7314 = vpack.c.b16 %v7212, %v7210
    %v7315 = vpack.c.b16 %v7213, %v7211
    %v7316 = vpack.c.b16 %v7216, %v7214
    %v7317 = vpack.c.b16 %v7217, %v7215
    %v7318 = vpack.c.b16 %v7220, %v7218
    %v7319 = vpack.c.b16 %v7221, %v7219
    %v7320 = vpack.c.b16 %v7224, %v7222
    %v7321 = vpack.c.b16 %v7225, %v7223
    %v7322 = vpack.c.b16 %v7228, %v7226
    %v7323 = vpack.c.b16 %v7229, %v7227
    %v7324 = vpack.c.b16 %v7232, %v7230
    %v7325 = vpack.c.b16 %v7233, %v7231
    %v7326 = vpack.c.b16 %v7236, %v7234
    %v7327 = vpack.c.b16 %v7237, %v7235
    %v7328 = vpack.c.b16 %v7240, %v7238
    %v7329 = vpack.c.b16 %v7241, %v7239
    %v7330 = vpack.c.b16 %v7244, %v7242
    %v7331 = vpack.c.b16 %v7245, %v7243
    %v7332 = vpack.c.b16 %v7248, %v7246
    %v7333 = vpack.c.b16 %v7249, %v7247
    %v7334 = vpack.c.b16 %v7252, %v7250
    %v7335 = vpack.c.b16 %v7253, %v7251
    %v7336 = vpack.c.b16 %v7256, %v7254
    %v7337 = vpack.c.b16 %v7257, %v7255
    %v7338 = vpack.c.b16 %v7260, %v7258
    %v7339 = vpack.c.b16 %v7261, %v7259
    %v7340 = vpack.c.b16 %v7264, %v7262
    %v7341 = vpack.c.b16 %v7265, %v7263
    %v7342 = vpack.c.b16 %v7268, %v7266
    %v7343 = vpack.c.b16 %v7269, %v7267
    %v7344 = vpack.c.b16 %v7272, %v7270
    %v7345 = vpack.c.b16 %v7273, %v7271
    %v7346 = vpack.c.b16 %v7276, %v7274
    %v7347 = vpack.c.b16 %v7277, %v7275
    %v7348 = vpack.c.b16 %v7280, %v7278
    %v7349 = vpack.c.b16 %v7281, %v7279
    %v7350 = vpack.c.b16 %v7284, %v7282
    %v7351 = vpack.c.b16 %v7285, %v7283
    %v7352 = vpack.c.b16 %v7288, %v7286
    %v7353 = vpack.c.b16 %v7289, %v7287
    %7418 = vmatprep.subr.bf16.mxu0 %v7291
    %7419 = vmatpush1.bf16.msra.mxu0 %v7290
    %7420 = vmatprep.subr.bf16.mxu0 %v7293
    %7421 = vmatpush1.bf16.msra.mxu0 %v7292
    %7422 = vmatprep.subr.bf16.mxu0 %v7295
    %7423 = vmatpush1.bf16.msra.mxu0 %v7294
    %7424 = vmatprep.subr.bf16.mxu0 %v7297
    %7425 = vmatpush1.bf16.msra.mxu0 %v7296
    %7426 = vmatprep.subr.bf16.mxu0 %v7299
    %7427 = vmatpush1.bf16.msra.mxu0 %v7298
    %7428 = vmatprep.subr.bf16.mxu0 %v7301
    %7429 = vmatpush1.bf16.msra.mxu0 %v7300
    %7430 = vmatprep.subr.bf16.mxu0 %v7303
    %7431 = vmatpush1.bf16.msra.mxu0 %v7302
    %7432 = vmatprep.subr.bf16.mxu0 %v7305
    %7433 = vmatpush1.bf16.msra.mxu0 %v7304
    %7434 = vmatprep.subr.bf16.mxu0 %v7307
    %7435 = vmatpush1.bf16.msra.mxu0 %v7306
    %7436 = vmatprep.subr.bf16.mxu0 %v7309
    %7437 = vmatpush1.bf16.msra.mxu0 %v7308
    %7438 = vmatprep.subr.bf16.mxu0 %v7311
    %7439 = vmatpush1.bf16.msra.mxu0 %v7310
    %7440 = vmatprep.subr.bf16.mxu0 %v7313
    %7441 = vmatpush1.bf16.msra.mxu0 %v7312
    %7442 = vmatprep.subr.bf16.mxu0 %v7315
    %7443 = vmatpush1.bf16.msra.mxu0 %v7314
    %7444 = vmatprep.subr.bf16.mxu0 %v7317
    %7445 = vmatpush1.bf16.msra.mxu0 %v7316
    %7446 = vmatprep.subr.bf16.mxu0 %v7319
    %7447 = vmatpush1.bf16.msra.mxu0 %v7318
    %7448 = vmatprep.subr.bf16.mxu0 %v7321
    %7449 = vmatpush1.bf16.msra.mxu0 %v7320
    %7450 = vmatprep.mubr.bf16.mxu0 %v7019
    %7451 = vmatmul.mubr.bf16.gmra.mrb[0].mxu0 %v7018
    %v7452 = vpop.f32.mrb[0].mxu0
    %v7453 = vadd.f32 %v7091, %v7452
    %v7454 = vpop.f32.mrb[0].mxu0
    %v7455 = vadd.f32 %v7095, %v7454
    %v7456 = vpop.f32.mrb[0].mxu0
    %v7457 = vpop.f32.mrb[0].mxu0
    %7458 = vdwg.mxu0
    %7459 = vmatprep.subr.bf16.mxu0 %v7323
    %7460 = vmatpush1.bf16.msra.mxu0 %v7322
    %7461 = vmatprep.subr.bf16.mxu0 %v7325
    %7462 = vmatpush1.bf16.msra.mxu0 %v7324
    %7463 = vmatprep.subr.bf16.mxu0 %v7327
    %7464 = vmatpush1.bf16.msra.mxu0 %v7326
    %7465 = vmatprep.subr.bf16.mxu0 %v7329
    %7466 = vmatpush1.bf16.msra.mxu0 %v7328
    %7467 = vmatprep.subr.bf16.mxu0 %v7331
    %7468 = vmatpush1.bf16.msra.mxu0 %v7330
    %7469 = vmatprep.subr.bf16.mxu0 %v7333
    %7470 = vmatpush1.bf16.msra.mxu0 %v7332
    %7471 = vmatprep.subr.bf16.mxu0 %v7335
    %7472 = vmatpush1.bf16.msra.mxu0 %v7334
    %7473 = vmatprep.subr.bf16.mxu0 %v7337
    %7474 = vmatpush1.bf16.msra.mxu0 %v7336
    %7475 = vmatprep.subr.bf16.mxu0 %v7339
    %7476 = vmatpush1.bf16.msra.mxu0 %v7338
    %7477 = vmatprep.subr.bf16.mxu0 %v7341
    %7478 = vmatpush1.bf16.msra.mxu0 %v7340
    %7479 = vmatprep.subr.bf16.mxu0 %v7343
    %7480 = vmatpush1.bf16.msra.mxu0 %v7342
    %7481 = vmatprep.subr.bf16.mxu0 %v7345
    %7482 = vmatpush1.bf16.msra.mxu0 %v7344
    %7483 = vmatprep.subr.bf16.mxu0 %v7347
    %7484 = vmatpush1.bf16.msra.mxu0 %v7346
    %7485 = vmatprep.subr.bf16.mxu0 %v7349
    %7486 = vmatpush1.bf16.msra.mxu0 %v7348
    %7487 = vmatprep.subr.bf16.mxu0 %v7351
    %7488 = vmatpush1.bf16.msra.mxu0 %v7350
    %7489 = vmatprep.subr.bf16.mxu0 %v7353
    %7490 = vmatpush1.bf16.msra.mxu0 %v7352
    %7491 = vmatprep.mubr.bf16.mxu0 %v7021
    %7492 = vmatmul.mubr.bf16.gmra.mrb[0].mxu0 %v7020
    %v7493 = vpop.f32.mrb[0].mxu0
    %v7494 = vadd.f32 %v7453, %v7493
    %v7495 = vpop.f32.mrb[0].mxu0
    %v7496 = vadd.f32 %v7455, %v7495
    %v7497 = vpop.f32.mrb[0].mxu0
    %v7498 = vpop.f32.mrb[0].mxu0
    %7499 = vdwg.mxu0
    %v7500 = vmax.f32 %v7494, 0.0
    %v7501 = vmax.f32 %v7496, 0.0
    %v7502 = vpack.c.bf16 %v7500, %v7500
    %v7503 = vpack.c.bf16 %v7501, %v7501
    %v7504 = vld [vmem:[#allocation33] sm:$0xf]
    %v7505 = vld [vmem:[#allocation33 + $0x4] sm:$0xf]
    %v7506 = vld [vmem:[#allocation33 + $0x8] sm:$0xf]
    %v7507 = vld [vmem:[#allocation33 + $0xc] sm:$0xf]
    %v7508 = vld [vmem:[#allocation33 + $0x10] sm:$0xf]
    %v7509 = vld [vmem:[#allocation33 + $0x14] sm:$0xf]
    %v7510 = vld [vmem:[#allocation33 + $0x18] sm:$0xf]
    %v7511 = vld [vmem:[#allocation33 + $0x1c] sm:$0xf]
    %v7512 = vld [vmem:[#allocation33 + $0x20] sm:$0xf]
    %v7513 = vld [vmem:[#allocation33 + $0x24] sm:$0xf]
    %v7514 = vld [vmem:[#allocation33 + $0x28] sm:$0xf]
    %v7515 = vld [vmem:[#allocation33 + $0x2c] sm:$0xf]
    %v7516 = vld [vmem:[#allocation33 + $0x30] sm:$0xf]
    %v7517 = vld [vmem:[#allocation33 + $0x34] sm:$0xf]
    %v7518 = vld [vmem:[#allocation33 + $0x38] sm:$0xf]
    %v7519 = vld [vmem:[#allocation33 + $0x3c] sm:$0xf]
    %v7520 = vld [vmem:[#allocation33 + $0x40] sm:$0xf]
    %v7521 = vld [vmem:[#allocation33 + $0x44] sm:$0xf]
    %v7522 = vld [vmem:[#allocation33 + $0x48] sm:$0xf]
    %v7523 = vld [vmem:[#allocation33 + $0x4c] sm:$0xf]
    %v7524 = vld [vmem:[#allocation33 + $0x50] sm:$0xf]
    %v7525 = vld [vmem:[#allocation33 + $0x54] sm:$0xf]
    %v7526 = vld [vmem:[#allocation33 + $0x58] sm:$0xf]
    %v7527 = vld [vmem:[#allocation33 + $0x5c] sm:$0xf]
    %v7528 = vld [vmem:[#allocation33 + $0x60] sm:$0xf]
    %v7529 = vld [vmem:[#allocation33 + $0x64] sm:$0xf]
    %v7530 = vld [vmem:[#allocation33 + $0x68] sm:$0xf]
    %v7531 = vld [vmem:[#allocation33 + $0x6c] sm:$0xf]
    %v7532 = vld [vmem:[#allocation33 + $0x70] sm:$0xf]
    %v7533 = vld [vmem:[#allocation33 + $0x74] sm:$0xf]
    %v7534 = vld [vmem:[#allocation33 + $0x78] sm:$0xf]
    %v7535 = vld [vmem:[#allocation33 + $0x7c] sm:$0xf]
    %v7536 = vld [vmem:[#allocation34] sm:$0x1]
    %v7538 = vlaneseq
    %v7539 = vshrl.u32 %v7538, 7
    %v7540 = vsub.s32 0, %v7539
    %v7541 = vrot.slane %v7536, %v7540
    %v7575 = vunpack.c.l.b16 %v7504
    %v7576 = vunpack.c.l.b16 %v7505
    %v7577 = vunpack.c.l.b16 %v7506
    %v7578 = vunpack.c.l.b16 %v7507
    %v7579 = vunpack.c.l.b16 %v7508
    %v7580 = vunpack.c.l.b16 %v7509
    %v7581 = vunpack.c.l.b16 %v7510
    %v7582 = vunpack.c.l.b16 %v7511
    %v7583 = vunpack.c.l.b16 %v7512
    %v7584 = vunpack.c.l.b16 %v7513
    %v7585 = vunpack.c.l.b16 %v7514
    %v7586 = vunpack.c.l.b16 %v7515
    %v7587 = vunpack.c.l.b16 %v7516
    %v7588 = vunpack.c.l.b16 %v7517
    %v7589 = vunpack.c.l.b16 %v7518
    %v7590 = vunpack.c.l.b16 %v7519
    %v7591 = vunpack.c.l.b16 %v7520
    %v7592 = vunpack.c.l.b16 %v7521
    %v7593 = vunpack.c.l.b16 %v7522
    %v7594 = vunpack.c.l.b16 %v7523
    %v7595 = vunpack.c.l.b16 %v7524
    %v7596 = vunpack.c.l.b16 %v7525
    %v7597 = vunpack.c.l.b16 %v7526
    %v7598 = vunpack.c.l.b16 %v7527
    %v7599 = vunpack.c.l.b16 %v7528
    %v7600 = vunpack.c.l.b16 %v7529
    %v7601 = vunpack.c.l.b16 %v7530
    %v7602 = vunpack.c.l.b16 %v7531
    %v7603 = vunpack.c.l.b16 %v7532
    %v7604 = vunpack.c.l.b16 %v7533
    %v7605 = vunpack.c.l.b16 %v7534
    %v7606 = vunpack.c.l.b16 %v7535
    %v7607 = vpack.c.b16 %v7576, %v7575
    %v7608 = vpack.c.b16 %v7578, %v7577
    %v7609 = vpack.c.b16 %v7580, %v7579
    %v7610 = vpack.c.b16 %v7582, %v7581
    %v7611 = vpack.c.b16 %v7584, %v7583
    %v7612 = vpack.c.b16 %v7586, %v7585
    %v7613 = vpack.c.b16 %v7588, %v7587
    %v7614 = vpack.c.b16 %v7590, %v7589
    %v7615 = vpack.c.b16 %v7592, %v7591
    %v7616 = vpack.c.b16 %v7594, %v7593
    %v7617 = vpack.c.b16 %v7596, %v7595
    %v7618 = vpack.c.b16 %v7598, %v7597
    %v7619 = vpack.c.b16 %v7600, %v7599
    %v7620 = vpack.c.b16 %v7602, %v7601
    %v7621 = vpack.c.b16 %v7604, %v7603
    %v7622 = vpack.c.b16 %v7606, %v7605
    %7639 = vmatprep.subr.bf16.mxu0 0
    %7640 = vmatpush1.bf16.msra.mxu0 %v7607
    %7641 = vmatprep.subr.bf16.mxu0 0
    %7642 = vmatpush1.bf16.msra.mxu0 %v7608
    %7643 = vmatprep.subr.bf16.mxu0 0
    %7644 = vmatpush1.bf16.msra.mxu0 %v7609
    %7645 = vmatprep.subr.bf16.mxu0 0
    %7646 = vmatpush1.bf16.msra.mxu0 %v7610
    %7647 = vmatprep.subr.bf16.mxu0 0
    %7648 = vmatpush1.bf16.msra.mxu0 %v7611
    %7649 = vmatprep.subr.bf16.mxu0 0
    %7650 = vmatpush1.bf16.msra.mxu0 %v7612
    %7651 = vmatprep.subr.bf16.mxu0 0
    %7652 = vmatpush1.bf16.msra.mxu0 %v7613
    %7653 = vmatprep.subr.bf16.mxu0 0
    %7654 = vmatpush1.bf16.msra.mxu0 %v7614
    %7655 = vmatprep.subr.bf16.mxu0 0
    %7656 = vmatpush1.bf16.msra.mxu0 %v7615
    %7657 = vmatprep.subr.bf16.mxu0 0
    %7658 = vmatpush1.bf16.msra.mxu0 %v7616
    %7659 = vmatprep.subr.bf16.mxu0 0
    %7660 = vmatpush1.bf16.msra.mxu0 %v7617
    %7661 = vmatprep.subr.bf16.mxu0 0
    %7662 = vmatpush1.bf16.msra.mxu0 %v7618
    %7663 = vmatprep.subr.bf16.mxu0 0
    %7664 = vmatpush1.bf16.msra.mxu0 %v7619
    %7665 = vmatprep.subr.bf16.mxu0 0
    %7666 = vmatpush1.bf16.msra.mxu0 %v7620
    %7667 = vmatprep.subr.bf16.mxu0 0
    %7668 = vmatpush1.bf16.msra.mxu0 %v7621
    %7669 = vmatprep.subr.bf16.mxu0 0
    %7670 = vmatpush1.bf16.msra.mxu0 %v7622
    %7671 = vmatprep.mubr.bf16.mxu0 %v7503
    %7672 = vmatmul.mubr.bf16.gmra.mrb[0].mxu0 %v7502
    %v7673 = vpop.f32.mrb[0].mxu0
    %v7674 = vadd.f32 %v7541, %v7673
    %v7675 = vpop.f32.mrb[0].mxu0
    %v7676 = vpop.f32.mrb[0].mxu0
    %v7677 = vpop.f32.mrb[0].mxu0
    %7678 = vdwg.mxu0
    %v7679 = vmax.f32 %v7674, 0.0
    %v7680 = vpack.c.bf16 %v7679, %v7679
    %v7681 = vld [vmem:[#allocation36] sm:$0xf]
    %v7682 = vld [vmem:[#allocation36 + $0x4] sm:$0xf]
    %v7683 = vld [vmem:[#allocation36 + $0x8] sm:$0xf]
    %v7684 = vld [vmem:[#allocation36 + $0xc] sm:$0xf]
    %v7685 = vld [vmem:[#allocation36 + $0x10] sm:$0xf]
    %v7686 = vld [vmem:[#allocation36 + $0x14] sm:$0xf]
    %v7687 = vld [vmem:[#allocation36 + $0x18] sm:$0xf]
    %v7688 = vld [vmem:[#allocation36 + $0x1c] sm:$0xf]
    %v7689 = vld [vmem:[#allocation36 + $0x20] sm:$0xf]
    %v7690 = vld [vmem:[#allocation36 + $0x24] sm:$0xf]
    %v7691 = vld [vmem:[#allocation36 + $0x28] sm:$0xf]
    %v7692 = vld [vmem:[#allocation36 + $0x2c] sm:$0xf]
    %v7693 = vld [vmem:[#allocation36 + $0x30] sm:$0xf]
    %v7694 = vld [vmem:[#allocation36 + $0x34] sm:$0xf]
    %v7695 = vld [vmem:[#allocation36 + $0x38] sm:$0xf]
    %v7696 = vld [vmem:[#allocation36 + $0x3c] sm:$0xf]
    %v7697 = vld [vmem:[#allocation37] sm:$0x1]
    %v7699 = vlaneseq
    %v7700 = vshrl.u32 %v7699, 7
    %v7701 = vsub.s32 0, %v7700
    %v7702 = vrot.slane %v7697, %v7701
    %v7720 = vunpack.c.l.b16 %v7681
    %v7721 = vunpack.c.l.b16 %v7682
    %v7722 = vunpack.c.l.b16 %v7683
    %v7723 = vunpack.c.l.b16 %v7684
    %v7724 = vunpack.c.l.b16 %v7685
    %v7725 = vunpack.c.l.b16 %v7686
    %v7726 = vunpack.c.l.b16 %v7687
    %v7727 = vunpack.c.l.b16 %v7688
    %v7728 = vunpack.c.l.b16 %v7689
    %v7729 = vunpack.c.l.b16 %v7690
    %v7730 = vunpack.c.l.b16 %v7691
    %v7731 = vunpack.c.l.b16 %v7692
    %v7732 = vunpack.c.l.b16 %v7693
    %v7733 = vunpack.c.l.b16 %v7694
    %v7734 = vunpack.c.l.b16 %v7695
    %v7735 = vunpack.c.l.b16 %v7696
    %v7736 = vpack.c.b16 %v7721, %v7720
    %v7737 = vpack.c.b16 %v7723, %v7722
    %v7738 = vpack.c.b16 %v7725, %v7724
    %v7739 = vpack.c.b16 %v7727, %v7726
    %v7740 = vpack.c.b16 %v7729, %v7728
    %v7741 = vpack.c.b16 %v7731, %v7730
    %v7742 = vpack.c.b16 %v7733, %v7732
    %v7743 = vpack.c.b16 %v7735, %v7734
    %7752 = vmatprep.subr.bf16.mxu0 0
    %7753 = vmatpush1.bf16.msra.mxu0 %v7736
    %7754 = vmatprep.subr.bf16.mxu0 0
    %7755 = vmatpush1.bf16.msra.mxu0 %v7737
    %7756 = vmatprep.subr.bf16.mxu0 0
    %7757 = vmatpush1.bf16.msra.mxu0 %v7738
    %7758 = vmatprep.subr.bf16.mxu0 0
    %7759 = vmatpush1.bf16.msra.mxu0 %v7739
    %7760 = vmatprep.subr.bf16.mxu0 0
    %7761 = vmatpush1.bf16.msra.mxu0 %v7740
    %7762 = vmatprep.subr.bf16.mxu0 0
    %7763 = vmatpush1.bf16.msra.mxu0 %v7741
    %7764 = vmatprep.subr.bf16.mxu0 0
    %7765 = vmatpush1.bf16.msra.mxu0 %v7742
    %7766 = vmatprep.subr.bf16.mxu0 0
    %7767 = vmatpush1.bf16.msra.mxu0 %v7743
    %7768 = vmatprep.subr.bf16.mxu0 0
    %7769 = vmatpush1.bf16.msra.mxu0 0
    %7770 = vmatprep.subr.bf16.mxu0 0
    %7771 = vmatpush1.bf16.msra.mxu0 0
    %7772 = vmatprep.subr.bf16.mxu0 0
    %7773 = vmatpush1.bf16.msra.mxu0 0
    %7774 = vmatprep.subr.bf16.mxu0 0
    %7775 = vmatpush1.bf16.msra.mxu0 0
    %7776 = vmatprep.subr.bf16.mxu0 0
    %7777 = vmatpush1.bf16.msra.mxu0 0
    %7778 = vmatprep.subr.bf16.mxu0 0
    %7779 = vmatpush1.bf16.msra.mxu0 0
    %7780 = vmatprep.subr.bf16.mxu0 0
    %7781 = vmatpush1.bf16.msra.mxu0 0
    %7782 = vmatprep.subr.bf16.mxu0 0
    %7783 = vmatpush1.bf16.msra.mxu0 0
    %7784 = vmatprep.mubr.bf16.mxu0 0
    %7785 = vmatmul.mubr.bf16.gmra.mrb[0].mxu0 %v7680
    %v7786 = vpop.f32.mrb[0].mxu0
    %v7787 = vadd.f32 %v7702, %v7786
    %v7788 = vpop.f32.mrb[0].mxu0
    %v7789 = vpop.f32.mrb[0].mxu0
    %v7790 = vpop.f32.mrb[0].mxu0
    %7791 = vdwg.mxu0
    %7792 = vst [vmem:[#allocation39] sm:$0xff] %v7787
    // Predicated region
    $region186: #{tpu_custom_call.1} parent=1 // pred_check
      _
    $region187: #{tpu_custom_call.1} parent=1 // pred_check_branch
      %7794 = sbr.rel (0) target = $region189
    $region188: #{tpu_custom_call.1} parent=1 // pred_region
      %s7796 = ssub.s32 128, 128
      %7797 = vsyncadd [#allocation6], %s7796
      %s7799 = sshll.u32 [#allocation39], 4
      %s7800 = int_to_ptr.vmem [resolvable:$true] %s7799
      %7802 = dma.vmem_to_hbm [thread:$0]  %s7800, 128, %s24, [#allocation6]
    $region189: #{tpu_custom_call.1} parent=1 // pred_fallthru
      _
    // Predicated region
    $region190: #{tpu_custom_call.1} parent=1 // pred_check
      _
    $region191: #{tpu_custom_call.1} parent=1 // pred_check_branch
      %7804 = sbr.rel (0) target = $region193
    $region192: #{tpu_custom_call.1} parent=1 // pred_region
      %7805 = dma.done [#allocation6], 128
    $region193: #{tpu_custom_call.1} parent=1 // pred_fallthru
      _
    %7806 = vsyncpa [#allocation5], 1
    %7807 = vsyncpa [#allocation8], 1
    %7808 = vsyncpa [#allocation11], 1
    %7809 = vsyncpa [#allocation14], 1
    %7810 = vsyncpa [#allocation17], 1
    %7811 = vsyncpa [#allocation20], 1
    %7812 = vsyncpa [#allocation23], 1
    %7813 = vsyncpa [#allocation26], 1
    %7814 = vsyncpa [#allocation29], 1
    %7815 = vsyncpa [#allocation32], 1
    %7816 = vsyncpa [#allocation35], 1
    %7817 = vsyncpa [#allocation38], 1
    %7818 = vsyncpa [#allocation6], 1

</llo_original>
